<compile_context>
chip_gen: v6e
topology: v6e:2x2x1
jax: 0.10.0
libtpu: 0.0.40
codegen_flags: <defaults>
</compile_context>

<pallas_src>
import functools
import math

import jax
import jax.numpy as jnp
from jax import lax
from jax.experimental import pallas as pl
from jax.experimental.pallas import tpu as pltpu


# ----------------------------------------------------------------------------
# In-kernel helpers.
#
# Layout: one image is a (C, L) array.  In block b (dilation f = 2^(b-1)) the
# logical pixel (iy, ix) of that block's input lives at lane f*(iy*W0 + ix),
# where W0 is the ORIGINAL image width.  All other lanes are finite don't-care
# values; the wrapper extracts only the valid anchors.
# ----------------------------------------------------------------------------
def _conv3x3(x, w_ref, b_ref, stack_ref, width, f):
    """3x3 VALID conv (dilated layout) as one wide-K MXU matmul.

    x:         (Cin, Lin) value.
    w_ref:     (Cout, 9*Cin) ref, taps stacked (dy, dx, cin)-major.
    b_ref:     (Cout, 1) ref.
    stack_ref: shared (>=9*Cin, >=Lin) VMEM scratch (im2col stack).
    Returns (Cout, Lout), Lout = Lin - f*(2*width+2).  Valid conv outputs sit
    at lanes f*(oy*width+ox); everything else is don't-care (but finite).
    """
    cin, lin = x.shape
    lout = lin - f * (2 * width + 2)
    for dy in range(3):
        for dx in range(3):
            k = dy * 3 + dx
            s = f * (dy * width + dx)          # tap shift = pure lane offset
            stack_ref[k * cin:(k + 1) * cin, :lout] = x[:, s:s + lout]
    acc = jnp.dot(w_ref[...], stack_ref[:9 * cin, :lout],
                  preferred_element_type=jnp.float32)
    return acc + b_ref[...]


def _maxpool2x2(y, width, f):
    """2x2/2 maxpool in flat coords.

    y: (C, Lin).  Result (C, Lin - f*(width+1)); pooled value for pooled pixel
    (py, px) sits at lane 2f*(py*width+px) (i.e. the next block's dilation).
    """
    _, lin = y.shape
    l1 = lin - f
    m1 = jnp.maximum(y[:, :l1], y[:, f:f + l1])
    lp = l1 - f * width
    return jnp.maximum(m1[:, :lp], m1[:, f * width:f * width + lp])


def _encoder_kernel(x_ref,
                    w11, b11, w12, b12,
                    w21, b21, w22, b22,
                    w31, b31, w32, b32,
                    o1_ref, o2_ref, o3_ref,
                    stack_ref, *, width):
    """Whole encoder (3 blocks) for one image, entirely in VMEM."""
    x = x_ref[0]                                           # (C0, H0*W0)

    # ---- block 1 (dense layout, f = 1) ----
    h = jnp.maximum(_conv3x3(x, w11, b11, stack_ref, width, 1), 0.0)
    y = _conv3x3(h, w12, b12, stack_ref, width, 1)
    o1_ref[0] = y                                          # skip output 1
    p = _maxpool2x2(y, width, 1)

    # ---- block 2 (stride-2 dilated layout, f = 2) ----
    h = jnp.maximum(_conv3x3(p, w21, b21, stack_ref, width, 2), 0.0)
    y = _conv3x3(h, w22, b22, stack_ref, width, 2)
    o2_ref[0] = y                                          # skip output 2
    p = _maxpool2x2(y, width, 2)

    # ---- block 3 (stride-4 dilated layout, f = 4) ----
    h = jnp.maximum(_conv3x3(p, w31, b31, stack_ref, width, 4), 0.0)
    y = _conv3x3(h, w32, b32, stack_ref, width, 4)
    o3_ref[0] = y                                          # skip output 3


# ----------------------------------------------------------------------------
# Parameters (PyTorch-default-like init) and pre-packing.
# ----------------------------------------------------------------------------
def init_params(key, channels=(1, 16, 32, 64)):
    params = []
    for i in range(len(channels) - 1):
        cin, cout = channels[i], channels[i + 1]
        key, k1, k2, k3, k4 = jax.random.split(key, 5)
        bound1 = 1.0 / math.sqrt(cin * 9)
        w1 = jax.random.uniform(k1, (3, 3, cin, cout), jnp.float32,
                                -bound1, bound1)
        b1 = jax.random.uniform(k2, (cout,), jnp.float32, -bound1, bound1)
        bound2 = 1.0 / math.sqrt(cout * 9)
        w2 = jax.random.uniform(k3, (3, 3, cout, cout), jnp.float32,
                                -bound2, bound2)
        b2 = jax.random.uniform(k4, (cout,), jnp.float32, -bound2, bound2)
        params.append((w1, b1, w2, b2))
    return params


def prepare_params(raw_params):
    """Pre-stack HWIO weights to (Cout, 9*Cin), biases to (Cout, 1)."""
    prepped = []
    for (w1, b1, w2, b2) in raw_params:
        cin, cout = w1.shape[2], w1.shape[3]
        w1w = jnp.transpose(w1, (3, 0, 1, 2)).reshape(cout, 9 * cin)
        w2w = jnp.transpose(w2, (3, 0, 1, 2)).reshape(cout, 9 * cout)
        prepped.append((w1w, b1.reshape(cout, 1), w2w, b2.reshape(cout, 1)))
    return prepped


# ----------------------------------------------------------------------------
# Forward pass: one pallas_call + cheap per-output unpack.
# ----------------------------------------------------------------------------
def _extract(res, h_out, w_out, f, w0):
    """Pull the dense (N, C, h_out, w_out) block output out of the flat plane."""
    n, c, l = res.shape
    row = f * w0
    need = h_out * row
    r = jnp.pad(res, ((0, 0), (0, 0), (0, need - l)))
    r = r.reshape(n, c, h_out, row)
    return r[:, :, :, 0:f * w_out:f]


def encoder_forward(prepped_params, x_nchw):
    """Reproduces Encoder.forward: returns the list of pre-pool block outputs."""
    assert len(prepped_params) == 3, "kernel is specialized to 3 encoder blocks"
    n, c0, h0, w0 = x_nchw.shape
    l0 = h0 * w0
    x = x_nchw.reshape(n, c0, l0)                # channel-major flat (free)

    factors = (1, 2, 4)
    widths, sizes = [], []
    l, h, w = l0, h0, w0
    for f in factors:
        l -= 2 * f * (2 * w0 + 2)                # two 3x3 VALID convs
        h, w = h - 4, w - 4
        widths.append(l)
        sizes.append((h, w))
        if f != factors[-1]:
            l -= f * (w0 + 1)                    # 2x2 maxpool
            h, w = h // 2, w // 2
    assert h >= 1 and w >= 1 and all(wd > 0 for wd in widths), "input too small"

    (w11, b11, w12, b12), (w21, b21, w22, b22), (w31, b31, w32, b32) = \
        prepped_params
    c1, c2, c3 = w11.shape[0], w21.shape[0], w31.shape[0]

    kern = functools.partial(_encoder_kernel, width=w0)
    data = lambda c, ln: pl.BlockSpec((1, c, ln), lambda i: (i, 0, 0))
    wspec = lambda a: pl.BlockSpec(a.shape, lambda i: (0, 0))

    res = pl.pallas_call(
        kern,
        out_shape=(jax.ShapeDtypeStruct((n, c1, widths[0]), jnp.float32),
                   jax.ShapeDtypeStruct((n, c2, widths[1]), jnp.float32),
                   jax.ShapeDtypeStruct((n, c3, widths[2]), jnp.float32)),
        grid=(n,),
        in_specs=[data(c0, l0),
                  wspec(w11), wspec(b11), wspec(w12), wspec(b12),
                  wspec(w21), wspec(b21), wspec(w22), wspec(b22),
                  wspec(w31), wspec(b31), wspec(w32), wspec(b32)],
        out_specs=(data(c1, widths[0]), data(c2, widths[1]),
                   data(c3, widths[2])),
        scratch_shapes=[pltpu.VMEM((9 * c3, l0), jnp.float32)],
        compiler_params=pltpu.CompilerParams(
            dimension_semantics=("parallel",),
            vmem_limit_bytes=32 * 1024 * 1024),
    )(x, w11, b11, w12, b12, w21, b21, w22, b22, w31, b31, w32, b32)

    return [_extract(r, hh, ww, f, w0)
            for r, (hh, ww), f in zip(res, sizes, factors)]


# ----------------------------------------------------------------------------
# Plain-JAX reference (correctness check only).
# ----------------------------------------------------------------------------
def encoder_reference(raw_params, x_nchw):
    x = jnp.transpose(x_nchw, (0, 2, 3, 1))
    dn = ('NHWC', 'HWIO', 'NHWC')
    outs = []
    for (w1, b1, w2, b2) in raw_params:
        h = lax.conv_general_dilated(x, w1, (1, 1), 'VALID',
                                     dimension_numbers=dn) + b1
        h = jnp.maximum(h, 0.0)
        y = lax.conv_general_dilated(h, w2, (1, 1), 'VALID',
                                     dimension_numbers=dn) + b2
        outs.append(jnp.transpose(y, (0, 3, 1, 2)))
        x = lax.reduce_window(y, -jnp.inf, lax.max,
                              (1, 2, 2, 1), (1, 2, 2, 1), 'VALID')
    return outs


if __name__ == "__main__":
    key = jax.random.PRNGKey(0)
    pkey, xkey = jax.random.split(key)
    raw_params = init_params(pkey, channels=(1, 16, 32, 64))
    prepped = prepare_params(raw_params)

    # NCHW input like the PyTorch module.  36x36 keeps every conv/pool valid:
    # block outputs are (2,16,32,32), (2,32,12,12), (2,64,2,2).
    x = jax.random.normal(xkey, (2, 1, 36, 36), jnp.float32)

    fwd = jax.jit(encoder_forward)
    outs = jax.block_until_ready(fwd(prepped, x))

    refs = encoder_reference(raw_params, x)
    expected_shapes = [(2, 16, 32, 32), (2, 32, 12, 12), (2, 64, 2, 2)]
    for o, r, es in zip(outs, refs, expected_shapes):
        assert o.shape == es, (o.shape, es)
        assert jnp.allclose(o, r, rtol=1e-3, atol=1e-3), \
            float(jnp.max(jnp.abs(o - r)))

    print("KERNEL_OK")
</pallas_src>

<mosaic_0001>
module attributes {stable_mosaic.version = 11 : i64} {
  func.func @_encoder_kernel(%arg0: i32, %arg1: memref<1x1x1296xf32, #tpu.memory_space<vmem>>, %arg2: memref<16x9xf32, #tpu.memory_space<vmem>>, %arg3: memref<16x1xf32, #tpu.memory_space<vmem>>, %arg4: memref<16x144xf32, #tpu.memory_space<vmem>>, %arg5: memref<16x1xf32, #tpu.memory_space<vmem>>, %arg6: memref<32x144xf32, #tpu.memory_space<vmem>>, %arg7: memref<32x1xf32, #tpu.memory_space<vmem>>, %arg8: memref<32x288xf32, #tpu.memory_space<vmem>>, %arg9: memref<32x1xf32, #tpu.memory_space<vmem>>, %arg10: memref<64x288xf32, #tpu.memory_space<vmem>>, %arg11: memref<64x1xf32, #tpu.memory_space<vmem>>, %arg12: memref<64x576xf32, #tpu.memory_space<vmem>>, %arg13: memref<64x1xf32, #tpu.memory_space<vmem>>, %arg14: memref<1x16x1148xf32, #tpu.memory_space<vmem>>, %arg15: memref<1x32x815xf32, #tpu.memory_space<vmem>>, %arg16: memref<1x64x149xf32, #tpu.memory_space<vmem>>, %arg17: memref<576x1296xf32, #tpu.memory_space<vmem>>) attributes {dimension_semantics = [#tpu.dimension_semantics<parallel>], iteration_bounds = array<i64: 2>, scalar_prefetch = 0 : i64, scratch_operands = 1 : i64, tpu.core_type = #tpu.core_type<tc>, window_params = [{transform_indices = @transform_0, window_bounds = array<i64: 1, 1, 1296>}, {pipeline_mode = #tpu.pipeline_mode<synchronous>, transform_indices = @transform_1, window_bounds = array<i64: 16, 9>}, {pipeline_mode = #tpu.pipeline_mode<synchronous>, transform_indices = @transform_2, window_bounds = array<i64: 16, 1>}, {pipeline_mode = #tpu.pipeline_mode<synchronous>, transform_indices = @transform_3, window_bounds = array<i64: 16, 144>}, {pipeline_mode = #tpu.pipeline_mode<synchronous>, transform_indices = @transform_4, window_bounds = array<i64: 16, 1>}, {pipeline_mode = #tpu.pipeline_mode<synchronous>, transform_indices = @transform_5, window_bounds = array<i64: 32, 144>}, {pipeline_mode = #tpu.pipeline_mode<synchronous>, transform_indices = @transform_6, window_bounds = array<i64: 32, 1>}, {pipeline_mode = #tpu.pipeline_mode<synchronous>, transform_indices = @transform_7, window_bounds = array<i64: 32, 288>}, {pipeline_mode = #tpu.pipeline_mode<synchronous>, transform_indices = @transform_8, window_bounds = array<i64: 32, 1>}, {pipeline_mode = #tpu.pipeline_mode<synchronous>, transform_indices = @transform_9, window_bounds = array<i64: 64, 288>}, {pipeline_mode = #tpu.pipeline_mode<synchronous>, transform_indices = @transform_10, window_bounds = array<i64: 64, 1>}, {pipeline_mode = #tpu.pipeline_mode<synchronous>, transform_indices = @transform_11, window_bounds = array<i64: 64, 576>}, {pipeline_mode = #tpu.pipeline_mode<synchronous>, transform_indices = @transform_12, window_bounds = array<i64: 64, 1>}, {transform_indices = @transform_13, window_bounds = array<i64: 1, 16, 1148>}, {transform_indices = @transform_14, window_bounds = array<i64: 1, 32, 815>}, {transform_indices = @transform_15, window_bounds = array<i64: 1, 64, 149>}]} {
    %c0 = arith.constant 0 : index
    %c0_0 = arith.constant 0 : index
    %c0_1 = arith.constant 0 : index
    %0 = vector.load %arg1[%c0, %c0_0, %c0_1] : memref<1x1x1296xf32, #tpu.memory_space<vmem>>, vector<1x1x1296xf32>
    %1 = vector.shape_cast %0 : vector<1x1x1296xf32> to vector<1x1296xf32>
    %2 = vector.extract_strided_slice %1 {offsets = [0, 0], sizes = [1, 1222], strides = [1, 1]} : vector<1x1296xf32> to vector<1x1222xf32>
    %c0_2 = arith.constant 0 : index
    %c0_3 = arith.constant 0 : index
    %3 = vector.load %arg17[%c0_2, %c0_3] : memref<576x1296xf32, #tpu.memory_space<vmem>>, vector<1x1222xf32>
    tpu.vector_store %arg17[%c0_2, %c0_3], %2 {strides = array<i32>} : memref<576x1296xf32, #tpu.memory_space<vmem>>, vector<1x1222xf32>,
    %4 = vector.extract_strided_slice %1 {offsets = [0, 1], sizes = [1, 1222], strides = [1, 1]} : vector<1x1296xf32> to vector<1x1222xf32>
    %c1 = arith.constant 1 : index
    %c0_4 = arith.constant 0 : index
    %5 = vector.load %arg17[%c1, %c0_4] : memref<576x1296xf32, #tpu.memory_space<vmem>>, vector<1x1222xf32>
    tpu.vector_store %arg17[%c1, %c0_4], %4 {strides = array<i32>} : memref<576x1296xf32, #tpu.memory_space<vmem>>, vector<1x1222xf32>,
    %6 = vector.extract_strided_slice %1 {offsets = [0, 2], sizes = [1, 1222], strides = [1, 1]} : vector<1x1296xf32> to vector<1x1222xf32>
    %c2 = arith.constant 2 : index
    %c0_5 = arith.constant 0 : index
    %7 = vector.load %arg17[%c2, %c0_5] : memref<576x1296xf32, #tpu.memory_space<vmem>>, vector<1x1222xf32>
    tpu.vector_store %arg17[%c2, %c0_5], %6 {strides = array<i32>} : memref<576x1296xf32, #tpu.memory_space<vmem>>, vector<1x1222xf32>,
    %8 = vector.extract_strided_slice %1 {offsets = [0, 36], sizes = [1, 1222], strides = [1, 1]} : vector<1x1296xf32> to vector<1x1222xf32>
    %c3 = arith.constant 3 : index
    %c0_6 = arith.constant 0 : index
    %9 = vector.load %arg17[%c3, %c0_6] : memref<576x1296xf32, #tpu.memory_space<vmem>>, vector<1x1222xf32>
    tpu.vector_store %arg17[%c3, %c0_6], %8 {strides = array<i32>} : memref<576x1296xf32, #tpu.memory_space<vmem>>, vector<1x1222xf32>,
    %10 = vector.extract_strided_slice %1 {offsets = [0, 37], sizes = [1, 1222], strides = [1, 1]} : vector<1x1296xf32> to vector<1x1222xf32>
    %c4 = arith.constant 4 : index
    %c0_7 = arith.constant 0 : index
    %11 = vector.load %arg17[%c4, %c0_7] : memref<576x1296xf32, #tpu.memory_space<vmem>>, vector<1x1222xf32>
    tpu.vector_store %arg17[%c4, %c0_7], %10 {strides = array<i32>} : memref<576x1296xf32, #tpu.memory_space<vmem>>, vector<1x1222xf32>,
    %12 = vector.extract_strided_slice %1 {offsets = [0, 38], sizes = [1, 1222], strides = [1, 1]} : vector<1x1296xf32> to vector<1x1222xf32>
    %c5 = arith.constant 5 : index
    %c0_8 = arith.constant 0 : index
    %13 = vector.load %arg17[%c5, %c0_8] : memref<576x1296xf32, #tpu.memory_space<vmem>>, vector<1x1222xf32>
    tpu.vector_store %arg17[%c5, %c0_8], %12 {strides = array<i32>} : memref<576x1296xf32, #tpu.memory_space<vmem>>, vector<1x1222xf32>,
    %14 = vector.extract_strided_slice %1 {offsets = [0, 72], sizes = [1, 1222], strides = [1, 1]} : vector<1x1296xf32> to vector<1x1222xf32>
    %c6 = arith.constant 6 : index
    %c0_9 = arith.constant 0 : index
    %15 = vector.load %arg17[%c6, %c0_9] : memref<576x1296xf32, #tpu.memory_space<vmem>>, vector<1x1222xf32>
    tpu.vector_store %arg17[%c6, %c0_9], %14 {strides = array<i32>} : memref<576x1296xf32, #tpu.memory_space<vmem>>, vector<1x1222xf32>,
    %16 = vector.extract_strided_slice %1 {offsets = [0, 73], sizes = [1, 1222], strides = [1, 1]} : vector<1x1296xf32> to vector<1x1222xf32>
    %c7 = arith.constant 7 : index
    %c0_10 = arith.constant 0 : index
    %17 = vector.load %arg17[%c7, %c0_10] : memref<576x1296xf32, #tpu.memory_space<vmem>>, vector<1x1222xf32>
    tpu.vector_store %arg17[%c7, %c0_10], %16 {strides = array<i32>} : memref<576x1296xf32, #tpu.memory_space<vmem>>, vector<1x1222xf32>,
    %18 = vector.extract_strided_slice %1 {offsets = [0, 74], sizes = [1, 1222], strides = [1, 1]} : vector<1x1296xf32> to vector<1x1222xf32>
    %c8 = arith.constant 8 : index
    %c0_11 = arith.constant 0 : index
    %19 = vector.load %arg17[%c8, %c0_11] : memref<576x1296xf32, #tpu.memory_space<vmem>>, vector<1x1222xf32>
    tpu.vector_store %arg17[%c8, %c0_11], %18 {strides = array<i32>} : memref<576x1296xf32, #tpu.memory_space<vmem>>, vector<1x1222xf32>,
    %c0_12 = arith.constant 0 : index
    %c0_13 = arith.constant 0 : index
    %20 = vector.load %arg2[%c0_12, %c0_13] : memref<16x9xf32, #tpu.memory_space<vmem>>, vector<16x9xf32>
    %c0_14 = arith.constant 0 : index
    %c0_15 = arith.constant 0 : index
    %21 = vector.load %arg17[%c0_14, %c0_15] : memref<576x1296xf32, #tpu.memory_space<vmem>>, vector<9x1222xf32>
    %cst = arith.constant dense<0.000000e+00> : vector<16x1222xf32>
    %22 = tpu.matmul %20, %21, %cst {dimension_numbers = #tpu.dot_dimension_numbers<[1], [0], [0], [1], [0, 0, 1, 1], [], []>} : vector<16x9xf32>, vector<9x1222xf32>, vector<16x1222xf32> -> vector<16x1222xf32>
    %c0_16 = arith.constant 0 : index
    %c0_17 = arith.constant 0 : index
    %23 = vector.load %arg3[%c0_16, %c0_17] : memref<16x1xf32, #tpu.memory_space<vmem>>, vector<16x1xf32>
    %24 = vector.broadcast %23 : vector<16x1xf32> to vector<16x1222xf32>
    %25 = arith.addf %22, %24 : vector<16x1222xf32>
    %cst_18 = arith.constant 0.000000e+00 : f32
    %26 = vector.broadcast %cst_18 : f32 to vector<16x1222xf32>
    %27 = arith.maximumf %25, %26 : vector<16x1222xf32>
    %28 = vector.extract_strided_slice %27 {offsets = [0, 0], sizes = [16, 1148], strides = [1, 1]} : vector<16x1222xf32> to vector<16x1148xf32>
    %c0_19 = arith.constant 0 : index
    %c0_20 = arith.constant 0 : index
    %29 = vector.load %arg17[%c0_19, %c0_20] : memref<576x1296xf32, #tpu.memory_space<vmem>>, vector<16x1148xf32>
    tpu.vector_store %arg17[%c0_19, %c0_20], %28 {strides = array<i32>} : memref<576x1296xf32, #tpu.memory_space<vmem>>, vector<16x1148xf32>,
    %30 = vector.extract_strided_slice %27 {offsets = [0, 1], sizes = [16, 1148], strides = [1, 1]} : vector<16x1222xf32> to vector<16x1148xf32>
    %c16 = arith.constant 16 : index
    %c0_21 = arith.constant 0 : index
    %31 = vector.load %arg17[%c16, %c0_21] : memref<576x1296xf32, #tpu.memory_space<vmem>>, vector<16x1148xf32>
    tpu.vector_store %arg17[%c16, %c0_21], %30 {strides = array<i32>} : memref<576x1296xf32, #tpu.memory_space<vmem>>, vector<16x1148xf32>,
    %32 = vector.extract_strided_slice %27 {offsets = [0, 2], sizes = [16, 1148], strides = [1, 1]} : vector<16x1222xf32> to vector<16x1148xf32>
    %c32 = arith.constant 32 : index
    %c0_22 = arith.constant 0 : index
    %33 = vector.load %arg17[%c32, %c0_22] : memref<576x1296xf32, #tpu.memory_space<vmem>>, vector<16x1148xf32>
    tpu.vector_store %arg17[%c32, %c0_22], %32 {strides = array<i32>} : memref<576x1296xf32, #tpu.memory_space<vmem>>, vector<16x1148xf32>,
    %34 = vector.extract_strided_slice %27 {offsets = [0, 36], sizes = [16, 1148], strides = [1, 1]} : vector<16x1222xf32> to vector<16x1148xf32>
    %c48 = arith.constant 48 : index
    %c0_23 = arith.constant 0 : index
    %35 = vector.load %arg17[%c48, %c0_23] : memref<576x1296xf32, #tpu.memory_space<vmem>>, vector<16x1148xf32>
    tpu.vector_store %arg17[%c48, %c0_23], %34 {strides = array<i32>} : memref<576x1296xf32, #tpu.memory_space<vmem>>, vector<16x1148xf32>,
    %36 = vector.extract_strided_slice %27 {offsets = [0, 37], sizes = [16, 1148], strides = [1, 1]} : vector<16x1222xf32> to vector<16x1148xf32>
    %c64 = arith.constant 64 : index
    %c0_24 = arith.constant 0 : index
    %37 = vector.load %arg17[%c64, %c0_24] : memref<576x1296xf32, #tpu.memory_space<vmem>>, vector<16x1148xf32>
    tpu.vector_store %arg17[%c64, %c0_24], %36 {strides = array<i32>} : memref<576x1296xf32, #tpu.memory_space<vmem>>, vector<16x1148xf32>,
    %38 = vector.extract_strided_slice %27 {offsets = [0, 38], sizes = [16, 1148], strides = [1, 1]} : vector<16x1222xf32> to vector<16x1148xf32>
    %c80 = arith.constant 80 : index
    %c0_25 = arith.constant 0 : index
    %39 = vector.load %arg17[%c80, %c0_25] : memref<576x1296xf32, #tpu.memory_space<vmem>>, vector<16x1148xf32>
    tpu.vector_store %arg17[%c80, %c0_25], %38 {strides = array<i32>} : memref<576x1296xf32, #tpu.memory_space<vmem>>, vector<16x1148xf32>,
    %40 = vector.extract_strided_slice %27 {offsets = [0, 72], sizes = [16, 1148], strides = [1, 1]} : vector<16x1222xf32> to vector<16x1148xf32>
    %c96 = arith.constant 96 : index
    %c0_26 = arith.constant 0 : index
    %41 = vector.load %arg17[%c96, %c0_26] : memref<576x1296xf32, #tpu.memory_space<vmem>>, vector<16x1148xf32>
    tpu.vector_store %arg17[%c96, %c0_26], %40 {strides = array<i32>} : memref<576x1296xf32, #tpu.memory_space<vmem>>, vector<16x1148xf32>,
    %42 = vector.extract_strided_slice %27 {offsets = [0, 73], sizes = [16, 1148], strides = [1, 1]} : vector<16x1222xf32> to vector<16x1148xf32>
    %c112 = arith.constant 112 : index
    %c0_27 = arith.constant 0 : index
    %43 = vector.load %arg17[%c112, %c0_27] : memref<576x1296xf32, #tpu.memory_space<vmem>>, vector<16x1148xf32>
    tpu.vector_store %arg17[%c112, %c0_27], %42 {strides = array<i32>} : memref<576x1296xf32, #tpu.memory_space<vmem>>, vector<16x1148xf32>,
    %44 = vector.extract_strided_slice %27 {offsets = [0, 74], sizes = [16, 1148], strides = [1, 1]} : vector<16x1222xf32> to vector<16x1148xf32>
    %c128 = arith.constant 128 : index
    %c0_28 = arith.constant 0 : index
    %45 = vector.load %arg17[%c128, %c0_28] : memref<576x1296xf32, #tpu.memory_space<vmem>>, vector<16x1148xf32>
    tpu.vector_store %arg17[%c128, %c0_28], %44 {strides = array<i32>} : memref<576x1296xf32, #tpu.memory_space<vmem>>, vector<16x1148xf32>,
    %c0_29 = arith.constant 0 : index
    %c0_30 = arith.constant 0 : index
    %46 = vector.load %arg4[%c0_29, %c0_30] : memref<16x144xf32, #tpu.memory_space<vmem>>, vector<16x144xf32>
    %c0_31 = arith.constant 0 : index
    %c0_32 = arith.constant 0 : index
    %47 = vector.load %arg17[%c0_31, %c0_32] : memref<576x1296xf32, #tpu.memory_space<vmem>>, vector<144x1148xf32>
    %cst_33 = arith.constant dense<0.000000e+00> : vector<16x1148xf32>
    %48 = tpu.matmul %46, %47, %cst_33 {dimension_numbers = #tpu.dot_dimension_numbers<[1], [0], [0], [1], [0, 0, 1, 1], [], []>} : vector<16x144xf32>, vector<144x1148xf32>, vector<16x1148xf32> -> vector<16x1148xf32>
    %c0_34 = arith.constant 0 : index
    %c0_35 = arith.constant 0 : index
    %49 = vector.load %arg5[%c0_34, %c0_35] : memref<16x1xf32, #tpu.memory_space<vmem>>, vector<16x1xf32>
    %50 = vector.broadcast %49 : vector<16x1xf32> to vector<16x1148xf32>
    %51 = arith.addf %48, %50 : vector<16x1148xf32>
    %c0_36 = arith.constant 0 : index
    %c0_37 = arith.constant 0 : index
    %c0_38 = arith.constant 0 : index
    %52 = vector.load %arg14[%c0_36, %c0_37, %c0_38] : memref<1x16x1148xf32, #tpu.memory_space<vmem>>, vector<1x16x1148xf32>
    %53 = vector.shape_cast %52 : vector<1x16x1148xf32> to vector<16x1148xf32>
    %54 = vector.shape_cast %51 : vector<16x1148xf32> to vector<1x16x1148xf32>
    tpu.vector_store %arg14[%c0_36, %c0_37, %c0_38], %54 {strides = array<i32>} : memref<1x16x1148xf32, #tpu.memory_space<vmem>>, vector<1x16x1148xf32>,
    %55 = vector.extract_strided_slice %51 {offsets = [0, 0], sizes = [16, 1147], strides = [1, 1]} : vector<16x1148xf32> to vector<16x1147xf32>
    %56 = vector.extract_strided_slice %51 {offsets = [0, 1], sizes = [16, 1147], strides = [1, 1]} : vector<16x1148xf32> to vector<16x1147xf32>
    %57 = arith.maximumf %55, %56 : vector<16x1147xf32>
    %58 = vector.extract_strided_slice %57 {offsets = [0, 0], sizes = [16, 1111], strides = [1, 1]} : vector<16x1147xf32> to vector<16x1111xf32>
    %59 = vector.extract_strided_slice %57 {offsets = [0, 36], sizes = [16, 1111], strides = [1, 1]} : vector<16x1147xf32> to vector<16x1111xf32>
    %60 = arith.maximumf %58, %59 : vector<16x1111xf32>
    %61 = vector.extract_strided_slice %60 {offsets = [0, 0], sizes = [16, 963], strides = [1, 1]} : vector<16x1111xf32> to vector<16x963xf32>
    %c0_39 = arith.constant 0 : index
    %c0_40 = arith.constant 0 : index
    %62 = vector.load %arg17[%c0_39, %c0_40] : memref<576x1296xf32, #tpu.memory_space<vmem>>, vector<16x963xf32>
    tpu.vector_store %arg17[%c0_39, %c0_40], %61 {strides = array<i32>} : memref<576x1296xf32, #tpu.memory_space<vmem>>, vector<16x963xf32>,
    %63 = vector.extract_strided_slice %60 {offsets = [0, 2], sizes = [16, 963], strides = [1, 1]} : vector<16x1111xf32> to vector<16x963xf32>
    %c16_41 = arith.constant 16 : index
    %c0_42 = arith.constant 0 : index
    %64 = vector.load %arg17[%c16_41, %c0_42] : memref<576x1296xf32, #tpu.memory_space<vmem>>, vector<16x963xf32>
    tpu.vector_store %arg17[%c16_41, %c0_42], %63 {strides = array<i32>} : memref<576x1296xf32, #tpu.memory_space<vmem>>, vector<16x963xf32>,
    %65 = vector.extract_strided_slice %60 {offsets = [0, 4], sizes = [16, 963], strides = [1, 1]} : vector<16x1111xf32> to vector<16x963xf32>
    %c32_43 = arith.constant 32 : index
    %c0_44 = arith.constant 0 : index
    %66 = vector.load %arg17[%c32_43, %c0_44] : memref<576x1296xf32, #tpu.memory_space<vmem>>, vector<16x963xf32>
    tpu.vector_store %arg17[%c32_43, %c0_44], %65 {strides = array<i32>} : memref<576x1296xf32, #tpu.memory_space<vmem>>, vector<16x963xf32>,
    %67 = vector.extract_strided_slice %60 {offsets = [0, 72], sizes = [16, 963], strides = [1, 1]} : vector<16x1111xf32> to vector<16x963xf32>
    %c48_45 = arith.constant 48 : index
    %c0_46 = arith.constant 0 : index
    %68 = vector.load %arg17[%c48_45, %c0_46] : memref<576x1296xf32, #tpu.memory_space<vmem>>, vector<16x963xf32>
    tpu.vector_store %arg17[%c48_45, %c0_46], %67 {strides = array<i32>} : memref<576x1296xf32, #tpu.memory_space<vmem>>, vector<16x963xf32>,
    %69 = vector.extract_strided_slice %60 {offsets = [0, 74], sizes = [16, 963], strides = [1, 1]} : vector<16x1111xf32> to vector<16x963xf32>
    %c64_47 = arith.constant 64 : index
    %c0_48 = arith.constant 0 : index
    %70 = vector.load %arg17[%c64_47, %c0_48] : memref<576x1296xf32, #tpu.memory_space<vmem>>, vector<16x963xf32>
    tpu.vector_store %arg17[%c64_47, %c0_48], %69 {strides = array<i32>} : memref<576x1296xf32, #tpu.memory_space<vmem>>, vector<16x963xf32>,
    %71 = vector.extract_strided_slice %60 {offsets = [0, 76], sizes = [16, 963], strides = [1, 1]} : vector<16x1111xf32> to vector<16x963xf32>
    %c80_49 = arith.constant 80 : index
    %c0_50 = arith.constant 0 : index
    %72 = vector.load %arg17[%c80_49, %c0_50] : memref<576x1296xf32, #tpu.memory_space<vmem>>, vector<16x963xf32>
    tpu.vector_store %arg17[%c80_49, %c0_50], %71 {strides = array<i32>} : memref<576x1296xf32, #tpu.memory_space<vmem>>, vector<16x963xf32>,
    %73 = vector.extract_strided_slice %60 {offsets = [0, 144], sizes = [16, 963], strides = [1, 1]} : vector<16x1111xf32> to vector<16x963xf32>
    %c96_51 = arith.constant 96 : index
    %c0_52 = arith.constant 0 : index
    %74 = vector.load %arg17[%c96_51, %c0_52] : memref<576x1296xf32, #tpu.memory_space<vmem>>, vector<16x963xf32>
    tpu.vector_store %arg17[%c96_51, %c0_52], %73 {strides = array<i32>} : memref<576x1296xf32, #tpu.memory_space<vmem>>, vector<16x963xf32>,
    %75 = vector.extract_strided_slice %60 {offsets = [0, 146], sizes = [16, 963], strides = [1, 1]} : vector<16x1111xf32> to vector<16x963xf32>
    %c112_53 = arith.constant 112 : index
    %c0_54 = arith.constant 0 : index
    %76 = vector.load %arg17[%c112_53, %c0_54] : memref<576x1296xf32, #tpu.memory_space<vmem>>, vector<16x963xf32>
    tpu.vector_store %arg17[%c112_53, %c0_54], %75 {strides = array<i32>} : memref<576x1296xf32, #tpu.memory_space<vmem>>, vector<16x963xf32>,
    %77 = vector.extract_strided_slice %60 {offsets = [0, 148], sizes = [16, 963], strides = [1, 1]} : vector<16x1111xf32> to vector<16x963xf32>
    %c128_55 = arith.constant 128 : index
    %c0_56 = arith.constant 0 : index
    %78 = vector.load %arg17[%c128_55, %c0_56] : memref<576x1296xf32, #tpu.memory_space<vmem>>, vector<16x963xf32>
    tpu.vector_store %arg17[%c128_55, %c0_56], %77 {strides = array<i32>} : memref<576x1296xf32, #tpu.memory_space<vmem>>, vector<16x963xf32>,
    %c0_57 = arith.constant 0 : index
    %c0_58 = arith.constant 0 : index
    %79 = vector.load %arg6[%c0_57, %c0_58] : memref<32x144xf32, #tpu.memory_space<vmem>>, vector<32x144xf32>
    %c0_59 = arith.constant 0 : index
    %c0_60 = arith.constant 0 : index
    %80 = vector.load %arg17[%c0_59, %c0_60] : memref<576x1296xf32, #tpu.memory_space<vmem>>, vector<144x963xf32>
    %cst_61 = arith.constant dense<0.000000e+00> : vector<32x963xf32>
    %81 = tpu.matmul %79, %80, %cst_61 {dimension_numbers = #tpu.dot_dimension_numbers<[1], [0], [0], [1], [0, 0, 1, 1], [], []>} : vector<32x144xf32>, vector<144x963xf32>, vector<32x963xf32> -> vector<32x963xf32>
    %c0_62 = arith.constant 0 : index
    %c0_63 = arith.constant 0 : index
    %82 = vector.load %arg7[%c0_62, %c0_63] : memref<32x1xf32, #tpu.memory_space<vmem>>, vector<32x1xf32>
    %83 = vector.broadcast %82 : vector<32x1xf32> to vector<32x963xf32>
    %84 = arith.addf %81, %83 : vector<32x963xf32>
    %cst_64 = arith.constant 0.000000e+00 : f32
    %85 = vector.broadcast %cst_64 : f32 to vector<32x963xf32>
    %86 = arith.maximumf %84, %85 : vector<32x963xf32>
    %87 = vector.extract_strided_slice %86 {offsets = [0, 0], sizes = [32, 815], strides = [1, 1]} : vector<32x963xf32> to vector<32x815xf32>
    %c0_65 = arith.constant 0 : index
    %c0_66 = arith.constant 0 : index
    %88 = vector.load %arg17[%c0_65, %c0_66] : memref<576x1296xf32, #tpu.memory_space<vmem>>, vector<32x815xf32>
    tpu.vector_store %arg17[%c0_65, %c0_66], %87 {strides = array<i32>} : memref<576x1296xf32, #tpu.memory_space<vmem>>, vector<32x815xf32>,
    %89 = vector.extract_strided_slice %86 {offsets = [0, 2], sizes = [32, 815], strides = [1, 1]} : vector<32x963xf32> to vector<32x815xf32>
    %c32_67 = arith.constant 32 : index
    %c0_68 = arith.constant 0 : index
    %90 = vector.load %arg17[%c32_67, %c0_68] : memref<576x1296xf32, #tpu.memory_space<vmem>>, vector<32x815xf32>
    tpu.vector_store %arg17[%c32_67, %c0_68], %89 {strides = array<i32>} : memref<576x1296xf32, #tpu.memory_space<vmem>>, vector<32x815xf32>,
    %91 = vector.extract_strided_slice %86 {offsets = [0, 4], sizes = [32, 815], strides = [1, 1]} : vector<32x963xf32> to vector<32x815xf32>
    %c64_69 = arith.constant 64 : index
    %c0_70 = arith.constant 0 : index
    %92 = vector.load %arg17[%c64_69, %c0_70] : memref<576x1296xf32, #tpu.memory_space<vmem>>, vector<32x815xf32>
    tpu.vector_store %arg17[%c64_69, %c0_70], %91 {strides = array<i32>} : memref<576x1296xf32, #tpu.memory_space<vmem>>, vector<32x815xf32>,
    %93 = vector.extract_strided_slice %86 {offsets = [0, 72], sizes = [32, 815], strides = [1, 1]} : vector<32x963xf32> to vector<32x815xf32>
    %c96_71 = arith.constant 96 : index
    %c0_72 = arith.constant 0 : index
    %94 = vector.load %arg17[%c96_71, %c0_72] : memref<576x1296xf32, #tpu.memory_space<vmem>>, vector<32x815xf32>
    tpu.vector_store %arg17[%c96_71, %c0_72], %93 {strides = array<i32>} : memref<576x1296xf32, #tpu.memory_space<vmem>>, vector<32x815xf32>,
    %95 = vector.extract_strided_slice %86 {offsets = [0, 74], sizes = [32, 815], strides = [1, 1]} : vector<32x963xf32> to vector<32x815xf32>
    %c128_73 = arith.constant 128 : index
    %c0_74 = arith.constant 0 : index
    %96 = vector.load %arg17[%c128_73, %c0_74] : memref<576x1296xf32, #tpu.memory_space<vmem>>, vector<32x815xf32>
    tpu.vector_store %arg17[%c128_73, %c0_74], %95 {strides = array<i32>} : memref<576x1296xf32, #tpu.memory_space<vmem>>, vector<32x815xf32>,
    %97 = vector.extract_strided_slice %86 {offsets = [0, 76], sizes = [32, 815], strides = [1, 1]} : vector<32x963xf32> to vector<32x815xf32>
    %c160 = arith.constant 160 : index
    %c0_75 = arith.constant 0 : index
    %98 = vector.load %arg17[%c160, %c0_75] : memref<576x1296xf32, #tpu.memory_space<vmem>>, vector<32x815xf32>
    tpu.vector_store %arg17[%c160, %c0_75], %97 {strides = array<i32>} : memref<576x1296xf32, #tpu.memory_space<vmem>>, vector<32x815xf32>,
    %99 = vector.extract_strided_slice %86 {offsets = [0, 144], sizes = [32, 815], strides = [1, 1]} : vector<32x963xf32> to vector<32x815xf32>
    %c192 = arith.constant 192 : index
    %c0_76 = arith.constant 0 : index
    %100 = vector.load %arg17[%c192, %c0_76] : memref<576x1296xf32, #tpu.memory_space<vmem>>, vector<32x815xf32>
    tpu.vector_store %arg17[%c192, %c0_76], %99 {strides = array<i32>} : memref<576x1296xf32, #tpu.memory_space<vmem>>, vector<32x815xf32>,
    %101 = vector.extract_strided_slice %86 {offsets = [0, 146], sizes = [32, 815], strides = [1, 1]} : vector<32x963xf32> to vector<32x815xf32>
    %c224 = arith.constant 224 : index
    %c0_77 = arith.constant 0 : index
    %102 = vector.load %arg17[%c224, %c0_77] : memref<576x1296xf32, #tpu.memory_space<vmem>>, vector<32x815xf32>
    tpu.vector_store %arg17[%c224, %c0_77], %101 {strides = array<i32>} : memref<576x1296xf32, #tpu.memory_space<vmem>>, vector<32x815xf32>,
    %103 = vector.extract_strided_slice %86 {offsets = [0, 148], sizes = [32, 815], strides = [1, 1]} : vector<32x963xf32> to vector<32x815xf32>
    %c256 = arith.constant 256 : index
    %c0_78 = arith.constant 0 : index
    %104 = vector.load %arg17[%c256, %c0_78] : memref<576x1296xf32, #tpu.memory_space<vmem>>, vector<32x815xf32>
    tpu.vector_store %arg17[%c256, %c0_78], %103 {strides = array<i32>} : memref<576x1296xf32, #tpu.memory_space<vmem>>, vector<32x815xf32>,
    %c0_79 = arith.constant 0 : index
    %c0_80 = arith.constant 0 : index
    %105 = vector.load %arg8[%c0_79, %c0_80] : memref<32x288xf32, #tpu.memory_space<vmem>>, vector<32x288xf32>
    %c0_81 = arith.constant 0 : index
    %c0_82 = arith.constant 0 : index
    %106 = vector.load %arg17[%c0_81, %c0_82] : memref<576x1296xf32, #tpu.memory_space<vmem>>, vector<288x815xf32>
    %cst_83 = arith.constant dense<0.000000e+00> : vector<32x815xf32>
    %107 = tpu.matmul %105, %106, %cst_83 {dimension_numbers = #tpu.dot_dimension_numbers<[1], [0], [0], [1], [0, 0, 1, 1], [], []>} : vector<32x288xf32>, vector<288x815xf32>, vector<32x815xf32> -> vector<32x815xf32>
    %c0_84 = arith.constant 0 : index
    %c0_85 = arith.constant 0 : index
    %108 = vector.load %arg9[%c0_84, %c0_85] : memref<32x1xf32, #tpu.memory_space<vmem>>, vector<32x1xf32>
    %109 = vector.broadcast %108 : vector<32x1xf32> to vector<32x815xf32>
    %110 = arith.addf %107, %109 : vector<32x815xf32>
    %c0_86 = arith.constant 0 : index
    %c0_87 = arith.constant 0 : index
    %c0_88 = arith.constant 0 : index
    %111 = vector.load %arg15[%c0_86, %c0_87, %c0_88] : memref<1x32x815xf32, #tpu.memory_space<vmem>>, vector<1x32x815xf32>
    %112 = vector.shape_cast %111 : vector<1x32x815xf32> to vector<32x815xf32>
    %113 = vector.shape_cast %110 : vector<32x815xf32> to vector<1x32x815xf32>
    tpu.vector_store %arg15[%c0_86, %c0_87, %c0_88], %113 {strides = array<i32>} : memref<1x32x815xf32, #tpu.memory_space<vmem>>, vector<1x32x815xf32>,
    %114 = vector.extract_strided_slice %110 {offsets = [0, 0], sizes = [32, 813], strides = [1, 1]} : vector<32x815xf32> to vector<32x813xf32>
    %115 = vector.extract_strided_slice %110 {offsets = [0, 2], sizes = [32, 813], strides = [1, 1]} : vector<32x815xf32> to vector<32x813xf32>
    %116 = arith.maximumf %114, %115 : vector<32x813xf32>
    %117 = vector.extract_strided_slice %116 {offsets = [0, 0], sizes = [32, 741], strides = [1, 1]} : vector<32x813xf32> to vector<32x741xf32>
    %118 = vector.extract_strided_slice %116 {offsets = [0, 72], sizes = [32, 741], strides = [1, 1]} : vector<32x813xf32> to vector<32x741xf32>
    %119 = arith.maximumf %117, %118 : vector<32x741xf32>
    %120 = vector.extract_strided_slice %119 {offsets = [0, 0], sizes = [32, 445], strides = [1, 1]} : vector<32x741xf32> to vector<32x445xf32>
    %c0_89 = arith.constant 0 : index
    %c0_90 = arith.constant 0 : index
    %121 = vector.load %arg17[%c0_89, %c0_90] : memref<576x1296xf32, #tpu.memory_space<vmem>>, vector<32x445xf32>
    tpu.vector_store %arg17[%c0_89, %c0_90], %120 {strides = array<i32>} : memref<576x1296xf32, #tpu.memory_space<vmem>>, vector<32x445xf32>,
    %122 = vector.extract_strided_slice %119 {offsets = [0, 4], sizes = [32, 445], strides = [1, 1]} : vector<32x741xf32> to vector<32x445xf32>
    %c32_91 = arith.constant 32 : index
    %c0_92 = arith.constant 0 : index
    %123 = vector.load %arg17[%c32_91, %c0_92] : memref<576x1296xf32, #tpu.memory_space<vmem>>, vector<32x445xf32>
    tpu.vector_store %arg17[%c32_91, %c0_92], %122 {strides = array<i32>} : memref<576x1296xf32, #tpu.memory_space<vmem>>, vector<32x445xf32>,
    %124 = vector.extract_strided_slice %119 {offsets = [0, 8], sizes = [32, 445], strides = [1, 1]} : vector<32x741xf32> to vector<32x445xf32>
    %c64_93 = arith.constant 64 : index
    %c0_94 = arith.constant 0 : index
    %125 = vector.load %arg17[%c64_93, %c0_94] : memref<576x1296xf32, #tpu.memory_space<vmem>>, vector<32x445xf32>
    tpu.vector_store %arg17[%c64_93, %c0_94], %124 {strides = array<i32>} : memref<576x1296xf32, #tpu.memory_space<vmem>>, vector<32x445xf32>,
    %126 = vector.extract_strided_slice %119 {offsets = [0, 144], sizes = [32, 445], strides = [1, 1]} : vector<32x741xf32> to vector<32x445xf32>
    %c96_95 = arith.constant 96 : index
    %c0_96 = arith.constant 0 : index
    %127 = vector.load %arg17[%c96_95, %c0_96] : memref<576x1296xf32, #tpu.memory_space<vmem>>, vector<32x445xf32>
    tpu.vector_store %arg17[%c96_95, %c0_96], %126 {strides = array<i32>} : memref<576x1296xf32, #tpu.memory_space<vmem>>, vector<32x445xf32>,
    %128 = vector.extract_strided_slice %119 {offsets = [0, 148], sizes = [32, 445], strides = [1, 1]} : vector<32x741xf32> to vector<32x445xf32>
    %c128_97 = arith.constant 128 : index
    %c0_98 = arith.constant 0 : index
    %129 = vector.load %arg17[%c128_97, %c0_98] : memref<576x1296xf32, #tpu.memory_space<vmem>>, vector<32x445xf32>
    tpu.vector_store %arg17[%c128_97, %c0_98], %128 {strides = array<i32>} : memref<576x1296xf32, #tpu.memory_space<vmem>>, vector<32x445xf32>,
    %130 = vector.extract_strided_slice %119 {offsets = [0, 152], sizes = [32, 445], strides = [1, 1]} : vector<32x741xf32> to vector<32x445xf32>
    %c160_99 = arith.constant 160 : index
    %c0_100 = arith.constant 0 : index
    %131 = vector.load %arg17[%c160_99, %c0_100] : memref<576x1296xf32, #tpu.memory_space<vmem>>, vector<32x445xf32>
    tpu.vector_store %arg17[%c160_99, %c0_100], %130 {strides = array<i32>} : memref<576x1296xf32, #tpu.memory_space<vmem>>, vector<32x445xf32>,
    %132 = vector.extract_strided_slice %119 {offsets = [0, 288], sizes = [32, 445], strides = [1, 1]} : vector<32x741xf32> to vector<32x445xf32>
    %c192_101 = arith.constant 192 : index
    %c0_102 = arith.constant 0 : index
    %133 = vector.load %arg17[%c192_101, %c0_102] : memref<576x1296xf32, #tpu.memory_space<vmem>>, vector<32x445xf32>
    tpu.vector_store %arg17[%c192_101, %c0_102], %132 {strides = array<i32>} : memref<576x1296xf32, #tpu.memory_space<vmem>>, vector<32x445xf32>,
    %134 = vector.extract_strided_slice %119 {offsets = [0, 292], sizes = [32, 445], strides = [1, 1]} : vector<32x741xf32> to vector<32x445xf32>
    %c224_103 = arith.constant 224 : index
    %c0_104 = arith.constant 0 : index
    %135 = vector.load %arg17[%c224_103, %c0_104] : memref<576x1296xf32, #tpu.memory_space<vmem>>, vector<32x445xf32>
    tpu.vector_store %arg17[%c224_103, %c0_104], %134 {strides = array<i32>} : memref<576x1296xf32, #tpu.memory_space<vmem>>, vector<32x445xf32>,
    %136 = vector.extract_strided_slice %119 {offsets = [0, 296], sizes = [32, 445], strides = [1, 1]} : vector<32x741xf32> to vector<32x445xf32>
    %c256_105 = arith.constant 256 : index
    %c0_106 = arith.constant 0 : index
    %137 = vector.load %arg17[%c256_105, %c0_106] : memref<576x1296xf32, #tpu.memory_space<vmem>>, vector<32x445xf32>
    tpu.vector_store %arg17[%c256_105, %c0_106], %136 {strides = array<i32>} : memref<576x1296xf32, #tpu.memory_space<vmem>>, vector<32x445xf32>,
    %c0_107 = arith.constant 0 : index
    %c0_108 = arith.constant 0 : index
    %138 = vector.load %arg10[%c0_107, %c0_108] : memref<64x288xf32, #tpu.memory_space<vmem>>, vector<64x288xf32>
    %c0_109 = arith.constant 0 : index
    %c0_110 = arith.constant 0 : index
    %139 = vector.load %arg17[%c0_109, %c0_110] : memref<576x1296xf32, #tpu.memory_space<vmem>>, vector<288x445xf32>
    %cst_111 = arith.constant dense<0.000000e+00> : vector<64x445xf32>
    %140 = tpu.matmul %138, %139, %cst_111 {dimension_numbers = #tpu.dot_dimension_numbers<[1], [0], [0], [1], [0, 0, 1, 1], [], []>} : vector<64x288xf32>, vector<288x445xf32>, vector<64x445xf32> -> vector<64x445xf32>
    %c0_112 = arith.constant 0 : index
    %c0_113 = arith.constant 0 : index
    %141 = vector.load %arg11[%c0_112, %c0_113] : memref<64x1xf32, #tpu.memory_space<vmem>>, vector<64x1xf32>
    %142 = vector.broadcast %141 : vector<64x1xf32> to vector<64x445xf32>
    %143 = arith.addf %140, %142 : vector<64x445xf32>
    %cst_114 = arith.constant 0.000000e+00 : f32
    %144 = vector.broadcast %cst_114 : f32 to vector<64x445xf32>
    %145 = arith.maximumf %143, %144 : vector<64x445xf32>
    %146 = vector.extract_strided_slice %145 {offsets = [0, 0], sizes = [64, 149], strides = [1, 1]} : vector<64x445xf32> to vector<64x149xf32>
    %c0_115 = arith.constant 0 : index
    %c0_116 = arith.constant 0 : index
    %147 = vector.load %arg17[%c0_115, %c0_116] : memref<576x1296xf32, #tpu.memory_space<vmem>>, vector<64x149xf32>
    tpu.vector_store %arg17[%c0_115, %c0_116], %146 {strides = array<i32>} : memref<576x1296xf32, #tpu.memory_space<vmem>>, vector<64x149xf32>,
    %148 = vector.extract_strided_slice %145 {offsets = [0, 4], sizes = [64, 149], strides = [1, 1]} : vector<64x445xf32> to vector<64x149xf32>
    %c64_117 = arith.constant 64 : index
    %c0_118 = arith.constant 0 : index
    %149 = vector.load %arg17[%c64_117, %c0_118] : memref<576x1296xf32, #tpu.memory_space<vmem>>, vector<64x149xf32>
    tpu.vector_store %arg17[%c64_117, %c0_118], %148 {strides = array<i32>} : memref<576x1296xf32, #tpu.memory_space<vmem>>, vector<64x149xf32>,
    %150 = vector.extract_strided_slice %145 {offsets = [0, 8], sizes = [64, 149], strides = [1, 1]} : vector<64x445xf32> to vector<64x149xf32>
    %c128_119 = arith.constant 128 : index
    %c0_120 = arith.constant 0 : index
    %151 = vector.load %arg17[%c128_119, %c0_120] : memref<576x1296xf32, #tpu.memory_space<vmem>>, vector<64x149xf32>
    tpu.vector_store %arg17[%c128_119, %c0_120], %150 {strides = array<i32>} : memref<576x1296xf32, #tpu.memory_space<vmem>>, vector<64x149xf32>,
    %152 = vector.extract_strided_slice %145 {offsets = [0, 144], sizes = [64, 149], strides = [1, 1]} : vector<64x445xf32> to vector<64x149xf32>
    %c192_121 = arith.constant 192 : index
    %c0_122 = arith.constant 0 : index
    %153 = vector.load %arg17[%c192_121, %c0_122] : memref<576x1296xf32, #tpu.memory_space<vmem>>, vector<64x149xf32>
    tpu.vector_store %arg17[%c192_121, %c0_122], %152 {strides = array<i32>} : memref<576x1296xf32, #tpu.memory_space<vmem>>, vector<64x149xf32>,
    %154 = vector.extract_strided_slice %145 {offsets = [0, 148], sizes = [64, 149], strides = [1, 1]} : vector<64x445xf32> to vector<64x149xf32>
    %c256_123 = arith.constant 256 : index
    %c0_124 = arith.constant 0 : index
    %155 = vector.load %arg17[%c256_123, %c0_124] : memref<576x1296xf32, #tpu.memory_space<vmem>>, vector<64x149xf32>
    tpu.vector_store %arg17[%c256_123, %c0_124], %154 {strides = array<i32>} : memref<576x1296xf32, #tpu.memory_space<vmem>>, vector<64x149xf32>,
    %156 = vector.extract_strided_slice %145 {offsets = [0, 152], sizes = [64, 149], strides = [1, 1]} : vector<64x445xf32> to vector<64x149xf32>
    %c320 = arith.constant 320 : index
    %c0_125 = arith.constant 0 : index
    %157 = vector.load %arg17[%c320, %c0_125] : memref<576x1296xf32, #tpu.memory_space<vmem>>, vector<64x149xf32>
    tpu.vector_store %arg17[%c320, %c0_125], %156 {strides = array<i32>} : memref<576x1296xf32, #tpu.memory_space<vmem>>, vector<64x149xf32>,
    %158 = vector.extract_strided_slice %145 {offsets = [0, 288], sizes = [64, 149], strides = [1, 1]} : vector<64x445xf32> to vector<64x149xf32>
    %c384 = arith.constant 384 : index
    %c0_126 = arith.constant 0 : index
    %159 = vector.load %arg17[%c384, %c0_126] : memref<576x1296xf32, #tpu.memory_space<vmem>>, vector<64x149xf32>
    tpu.vector_store %arg17[%c384, %c0_126], %158 {strides = array<i32>} : memref<576x1296xf32, #tpu.memory_space<vmem>>, vector<64x149xf32>,
    %160 = vector.extract_strided_slice %145 {offsets = [0, 292], sizes = [64, 149], strides = [1, 1]} : vector<64x445xf32> to vector<64x149xf32>
    %c448 = arith.constant 448 : index
    %c0_127 = arith.constant 0 : index
    %161 = vector.load %arg17[%c448, %c0_127] : memref<576x1296xf32, #tpu.memory_space<vmem>>, vector<64x149xf32>
    tpu.vector_store %arg17[%c448, %c0_127], %160 {strides = array<i32>} : memref<576x1296xf32, #tpu.memory_space<vmem>>, vector<64x149xf32>,
    %162 = vector.extract_strided_slice %145 {offsets = [0, 296], sizes = [64, 149], strides = [1, 1]} : vector<64x445xf32> to vector<64x149xf32>
    %c512 = arith.constant 512 : index
    %c0_128 = arith.constant 0 : index
    %163 = vector.load %arg17[%c512, %c0_128] : memref<576x1296xf32, #tpu.memory_space<vmem>>, vector<64x149xf32>
    tpu.vector_store %arg17[%c512, %c0_128], %162 {strides = array<i32>} : memref<576x1296xf32, #tpu.memory_space<vmem>>, vector<64x149xf32>,
    %c0_129 = arith.constant 0 : index
    %c0_130 = arith.constant 0 : index
    %164 = vector.load %arg12[%c0_129, %c0_130] : memref<64x576xf32, #tpu.memory_space<vmem>>, vector<64x576xf32>
    %c0_131 = arith.constant 0 : index
    %c0_132 = arith.constant 0 : index
    %165 = vector.load %arg17[%c0_131, %c0_132] : memref<576x1296xf32, #tpu.memory_space<vmem>>, vector<576x149xf32>
    %cst_133 = arith.constant dense<0.000000e+00> : vector<64x149xf32>
    %166 = tpu.matmul %164, %165, %cst_133 {dimension_numbers = #tpu.dot_dimension_numbers<[1], [0], [0], [1], [0, 0, 1, 1], [], []>} : vector<64x576xf32>, vector<576x149xf32>, vector<64x149xf32> -> vector<64x149xf32>
    %c0_134 = arith.constant 0 : index
    %c0_135 = arith.constant 0 : index
    %167 = vector.load %arg13[%c0_134, %c0_135] : memref<64x1xf32, #tpu.memory_space<vmem>>, vector<64x1xf32>
    %168 = vector.broadcast %167 : vector<64x1xf32> to vector<64x149xf32>
    %169 = arith.addf %166, %168 : vector<64x149xf32>
    %c0_136 = arith.constant 0 : index
    %c0_137 = arith.constant 0 : index
    %c0_138 = arith.constant 0 : index
    %170 = vector.load %arg16[%c0_136, %c0_137, %c0_138] : memref<1x64x149xf32, #tpu.memory_space<vmem>>, vector<1x64x149xf32>
    %171 = vector.shape_cast %170 : vector<1x64x149xf32> to vector<64x149xf32>
    %172 = vector.shape_cast %169 : vector<64x149xf32> to vector<1x64x149xf32>
    tpu.vector_store %arg16[%c0_136, %c0_137, %c0_138], %172 {strides = array<i32>} : memref<1x64x149xf32, #tpu.memory_space<vmem>>, vector<1x64x149xf32>,
    return
  }
  func.func @transform_0(%arg0: i32) -> (i32, i32, i32) {
    %c0_i32 = arith.constant 0 : i32
    %c0_i32_0 = arith.constant 0 : i32
    %c0_i32_1 = arith.constant 0 : i32
    return %arg0, %c0_i32, %c0_i32_0 : i32, i32, i32
  }
  func.func @transform_1(%arg0: i32) -> (i32, i32) {
    %c0_i32 = arith.constant 0 : i32
    %c0_i32_0 = arith.constant 0 : i32
    %c0_i32_1 = arith.constant 0 : i32
    return %c0_i32, %c0_i32_0 : i32, i32
  }
  func.func @transform_2(%arg0: i32) -> (i32, i32) {
    %c0_i32 = arith.constant 0 : i32
    %c0_i32_0 = arith.constant 0 : i32
    %c0_i32_1 = arith.constant 0 : i32
    return %c0_i32, %c0_i32_0 : i32, i32
  }
  func.func @transform_3(%arg0: i32) -> (i32, i32) {
    %c0_i32 = arith.constant 0 : i32
    %c0_i32_0 = arith.constant 0 : i32
    %c0_i32_1 = arith.constant 0 : i32
    return %c0_i32, %c0_i32_0 : i32, i32
  }
  func.func @transform_4(%arg0: i32) -> (i32, i32) {
    %c0_i32 = arith.constant 0 : i32
    %c0_i32_0 = arith.constant 0 : i32
    %c0_i32_1 = arith.constant 0 : i32
    return %c0_i32, %c0_i32_0 : i32, i32
  }
  func.func @transform_5(%arg0: i32) -> (i32, i32) {
    %c0_i32 = arith.constant 0 : i32
    %c0_i32_0 = arith.constant 0 : i32
    %c0_i32_1 = arith.constant 0 : i32
    return %c0_i32, %c0_i32_0 : i32, i32
  }
  func.func @transform_6(%arg0: i32) -> (i32, i32) {
    %c0_i32 = arith.constant 0 : i32
    %c0_i32_0 = arith.constant 0 : i32
    %c0_i32_1 = arith.constant 0 : i32
    return %c0_i32, %c0_i32_0 : i32, i32
  }
  func.func @transform_7(%arg0: i32) -> (i32, i32) {
    %c0_i32 = arith.constant 0 : i32
    %c0_i32_0 = arith.constant 0 : i32
    %c0_i32_1 = arith.constant 0 : i32
    return %c0_i32, %c0_i32_0 : i32, i32
  }
  func.func @transform_8(%arg0: i32) -> (i32, i32) {
    %c0_i32 = arith.constant 0 : i32
    %c0_i32_0 = arith.constant 0 : i32
    %c0_i32_1 = arith.constant 0 : i32
    return %c0_i32, %c0_i32_0 : i32, i32
  }
  func.func @transform_9(%arg0: i32) -> (i32, i32) {
    %c0_i32 = arith.constant 0 : i32
    %c0_i32_0 = arith.constant 0 : i32
    %c0_i32_1 = arith.constant 0 : i32
    return %c0_i32, %c0_i32_0 : i32, i32
  }
  func.func @transform_10(%arg0: i32) -> (i32, i32) {
    %c0_i32 = arith.constant 0 : i32
    %c0_i32_0 = arith.constant 0 : i32
    %c0_i32_1 = arith.constant 0 : i32
    return %c0_i32, %c0_i32_0 : i32, i32
  }
  func.func @transform_11(%arg0: i32) -> (i32, i32) {
    %c0_i32 = arith.constant 0 : i32
    %c0_i32_0 = arith.constant 0 : i32
    %c0_i32_1 = arith.constant 0 : i32
    return %c0_i32, %c0_i32_0 : i32, i32
  }
  func.func @transform_12(%arg0: i32) -> (i32, i32) {
    %c0_i32 = arith.constant 0 : i32
    %c0_i32_0 = arith.constant 0 : i32
    %c0_i32_1 = arith.constant 0 : i32
    return %c0_i32, %c0_i32_0 : i32, i32
  }
  func.func @transform_13(%arg0: i32) -> (i32, i32, i32) {
    %c0_i32 = arith.constant 0 : i32
    %c0_i32_0 = arith.constant 0 : i32
    %c0_i32_1 = arith.constant 0 : i32
    return %arg0, %c0_i32, %c0_i32_0 : i32, i32, i32
  }
  func.func @transform_14(%arg0: i32) -> (i32, i32, i32) {
    %c0_i32 = arith.constant 0 : i32
    %c0_i32_0 = arith.constant 0 : i32
    %c0_i32_1 = arith.constant 0 : i32
    return %arg0, %c0_i32, %c0_i32_0 : i32, i32, i32
  }
  func.func @transform_15(%arg0: i32) -> (i32, i32, i32) {
    %c0_i32 = arith.constant 0 : i32
    %c0_i32_0 = arith.constant 0 : i32
    %c0_i32_1 = arith.constant 0 : i32
    return %arg0, %c0_i32, %c0_i32_0 : i32, i32, i32
  }
}

</mosaic_0001>

<llo_original>
// kernel: encoder_forward.1
$region0: #{encoder_forward.1}
  #allocation0 [shape = 'u32[]', space=smem, size = 0x4, offset = 0x4, fixed_abs, tag = 'smem constant byte address 0x4 - core index']
  #allocation1 [shape = 'u32[144,128]{1,0:T(1,128)}', space=vmem, size = 0x12000, scoped, tag = 'internal scratch']
  #allocation2 [shape = 'f32[576,1296]{1,0:T(8,128)}', space=vmem, size = 0x318000, scoped, tag = 'scratch operand']
  %s0 = inlined_call_operand.vmem [shape: f32[2,1,1296], index: 0, kind: input, shape index: {}]
  %s1 = inlined_call_operand.vmem [shape: f32[16,9], index: 1, kind: input, shape index: {}]
  %s2 = inlined_call_operand.vmem [shape: f32[16,1], index: 2, kind: input, shape index: {}]
  %s3 = inlined_call_operand.hbm [shape: f32[16,144], index: 3, kind: input, shape index: {}]
  %s4 = inlined_call_operand.vmem [shape: f32[16,1], index: 4, kind: input, shape index: {}]
  %s5 = inlined_call_operand.hbm [shape: f32[32,144], index: 5, kind: input, shape index: {}]
  %s6 = inlined_call_operand.vmem [shape: f32[32,1], index: 6, kind: input, shape index: {}]
  %s7 = inlined_call_operand.vmem [shape: f32[32,288], index: 7, kind: input, shape index: {}]
  %s8 = inlined_call_operand.vmem [shape: f32[32,1], index: 8, kind: input, shape index: {}]
  %s9 = inlined_call_operand.hbm [shape: f32[64,288], index: 9, kind: input, shape index: {}]
  %s10 = inlined_call_operand.vmem [shape: f32[64,1], index: 10, kind: input, shape index: {}]
  %s11 = inlined_call_operand.vmem [shape: f32[64,576], index: 11, kind: input, shape index: {}]
  %s12 = inlined_call_operand.vmem [shape: f32[64,1], index: 12, kind: input, shape index: {}]
  %s13 = inlined_call_operand.vmem [shape: f32[2,16,1148], index: 13, kind: output, shape index: {0}]
  %s14 = inlined_call_operand.vmem [shape: f32[2,32,815], index: 14, kind: output, shape index: {1}]
  %s15 = inlined_call_operand.vmem [shape: f32[2,64,149], index: 15, kind: output, shape index: {2}]
  %16 = xla_tuple %s13, %s14, %s15
  %s17 = sld [smem:[#allocation0]]
  $region113: #{encoder_forward.1} parent=0
    _
  %s19 = ssub.s32 1, %s17
  %s20 = scalar_select 0, %s19, %s17
  $region1: #{encoder_forward.1} parent=0
    #allocation3 [shape = 'u8[16384]{0}', space=vmem, size = 0x4000, scoped, tag = 'input window, operand 3, single buffered']
    #allocation4 [shape = 's32[2]{0}', space=sflag, size = 0x8, scoped, tag = 'scoped memory for encoder_forward.1']
    #allocation5 [shape = 'u8[32768]{0}', space=vmem, size = 0x8000, scoped, tag = 'input window, operand 5, single buffered']
    #allocation6 [shape = 's32[1]{0}', space=sflag, size = 0x4, scoped, tag = 'scoped memory for encoder_forward.1']
    #allocation7 [shape = 'u8[98304]{0}', space=vmem, size = 0x18000, scoped, tag = 'input window, operand 9, single buffered']
    %21 = vsyncpa [#allocation4], 0
    %22 = vsyncpa [#allocation6], 0
    loop: start=0, step=1, limit=4
    $region2: #{encoder_forward.1} parent=1 // loop_pre_header
      _
    $region3: #{encoder_forward.1} parent=1 // loop_header
      %s24 = sphi 0, %s28
      %p25 = scmp.ge.s32.totalorder %s24, 4
      %s34 = sphi 0, %s36
      %s37 = sphi 0, %s34
      %s38 = sphi 0, %s37
      %s54 = sphi 0, %s38
      %s58 = sphi 0, %s58
      %s60 = sphi 0, %s58
      %s61 = sphi 0, %s60
      %s75 = sphi 0, %s61
      %s79 = sphi 0, %s79
      %s81 = sphi 0, %s79
      %s82 = sphi 0, %s81
      %s96 = sphi 0, %s82
      %s100 = sphi 0, %s100
      %s102 = sphi 0, %s100
      %s103 = sphi 0, %s102
      %s117 = sphi 0, %s103
      %s121 = sphi 0, %s121
      %s123 = sphi 0, %s121
      %s124 = sphi 0, %s123
      %s138 = sphi 0, %s124
      %s142 = sphi 0, %s142
      %s144 = sphi 0, %s142
      %s145 = sphi 0, %s144
      %s159 = sphi 0, %s145
      %s163 = sphi 0, %s163
      %s165 = sphi 0, %s163
      %s166 = sphi 0, %s165
      %s180 = sphi 0, %s166
      %s184 = sphi 0, %s184
      %s186 = sphi 0, %s184
      %s187 = sphi 0, %s186
      %s201 = sphi 0, %s187
      %s205 = sphi 0, %s205
      %s207 = sphi 0, %s205
      %s208 = sphi 0, %s207
      %s222 = sphi 0, %s208
      %s226 = sphi 0, %s226
      %s228 = sphi 0, %s226
      %s229 = sphi 0, %s228
      %s243 = sphi 0, %s229
      %s247 = sphi 0, %s247
      %s249 = sphi 0, %s247
      %s250 = sphi 0, %s249
      %s264 = sphi 0, %s250
      %s268 = sphi 0, %s268
      %s270 = sphi 0, %s268
      %s271 = sphi 0, %s270
      %s285 = sphi 0, %s271
      %s289 = sphi 0, %s289
      %s291 = sphi 0, %s289
      %s292 = sphi 0, %s291
      %s306 = sphi 0, %s292
      %s312 = sphi 0, %s314
      %s315 = sphi 0, %s312
      %s316 = sphi 0, %s315
      %s332 = sphi 0, %s316
      %s338 = sphi 0, %s340
      %s341 = sphi 0, %s338
      %s342 = sphi 0, %s341
      %s358 = sphi 0, %s342
      %s364 = sphi 0, %s366
      %s367 = sphi 0, %s364
      %s368 = sphi 0, %s367
      %s384 = sphi 0, %s368
    $region4: #{encoder_forward.1} parent=1 // loop_header_branch
      %27 = sbr.rel (%p25) target = $region8
    $region5: #{encoder_forward.1} parent=1 // loop_body
      %s29 = ssub.s32 %s24, 1
      %s30 = ssub.s32 %s24, 2
      %s31 = sadd.s32 %s24, 1
      %s32 = ssub.s32 %s24, %s31
      %p33 = scmp.eq.s32.totalorder %s32, 0
      %s35 = sadd.s32 %s34, 1
      %s36 = scalar_select %p33, %s34, %s35
      %p39 = pneg %p33
      %p40 = scmp.eq.s32.totalorder %s24, 1
      %p41 = por %p39, %p40
      %p42 = scmp.ne.s32.totalorder %s34, %s37
      %p43 = scmp.eq.s32.totalorder %s24, 0
      %p44 = por %p42, %p43
      %p45 = scmp.ne.s32.totalorder %s34, %s37
      %p46 = scmp.eq.s32.totalorder %s29, 1
      %p47 = por %p45, %p46
      %p48 = scmp.ne.s32.totalorder %s37, %s38
      %p49 = scmp.eq.s32.totalorder %s29, 0
      %p50 = por %p48, %p49
      %p51 = scmp.ne.s32.totalorder %s37, %s38
      %p52 = scmp.eq.s32.totalorder %s30, 1
      %p53 = por %p51, %p52
      %p55 = scmp.ne.s32.totalorder %s38, %s54
      %p56 = scmp.eq.s32.totalorder %s30, 0
      %p57 = por %p55, %p56
      %s59 = sadd.s32 %s58, 1
      %p62 = scmp.eq.s32.totalorder %s24, 1
      %p63 = scmp.ne.s32.totalorder %s58, %s60
      %p64 = scmp.eq.s32.totalorder %s24, 0
      %p65 = por %p63, %p64
      %p66 = scmp.ne.s32.totalorder %s58, %s60
      %p67 = scmp.eq.s32.totalorder %s29, 1
      %p68 = por %p66, %p67
      %p69 = scmp.ne.s32.totalorder %s60, %s61
      %p70 = scmp.eq.s32.totalorder %s29, 0
      %p71 = por %p69, %p70
      %p72 = scmp.ne.s32.totalorder %s60, %s61
      %p73 = scmp.eq.s32.totalorder %s30, 1
      %p74 = por %p72, %p73
      %p76 = scmp.ne.s32.totalorder %s61, %s75
      %p77 = scmp.eq.s32.totalorder %s30, 0
      %p78 = por %p76, %p77
      %s80 = sadd.s32 %s79, 1
      %p83 = scmp.eq.s32.totalorder %s24, 1
      %p84 = scmp.ne.s32.totalorder %s79, %s81
      %p85 = scmp.eq.s32.totalorder %s24, 0
      %p86 = por %p84, %p85
      %p87 = scmp.ne.s32.totalorder %s79, %s81
      %p88 = scmp.eq.s32.totalorder %s29, 1
      %p89 = por %p87, %p88
      %p90 = scmp.ne.s32.totalorder %s81, %s82
      %p91 = scmp.eq.s32.totalorder %s29, 0
      %p92 = por %p90, %p91
      %p93 = scmp.ne.s32.totalorder %s81, %s82
      %p94 = scmp.eq.s32.totalorder %s30, 1
      %p95 = por %p93, %p94
      %p97 = scmp.ne.s32.totalorder %s82, %s96
      %p98 = scmp.eq.s32.totalorder %s30, 0
      %p99 = por %p97, %p98
      %s101 = sadd.s32 %s100, 1
      %p104 = scmp.eq.s32.totalorder %s24, 1
      %p105 = scmp.ne.s32.totalorder %s100, %s102
      %p106 = scmp.eq.s32.totalorder %s24, 0
      %p107 = por %p105, %p106
      %p108 = scmp.ne.s32.totalorder %s100, %s102
      %p109 = scmp.eq.s32.totalorder %s29, 1
      %p110 = por %p108, %p109
      %p111 = scmp.ne.s32.totalorder %s102, %s103
      %p112 = scmp.eq.s32.totalorder %s29, 0
      %p113 = por %p111, %p112
      %p114 = scmp.ne.s32.totalorder %s102, %s103
      %p115 = scmp.eq.s32.totalorder %s30, 1
      %p116 = por %p114, %p115
      %p118 = scmp.ne.s32.totalorder %s103, %s117
      %p119 = scmp.eq.s32.totalorder %s30, 0
      %p120 = por %p118, %p119
      %s122 = sadd.s32 %s121, 1
      %p125 = scmp.eq.s32.totalorder %s24, 1
      %p126 = scmp.ne.s32.totalorder %s121, %s123
      %p127 = scmp.eq.s32.totalorder %s24, 0
      %p128 = por %p126, %p127
      %p129 = scmp.ne.s32.totalorder %s121, %s123
      %p130 = scmp.eq.s32.totalorder %s29, 1
      %p131 = por %p129, %p130
      %p132 = scmp.ne.s32.totalorder %s123, %s124
      %p133 = scmp.eq.s32.totalorder %s29, 0
      %p134 = por %p132, %p133
      %p135 = scmp.ne.s32.totalorder %s123, %s124
      %p136 = scmp.eq.s32.totalorder %s30, 1
      %p137 = por %p135, %p136
      %p139 = scmp.ne.s32.totalorder %s124, %s138
      %p140 = scmp.eq.s32.totalorder %s30, 0
      %p141 = por %p139, %p140
      %s143 = sadd.s32 %s142, 1
      %p146 = scmp.eq.s32.totalorder %s24, 1
      %p147 = scmp.ne.s32.totalorder %s142, %s144
      %p148 = scmp.eq.s32.totalorder %s24, 0
      %p149 = por %p147, %p148
      %p150 = scmp.ne.s32.totalorder %s142, %s144
      %p151 = scmp.eq.s32.totalorder %s29, 1
      %p152 = por %p150, %p151
      %p153 = scmp.ne.s32.totalorder %s144, %s145
      %p154 = scmp.eq.s32.totalorder %s29, 0
      %p155 = por %p153, %p154
      %p156 = scmp.ne.s32.totalorder %s144, %s145
      %p157 = scmp.eq.s32.totalorder %s30, 1
      %p158 = por %p156, %p157
      %p160 = scmp.ne.s32.totalorder %s145, %s159
      %p161 = scmp.eq.s32.totalorder %s30, 0
      %p162 = por %p160, %p161
      %s164 = sadd.s32 %s163, 1
      %p167 = scmp.eq.s32.totalorder %s24, 1
      %p168 = scmp.ne.s32.totalorder %s163, %s165
      %p169 = scmp.eq.s32.totalorder %s24, 0
      %p170 = por %p168, %p169
      %p171 = scmp.ne.s32.totalorder %s163, %s165
      %p172 = scmp.eq.s32.totalorder %s29, 1
      %p173 = por %p171, %p172
      %p174 = scmp.ne.s32.totalorder %s165, %s166
      %p175 = scmp.eq.s32.totalorder %s29, 0
      %p176 = por %p174, %p175
      %p177 = scmp.ne.s32.totalorder %s165, %s166
      %p178 = scmp.eq.s32.totalorder %s30, 1
      %p179 = por %p177, %p178
      %p181 = scmp.ne.s32.totalorder %s166, %s180
      %p182 = scmp.eq.s32.totalorder %s30, 0
      %p183 = por %p181, %p182
      %s185 = sadd.s32 %s184, 1
      %p188 = scmp.eq.s32.totalorder %s24, 1
      %p189 = scmp.ne.s32.totalorder %s184, %s186
      %p190 = scmp.eq.s32.totalorder %s24, 0
      %p191 = por %p189, %p190
      %p192 = scmp.ne.s32.totalorder %s184, %s186
      %p193 = scmp.eq.s32.totalorder %s29, 1
      %p194 = por %p192, %p193
      %p195 = scmp.ne.s32.totalorder %s186, %s187
      %p196 = scmp.eq.s32.totalorder %s29, 0
      %p197 = por %p195, %p196
      %p198 = scmp.ne.s32.totalorder %s186, %s187
      %p199 = scmp.eq.s32.totalorder %s30, 1
      %p200 = por %p198, %p199
      %p202 = scmp.ne.s32.totalorder %s187, %s201
      %p203 = scmp.eq.s32.totalorder %s30, 0
      %p204 = por %p202, %p203
      %s206 = sadd.s32 %s205, 1
      %p209 = scmp.eq.s32.totalorder %s24, 1
      %p210 = scmp.ne.s32.totalorder %s205, %s207
      %p211 = scmp.eq.s32.totalorder %s24, 0
      %p212 = por %p210, %p211
      %p213 = scmp.ne.s32.totalorder %s205, %s207
      %p214 = scmp.eq.s32.totalorder %s29, 1
      %p215 = por %p213, %p214
      %p216 = scmp.ne.s32.totalorder %s207, %s208
      %p217 = scmp.eq.s32.totalorder %s29, 0
      %p218 = por %p216, %p217
      %p219 = scmp.ne.s32.totalorder %s207, %s208
      %p220 = scmp.eq.s32.totalorder %s30, 1
      %p221 = por %p219, %p220
      %p223 = scmp.ne.s32.totalorder %s208, %s222
      %p224 = scmp.eq.s32.totalorder %s30, 0
      %p225 = por %p223, %p224
      %s227 = sadd.s32 %s226, 1
      %p230 = scmp.eq.s32.totalorder %s24, 1
      %p231 = scmp.ne.s32.totalorder %s226, %s228
      %p232 = scmp.eq.s32.totalorder %s24, 0
      %p233 = por %p231, %p232
      %p234 = scmp.ne.s32.totalorder %s226, %s228
      %p235 = scmp.eq.s32.totalorder %s29, 1
      %p236 = por %p234, %p235
      %p237 = scmp.ne.s32.totalorder %s228, %s229
      %p238 = scmp.eq.s32.totalorder %s29, 0
      %p239 = por %p237, %p238
      %p240 = scmp.ne.s32.totalorder %s228, %s229
      %p241 = scmp.eq.s32.totalorder %s30, 1
      %p242 = por %p240, %p241
      %p244 = scmp.ne.s32.totalorder %s229, %s243
      %p245 = scmp.eq.s32.totalorder %s30, 0
      %p246 = por %p244, %p245
      %s248 = sadd.s32 %s247, 1
      %p251 = scmp.eq.s32.totalorder %s24, 1
      %p252 = scmp.ne.s32.totalorder %s247, %s249
      %p253 = scmp.eq.s32.totalorder %s24, 0
      %p254 = por %p252, %p253
      %p255 = scmp.ne.s32.totalorder %s247, %s249
      %p256 = scmp.eq.s32.totalorder %s29, 1
      %p257 = por %p255, %p256
      %p258 = scmp.ne.s32.totalorder %s249, %s250
      %p259 = scmp.eq.s32.totalorder %s29, 0
      %p260 = por %p258, %p259
      %p261 = scmp.ne.s32.totalorder %s249, %s250
      %p262 = scmp.eq.s32.totalorder %s30, 1
      %p263 = por %p261, %p262
      %p265 = scmp.ne.s32.totalorder %s250, %s264
      %p266 = scmp.eq.s32.totalorder %s30, 0
      %p267 = por %p265, %p266
      %s269 = sadd.s32 %s268, 1
      %p272 = scmp.eq.s32.totalorder %s24, 1
      %p273 = scmp.ne.s32.totalorder %s268, %s270
      %p274 = scmp.eq.s32.totalorder %s24, 0
      %p275 = por %p273, %p274
      %p276 = scmp.ne.s32.totalorder %s268, %s270
      %p277 = scmp.eq.s32.totalorder %s29, 1
      %p278 = por %p276, %p277
      %p279 = scmp.ne.s32.totalorder %s270, %s271
      %p280 = scmp.eq.s32.totalorder %s29, 0
      %p281 = por %p279, %p280
      %p282 = scmp.ne.s32.totalorder %s270, %s271
      %p283 = scmp.eq.s32.totalorder %s30, 1
      %p284 = por %p282, %p283
      %p286 = scmp.ne.s32.totalorder %s271, %s285
      %p287 = scmp.eq.s32.totalorder %s30, 0
      %p288 = por %p286, %p287
      %s290 = sadd.s32 %s289, 1
      %p293 = scmp.eq.s32.totalorder %s24, 1
      %p294 = scmp.ne.s32.totalorder %s289, %s291
      %p295 = scmp.eq.s32.totalorder %s24, 0
      %p296 = por %p294, %p295
      %p297 = scmp.ne.s32.totalorder %s289, %s291
      %p298 = scmp.eq.s32.totalorder %s29, 1
      %p299 = por %p297, %p298
      %p300 = scmp.ne.s32.totalorder %s291, %s292
      %p301 = scmp.eq.s32.totalorder %s29, 0
      %p302 = por %p300, %p301
      %p303 = scmp.ne.s32.totalorder %s291, %s292
      %p304 = scmp.eq.s32.totalorder %s30, 1
      %p305 = por %p303, %p304
      %p307 = scmp.ne.s32.totalorder %s292, %s306
      %p308 = scmp.eq.s32.totalorder %s30, 0
      %p309 = por %p307, %p308
      %s310 = ssub.s32 %s24, %s31
      %p311 = scmp.eq.s32.totalorder %s310, 0
      %s313 = sadd.s32 %s312, 1
      %s314 = scalar_select %p311, %s312, %s313
      %p317 = pneg %p311
      %p318 = scmp.eq.s32.totalorder %s24, 1
      %p319 = por %p317, %p318
      %p320 = scmp.ne.s32.totalorder %s312, %s315
      %p321 = scmp.eq.s32.totalorder %s24, 0
      %p322 = por %p320, %p321
      %p323 = scmp.ne.s32.totalorder %s312, %s315
      %p324 = scmp.eq.s32.totalorder %s29, 1
      %p325 = por %p323, %p324
      %p326 = scmp.ne.s32.totalorder %s315, %s316
      %p327 = scmp.eq.s32.totalorder %s29, 0
      %p328 = por %p326, %p327
      %p329 = scmp.ne.s32.totalorder %s315, %s316
      %p330 = scmp.eq.s32.totalorder %s30, 1
      %p331 = por %p329, %p330
      %p333 = scmp.ne.s32.totalorder %s316, %s332
      %p334 = scmp.eq.s32.totalorder %s30, 0
      %p335 = por %p333, %p334
      %s336 = ssub.s32 %s24, %s31
      %p337 = scmp.eq.s32.totalorder %s336, 0
      %s339 = sadd.s32 %s338, 1
      %s340 = scalar_select %p337, %s338, %s339
      %p343 = pneg %p337
      %p344 = scmp.eq.s32.totalorder %s24, 1
      %p345 = por %p343, %p344
      %p346 = scmp.ne.s32.totalorder %s338, %s341
      %p347 = scmp.eq.s32.totalorder %s24, 0
      %p348 = por %p346, %p347
      %p349 = scmp.ne.s32.totalorder %s338, %s341
      %p350 = scmp.eq.s32.totalorder %s29, 1
      %p351 = por %p349, %p350
      %p352 = scmp.ne.s32.totalorder %s341, %s342
      %p353 = scmp.eq.s32.totalorder %s29, 0
      %p354 = por %p352, %p353
      %p355 = scmp.ne.s32.totalorder %s341, %s342
      %p356 = scmp.eq.s32.totalorder %s30, 1
      %p357 = por %p355, %p356
      %p359 = scmp.ne.s32.totalorder %s342, %s358
      %p360 = scmp.eq.s32.totalorder %s30, 0
      %p361 = por %p359, %p360
      %s362 = ssub.s32 %s24, %s31
      %p363 = scmp.eq.s32.totalorder %s362, 0
      %s365 = sadd.s32 %s364, 1
      %s366 = scalar_select %p363, %s364, %s365
      %p369 = pneg %p363
      %p370 = scmp.eq.s32.totalorder %s24, 1
      %p371 = por %p369, %p370
      %p372 = scmp.ne.s32.totalorder %s364, %s367
      %p373 = scmp.eq.s32.totalorder %s24, 0
      %p374 = por %p372, %p373
      %p375 = scmp.ne.s32.totalorder %s364, %s367
      %p376 = scmp.eq.s32.totalorder %s29, 1
      %p377 = por %p375, %p376
      %p378 = scmp.ne.s32.totalorder %s367, %s368
      %p379 = scmp.eq.s32.totalorder %s29, 0
      %p380 = por %p378, %p379
      %p381 = scmp.ne.s32.totalorder %s367, %s368
      %p382 = scmp.eq.s32.totalorder %s30, 1
      %p383 = por %p381, %p382
      %p385 = scmp.ne.s32.totalorder %s368, %s384
      %p386 = scmp.eq.s32.totalorder %s30, 0
      %p387 = por %p385, %p386
      %p388 = scmp.le.s32.totalorder 1, %s24
      %p389 = scmp.lt.s32.totalorder %s24, 3
      %p390 = pnand %p388, %p389
      %p391 = pneg %p390
      // Predicated region
      $region9: #{encoder_forward.1} parent=5 // pred_check
        _
      $region10: #{encoder_forward.1} parent=5 // pred_check_branch
        %393 = sbr.rel (%p390) target = $region12
      $region11: #{encoder_forward.1} parent=5 // pred_region
        %s394 = ssub.s32 %s24, 1
        // Predicated region
        $region13: #{encoder_forward.1} parent=11 // pred_check
          %p395 = pneg %p71
        $region14: #{encoder_forward.1} parent=11 // pred_check_branch
          %397 = sbr.rel (%p395) target = $region16
        $region15: #{encoder_forward.1} parent=11 // pred_region
          _
        $region16: #{encoder_forward.1} parent=11 // pred_fallthru
          _
        // Predicated region
        $region17: #{encoder_forward.1} parent=11 // pred_check
          %p398 = pneg %p92
        $region18: #{encoder_forward.1} parent=11 // pred_check_branch
          %400 = sbr.rel (%p398) target = $region20
        $region19: #{encoder_forward.1} parent=11 // pred_region
          _
        $region20: #{encoder_forward.1} parent=11 // pred_fallthru
          _
        // Predicated region
        $region21: #{encoder_forward.1} parent=11 // pred_check
          %p401 = pneg %p113
        $region22: #{encoder_forward.1} parent=11 // pred_check_branch
          %403 = sbr.rel (%p401) target = $region24
        $region23: #{encoder_forward.1} parent=11 // pred_region
          %s405 = ssub.s32 512, 512
          %406 = vsyncadd [#allocation4], %s405
          %s407 = sshll.u32 [#allocation3], 4
          %s408 = int_to_ptr.vmem [resolvable:$true] %s407
          %413 = dma.hbm_to_vmem [thread:$0]  %s3, 512, %s408, [#allocation4], 256, 256, 16
        $region24: #{encoder_forward.1} parent=11 // pred_fallthru
          _
        // Predicated region
        $region25: #{encoder_forward.1} parent=11 // pred_check
          %p414 = pneg %p134
        $region26: #{encoder_forward.1} parent=11 // pred_check_branch
          %416 = sbr.rel (%p414) target = $region28
        $region27: #{encoder_forward.1} parent=11 // pred_region
          _
        $region28: #{encoder_forward.1} parent=11 // pred_fallthru
          _
        // Predicated region
        $region29: #{encoder_forward.1} parent=11 // pred_check
          %p417 = pneg %p155
        $region30: #{encoder_forward.1} parent=11 // pred_check_branch
          %419 = sbr.rel (%p417) target = $region32
        $region31: #{encoder_forward.1} parent=11 // pred_region
          %s421 = ssub.s32 1024, 1024
          %422 = vsyncadd [#allocation6], %s421
          %s423 = sshll.u32 [#allocation5], 4
          %s424 = int_to_ptr.vmem [resolvable:$true] %s423
          %429 = dma.hbm_to_vmem [thread:$0]  %s5, 1024, %s424, [#allocation6], 256, 256, 16
        $region32: #{encoder_forward.1} parent=11 // pred_fallthru
          _
        // Predicated region
        $region33: #{encoder_forward.1} parent=11 // pred_check
          %p430 = pneg %p176
        $region34: #{encoder_forward.1} parent=11 // pred_check_branch
          %432 = sbr.rel (%p430) target = $region36
        $region35: #{encoder_forward.1} parent=11 // pred_region
          _
        $region36: #{encoder_forward.1} parent=11 // pred_fallthru
          _
        // Predicated region
        $region37: #{encoder_forward.1} parent=11 // pred_check
          %p433 = pneg %p197
        $region38: #{encoder_forward.1} parent=11 // pred_check_branch
          %435 = sbr.rel (%p433) target = $region40
        $region39: #{encoder_forward.1} parent=11 // pred_region
          _
        $region40: #{encoder_forward.1} parent=11 // pred_fallthru
          _
        // Predicated region
        $region41: #{encoder_forward.1} parent=11 // pred_check
          %p436 = pneg %p218
        $region42: #{encoder_forward.1} parent=11 // pred_check_branch
          %438 = sbr.rel (%p436) target = $region44
        $region43: #{encoder_forward.1} parent=11 // pred_region
          _
        $region44: #{encoder_forward.1} parent=11 // pred_fallthru
          _
        // Predicated region
        $region45: #{encoder_forward.1} parent=11 // pred_check
          %p439 = pneg %p239
        $region46: #{encoder_forward.1} parent=11 // pred_check_branch
          %441 = sbr.rel (%p439) target = $region48
        $region47: #{encoder_forward.1} parent=11 // pred_region
          %s443 = ssub.s32 3072, 3072
          %444 = vsyncadd [#allocation6], %s443
          %s445 = sshll.u32 [#allocation7], 4
          %s446 = int_to_ptr.vmem [resolvable:$true] %s445
          %451 = dma.hbm_to_vmem [thread:$0]  %s9, 3072, %s446, [#allocation6], 384, 384, 24
        $region48: #{encoder_forward.1} parent=11 // pred_fallthru
          _
        // Predicated region
        $region49: #{encoder_forward.1} parent=11 // pred_check
          %p452 = pneg %p260
        $region50: #{encoder_forward.1} parent=11 // pred_check_branch
          %454 = sbr.rel (%p452) target = $region52
        $region51: #{encoder_forward.1} parent=11 // pred_region
          _
        $region52: #{encoder_forward.1} parent=11 // pred_fallthru
          _
        // Predicated region
        $region53: #{encoder_forward.1} parent=11 // pred_check
          %p455 = pneg %p281
        $region54: #{encoder_forward.1} parent=11 // pred_check_branch
          %457 = sbr.rel (%p455) target = $region56
        $region55: #{encoder_forward.1} parent=11 // pred_region
          _
        $region56: #{encoder_forward.1} parent=11 // pred_fallthru
          _
        // Predicated region
        $region57: #{encoder_forward.1} parent=11 // pred_check
          %p458 = pneg %p302
        $region58: #{encoder_forward.1} parent=11 // pred_check_branch
          %460 = sbr.rel (%p458) target = $region60
        $region59: #{encoder_forward.1} parent=11 // pred_region
          _
        $region60: #{encoder_forward.1} parent=11 // pred_fallthru
          _
      $region12: #{encoder_forward.1} parent=5 // pred_fallthru
        _
      %p461 = scmp.lt.s32.totalorder %s24, 2
      // Predicated region
      $region61: #{encoder_forward.1} parent=5 // pred_check
        %p462 = pneg %p461
      $region62: #{encoder_forward.1} parent=5 // pred_check_branch
        %464 = sbr.rel (%p462) target = $region64
      $region63: #{encoder_forward.1} parent=5 // pred_region
        // Predicated region
        $region65: #{encoder_forward.1} parent=63 // pred_check
          %p465 = pneg %p44
        $region66: #{encoder_forward.1} parent=63 // pred_check_branch
          %467 = sbr.rel (%p465) target = $region68
        $region67: #{encoder_forward.1} parent=63 // pred_region
          %p468 = scmp.lt.s32.totalorder %s24, 1
          %s469 = scalar_select %p468, %s24, 1
          %s470 = smul.addr %s469, 11
          %s471 = scalar_lea.vmem %s0, %s470
        $region68: #{encoder_forward.1} parent=63 // pred_fallthru
          _
      $region64: #{encoder_forward.1} parent=5 // pred_fallthru
        _
      %p472 = scmp.le.s32.totalorder 1, %s24
      %p473 = scmp.lt.s32.totalorder %s24, 3
      %p474 = pnand %p472, %p473
      %p475 = pneg %p474
      // Predicated region
      $region69: #{encoder_forward.1} parent=5 // pred_check
        _
      $region70: #{encoder_forward.1} parent=5 // pred_check_branch
        %477 = sbr.rel (%p474) target = $region72
      $region71: #{encoder_forward.1} parent=5 // pred_region
        %s478 = ssub.s32 %s24, 1
        // Predicated region
        $region73: #{encoder_forward.1} parent=71 // pred_check
          %p479 = pneg %p113
        $region74: #{encoder_forward.1} parent=71 // pred_check_branch
          %481 = sbr.rel (%p479) target = $region76
        $region75: #{encoder_forward.1} parent=71 // pred_region
          %482 = dma.done [#allocation4], 512
        $region76: #{encoder_forward.1} parent=71 // pred_fallthru
          _
        // Predicated region
        $region77: #{encoder_forward.1} parent=71 // pred_check
          %p483 = pneg %p155
        $region78: #{encoder_forward.1} parent=71 // pred_check_branch
          %485 = sbr.rel (%p483) target = $region80
        $region79: #{encoder_forward.1} parent=71 // pred_region
          %486 = dma.done [#allocation6], 1024
        $region80: #{encoder_forward.1} parent=71 // pred_fallthru
          _
        // Predicated region
        $region81: #{encoder_forward.1} parent=71 // pred_check
          %p487 = pneg %p239
        $region82: #{encoder_forward.1} parent=71 // pred_check_branch
          %489 = sbr.rel (%p487) target = $region84
        $region83: #{encoder_forward.1} parent=71 // pred_region
          %490 = dma.done [#allocation6], 3072
        $region84: #{encoder_forward.1} parent=71 // pred_fallthru
          _
        %p491 = scmp.lt.s32.totalorder %s29, 1
        %s492 = scalar_select %p491, %s29, 1
        %s493 = smul.addr %s492, 11
        %s494 = scalar_lea.vmem %s0, %s493
        %p495 = pneg %p50
        %p496 = pneg %p47
        %p497 = pneg %p71
        %p498 = pneg %p68
        %p499 = pneg %p92
        %p500 = pneg %p89
        %p501 = pneg %p113
        %p502 = pneg %p110
        %p503 = pneg %p134
        %p504 = pneg %p131
        %p505 = pneg %p155
        %p506 = pneg %p152
        %p507 = pneg %p176
        %p508 = pneg %p173
        %p509 = pneg %p197
        %p510 = pneg %p194
        %p511 = pneg %p218
        %p512 = pneg %p215
        %p513 = pneg %p239
        %p514 = pneg %p236
        %p515 = pneg %p260
        %p516 = pneg %p257
        %p517 = pneg %p281
        %p518 = pneg %p278
        %p519 = pneg %p302
        %p520 = pneg %p299
        %p521 = pneg %p328
        %p522 = pneg %p325
        %p523 = scmp.lt.s32.totalorder %s29, 1
        %s524 = scalar_select %p523, %s29, 1
        %s525 = smul.addr %s524, 18
        %s526 = smul.addr %s525, 8
        %s527 = scalar_lea.vmem %s13, %s526
        %p528 = pneg %p354
        %p529 = pneg %p351
        %p530 = scmp.lt.s32.totalorder %s29, 1
        %s531 = scalar_select %p530, %s29, 1
        %s532 = smul.addr %s531, 28
        %s533 = smul.addr %s532, 8
        %s534 = scalar_lea.vmem %s14, %s533
        %p535 = pneg %p380
        %p536 = pneg %p377
        %p537 = scmp.lt.s32.totalorder %s29, 1
        %s538 = scalar_select %p537, %s29, 1
        %s539 = smul.addr %s538, 16
        %s540 = smul.addr %s539, 8
        %s541 = scalar_lea.vmem %s15, %s540
        %p542 = scmp.lt.s32.totalorder %s29, 1
        %s543 = scalar_select %p542, %s29, 1
        %s544 = smul.addr %s543, 11
        %s545 = scalar_lea.vmem %s0, %s544
        %p546 = scmp.lt.s32.totalorder %s29, 1
        %s547 = scalar_select %p546, %s29, 1
        %s548 = smul.addr %s547, 18
        %s549 = smul.addr %s548, 8
        %s550 = scalar_lea.vmem %s13, %s549
        %p551 = scmp.lt.s32.totalorder %s29, 1
        %s552 = scalar_select %p551, %s29, 1
        %s553 = smul.addr %s552, 28
        %s554 = smul.addr %s553, 8
        %s555 = scalar_lea.vmem %s14, %s554
        %p556 = scmp.lt.s32.totalorder %s29, 1
        %s557 = scalar_select %p556, %s29, 1
        %s558 = smul.addr %s557, 16
        %s559 = smul.addr %s558, 8
        %s560 = scalar_lea.vmem %s15, %s559
        %v561 = vld [vmem:[%s545] sm:$0xff]
        %v562 = vld [vmem:[%s545 + $0x8] sm:$0x7]
        %563 = vst [vmem:[#allocation2] ss:$8 sm:$0xf] %v561
        %564 = vst [vmem:[#allocation2] ss:$8 sm:$0xf0] %v561
        %v565 = vlaneseq
        %vm566 = vcmp.ge.s32.totalorder %v565, 0
        %vm567 = vcmp.lt.s32.totalorder %v565, 198
        %vm568 = vmand %vm566, %vm567
        %s569 = scalar_lea.vmem [#allocation2], 64
        %570 = vst.msk [vmem:[%s569] ss:$8 sm:$0x3] %vm568, %v562
        %571 = vst.msk [vmem:[%s569] ss:$8 sm:$0x0] %vm568, %v562
        %574 = vrot.lane.b32.xlu0 %v561, 127
        %v575 = vpop.permute.xlu0 %574
        %576 = vrot.lane.b32.xlu0 %v562, 127
        %v577 = vpop.permute.xlu0 %576
        %v578 = vrot.slane %v575, 1
        %v579 = vrot.slane %v577, 1
        %vm580 = vcmask 1046528
        %v581 = vsel %vm580, %v578, %v579
        %vm582 = vcmask 1039360
        %v583 = vsel %vm582, %v575, %v581
        %v584 = vsel %vm582, %v577, %v579
        %s587 = scalar_lea.vmem [#allocation2], 1
        %588 = vst [vmem:[%s587] ss:$8 sm:$0xf] %v583
        %589 = vst [vmem:[%s587] ss:$8 sm:$0xf0] %v583
        %s590 = scalar_lea.vmem [#allocation2], 65
        %591 = vst.msk [vmem:[%s590] ss:$8 sm:$0x3] %vm568, %v584
        %592 = vst.msk [vmem:[%s590] ss:$8 sm:$0x0] %vm568, %v584
        %593 = vrot.lane.b32.xlu0 %v561, 126
        %v594 = vpop.permute.xlu0 %593
        %595 = vrot.lane.b32.xlu0 %v562, 126
        %v596 = vpop.permute.xlu0 %595
        %v597 = vrot.slane %v594, 1
        %v598 = vrot.slane %v596, 1
        %v599 = vsel %vm580, %v597, %v598
        %vm600 = vcmask 1031168
        %v601 = vsel %vm600, %v594, %v599
        %v602 = vsel %vm600, %v596, %v598
        %s605 = scalar_lea.vmem [#allocation2], 2
        %606 = vst [vmem:[%s605] ss:$8 sm:$0xf] %v601
        %607 = vst [vmem:[%s605] ss:$8 sm:$0xf0] %v601
        %s608 = scalar_lea.vmem [#allocation2], 66
        %609 = vst.msk [vmem:[%s608] ss:$8 sm:$0x3] %vm568, %v602
        %610 = vst.msk [vmem:[%s608] ss:$8 sm:$0x0] %vm568, %v602
        %611 = vrot.lane.b32.xlu0 %v561, 92
        %v612 = vpop.permute.xlu0 %611
        %613 = vrot.lane.b32.xlu0 %v562, 92
        %v614 = vpop.permute.xlu0 %613
        %v615 = vrot.slane %v612, 1
        %v616 = vrot.slane %v614, 1
        %v617 = vsel %vm580, %v615, %v616
        %vm618 = vcmask 752640
        %v619 = vsel %vm618, %v612, %v617
        %v620 = vsel %vm618, %v614, %v616
        %s623 = scalar_lea.vmem [#allocation2], 3
        %624 = vst [vmem:[%s623] ss:$8 sm:$0xf] %v619
        %625 = vst [vmem:[%s623] ss:$8 sm:$0xf0] %v619
        %s626 = scalar_lea.vmem [#allocation2], 67
        %627 = vst.msk [vmem:[%s626] ss:$8 sm:$0x3] %vm568, %v620
        %628 = vst.msk [vmem:[%s626] ss:$8 sm:$0x0] %vm568, %v620
        %629 = vrot.lane.b32.xlu0 %v561, 91
        %v630 = vpop.permute.xlu0 %629
        %631 = vrot.lane.b32.xlu0 %v562, 91
        %v632 = vpop.permute.xlu0 %631
        %v633 = vrot.slane %v630, 1
        %v634 = vrot.slane %v632, 1
        %v635 = vsel %vm580, %v633, %v634
        %vm636 = vcmask 744448
        %v637 = vsel %vm636, %v630, %v635
        %v638 = vsel %vm636, %v632, %v634
        %s641 = scalar_lea.vmem [#allocation2], 4
        %642 = vst [vmem:[%s641] ss:$8 sm:$0xf] %v637
        %643 = vst [vmem:[%s641] ss:$8 sm:$0xf0] %v637
        %s644 = scalar_lea.vmem [#allocation2], 68
        %645 = vst.msk [vmem:[%s644] ss:$8 sm:$0x3] %vm568, %v638
        %646 = vst.msk [vmem:[%s644] ss:$8 sm:$0x0] %vm568, %v638
        %647 = vrot.lane.b32.xlu0 %v561, 90
        %v648 = vpop.permute.xlu0 %647
        %649 = vrot.lane.b32.xlu0 %v562, 90
        %v650 = vpop.permute.xlu0 %649
        %v651 = vrot.slane %v648, 1
        %v652 = vrot.slane %v650, 1
        %v653 = vsel %vm580, %v651, %v652
        %vm654 = vcmask 736256
        %v655 = vsel %vm654, %v648, %v653
        %v656 = vsel %vm654, %v650, %v652
        %s659 = scalar_lea.vmem [#allocation2], 5
        %660 = vst [vmem:[%s659] ss:$8 sm:$0xf] %v655
        %661 = vst [vmem:[%s659] ss:$8 sm:$0xf0] %v655
        %s662 = scalar_lea.vmem [#allocation2], 69
        %663 = vst.msk [vmem:[%s662] ss:$8 sm:$0x3] %vm568, %v656
        %664 = vst.msk [vmem:[%s662] ss:$8 sm:$0x0] %vm568, %v656
        %665 = vrot.lane.b32.xlu0 %v561, 56
        %v666 = vpop.permute.xlu0 %665
        %667 = vrot.lane.b32.xlu0 %v562, 56
        %v668 = vpop.permute.xlu0 %667
        %v669 = vrot.slane %v666, 1
        %v670 = vrot.slane %v668, 1
        %v671 = vsel %vm580, %v669, %v670
        %vm672 = vcmask 457728
        %v673 = vsel %vm672, %v666, %v671
        %v674 = vsel %vm672, %v668, %v670
        %s677 = scalar_lea.vmem [#allocation2], 6
        %678 = vst [vmem:[%s677] ss:$8 sm:$0xf] %v673
        %679 = vst [vmem:[%s677] ss:$8 sm:$0xf0] %v673
        %s680 = scalar_lea.vmem [#allocation2], 70
        %681 = vst.msk [vmem:[%s680] ss:$8 sm:$0x3] %vm568, %v674
        %682 = vst.msk [vmem:[%s680] ss:$8 sm:$0x0] %vm568, %v674
        %683 = vrot.lane.b32.xlu0 %v561, 55
        %v684 = vpop.permute.xlu0 %683
        %685 = vrot.lane.b32.xlu0 %v562, 55
        %v686 = vpop.permute.xlu0 %685
        %v687 = vrot.slane %v684, 1
        %v688 = vrot.slane %v686, 1
        %v689 = vsel %vm580, %v687, %v688
        %vm690 = vcmask 449536
        %v691 = vsel %vm690, %v684, %v689
        %v692 = vsel %vm690, %v686, %v688
        %s695 = scalar_lea.vmem [#allocation2], 7
        %696 = vst [vmem:[%s695] ss:$8 sm:$0xf] %v691
        %697 = vst [vmem:[%s695] ss:$8 sm:$0xf0] %v691
        %s698 = scalar_lea.vmem [#allocation2], 71
        %699 = vst.msk [vmem:[%s698] ss:$8 sm:$0x3] %vm568, %v692
        %700 = vst.msk [vmem:[%s698] ss:$8 sm:$0x0] %vm568, %v692
        %701 = vrot.lane.b32.xlu0 %v561, 54
        %v702 = vpop.permute.xlu0 %701
        %703 = vrot.lane.b32.xlu0 %v562, 54
        %v704 = vpop.permute.xlu0 %703
        %v705 = vrot.slane %v702, 1
        %v706 = vrot.slane %v704, 1
        %v707 = vsel %vm580, %v705, %v706
        %vm708 = vcmask 441344
        %v709 = vsel %vm708, %v702, %v707
        %v710 = vsel %vm708, %v704, %v706
        %s713 = scalar_lea.vmem [#allocation2], 88
        %714 = vst [vmem:[%s713] ss:$8 sm:$0xf] %v709
        %715 = vst [vmem:[%s713] ss:$8 sm:$0xf0] %v709
        %s716 = scalar_lea.vmem [#allocation2], 152
        %717 = vst.msk [vmem:[%s716] ss:$8 sm:$0x3] %vm568, %v710
        %718 = vst.msk [vmem:[%s716] ss:$8 sm:$0x0] %vm568, %v710
        %v719 = vld [vmem:[%s1] sm:$0xff]
        %v720 = vld [vmem:[%s1 + $0x8] sm:$0xff]
        %v721 = vld [vmem:[#allocation2] sm:$0xff]
        %v722 = vld [vmem:[#allocation2 + $0x8] sm:$0xff]
        %v723 = vld [vmem:[#allocation2 + $0x10] sm:$0xff]
        %v724 = vld [vmem:[#allocation2 + $0x18] sm:$0xff]
        %v725 = vld [vmem:[#allocation2 + $0x20] sm:$0xff]
        %v726 = vld [vmem:[#allocation2 + $0x28] sm:$0xff]
        %v727 = vld [vmem:[#allocation2 + $0x30] sm:$0xff]
        %v728 = vld [vmem:[#allocation2 + $0x38] sm:$0xff]
        %v729 = vld [vmem:[#allocation2 + $0x40] sm:$0xff]
        %v730 = vld [vmem:[#allocation2 + $0x48] sm:$0xff]
        %v731 = vld [vmem:[#allocation2 + $0x58] sm:$0x1]
        %v732 = vld [vmem:[#allocation2 + $0x60] sm:$0x1]
        %v733 = vld [vmem:[#allocation2 + $0x68] sm:$0x1]
        %v734 = vld [vmem:[#allocation2 + $0x70] sm:$0x1]
        %v735 = vld [vmem:[#allocation2 + $0x78] sm:$0x1]
        %v736 = vld [vmem:[#allocation2 + $0x80] sm:$0x1]
        %v737 = vld [vmem:[#allocation2 + $0x88] sm:$0x1]
        %v738 = vld [vmem:[#allocation2 + $0x90] sm:$0x1]
        %v739 = vld [vmem:[#allocation2 + $0x98] sm:$0x1]
        %v740 = vld [vmem:[#allocation2 + $0xa0] sm:$0x1]
        %v741 = vld [vmem:[%s2] sm:$0xff]
        %v742 = vld [vmem:[%s2 + $0x8] sm:$0xff]
        %744 = vset.pattern.permute.xlu0 0
        %745 = vperm.xlu0 %744, %v741
        %v746 = vpop.permute.xlu0 %745
        %749 = vset.pattern.permute.xlu0 0
        %750 = vperm.xlu0 %749, %v742
        %v751 = vpop.permute.xlu0 %750
        %vm753 = vcmask 72704
        %v755 = vsel %vm753, %v719, 0
        %v758 = vsel %vm753, %v720, 0
        %vm760 = vcmask 1040384
        %v762 = vsel %vm760, %v731, 0
        %v765 = vsel %vm760, %v732, 0
        %v768 = vsel %vm760, %v733, 0
        %v771 = vsel %vm760, %v734, 0
        %v774 = vsel %vm760, %v735, 0
        %v777 = vsel %vm760, %v736, 0
        %v780 = vsel %vm760, %v737, 0
        %v783 = vsel %vm760, %v738, 0
        %v786 = vsel %vm760, %v739, 0
        %v789 = vsel %vm760, %v740, 0
        %791 = vmatprep.subr.mxu0 0.0
        %792 = vmatpush1.msra.mxu0 0.0
        %793 = vmatprep.subr.mxu0 0.0
        %794 = vmatpush1.msra.mxu0 0.0
        %795 = vmatprep.subr.mxu0 0.0
        %796 = vmatpush1.msra.mxu0 0.0
        %797 = vmatprep.subr.mxu0 0.0
        %798 = vmatpush1.msra.mxu0 0.0
        %799 = vmatprep.subr.mxu0 0.0
        %800 = vmatpush1.msra.mxu0 0.0
        %801 = vmatprep.subr.mxu0 0.0
        %802 = vmatpush1.msra.mxu0 0.0
        %803 = vmatprep.subr.mxu0 0.0
        %804 = vmatpush1.msra.mxu0 0.0
        %805 = vmatprep.subr.mxu0 0.0
        %806 = vmatpush1.msra.mxu0 0.0
        %807 = vmatprep.subr.mxu0 0.0
        %808 = vmatpush1.msra.mxu0 0.0
        %809 = vmatprep.subr.mxu0 0.0
        %810 = vmatpush1.msra.mxu0 0.0
        %811 = vmatprep.subr.mxu0 0.0
        %812 = vmatpush1.msra.mxu0 0.0
        %813 = vmatprep.subr.mxu0 0.0
        %814 = vmatpush1.msra.mxu0 0.0
        %815 = vmatprep.subr.mxu0 0.0
        %816 = vmatpush1.msra.mxu0 0.0
        %817 = vmatprep.subr.mxu0 0.0
        %818 = vmatpush1.msra.mxu0 0.0
        %819 = vmatprep.subr.mxu0 %v765
        %820 = vmatpush1.msra.mxu0 %v762
        %821 = vmatprep.subr.mxu0 %v722
        %822 = vmatpush1.msra.mxu0 %v721
        %823 = vmatprep.subr.mxu0 0.0
        %824 = vmatpush2.msra.mxu0 0.0
        %825 = vmatprep.subr.mxu0 0.0
        %826 = vmatpush2.msra.mxu0 0.0
        %827 = vmatprep.subr.mxu0 0.0
        %828 = vmatpush2.msra.mxu0 0.0
        %829 = vmatprep.subr.mxu0 0.0
        %830 = vmatpush2.msra.mxu0 0.0
        %831 = vmatprep.subr.mxu0 0.0
        %832 = vmatpush2.msra.mxu0 0.0
        %833 = vmatprep.subr.mxu0 0.0
        %834 = vmatpush2.msra.mxu0 0.0
        %835 = vmatprep.subr.mxu0 0.0
        %836 = vmatpush2.msra.mxu0 0.0
        %837 = vmatprep.subr.mxu0 0.0
        %838 = vmatpush2.msra.mxu0 0.0
        %839 = vmatprep.subr.mxu0 0.0
        %840 = vmatpush2.msra.mxu0 0.0
        %841 = vmatprep.subr.mxu0 0.0
        %842 = vmatpush2.msra.mxu0 0.0
        %843 = vmatprep.subr.mxu0 0.0
        %844 = vmatpush2.msra.mxu0 0.0
        %845 = vmatprep.subr.mxu0 0.0
        %846 = vmatpush2.msra.mxu0 0.0
        %847 = vmatprep.subr.mxu0 0.0
        %848 = vmatpush2.msra.mxu0 0.0
        %849 = vmatprep.subr.mxu0 0.0
        %850 = vmatpush2.msra.mxu0 0.0
        %851 = vmatprep.subr.mxu0 0.0
        %852 = vmatpush2.msra.mxu0 0.0
        %853 = vmatprep.subr.mxu0 0.0
        %854 = vmatpush2.msra.mxu0 0.0
        %855 = vmatprep.mubr.f32.mxu0 0.0
        %856 = vmatmul.mubr.f32.gmra.mxu0 %v755
        %v857 = vpop.f32.mrf.mxu0
        %v858 = vadd.f32 %v746, %v857
        %v859 = vpop.f32.mrf.mxu0
        %v860 = vadd.f32 %v746, %v859
        %861 = vmatprep.mubr.f32.mxu0 0.0
        %862 = vmatmul.mubr.f32.gmra.mxu0 %v758
        %v863 = vpop.f32.mrf.mxu0
        %v864 = vadd.f32 %v751, %v863
        %v865 = vpop.f32.mrf.mxu0
        %v866 = vadd.f32 %v751, %v865
        %867 = vdwg.mxu0
        %868 = vmatprep.subr.mxu0 0.0
        %869 = vmatpush1.msra.mxu0 0.0
        %870 = vmatprep.subr.mxu0 0.0
        %871 = vmatpush1.msra.mxu0 0.0
        %872 = vmatprep.subr.mxu0 0.0
        %873 = vmatpush1.msra.mxu0 0.0
        %874 = vmatprep.subr.mxu0 0.0
        %875 = vmatpush1.msra.mxu0 0.0
        %876 = vmatprep.subr.mxu0 0.0
        %877 = vmatpush1.msra.mxu0 0.0
        %878 = vmatprep.subr.mxu0 0.0
        %879 = vmatpush1.msra.mxu0 0.0
        %880 = vmatprep.subr.mxu0 0.0
        %881 = vmatpush1.msra.mxu0 0.0
        %882 = vmatprep.subr.mxu0 0.0
        %883 = vmatpush1.msra.mxu0 0.0
        %884 = vmatprep.subr.mxu0 0.0
        %885 = vmatpush1.msra.mxu0 0.0
        %886 = vmatprep.subr.mxu0 0.0
        %887 = vmatpush1.msra.mxu0 0.0
        %888 = vmatprep.subr.mxu0 0.0
        %889 = vmatpush1.msra.mxu0 0.0
        %890 = vmatprep.subr.mxu0 0.0
        %891 = vmatpush1.msra.mxu0 0.0
        %892 = vmatprep.subr.mxu0 0.0
        %893 = vmatpush1.msra.mxu0 0.0
        %894 = vmatprep.subr.mxu0 0.0
        %895 = vmatpush1.msra.mxu0 0.0
        %896 = vmatprep.subr.mxu0 %v771
        %897 = vmatpush1.msra.mxu0 %v768
        %898 = vmatprep.subr.mxu0 %v724
        %899 = vmatpush1.msra.mxu0 %v723
        %900 = vmatprep.subr.mxu0 0.0
        %901 = vmatpush2.msra.mxu0 0.0
        %902 = vmatprep.subr.mxu0 0.0
        %903 = vmatpush2.msra.mxu0 0.0
        %904 = vmatprep.subr.mxu0 0.0
        %905 = vmatpush2.msra.mxu0 0.0
        %906 = vmatprep.subr.mxu0 0.0
        %907 = vmatpush2.msra.mxu0 0.0
        %908 = vmatprep.subr.mxu0 0.0
        %909 = vmatpush2.msra.mxu0 0.0
        %910 = vmatprep.subr.mxu0 0.0
        %911 = vmatpush2.msra.mxu0 0.0
        %912 = vmatprep.subr.mxu0 0.0
        %913 = vmatpush2.msra.mxu0 0.0
        %914 = vmatprep.subr.mxu0 0.0
        %915 = vmatpush2.msra.mxu0 0.0
        %916 = vmatprep.subr.mxu0 0.0
        %917 = vmatpush2.msra.mxu0 0.0
        %918 = vmatprep.subr.mxu0 0.0
        %919 = vmatpush2.msra.mxu0 0.0
        %920 = vmatprep.subr.mxu0 0.0
        %921 = vmatpush2.msra.mxu0 0.0
        %922 = vmatprep.subr.mxu0 0.0
        %923 = vmatpush2.msra.mxu0 0.0
        %924 = vmatprep.subr.mxu0 0.0
        %925 = vmatpush2.msra.mxu0 0.0
        %926 = vmatprep.subr.mxu0 0.0
        %927 = vmatpush2.msra.mxu0 0.0
        %928 = vmatprep.subr.mxu0 0.0
        %929 = vmatpush2.msra.mxu0 0.0
        %930 = vmatprep.subr.mxu0 0.0
        %931 = vmatpush2.msra.mxu0 0.0
        %932 = vmatprep.mubr.f32.mxu0 0.0
        %933 = vmatmul.mubr.f32.gmra.mxu0 %v755
        %v934 = vpop.f32.mrf.mxu0
        %v935 = vadd.f32 %v746, %v934
        %v936 = vpop.f32.mrf.mxu0
        %v937 = vadd.f32 %v746, %v936
        %938 = vmatprep.mubr.f32.mxu0 0.0
        %939 = vmatmul.mubr.f32.gmra.mxu0 %v758
        %v940 = vpop.f32.mrf.mxu0
        %v941 = vadd.f32 %v751, %v940
        %v942 = vpop.f32.mrf.mxu0
        %v943 = vadd.f32 %v751, %v942
        %944 = vdwg.mxu0
        %945 = vmatprep.subr.mxu0 0.0
        %946 = vmatpush1.msra.mxu0 0.0
        %947 = vmatprep.subr.mxu0 0.0
        %948 = vmatpush1.msra.mxu0 0.0
        %949 = vmatprep.subr.mxu0 0.0
        %950 = vmatpush1.msra.mxu0 0.0
        %951 = vmatprep.subr.mxu0 0.0
        %952 = vmatpush1.msra.mxu0 0.0
        %953 = vmatprep.subr.mxu0 0.0
        %954 = vmatpush1.msra.mxu0 0.0
        %955 = vmatprep.subr.mxu0 0.0
        %956 = vmatpush1.msra.mxu0 0.0
        %957 = vmatprep.subr.mxu0 0.0
        %958 = vmatpush1.msra.mxu0 0.0
        %959 = vmatprep.subr.mxu0 0.0
        %960 = vmatpush1.msra.mxu0 0.0
        %961 = vmatprep.subr.mxu0 0.0
        %962 = vmatpush1.msra.mxu0 0.0
        %963 = vmatprep.subr.mxu0 0.0
        %964 = vmatpush1.msra.mxu0 0.0
        %965 = vmatprep.subr.mxu0 0.0
        %966 = vmatpush1.msra.mxu0 0.0
        %967 = vmatprep.subr.mxu0 0.0
        %968 = vmatpush1.msra.mxu0 0.0
        %969 = vmatprep.subr.mxu0 0.0
        %970 = vmatpush1.msra.mxu0 0.0
        %971 = vmatprep.subr.mxu0 0.0
        %972 = vmatpush1.msra.mxu0 0.0
        %973 = vmatprep.subr.mxu0 %v777
        %974 = vmatpush1.msra.mxu0 %v774
        %975 = vmatprep.subr.mxu0 %v726
        %976 = vmatpush1.msra.mxu0 %v725
        %977 = vmatprep.subr.mxu0 0.0
        %978 = vmatpush2.msra.mxu0 0.0
        %979 = vmatprep.subr.mxu0 0.0
        %980 = vmatpush2.msra.mxu0 0.0
        %981 = vmatprep.subr.mxu0 0.0
        %982 = vmatpush2.msra.mxu0 0.0
        %983 = vmatprep.subr.mxu0 0.0
        %984 = vmatpush2.msra.mxu0 0.0
        %985 = vmatprep.subr.mxu0 0.0
        %986 = vmatpush2.msra.mxu0 0.0
        %987 = vmatprep.subr.mxu0 0.0
        %988 = vmatpush2.msra.mxu0 0.0
        %989 = vmatprep.subr.mxu0 0.0
        %990 = vmatpush2.msra.mxu0 0.0
        %991 = vmatprep.subr.mxu0 0.0
        %992 = vmatpush2.msra.mxu0 0.0
        %993 = vmatprep.subr.mxu0 0.0
        %994 = vmatpush2.msra.mxu0 0.0
        %995 = vmatprep.subr.mxu0 0.0
        %996 = vmatpush2.msra.mxu0 0.0
        %997 = vmatprep.subr.mxu0 0.0
        %998 = vmatpush2.msra.mxu0 0.0
        %999 = vmatprep.subr.mxu0 0.0
        %1000 = vmatpush2.msra.mxu0 0.0
        %1001 = vmatprep.subr.mxu0 0.0
        %1002 = vmatpush2.msra.mxu0 0.0
        %1003 = vmatprep.subr.mxu0 0.0
        %1004 = vmatpush2.msra.mxu0 0.0
        %1005 = vmatprep.subr.mxu0 0.0
        %1006 = vmatpush2.msra.mxu0 0.0
        %1007 = vmatprep.subr.mxu0 0.0
        %1008 = vmatpush2.msra.mxu0 0.0
        %1009 = vmatprep.mubr.f32.mxu0 0.0
        %1010 = vmatmul.mubr.f32.gmra.mxu0 %v755
        %v1011 = vpop.f32.mrf.mxu0
        %v1012 = vadd.f32 %v746, %v1011
        %v1013 = vpop.f32.mrf.mxu0
        %v1014 = vadd.f32 %v746, %v1013
        %1015 = vmatprep.mubr.f32.mxu0 0.0
        %1016 = vmatmul.mubr.f32.gmra.mxu0 %v758
        %v1017 = vpop.f32.mrf.mxu0
        %v1018 = vadd.f32 %v751, %v1017
        %v1019 = vpop.f32.mrf.mxu0
        %v1020 = vadd.f32 %v751, %v1019
        %1021 = vdwg.mxu0
        %1022 = vmatprep.subr.mxu0 0.0
        %1023 = vmatpush1.msra.mxu0 0.0
        %1024 = vmatprep.subr.mxu0 0.0
        %1025 = vmatpush1.msra.mxu0 0.0
        %1026 = vmatprep.subr.mxu0 0.0
        %1027 = vmatpush1.msra.mxu0 0.0
        %1028 = vmatprep.subr.mxu0 0.0
        %1029 = vmatpush1.msra.mxu0 0.0
        %1030 = vmatprep.subr.mxu0 0.0
        %1031 = vmatpush1.msra.mxu0 0.0
        %1032 = vmatprep.subr.mxu0 0.0
        %1033 = vmatpush1.msra.mxu0 0.0
        %1034 = vmatprep.subr.mxu0 0.0
        %1035 = vmatpush1.msra.mxu0 0.0
        %1036 = vmatprep.subr.mxu0 0.0
        %1037 = vmatpush1.msra.mxu0 0.0
        %1038 = vmatprep.subr.mxu0 0.0
        %1039 = vmatpush1.msra.mxu0 0.0
        %1040 = vmatprep.subr.mxu0 0.0
        %1041 = vmatpush1.msra.mxu0 0.0
        %1042 = vmatprep.subr.mxu0 0.0
        %1043 = vmatpush1.msra.mxu0 0.0
        %1044 = vmatprep.subr.mxu0 0.0
        %1045 = vmatpush1.msra.mxu0 0.0
        %1046 = vmatprep.subr.mxu0 0.0
        %1047 = vmatpush1.msra.mxu0 0.0
        %1048 = vmatprep.subr.mxu0 0.0
        %1049 = vmatpush1.msra.mxu0 0.0
        %1050 = vmatprep.subr.mxu0 %v783
        %1051 = vmatpush1.msra.mxu0 %v780
        %1052 = vmatprep.subr.mxu0 %v728
        %1053 = vmatpush1.msra.mxu0 %v727
        %1054 = vmatprep.subr.mxu0 0.0
        %1055 = vmatpush2.msra.mxu0 0.0
        %1056 = vmatprep.subr.mxu0 0.0
        %1057 = vmatpush2.msra.mxu0 0.0
        %1058 = vmatprep.subr.mxu0 0.0
        %1059 = vmatpush2.msra.mxu0 0.0
        %1060 = vmatprep.subr.mxu0 0.0
        %1061 = vmatpush2.msra.mxu0 0.0
        %1062 = vmatprep.subr.mxu0 0.0
        %1063 = vmatpush2.msra.mxu0 0.0
        %1064 = vmatprep.subr.mxu0 0.0
        %1065 = vmatpush2.msra.mxu0 0.0
        %1066 = vmatprep.subr.mxu0 0.0
        %1067 = vmatpush2.msra.mxu0 0.0
        %1068 = vmatprep.subr.mxu0 0.0
        %1069 = vmatpush2.msra.mxu0 0.0
        %1070 = vmatprep.subr.mxu0 0.0
        %1071 = vmatpush2.msra.mxu0 0.0
        %1072 = vmatprep.subr.mxu0 0.0
        %1073 = vmatpush2.msra.mxu0 0.0
        %1074 = vmatprep.subr.mxu0 0.0
        %1075 = vmatpush2.msra.mxu0 0.0
        %1076 = vmatprep.subr.mxu0 0.0
        %1077 = vmatpush2.msra.mxu0 0.0
        %1078 = vmatprep.subr.mxu0 0.0
        %1079 = vmatpush2.msra.mxu0 0.0
        %1080 = vmatprep.subr.mxu0 0.0
        %1081 = vmatpush2.msra.mxu0 0.0
        %1082 = vmatprep.subr.mxu0 0.0
        %1083 = vmatpush2.msra.mxu0 0.0
        %1084 = vmatprep.subr.mxu0 0.0
        %1085 = vmatpush2.msra.mxu0 0.0
        %1086 = vmatprep.mubr.f32.mxu0 0.0
        %1087 = vmatmul.mubr.f32.gmra.mxu0 %v755
        %v1088 = vpop.f32.mrf.mxu0
        %v1089 = vadd.f32 %v746, %v1088
        %v1090 = vpop.f32.mrf.mxu0
        %v1091 = vadd.f32 %v746, %v1090
        %1092 = vmatprep.mubr.f32.mxu0 0.0
        %1093 = vmatmul.mubr.f32.gmra.mxu0 %v758
        %v1094 = vpop.f32.mrf.mxu0
        %v1095 = vadd.f32 %v751, %v1094
        %v1096 = vpop.f32.mrf.mxu0
        %v1097 = vadd.f32 %v751, %v1096
        %1098 = vdwg.mxu0
        %1099 = vmatprep.subr.mxu0 0.0
        %1100 = vmatpush1.msra.mxu0 0.0
        %1101 = vmatprep.subr.mxu0 0.0
        %1102 = vmatpush1.msra.mxu0 0.0
        %1103 = vmatprep.subr.mxu0 0.0
        %1104 = vmatpush1.msra.mxu0 0.0
        %1105 = vmatprep.subr.mxu0 0.0
        %1106 = vmatpush1.msra.mxu0 0.0
        %1107 = vmatprep.subr.mxu0 0.0
        %1108 = vmatpush1.msra.mxu0 0.0
        %1109 = vmatprep.subr.mxu0 0.0
        %1110 = vmatpush1.msra.mxu0 0.0
        %1111 = vmatprep.subr.mxu0 0.0
        %1112 = vmatpush1.msra.mxu0 0.0
        %1113 = vmatprep.subr.mxu0 0.0
        %1114 = vmatpush1.msra.mxu0 0.0
        %1115 = vmatprep.subr.mxu0 0.0
        %1116 = vmatpush1.msra.mxu0 0.0
        %1117 = vmatprep.subr.mxu0 0.0
        %1118 = vmatpush1.msra.mxu0 0.0
        %1119 = vmatprep.subr.mxu0 0.0
        %1120 = vmatpush1.msra.mxu0 0.0
        %1121 = vmatprep.subr.mxu0 0.0
        %1122 = vmatpush1.msra.mxu0 0.0
        %1123 = vmatprep.subr.mxu0 0.0
        %1124 = vmatpush1.msra.mxu0 0.0
        %1125 = vmatprep.subr.mxu0 0.0
        %1126 = vmatpush1.msra.mxu0 0.0
        %1127 = vmatprep.subr.mxu0 %v789
        %1128 = vmatpush1.msra.mxu0 %v786
        %1129 = vmatprep.subr.mxu0 %v730
        %1130 = vmatpush1.msra.mxu0 %v729
        %1131 = vmatprep.subr.mxu0 0.0
        %1132 = vmatpush2.msra.mxu0 0.0
        %1133 = vmatprep.subr.mxu0 0.0
        %1134 = vmatpush2.msra.mxu0 0.0
        %1135 = vmatprep.subr.mxu0 0.0
        %1136 = vmatpush2.msra.mxu0 0.0
        %1137 = vmatprep.subr.mxu0 0.0
        %1138 = vmatpush2.msra.mxu0 0.0
        %1139 = vmatprep.subr.mxu0 0.0
        %1140 = vmatpush2.msra.mxu0 0.0
        %1141 = vmatprep.subr.mxu0 0.0
        %1142 = vmatpush2.msra.mxu0 0.0
        %1143 = vmatprep.subr.mxu0 0.0
        %1144 = vmatpush2.msra.mxu0 0.0
        %1145 = vmatprep.subr.mxu0 0.0
        %1146 = vmatpush2.msra.mxu0 0.0
        %1147 = vmatprep.subr.mxu0 0.0
        %1148 = vmatpush2.msra.mxu0 0.0
        %1149 = vmatprep.subr.mxu0 0.0
        %1150 = vmatpush2.msra.mxu0 0.0
        %1151 = vmatprep.subr.mxu0 0.0
        %1152 = vmatpush2.msra.mxu0 0.0
        %1153 = vmatprep.subr.mxu0 0.0
        %1154 = vmatpush2.msra.mxu0 0.0
        %1155 = vmatprep.subr.mxu0 0.0
        %1156 = vmatpush2.msra.mxu0 0.0
        %1157 = vmatprep.subr.mxu0 0.0
        %1158 = vmatpush2.msra.mxu0 0.0
        %1159 = vmatprep.subr.mxu0 0.0
        %1160 = vmatpush2.msra.mxu0 0.0
        %1161 = vmatprep.subr.mxu0 0.0
        %1162 = vmatpush2.msra.mxu0 0.0
        %1163 = vmatprep.mubr.f32.mxu0 0.0
        %1164 = vmatmul.mubr.f32.gmra.mxu0 %v755
        %v1165 = vpop.f32.mrf.mxu0
        %v1166 = vadd.f32 %v746, %v1165
        %v1167 = vpop.f32.mrf.mxu0
        %v1168 = vadd.f32 %v746, %v1167
        %1169 = vmatprep.mubr.f32.mxu0 0.0
        %1170 = vmatmul.mubr.f32.gmra.mxu0 %v758
        %v1171 = vpop.f32.mrf.mxu0
        %v1172 = vadd.f32 %v751, %v1171
        %v1173 = vpop.f32.mrf.mxu0
        %v1174 = vadd.f32 %v751, %v1173
        %1175 = vdwg.mxu0
        %v1176 = vmax.f32 %v858, 0.0
        %v1177 = vmax.f32 %v860, 0.0
        %v1178 = vmax.f32 %v935, 0.0
        %v1179 = vmax.f32 %v937, 0.0
        %v1180 = vmax.f32 %v1012, 0.0
        %v1181 = vmax.f32 %v1014, 0.0
        %v1182 = vmax.f32 %v1089, 0.0
        %v1183 = vmax.f32 %v1091, 0.0
        %v1184 = vmax.f32 %v1166, 0.0
        %v1185 = vmax.f32 %v1168, 0.0
        %v1186 = vmax.f32 %v864, 0.0
        %v1187 = vmax.f32 %v866, 0.0
        %v1188 = vmax.f32 %v941, 0.0
        %v1189 = vmax.f32 %v943, 0.0
        %v1190 = vmax.f32 %v1018, 0.0
        %v1191 = vmax.f32 %v1020, 0.0
        %v1192 = vmax.f32 %v1095, 0.0
        %v1193 = vmax.f32 %v1097, 0.0
        %v1194 = vmax.f32 %v1172, 0.0
        %v1195 = vmax.f32 %v1174, 0.0
        %1196 = vst [vmem:[#allocation2] sm:$0xff] %v1176
        %1197 = vst [vmem:[#allocation2 + $0x8] sm:$0xff] %v1177
        %1198 = vst [vmem:[#allocation2 + $0x10] sm:$0xff] %v1178
        %1199 = vst [vmem:[#allocation2 + $0x18] sm:$0xff] %v1179
        %1200 = vst [vmem:[#allocation2 + $0x20] sm:$0xff] %v1180
        %1201 = vst [vmem:[#allocation2 + $0x28] sm:$0xff] %v1181
        %1202 = vst [vmem:[#allocation2 + $0x30] sm:$0xff] %v1182
        %1203 = vst [vmem:[#allocation2 + $0x38] sm:$0xff] %v1183
        %vm1204 = vcmask 1014784
        %1205 = vst.msk [vmem:[#allocation2 + $0x40] sm:$0xff] %vm1204, %v1184
        %1206 = vst [vmem:[#allocation2 + $0x58] sm:$0xff] %v1186
        %1207 = vst [vmem:[#allocation2 + $0x60] sm:$0xff] %v1187
        %1208 = vst [vmem:[#allocation2 + $0x68] sm:$0xff] %v1188
        %1209 = vst [vmem:[#allocation2 + $0x70] sm:$0xff] %v1189
        %1210 = vst [vmem:[#allocation2 + $0x78] sm:$0xff] %v1190
        %1211 = vst [vmem:[#allocation2 + $0x80] sm:$0xff] %v1191
        %1212 = vst [vmem:[#allocation2 + $0x88] sm:$0xff] %v1192
        %1213 = vst [vmem:[#allocation2 + $0x90] sm:$0xff] %v1193
        %1214 = vst.msk [vmem:[#allocation2 + $0x98] sm:$0xff] %vm1204, %v1194
        %1233 = vrot.lane.b32.xlu0 %v1176, 127
        %v1234 = vpop.permute.xlu0 %1233
        %1235 = vrot.lane.b32.xlu0 %v1177, 127
        %v1236 = vpop.permute.xlu0 %1235
        %1237 = vrot.lane.b32.xlu0 %v1178, 127
        %v1238 = vpop.permute.xlu0 %1237
        %1239 = vrot.lane.b32.xlu0 %v1179, 127
        %v1240 = vpop.permute.xlu0 %1239
        %1241 = vrot.lane.b32.xlu0 %v1180, 127
        %v1242 = vpop.permute.xlu0 %1241
        %1243 = vrot.lane.b32.xlu0 %v1181, 127
        %v1244 = vpop.permute.xlu0 %1243
        %1245 = vrot.lane.b32.xlu0 %v1182, 127
        %v1246 = vpop.permute.xlu0 %1245
        %1247 = vrot.lane.b32.xlu0 %v1183, 127
        %v1248 = vpop.permute.xlu0 %1247
        %1249 = vrot.lane.b32.xlu0 %v1184, 127
        %v1250 = vpop.permute.xlu0 %1249
        %1251 = vrot.lane.b32.xlu0 %v1186, 127
        %v1252 = vpop.permute.xlu0 %1251
        %1253 = vrot.lane.b32.xlu0 %v1187, 127
        %v1254 = vpop.permute.xlu0 %1253
        %1255 = vrot.lane.b32.xlu0 %v1188, 127
        %v1256 = vpop.permute.xlu0 %1255
        %1257 = vrot.lane.b32.xlu0 %v1189, 127
        %v1258 = vpop.permute.xlu0 %1257
        %1259 = vrot.lane.b32.xlu0 %v1190, 127
        %v1260 = vpop.permute.xlu0 %1259
        %1261 = vrot.lane.b32.xlu0 %v1191, 127
        %v1262 = vpop.permute.xlu0 %1261
        %1263 = vrot.lane.b32.xlu0 %v1192, 127
        %v1264 = vpop.permute.xlu0 %1263
        %1265 = vrot.lane.b32.xlu0 %v1193, 127
        %v1266 = vpop.permute.xlu0 %1265
        %1267 = vrot.lane.b32.xlu0 %v1194, 127
        %v1268 = vpop.permute.xlu0 %1267
        %v1269 = vsel %vm582, %v1234, %v1236
        %v1270 = vsel %vm582, %v1236, %v1238
        %v1271 = vsel %vm582, %v1238, %v1240
        %v1272 = vsel %vm582, %v1240, %v1242
        %v1273 = vsel %vm582, %v1242, %v1244
        %v1274 = vsel %vm582, %v1244, %v1246
        %v1275 = vsel %vm582, %v1246, %v1248
        %v1276 = vsel %vm582, %v1248, %v1250
        %v1277 = vsel %vm582, %v1252, %v1254
        %v1278 = vsel %vm582, %v1254, %v1256
        %v1279 = vsel %vm582, %v1256, %v1258
        %v1280 = vsel %vm582, %v1258, %v1260
        %v1281 = vsel %vm582, %v1260, %v1262
        %v1282 = vsel %vm582, %v1262, %v1264
        %v1283 = vsel %vm582, %v1264, %v1266
        %v1284 = vsel %vm582, %v1266, %v1268
        %1303 = vst [vmem:[#allocation2 + $0xb0] sm:$0xff] %v1269
        %1304 = vst [vmem:[#allocation2 + $0xb8] sm:$0xff] %v1270
        %1305 = vst [vmem:[#allocation2 + $0xc0] sm:$0xff] %v1271
        %1306 = vst [vmem:[#allocation2 + $0xc8] sm:$0xff] %v1272
        %1307 = vst [vmem:[#allocation2 + $0xd0] sm:$0xff] %v1273
        %1308 = vst [vmem:[#allocation2 + $0xd8] sm:$0xff] %v1274
        %1309 = vst [vmem:[#allocation2 + $0xe0] sm:$0xff] %v1275
        %1310 = vst [vmem:[#allocation2 + $0xe8] sm:$0xff] %v1276
        %1311 = vst.msk [vmem:[#allocation2 + $0xf0] sm:$0xff] %vm1204, %v1250
        %1312 = vst [vmem:[#allocation2 + $0x108] sm:$0xff] %v1277
        %1313 = vst [vmem:[#allocation2 + $0x110] sm:$0xff] %v1278
        %1314 = vst [vmem:[#allocation2 + $0x118] sm:$0xff] %v1279
        %1315 = vst [vmem:[#allocation2 + $0x120] sm:$0xff] %v1280
        %1316 = vst [vmem:[#allocation2 + $0x128] sm:$0xff] %v1281
        %1317 = vst [vmem:[#allocation2 + $0x130] sm:$0xff] %v1282
        %1318 = vst [vmem:[#allocation2 + $0x138] sm:$0xff] %v1283
        %1319 = vst [vmem:[#allocation2 + $0x140] sm:$0xff] %v1284
        %1320 = vst.msk [vmem:[#allocation2 + $0x148] sm:$0xff] %vm1204, %v1268
        %1321 = vrot.lane.b32.xlu0 %v1176, 126
        %v1322 = vpop.permute.xlu0 %1321
        %1323 = vrot.lane.b32.xlu0 %v1177, 126
        %v1324 = vpop.permute.xlu0 %1323
        %1325 = vrot.lane.b32.xlu0 %v1178, 126
        %v1326 = vpop.permute.xlu0 %1325
        %1327 = vrot.lane.b32.xlu0 %v1179, 126
        %v1328 = vpop.permute.xlu0 %1327
        %1329 = vrot.lane.b32.xlu0 %v1180, 126
        %v1330 = vpop.permute.xlu0 %1329
        %1331 = vrot.lane.b32.xlu0 %v1181, 126
        %v1332 = vpop.permute.xlu0 %1331
        %1333 = vrot.lane.b32.xlu0 %v1182, 126
        %v1334 = vpop.permute.xlu0 %1333
        %1335 = vrot.lane.b32.xlu0 %v1183, 126
        %v1336 = vpop.permute.xlu0 %1335
        %1337 = vrot.lane.b32.xlu0 %v1184, 126
        %v1338 = vpop.permute.xlu0 %1337
        %1339 = vrot.lane.b32.xlu0 %v1186, 126
        %v1340 = vpop.permute.xlu0 %1339
        %1341 = vrot.lane.b32.xlu0 %v1187, 126
        %v1342 = vpop.permute.xlu0 %1341
        %1343 = vrot.lane.b32.xlu0 %v1188, 126
        %v1344 = vpop.permute.xlu0 %1343
        %1345 = vrot.lane.b32.xlu0 %v1189, 126
        %v1346 = vpop.permute.xlu0 %1345
        %1347 = vrot.lane.b32.xlu0 %v1190, 126
        %v1348 = vpop.permute.xlu0 %1347
        %1349 = vrot.lane.b32.xlu0 %v1191, 126
        %v1350 = vpop.permute.xlu0 %1349
        %1351 = vrot.lane.b32.xlu0 %v1192, 126
        %v1352 = vpop.permute.xlu0 %1351
        %1353 = vrot.lane.b32.xlu0 %v1193, 126
        %v1354 = vpop.permute.xlu0 %1353
        %1355 = vrot.lane.b32.xlu0 %v1194, 126
        %v1356 = vpop.permute.xlu0 %1355
        %v1357 = vsel %vm600, %v1322, %v1324
        %v1358 = vsel %vm600, %v1324, %v1326
        %v1359 = vsel %vm600, %v1326, %v1328
        %v1360 = vsel %vm600, %v1328, %v1330
        %v1361 = vsel %vm600, %v1330, %v1332
        %v1362 = vsel %vm600, %v1332, %v1334
        %v1363 = vsel %vm600, %v1334, %v1336
        %v1364 = vsel %vm600, %v1336, %v1338
        %v1365 = vsel %vm600, %v1340, %v1342
        %v1366 = vsel %vm600, %v1342, %v1344
        %v1367 = vsel %vm600, %v1344, %v1346
        %v1368 = vsel %vm600, %v1346, %v1348
        %v1369 = vsel %vm600, %v1348, %v1350
        %v1370 = vsel %vm600, %v1350, %v1352
        %v1371 = vsel %vm600, %v1352, %v1354
        %v1372 = vsel %vm600, %v1354, %v1356
        %1391 = vst [vmem:[#allocation2 + $0x160] sm:$0xff] %v1357
        %1392 = vst [vmem:[#allocation2 + $0x168] sm:$0xff] %v1358
        %1393 = vst [vmem:[#allocation2 + $0x170] sm:$0xff] %v1359
        %1394 = vst [vmem:[#allocation2 + $0x178] sm:$0xff] %v1360
        %1395 = vst [vmem:[#allocation2 + $0x180] sm:$0xff] %v1361
        %1396 = vst [vmem:[#allocation2 + $0x188] sm:$0xff] %v1362
        %1397 = vst [vmem:[#allocation2 + $0x190] sm:$0xff] %v1363
        %1398 = vst [vmem:[#allocation2 + $0x198] sm:$0xff] %v1364
        %1399 = vst.msk [vmem:[#allocation2 + $0x1a0] sm:$0xff] %vm1204, %v1338
        %1400 = vst [vmem:[#allocation2 + $0x1b8] sm:$0xff] %v1365
        %1401 = vst [vmem:[#allocation2 + $0x1c0] sm:$0xff] %v1366
        %1402 = vst [vmem:[#allocation2 + $0x1c8] sm:$0xff] %v1367
        %1403 = vst [vmem:[#allocation2 + $0x1d0] sm:$0xff] %v1368
        %1404 = vst [vmem:[#allocation2 + $0x1d8] sm:$0xff] %v1369
        %1405 = vst [vmem:[#allocation2 + $0x1e0] sm:$0xff] %v1370
        %1406 = vst [vmem:[#allocation2 + $0x1e8] sm:$0xff] %v1371
        %1407 = vst [vmem:[#allocation2 + $0x1f0] sm:$0xff] %v1372
        %1408 = vst.msk [vmem:[#allocation2 + $0x1f8] sm:$0xff] %vm1204, %v1356
        %1411 = vrot.lane.b32.xlu0 %v1176, 92
        %v1412 = vpop.permute.xlu0 %1411
        %1413 = vrot.lane.b32.xlu0 %v1177, 92
        %v1414 = vpop.permute.xlu0 %1413
        %1415 = vrot.lane.b32.xlu0 %v1178, 92
        %v1416 = vpop.permute.xlu0 %1415
        %1417 = vrot.lane.b32.xlu0 %v1179, 92
        %v1418 = vpop.permute.xlu0 %1417
        %1419 = vrot.lane.b32.xlu0 %v1180, 92
        %v1420 = vpop.permute.xlu0 %1419
        %1421 = vrot.lane.b32.xlu0 %v1181, 92
        %v1422 = vpop.permute.xlu0 %1421
        %1423 = vrot.lane.b32.xlu0 %v1182, 92
        %v1424 = vpop.permute.xlu0 %1423
        %1425 = vrot.lane.b32.xlu0 %v1183, 92
        %v1426 = vpop.permute.xlu0 %1425
        %1427 = vrot.lane.b32.xlu0 %v1184, 92
        %v1428 = vpop.permute.xlu0 %1427
        %1429 = vrot.lane.b32.xlu0 %v1185, 92
        %v1430 = vpop.permute.xlu0 %1429
        %1431 = vrot.lane.b32.xlu0 %v1186, 92
        %v1432 = vpop.permute.xlu0 %1431
        %1433 = vrot.lane.b32.xlu0 %v1187, 92
        %v1434 = vpop.permute.xlu0 %1433
        %1435 = vrot.lane.b32.xlu0 %v1188, 92
        %v1436 = vpop.permute.xlu0 %1435
        %1437 = vrot.lane.b32.xlu0 %v1189, 92
        %v1438 = vpop.permute.xlu0 %1437
        %1439 = vrot.lane.b32.xlu0 %v1190, 92
        %v1440 = vpop.permute.xlu0 %1439
        %1441 = vrot.lane.b32.xlu0 %v1191, 92
        %v1442 = vpop.permute.xlu0 %1441
        %1443 = vrot.lane.b32.xlu0 %v1192, 92
        %v1444 = vpop.permute.xlu0 %1443
        %1445 = vrot.lane.b32.xlu0 %v1193, 92
        %v1446 = vpop.permute.xlu0 %1445
        %1447 = vrot.lane.b32.xlu0 %v1194, 92
        %v1448 = vpop.permute.xlu0 %1447
        %1449 = vrot.lane.b32.xlu0 %v1195, 92
        %v1450 = vpop.permute.xlu0 %1449
        %v1451 = vsel %vm618, %v1412, %v1414
        %v1452 = vsel %vm618, %v1414, %v1416
        %v1453 = vsel %vm618, %v1416, %v1418
        %v1454 = vsel %vm618, %v1418, %v1420
        %v1455 = vsel %vm618, %v1420, %v1422
        %v1456 = vsel %vm618, %v1422, %v1424
        %v1457 = vsel %vm618, %v1424, %v1426
        %v1458 = vsel %vm618, %v1426, %v1428
        %v1459 = vsel %vm618, %v1428, %v1430
        %v1460 = vsel %vm618, %v1432, %v1434
        %v1461 = vsel %vm618, %v1434, %v1436
        %v1462 = vsel %vm618, %v1436, %v1438
        %v1463 = vsel %vm618, %v1438, %v1440
        %v1464 = vsel %vm618, %v1440, %v1442
        %v1465 = vsel %vm618, %v1442, %v1444
        %v1466 = vsel %vm618, %v1444, %v1446
        %v1467 = vsel %vm618, %v1446, %v1448
        %v1468 = vsel %vm618, %v1448, %v1450
        %1487 = vst [vmem:[#allocation2 + $0x210] sm:$0xff] %v1451
        %1488 = vst [vmem:[#allocation2 + $0x218] sm:$0xff] %v1452
        %1489 = vst [vmem:[#allocation2 + $0x220] sm:$0xff] %v1453
        %1490 = vst [vmem:[#allocation2 + $0x228] sm:$0xff] %v1454
        %1491 = vst [vmem:[#allocation2 + $0x230] sm:$0xff] %v1455
        %1492 = vst [vmem:[#allocation2 + $0x238] sm:$0xff] %v1456
        %1493 = vst [vmem:[#allocation2 + $0x240] sm:$0xff] %v1457
        %1494 = vst [vmem:[#allocation2 + $0x248] sm:$0xff] %v1458
        %1495 = vst.msk [vmem:[#allocation2 + $0x250] sm:$0xff] %vm1204, %v1459
        %1496 = vst [vmem:[#allocation2 + $0x268] sm:$0xff] %v1460
        %1497 = vst [vmem:[#allocation2 + $0x270] sm:$0xff] %v1461
        %1498 = vst [vmem:[#allocation2 + $0x278] sm:$0xff] %v1462
        %1499 = vst [vmem:[#allocation2 + $0x280] sm:$0xff] %v1463
        %1500 = vst [vmem:[#allocation2 + $0x288] sm:$0xff] %v1464
        %1501 = vst [vmem:[#allocation2 + $0x290] sm:$0xff] %v1465
        %1502 = vst [vmem:[#allocation2 + $0x298] sm:$0xff] %v1466
        %1503 = vst [vmem:[#allocation2 + $0x2a0] sm:$0xff] %v1467
        %1504 = vst.msk [vmem:[#allocation2 + $0x2a8] sm:$0xff] %vm1204, %v1468
        %1505 = vrot.lane.b32.xlu0 %v1176, 91
        %v1506 = vpop.permute.xlu0 %1505
        %1507 = vrot.lane.b32.xlu0 %v1177, 91
        %v1508 = vpop.permute.xlu0 %1507
        %1509 = vrot.lane.b32.xlu0 %v1178, 91
        %v1510 = vpop.permute.xlu0 %1509
        %1511 = vrot.lane.b32.xlu0 %v1179, 91
        %v1512 = vpop.permute.xlu0 %1511
        %1513 = vrot.lane.b32.xlu0 %v1180, 91
        %v1514 = vpop.permute.xlu0 %1513
        %1515 = vrot.lane.b32.xlu0 %v1181, 91
        %v1516 = vpop.permute.xlu0 %1515
        %1517 = vrot.lane.b32.xlu0 %v1182, 91
        %v1518 = vpop.permute.xlu0 %1517
        %1519 = vrot.lane.b32.xlu0 %v1183, 91
        %v1520 = vpop.permute.xlu0 %1519
        %1521 = vrot.lane.b32.xlu0 %v1184, 91
        %v1522 = vpop.permute.xlu0 %1521
        %1523 = vrot.lane.b32.xlu0 %v1185, 91
        %v1524 = vpop.permute.xlu0 %1523
        %1525 = vrot.lane.b32.xlu0 %v1186, 91
        %v1526 = vpop.permute.xlu0 %1525
        %1527 = vrot.lane.b32.xlu0 %v1187, 91
        %v1528 = vpop.permute.xlu0 %1527
        %1529 = vrot.lane.b32.xlu0 %v1188, 91
        %v1530 = vpop.permute.xlu0 %1529
        %1531 = vrot.lane.b32.xlu0 %v1189, 91
        %v1532 = vpop.permute.xlu0 %1531
        %1533 = vrot.lane.b32.xlu0 %v1190, 91
        %v1534 = vpop.permute.xlu0 %1533
        %1535 = vrot.lane.b32.xlu0 %v1191, 91
        %v1536 = vpop.permute.xlu0 %1535
        %1537 = vrot.lane.b32.xlu0 %v1192, 91
        %v1538 = vpop.permute.xlu0 %1537
        %1539 = vrot.lane.b32.xlu0 %v1193, 91
        %v1540 = vpop.permute.xlu0 %1539
        %1541 = vrot.lane.b32.xlu0 %v1194, 91
        %v1542 = vpop.permute.xlu0 %1541
        %1543 = vrot.lane.b32.xlu0 %v1195, 91
        %v1544 = vpop.permute.xlu0 %1543
        %v1545 = vsel %vm636, %v1506, %v1508
        %v1546 = vsel %vm636, %v1508, %v1510
        %v1547 = vsel %vm636, %v1510, %v1512
        %v1548 = vsel %vm636, %v1512, %v1514
        %v1549 = vsel %vm636, %v1514, %v1516
        %v1550 = vsel %vm636, %v1516, %v1518
        %v1551 = vsel %vm636, %v1518, %v1520
        %v1552 = vsel %vm636, %v1520, %v1522
        %v1553 = vsel %vm636, %v1522, %v1524
        %v1554 = vsel %vm636, %v1526, %v1528
        %v1555 = vsel %vm636, %v1528, %v1530
        %v1556 = vsel %vm636, %v1530, %v1532
        %v1557 = vsel %vm636, %v1532, %v1534
        %v1558 = vsel %vm636, %v1534, %v1536
        %v1559 = vsel %vm636, %v1536, %v1538
        %v1560 = vsel %vm636, %v1538, %v1540
        %v1561 = vsel %vm636, %v1540, %v1542
        %v1562 = vsel %vm636, %v1542, %v1544
        %1581 = vst [vmem:[#allocation2 + $0x2c0] sm:$0xff] %v1545
        %1582 = vst [vmem:[#allocation2 + $0x2c8] sm:$0xff] %v1546
        %1583 = vst [vmem:[#allocation2 + $0x2d0] sm:$0xff] %v1547
        %1584 = vst [vmem:[#allocation2 + $0x2d8] sm:$0xff] %v1548
        %1585 = vst [vmem:[#allocation2 + $0x2e0] sm:$0xff] %v1549
        %1586 = vst [vmem:[#allocation2 + $0x2e8] sm:$0xff] %v1550
        %1587 = vst [vmem:[#allocation2 + $0x2f0] sm:$0xff] %v1551
        %1588 = vst [vmem:[#allocation2 + $0x2f8] sm:$0xff] %v1552
        %1589 = vst.msk [vmem:[#allocation2 + $0x300] sm:$0xff] %vm1204, %v1553
        %1590 = vst [vmem:[#allocation2 + $0x318] sm:$0xff] %v1554
        %1591 = vst [vmem:[#allocation2 + $0x320] sm:$0xff] %v1555
        %1592 = vst [vmem:[#allocation2 + $0x328] sm:$0xff] %v1556
        %1593 = vst [vmem:[#allocation2 + $0x330] sm:$0xff] %v1557
        %1594 = vst [vmem:[#allocation2 + $0x338] sm:$0xff] %v1558
        %1595 = vst [vmem:[#allocation2 + $0x340] sm:$0xff] %v1559
        %1596 = vst [vmem:[#allocation2 + $0x348] sm:$0xff] %v1560
        %1597 = vst [vmem:[#allocation2 + $0x350] sm:$0xff] %v1561
        %1598 = vst.msk [vmem:[#allocation2 + $0x358] sm:$0xff] %vm1204, %v1562
        %1599 = vrot.lane.b32.xlu0 %v1176, 90
        %v1600 = vpop.permute.xlu0 %1599
        %1601 = vrot.lane.b32.xlu0 %v1177, 90
        %v1602 = vpop.permute.xlu0 %1601
        %1603 = vrot.lane.b32.xlu0 %v1178, 90
        %v1604 = vpop.permute.xlu0 %1603
        %1605 = vrot.lane.b32.xlu0 %v1179, 90
        %v1606 = vpop.permute.xlu0 %1605
        %1607 = vrot.lane.b32.xlu0 %v1180, 90
        %v1608 = vpop.permute.xlu0 %1607
        %1609 = vrot.lane.b32.xlu0 %v1181, 90
        %v1610 = vpop.permute.xlu0 %1609
        %1611 = vrot.lane.b32.xlu0 %v1182, 90
        %v1612 = vpop.permute.xlu0 %1611
        %1613 = vrot.lane.b32.xlu0 %v1183, 90
        %v1614 = vpop.permute.xlu0 %1613
        %1615 = vrot.lane.b32.xlu0 %v1184, 90
        %v1616 = vpop.permute.xlu0 %1615
        %1617 = vrot.lane.b32.xlu0 %v1185, 90
        %v1618 = vpop.permute.xlu0 %1617
        %1619 = vrot.lane.b32.xlu0 %v1186, 90
        %v1620 = vpop.permute.xlu0 %1619
        %1621 = vrot.lane.b32.xlu0 %v1187, 90
        %v1622 = vpop.permute.xlu0 %1621
        %1623 = vrot.lane.b32.xlu0 %v1188, 90
        %v1624 = vpop.permute.xlu0 %1623
        %1625 = vrot.lane.b32.xlu0 %v1189, 90
        %v1626 = vpop.permute.xlu0 %1625
        %1627 = vrot.lane.b32.xlu0 %v1190, 90
        %v1628 = vpop.permute.xlu0 %1627
        %1629 = vrot.lane.b32.xlu0 %v1191, 90
        %v1630 = vpop.permute.xlu0 %1629
        %1631 = vrot.lane.b32.xlu0 %v1192, 90
        %v1632 = vpop.permute.xlu0 %1631
        %1633 = vrot.lane.b32.xlu0 %v1193, 90
        %v1634 = vpop.permute.xlu0 %1633
        %1635 = vrot.lane.b32.xlu0 %v1194, 90
        %v1636 = vpop.permute.xlu0 %1635
        %1637 = vrot.lane.b32.xlu0 %v1195, 90
        %v1638 = vpop.permute.xlu0 %1637
        %v1639 = vsel %vm654, %v1600, %v1602
        %v1640 = vsel %vm654, %v1602, %v1604
        %v1641 = vsel %vm654, %v1604, %v1606
        %v1642 = vsel %vm654, %v1606, %v1608
        %v1643 = vsel %vm654, %v1608, %v1610
        %v1644 = vsel %vm654, %v1610, %v1612
        %v1645 = vsel %vm654, %v1612, %v1614
        %v1646 = vsel %vm654, %v1614, %v1616
        %v1647 = vsel %vm654, %v1616, %v1618
        %v1648 = vsel %vm654, %v1620, %v1622
        %v1649 = vsel %vm654, %v1622, %v1624
        %v1650 = vsel %vm654, %v1624, %v1626
        %v1651 = vsel %vm654, %v1626, %v1628
        %v1652 = vsel %vm654, %v1628, %v1630
        %v1653 = vsel %vm654, %v1630, %v1632
        %v1654 = vsel %vm654, %v1632, %v1634
        %v1655 = vsel %vm654, %v1634, %v1636
        %v1656 = vsel %vm654, %v1636, %v1638
        %1675 = vst [vmem:[#allocation2 + $0x370] sm:$0xff] %v1639
        %1676 = vst [vmem:[#allocation2 + $0x378] sm:$0xff] %v1640
        %1677 = vst [vmem:[#allocation2 + $0x380] sm:$0xff] %v1641
        %1678 = vst [vmem:[#allocation2 + $0x388] sm:$0xff] %v1642
        %1679 = vst [vmem:[#allocation2 + $0x390] sm:$0xff] %v1643
        %1680 = vst [vmem:[#allocation2 + $0x398] sm:$0xff] %v1644
        %1681 = vst [vmem:[#allocation2 + $0x3a0] sm:$0xff] %v1645
        %1682 = vst [vmem:[#allocation2 + $0x3a8] sm:$0xff] %v1646
        %1683 = vst.msk [vmem:[#allocation2 + $0x3b0] sm:$0xff] %vm1204, %v1647
        %1684 = vst [vmem:[#allocation2 + $0x3c8] sm:$0xff] %v1648
        %1685 = vst [vmem:[#allocation2 + $0x3d0] sm:$0xff] %v1649
        %1686 = vst [vmem:[#allocation2 + $0x3d8] sm:$0xff] %v1650
        %1687 = vst [vmem:[#allocation2 + $0x3e0] sm:$0xff] %v1651
        %1688 = vst [vmem:[#allocation2 + $0x3e8] sm:$0xff] %v1652
        %1689 = vst [vmem:[#allocation2 + $0x3f0] sm:$0xff] %v1653
        %1690 = vst [vmem:[#allocation2 + $0x3f8] sm:$0xff] %v1654
        %1691 = vst [vmem:[#allocation2 + $0x400] sm:$0xff] %v1655
        %1692 = vst.msk [vmem:[#allocation2 + $0x408] sm:$0xff] %vm1204, %v1656
        %1693 = vrot.lane.b32.xlu0 %v1176, 56
        %v1694 = vpop.permute.xlu0 %1693
        %1695 = vrot.lane.b32.xlu0 %v1177, 56
        %v1696 = vpop.permute.xlu0 %1695
        %1697 = vrot.lane.b32.xlu0 %v1178, 56
        %v1698 = vpop.permute.xlu0 %1697
        %1699 = vrot.lane.b32.xlu0 %v1179, 56
        %v1700 = vpop.permute.xlu0 %1699
        %1701 = vrot.lane.b32.xlu0 %v1180, 56
        %v1702 = vpop.permute.xlu0 %1701
        %1703 = vrot.lane.b32.xlu0 %v1181, 56
        %v1704 = vpop.permute.xlu0 %1703
        %1705 = vrot.lane.b32.xlu0 %v1182, 56
        %v1706 = vpop.permute.xlu0 %1705
        %1707 = vrot.lane.b32.xlu0 %v1183, 56
        %v1708 = vpop.permute.xlu0 %1707
        %1709 = vrot.lane.b32.xlu0 %v1184, 56
        %v1710 = vpop.permute.xlu0 %1709
        %1711 = vrot.lane.b32.xlu0 %v1185, 56
        %v1712 = vpop.permute.xlu0 %1711
        %1713 = vrot.lane.b32.xlu0 %v1186, 56
        %v1714 = vpop.permute.xlu0 %1713
        %1715 = vrot.lane.b32.xlu0 %v1187, 56
        %v1716 = vpop.permute.xlu0 %1715
        %1717 = vrot.lane.b32.xlu0 %v1188, 56
        %v1718 = vpop.permute.xlu0 %1717
        %1719 = vrot.lane.b32.xlu0 %v1189, 56
        %v1720 = vpop.permute.xlu0 %1719
        %1721 = vrot.lane.b32.xlu0 %v1190, 56
        %v1722 = vpop.permute.xlu0 %1721
        %1723 = vrot.lane.b32.xlu0 %v1191, 56
        %v1724 = vpop.permute.xlu0 %1723
        %1725 = vrot.lane.b32.xlu0 %v1192, 56
        %v1726 = vpop.permute.xlu0 %1725
        %1727 = vrot.lane.b32.xlu0 %v1193, 56
        %v1728 = vpop.permute.xlu0 %1727
        %1729 = vrot.lane.b32.xlu0 %v1194, 56
        %v1730 = vpop.permute.xlu0 %1729
        %1731 = vrot.lane.b32.xlu0 %v1195, 56
        %v1732 = vpop.permute.xlu0 %1731
        %v1733 = vsel %vm672, %v1694, %v1696
        %v1734 = vsel %vm672, %v1696, %v1698
        %v1735 = vsel %vm672, %v1698, %v1700
        %v1736 = vsel %vm672, %v1700, %v1702
        %v1737 = vsel %vm672, %v1702, %v1704
        %v1738 = vsel %vm672, %v1704, %v1706
        %v1739 = vsel %vm672, %v1706, %v1708
        %v1740 = vsel %vm672, %v1708, %v1710
        %v1741 = vsel %vm672, %v1710, %v1712
        %v1742 = vsel %vm672, %v1714, %v1716
        %v1743 = vsel %vm672, %v1716, %v1718
        %v1744 = vsel %vm672, %v1718, %v1720
        %v1745 = vsel %vm672, %v1720, %v1722
        %v1746 = vsel %vm672, %v1722, %v1724
        %v1747 = vsel %vm672, %v1724, %v1726
        %v1748 = vsel %vm672, %v1726, %v1728
        %v1749 = vsel %vm672, %v1728, %v1730
        %v1750 = vsel %vm672, %v1730, %v1732
        %1769 = vst [vmem:[#allocation2 + $0x420] sm:$0xff] %v1733
        %1770 = vst [vmem:[#allocation2 + $0x428] sm:$0xff] %v1734
        %1771 = vst [vmem:[#allocation2 + $0x430] sm:$0xff] %v1735
        %1772 = vst [vmem:[#allocation2 + $0x438] sm:$0xff] %v1736
        %1773 = vst [vmem:[#allocation2 + $0x440] sm:$0xff] %v1737
        %1774 = vst [vmem:[#allocation2 + $0x448] sm:$0xff] %v1738
        %1775 = vst [vmem:[#allocation2 + $0x450] sm:$0xff] %v1739
        %1776 = vst [vmem:[#allocation2 + $0x458] sm:$0xff] %v1740
        %1777 = vst.msk [vmem:[#allocation2 + $0x460] sm:$0xff] %vm1204, %v1741
        %1778 = vst [vmem:[#allocation2 + $0x478] sm:$0xff] %v1742
        %1779 = vst [vmem:[#allocation2 + $0x480] sm:$0xff] %v1743
        %1780 = vst [vmem:[#allocation2 + $0x488] sm:$0xff] %v1744
        %1781 = vst [vmem:[#allocation2 + $0x490] sm:$0xff] %v1745
        %1782 = vst [vmem:[#allocation2 + $0x498] sm:$0xff] %v1746
        %1783 = vst [vmem:[#allocation2 + $0x4a0] sm:$0xff] %v1747
        %1784 = vst [vmem:[#allocation2 + $0x4a8] sm:$0xff] %v1748
        %1785 = vst [vmem:[#allocation2 + $0x4b0] sm:$0xff] %v1749
        %1786 = vst.msk [vmem:[#allocation2 + $0x4b8] sm:$0xff] %vm1204, %v1750
        %1787 = vrot.lane.b32.xlu0 %v1176, 55
        %v1788 = vpop.permute.xlu0 %1787
        %1789 = vrot.lane.b32.xlu0 %v1177, 55
        %v1790 = vpop.permute.xlu0 %1789
        %1791 = vrot.lane.b32.xlu0 %v1178, 55
        %v1792 = vpop.permute.xlu0 %1791
        %1793 = vrot.lane.b32.xlu0 %v1179, 55
        %v1794 = vpop.permute.xlu0 %1793
        %1795 = vrot.lane.b32.xlu0 %v1180, 55
        %v1796 = vpop.permute.xlu0 %1795
        %1797 = vrot.lane.b32.xlu0 %v1181, 55
        %v1798 = vpop.permute.xlu0 %1797
        %1799 = vrot.lane.b32.xlu0 %v1182, 55
        %v1800 = vpop.permute.xlu0 %1799
        %1801 = vrot.lane.b32.xlu0 %v1183, 55
        %v1802 = vpop.permute.xlu0 %1801
        %1803 = vrot.lane.b32.xlu0 %v1184, 55
        %v1804 = vpop.permute.xlu0 %1803
        %1805 = vrot.lane.b32.xlu0 %v1185, 55
        %v1806 = vpop.permute.xlu0 %1805
        %1807 = vrot.lane.b32.xlu0 %v1186, 55
        %v1808 = vpop.permute.xlu0 %1807
        %1809 = vrot.lane.b32.xlu0 %v1187, 55
        %v1810 = vpop.permute.xlu0 %1809
        %1811 = vrot.lane.b32.xlu0 %v1188, 55
        %v1812 = vpop.permute.xlu0 %1811
        %1813 = vrot.lane.b32.xlu0 %v1189, 55
        %v1814 = vpop.permute.xlu0 %1813
        %1815 = vrot.lane.b32.xlu0 %v1190, 55
        %v1816 = vpop.permute.xlu0 %1815
        %1817 = vrot.lane.b32.xlu0 %v1191, 55
        %v1818 = vpop.permute.xlu0 %1817
        %1819 = vrot.lane.b32.xlu0 %v1192, 55
        %v1820 = vpop.permute.xlu0 %1819
        %1821 = vrot.lane.b32.xlu0 %v1193, 55
        %v1822 = vpop.permute.xlu0 %1821
        %1823 = vrot.lane.b32.xlu0 %v1194, 55
        %v1824 = vpop.permute.xlu0 %1823
        %1825 = vrot.lane.b32.xlu0 %v1195, 55
        %v1826 = vpop.permute.xlu0 %1825
        %v1827 = vsel %vm690, %v1788, %v1790
        %v1828 = vsel %vm690, %v1790, %v1792
        %v1829 = vsel %vm690, %v1792, %v1794
        %v1830 = vsel %vm690, %v1794, %v1796
        %v1831 = vsel %vm690, %v1796, %v1798
        %v1832 = vsel %vm690, %v1798, %v1800
        %v1833 = vsel %vm690, %v1800, %v1802
        %v1834 = vsel %vm690, %v1802, %v1804
        %v1835 = vsel %vm690, %v1804, %v1806
        %v1836 = vsel %vm690, %v1808, %v1810
        %v1837 = vsel %vm690, %v1810, %v1812
        %v1838 = vsel %vm690, %v1812, %v1814
        %v1839 = vsel %vm690, %v1814, %v1816
        %v1840 = vsel %vm690, %v1816, %v1818
        %v1841 = vsel %vm690, %v1818, %v1820
        %v1842 = vsel %vm690, %v1820, %v1822
        %v1843 = vsel %vm690, %v1822, %v1824
        %v1844 = vsel %vm690, %v1824, %v1826
        %1863 = vst [vmem:[#allocation2 + $0x4d0] sm:$0xff] %v1827
        %1864 = vst [vmem:[#allocation2 + $0x4d8] sm:$0xff] %v1828
        %1865 = vst [vmem:[#allocation2 + $0x4e0] sm:$0xff] %v1829
        %1866 = vst [vmem:[#allocation2 + $0x4e8] sm:$0xff] %v1830
        %1867 = vst [vmem:[#allocation2 + $0x4f0] sm:$0xff] %v1831
        %1868 = vst [vmem:[#allocation2 + $0x4f8] sm:$0xff] %v1832
        %1869 = vst [vmem:[#allocation2 + $0x500] sm:$0xff] %v1833
        %1870 = vst [vmem:[#allocation2 + $0x508] sm:$0xff] %v1834
        %1871 = vst.msk [vmem:[#allocation2 + $0x510] sm:$0xff] %vm1204, %v1835
        %1872 = vst [vmem:[#allocation2 + $0x528] sm:$0xff] %v1836
        %1873 = vst [vmem:[#allocation2 + $0x530] sm:$0xff] %v1837
        %1874 = vst [vmem:[#allocation2 + $0x538] sm:$0xff] %v1838
        %1875 = vst [vmem:[#allocation2 + $0x540] sm:$0xff] %v1839
        %1876 = vst [vmem:[#allocation2 + $0x548] sm:$0xff] %v1840
        %1877 = vst [vmem:[#allocation2 + $0x550] sm:$0xff] %v1841
        %1878 = vst [vmem:[#allocation2 + $0x558] sm:$0xff] %v1842
        %1879 = vst [vmem:[#allocation2 + $0x560] sm:$0xff] %v1843
        %1880 = vst.msk [vmem:[#allocation2 + $0x568] sm:$0xff] %vm1204, %v1844
        %1881 = vrot.lane.b32.xlu0 %v1176, 54
        %v1882 = vpop.permute.xlu0 %1881
        %1883 = vrot.lane.b32.xlu0 %v1177, 54
        %v1884 = vpop.permute.xlu0 %1883
        %1885 = vrot.lane.b32.xlu0 %v1178, 54
        %v1886 = vpop.permute.xlu0 %1885
        %1887 = vrot.lane.b32.xlu0 %v1179, 54
        %v1888 = vpop.permute.xlu0 %1887
        %1889 = vrot.lane.b32.xlu0 %v1180, 54
        %v1890 = vpop.permute.xlu0 %1889
        %1891 = vrot.lane.b32.xlu0 %v1181, 54
        %v1892 = vpop.permute.xlu0 %1891
        %1893 = vrot.lane.b32.xlu0 %v1182, 54
        %v1894 = vpop.permute.xlu0 %1893
        %1895 = vrot.lane.b32.xlu0 %v1183, 54
        %v1896 = vpop.permute.xlu0 %1895
        %1897 = vrot.lane.b32.xlu0 %v1184, 54
        %v1898 = vpop.permute.xlu0 %1897
        %1899 = vrot.lane.b32.xlu0 %v1185, 54
        %v1900 = vpop.permute.xlu0 %1899
        %1901 = vrot.lane.b32.xlu0 %v1186, 54
        %v1902 = vpop.permute.xlu0 %1901
        %1903 = vrot.lane.b32.xlu0 %v1187, 54
        %v1904 = vpop.permute.xlu0 %1903
        %1905 = vrot.lane.b32.xlu0 %v1188, 54
        %v1906 = vpop.permute.xlu0 %1905
        %1907 = vrot.lane.b32.xlu0 %v1189, 54
        %v1908 = vpop.permute.xlu0 %1907
        %1909 = vrot.lane.b32.xlu0 %v1190, 54
        %v1910 = vpop.permute.xlu0 %1909
        %1911 = vrot.lane.b32.xlu0 %v1191, 54
        %v1912 = vpop.permute.xlu0 %1911
        %1913 = vrot.lane.b32.xlu0 %v1192, 54
        %v1914 = vpop.permute.xlu0 %1913
        %1915 = vrot.lane.b32.xlu0 %v1193, 54
        %v1916 = vpop.permute.xlu0 %1915
        %1917 = vrot.lane.b32.xlu0 %v1194, 54
        %v1918 = vpop.permute.xlu0 %1917
        %1919 = vrot.lane.b32.xlu0 %v1195, 54
        %v1920 = vpop.permute.xlu0 %1919
        %v1921 = vsel %vm708, %v1882, %v1884
        %v1922 = vsel %vm708, %v1884, %v1886
        %v1923 = vsel %vm708, %v1886, %v1888
        %v1924 = vsel %vm708, %v1888, %v1890
        %v1925 = vsel %vm708, %v1890, %v1892
        %v1926 = vsel %vm708, %v1892, %v1894
        %v1927 = vsel %vm708, %v1894, %v1896
        %v1928 = vsel %vm708, %v1896, %v1898
        %v1929 = vsel %vm708, %v1898, %v1900
        %v1930 = vsel %vm708, %v1902, %v1904
        %v1931 = vsel %vm708, %v1904, %v1906
        %v1932 = vsel %vm708, %v1906, %v1908
        %v1933 = vsel %vm708, %v1908, %v1910
        %v1934 = vsel %vm708, %v1910, %v1912
        %v1935 = vsel %vm708, %v1912, %v1914
        %v1936 = vsel %vm708, %v1914, %v1916
        %v1937 = vsel %vm708, %v1916, %v1918
        %v1938 = vsel %vm708, %v1918, %v1920
        %1957 = vst [vmem:[#allocation2 + $0x580] sm:$0xff] %v1921
        %1958 = vst [vmem:[#allocation2 + $0x588] sm:$0xff] %v1922
        %1959 = vst [vmem:[#allocation2 + $0x590] sm:$0xff] %v1923
        %1960 = vst [vmem:[#allocation2 + $0x598] sm:$0xff] %v1924
        %1961 = vst [vmem:[#allocation2 + $0x5a0] sm:$0xff] %v1925
        %1962 = vst [vmem:[#allocation2 + $0x5a8] sm:$0xff] %v1926
        %1963 = vst [vmem:[#allocation2 + $0x5b0] sm:$0xff] %v1927
        %1964 = vst [vmem:[#allocation2 + $0x5b8] sm:$0xff] %v1928
        %1965 = vst.msk [vmem:[#allocation2 + $0x5c0] sm:$0xff] %vm1204, %v1929
        %1966 = vst [vmem:[#allocation2 + $0x5d8] sm:$0xff] %v1930
        %1967 = vst [vmem:[#allocation2 + $0x5e0] sm:$0xff] %v1931
        %1968 = vst [vmem:[#allocation2 + $0x5e8] sm:$0xff] %v1932
        %1969 = vst [vmem:[#allocation2 + $0x5f0] sm:$0xff] %v1933
        %1970 = vst [vmem:[#allocation2 + $0x5f8] sm:$0xff] %v1934
        %1971 = vst [vmem:[#allocation2 + $0x600] sm:$0xff] %v1935
        %1972 = vst [vmem:[#allocation2 + $0x608] sm:$0xff] %v1936
        %1973 = vst [vmem:[#allocation2 + $0x610] sm:$0xff] %v1937
        %1974 = vst.msk [vmem:[#allocation2 + $0x618] sm:$0xff] %vm1204, %v1938
        %v1975 = vld [vmem:[#allocation3] sm:$0xff]
        %v1976 = vld [vmem:[#allocation3 + $0x8] sm:$0xff]
        %v1977 = vld [vmem:[#allocation3 + $0x10] sm:$0xff]
        %v1978 = vld [vmem:[#allocation3 + $0x18] sm:$0xff]
        %v1979 = vld [vmem:[#allocation2] sm:$0xff]
        %v1980 = vld [vmem:[#allocation2 + $0x8] sm:$0xff]
        %v1981 = vld [vmem:[#allocation2 + $0x10] sm:$0xff]
        %v1982 = vld [vmem:[#allocation2 + $0x18] sm:$0xff]
        %v1983 = vld [vmem:[#allocation2 + $0x20] sm:$0xff]
        %v1984 = vld [vmem:[#allocation2 + $0x28] sm:$0xff]
        %v1985 = vld [vmem:[#allocation2 + $0x30] sm:$0xff]
        %v1986 = vld [vmem:[#allocation2 + $0x38] sm:$0xff]
        %v1987 = vld [vmem:[#allocation2 + $0x40] sm:$0xff]
        %v1988 = vld [vmem:[#allocation2 + $0x58] sm:$0xff]
        %v1989 = vld [vmem:[#allocation2 + $0x60] sm:$0xff]
        %v1990 = vld [vmem:[#allocation2 + $0x68] sm:$0xff]
        %v1991 = vld [vmem:[#allocation2 + $0x70] sm:$0xff]
        %v1992 = vld [vmem:[#allocation2 + $0x78] sm:$0xff]
        %v1993 = vld [vmem:[#allocation2 + $0x80] sm:$0xff]
        %v1994 = vld [vmem:[#allocation2 + $0x88] sm:$0xff]
        %v1995 = vld [vmem:[#allocation2 + $0x90] sm:$0xff]
        %v1996 = vld [vmem:[#allocation2 + $0x98] sm:$0xff]
        %v1997 = vld [vmem:[#allocation2 + $0xb0] sm:$0xff]
        %v1998 = vld [vmem:[#allocation2 + $0xb8] sm:$0xff]
        %v1999 = vld [vmem:[#allocation2 + $0xc0] sm:$0xff]
        %v2000 = vld [vmem:[#allocation2 + $0xc8] sm:$0xff]
        %v2001 = vld [vmem:[#allocation2 + $0xd0] sm:$0xff]
        %v2002 = vld [vmem:[#allocation2 + $0xd8] sm:$0xff]
        %v2003 = vld [vmem:[#allocation2 + $0xe0] sm:$0xff]
        %v2004 = vld [vmem:[#allocation2 + $0xe8] sm:$0xff]
        %v2005 = vld [vmem:[#allocation2 + $0xf0] sm:$0xff]
        %v2006 = vld [vmem:[#allocation2 + $0x108] sm:$0xff]
        %v2007 = vld [vmem:[#allocation2 + $0x110] sm:$0xff]
        %v2008 = vld [vmem:[#allocation2 + $0x118] sm:$0xff]
        %v2009 = vld [vmem:[#allocation2 + $0x120] sm:$0xff]
        %v2010 = vld [vmem:[#allocation2 + $0x128] sm:$0xff]
        %v2011 = vld [vmem:[#allocation2 + $0x130] sm:$0xff]
        %v2012 = vld [vmem:[#allocation2 + $0x138] sm:$0xff]
        %v2013 = vld [vmem:[#allocation2 + $0x140] sm:$0xff]
        %v2014 = vld [vmem:[#allocation2 + $0x148] sm:$0xff]
        %v2015 = vld [vmem:[#allocation2 + $0x160] sm:$0xff]
        %v2016 = vld [vmem:[#allocation2 + $0x168] sm:$0xff]
        %v2017 = vld [vmem:[#allocation2 + $0x170] sm:$0xff]
        %v2018 = vld [vmem:[#allocation2 + $0x178] sm:$0xff]
        %v2019 = vld [vmem:[#allocation2 + $0x180] sm:$0xff]
        %v2020 = vld [vmem:[#allocation2 + $0x188] sm:$0xff]
        %v2021 = vld [vmem:[#allocation2 + $0x190] sm:$0xff]
        %v2022 = vld [vmem:[#allocation2 + $0x198] sm:$0xff]
        %v2023 = vld [vmem:[#allocation2 + $0x1a0] sm:$0xff]
        %v2024 = vld [vmem:[#allocation2 + $0x1b8] sm:$0xff]
        %v2025 = vld [vmem:[#allocation2 + $0x1c0] sm:$0xff]
        %v2026 = vld [vmem:[#allocation2 + $0x1c8] sm:$0xff]
        %v2027 = vld [vmem:[#allocation2 + $0x1d0] sm:$0xff]
        %v2028 = vld [vmem:[#allocation2 + $0x1d8] sm:$0xff]
        %v2029 = vld [vmem:[#allocation2 + $0x1e0] sm:$0xff]
        %v2030 = vld [vmem:[#allocation2 + $0x1e8] sm:$0xff]
        %v2031 = vld [vmem:[#allocation2 + $0x1f0] sm:$0xff]
        %v2032 = vld [vmem:[#allocation2 + $0x1f8] sm:$0xff]
        %v2033 = vld [vmem:[#allocation2 + $0x210] sm:$0xff]
        %v2034 = vld [vmem:[#allocation2 + $0x218] sm:$0xff]
        %v2035 = vld [vmem:[#allocation2 + $0x220] sm:$0xff]
        %v2036 = vld [vmem:[#allocation2 + $0x228] sm:$0xff]
        %v2037 = vld [vmem:[#allocation2 + $0x230] sm:$0xff]
        %v2038 = vld [vmem:[#allocation2 + $0x238] sm:$0xff]
        %v2039 = vld [vmem:[#allocation2 + $0x240] sm:$0xff]
        %v2040 = vld [vmem:[#allocation2 + $0x248] sm:$0xff]
        %v2041 = vld [vmem:[#allocation2 + $0x250] sm:$0xff]
        %v2042 = vld [vmem:[#allocation2 + $0x268] sm:$0xff]
        %v2043 = vld [vmem:[#allocation2 + $0x270] sm:$0xff]
        %v2044 = vld [vmem:[#allocation2 + $0x278] sm:$0xff]
        %v2045 = vld [vmem:[#allocation2 + $0x280] sm:$0xff]
        %v2046 = vld [vmem:[#allocation2 + $0x288] sm:$0xff]
        %v2047 = vld [vmem:[#allocation2 + $0x290] sm:$0xff]
        %v2048 = vld [vmem:[#allocation2 + $0x298] sm:$0xff]
        %v2049 = vld [vmem:[#allocation2 + $0x2a0] sm:$0xff]
        %v2050 = vld [vmem:[#allocation2 + $0x2a8] sm:$0xff]
        %v2051 = vld [vmem:[#allocation2 + $0x2c0] sm:$0xff]
        %v2052 = vld [vmem:[#allocation2 + $0x2c8] sm:$0xff]
        %v2053 = vld [vmem:[#allocation2 + $0x2d0] sm:$0xff]
        %v2054 = vld [vmem:[#allocation2 + $0x2d8] sm:$0xff]
        %v2055 = vld [vmem:[#allocation2 + $0x2e0] sm:$0xff]
        %v2056 = vld [vmem:[#allocation2 + $0x2e8] sm:$0xff]
        %v2057 = vld [vmem:[#allocation2 + $0x2f0] sm:$0xff]
        %v2058 = vld [vmem:[#allocation2 + $0x2f8] sm:$0xff]
        %v2059 = vld [vmem:[#allocation2 + $0x300] sm:$0xff]
        %v2060 = vld [vmem:[#allocation2 + $0x318] sm:$0xff]
        %v2061 = vld [vmem:[#allocation2 + $0x320] sm:$0xff]
        %v2062 = vld [vmem:[#allocation2 + $0x328] sm:$0xff]
        %v2063 = vld [vmem:[#allocation2 + $0x330] sm:$0xff]
        %v2064 = vld [vmem:[#allocation2 + $0x338] sm:$0xff]
        %v2065 = vld [vmem:[#allocation2 + $0x340] sm:$0xff]
        %v2066 = vld [vmem:[#allocation2 + $0x348] sm:$0xff]
        %v2067 = vld [vmem:[#allocation2 + $0x350] sm:$0xff]
        %v2068 = vld [vmem:[#allocation2 + $0x358] sm:$0xff]
        %v2069 = vld [vmem:[#allocation2 + $0x370] sm:$0xff]
        %v2070 = vld [vmem:[#allocation2 + $0x378] sm:$0xff]
        %v2071 = vld [vmem:[#allocation2 + $0x380] sm:$0xff]
        %v2072 = vld [vmem:[#allocation2 + $0x388] sm:$0xff]
        %v2073 = vld [vmem:[#allocation2 + $0x390] sm:$0xff]
        %v2074 = vld [vmem:[#allocation2 + $0x398] sm:$0xff]
        %v2075 = vld [vmem:[#allocation2 + $0x3a0] sm:$0xff]
        %v2076 = vld [vmem:[#allocation2 + $0x3a8] sm:$0xff]
        %v2077 = vld [vmem:[#allocation2 + $0x3b0] sm:$0xff]
        %v2078 = vld [vmem:[#allocation2 + $0x3c8] sm:$0xff]
        %v2079 = vld [vmem:[#allocation2 + $0x3d0] sm:$0xff]
        %v2080 = vld [vmem:[#allocation2 + $0x3d8] sm:$0xff]
        %v2081 = vld [vmem:[#allocation2 + $0x3e0] sm:$0xff]
        %v2082 = vld [vmem:[#allocation2 + $0x3e8] sm:$0xff]
        %v2083 = vld [vmem:[#allocation2 + $0x3f0] sm:$0xff]
        %v2084 = vld [vmem:[#allocation2 + $0x3f8] sm:$0xff]
        %v2085 = vld [vmem:[#allocation2 + $0x400] sm:$0xff]
        %v2086 = vld [vmem:[#allocation2 + $0x408] sm:$0xff]
        %v2087 = vld [vmem:[#allocation2 + $0x420] sm:$0xff]
        %v2088 = vld [vmem:[#allocation2 + $0x428] sm:$0xff]
        %v2089 = vld [vmem:[#allocation2 + $0x430] sm:$0xff]
        %v2090 = vld [vmem:[#allocation2 + $0x438] sm:$0xff]
        %v2091 = vld [vmem:[#allocation2 + $0x440] sm:$0xff]
        %v2092 = vld [vmem:[#allocation2 + $0x448] sm:$0xff]
        %v2093 = vld [vmem:[#allocation2 + $0x450] sm:$0xff]
        %v2094 = vld [vmem:[#allocation2 + $0x458] sm:$0xff]
        %v2095 = vld [vmem:[#allocation2 + $0x460] sm:$0xff]
        %v2096 = vld [vmem:[#allocation2 + $0x478] sm:$0xff]
        %v2097 = vld [vmem:[#allocation2 + $0x480] sm:$0xff]
        %v2098 = vld [vmem:[#allocation2 + $0x488] sm:$0xff]
        %v2099 = vld [vmem:[#allocation2 + $0x490] sm:$0xff]
        %v2100 = vld [vmem:[#allocation2 + $0x498] sm:$0xff]
        %v2101 = vld [vmem:[#allocation2 + $0x4a0] sm:$0xff]
        %v2102 = vld [vmem:[#allocation2 + $0x4a8] sm:$0xff]
        %v2103 = vld [vmem:[#allocation2 + $0x4b0] sm:$0xff]
        %v2104 = vld [vmem:[#allocation2 + $0x4b8] sm:$0xff]
        %v2105 = vld [vmem:[#allocation2 + $0x4d0] sm:$0xff]
        %v2106 = vld [vmem:[#allocation2 + $0x4d8] sm:$0xff]
        %v2107 = vld [vmem:[#allocation2 + $0x4e0] sm:$0xff]
        %v2108 = vld [vmem:[#allocation2 + $0x4e8] sm:$0xff]
        %v2109 = vld [vmem:[#allocation2 + $0x4f0] sm:$0xff]
        %v2110 = vld [vmem:[#allocation2 + $0x4f8] sm:$0xff]
        %v2111 = vld [vmem:[#allocation2 + $0x500] sm:$0xff]
        %v2112 = vld [vmem:[#allocation2 + $0x508] sm:$0xff]
        %v2113 = vld [vmem:[#allocation2 + $0x510] sm:$0xff]
        %v2114 = vld [vmem:[#allocation2 + $0x528] sm:$0xff]
        %v2115 = vld [vmem:[#allocation2 + $0x530] sm:$0xff]
        %v2116 = vld [vmem:[#allocation2 + $0x538] sm:$0xff]
        %v2117 = vld [vmem:[#allocation2 + $0x540] sm:$0xff]
        %v2118 = vld [vmem:[#allocation2 + $0x548] sm:$0xff]
        %v2119 = vld [vmem:[#allocation2 + $0x550] sm:$0xff]
        %v2120 = vld [vmem:[#allocation2 + $0x558] sm:$0xff]
        %v2121 = vld [vmem:[#allocation2 + $0x560] sm:$0xff]
        %v2122 = vld [vmem:[#allocation2 + $0x568] sm:$0xff]
        %v2123 = vld [vmem:[#allocation2 + $0x580] sm:$0xff]
        %v2124 = vld [vmem:[#allocation2 + $0x588] sm:$0xff]
        %v2125 = vld [vmem:[#allocation2 + $0x590] sm:$0xff]
        %v2126 = vld [vmem:[#allocation2 + $0x598] sm:$0xff]
        %v2127 = vld [vmem:[#allocation2 + $0x5a0] sm:$0xff]
        %v2128 = vld [vmem:[#allocation2 + $0x5a8] sm:$0xff]
        %v2129 = vld [vmem:[#allocation2 + $0x5b0] sm:$0xff]
        %v2130 = vld [vmem:[#allocation2 + $0x5b8] sm:$0xff]
        %v2131 = vld [vmem:[#allocation2 + $0x5c0] sm:$0xff]
        %v2132 = vld [vmem:[#allocation2 + $0x5d8] sm:$0xff]
        %v2133 = vld [vmem:[#allocation2 + $0x5e0] sm:$0xff]
        %v2134 = vld [vmem:[#allocation2 + $0x5e8] sm:$0xff]
        %v2135 = vld [vmem:[#allocation2 + $0x5f0] sm:$0xff]
        %v2136 = vld [vmem:[#allocation2 + $0x5f8] sm:$0xff]
        %v2137 = vld [vmem:[#allocation2 + $0x600] sm:$0xff]
        %v2138 = vld [vmem:[#allocation2 + $0x608] sm:$0xff]
        %v2139 = vld [vmem:[#allocation2 + $0x610] sm:$0xff]
        %v2140 = vld [vmem:[#allocation2 + $0x618] sm:$0xff]
        %v2141 = vld [vmem:[%s4] sm:$0xff]
        %v2142 = vld [vmem:[%s4 + $0x8] sm:$0xff]
        %2144 = vset.pattern.permute.xlu0 0
        %2145 = vperm.xlu0 %2144, %v2141
        %v2146 = vpop.permute.xlu0 %2145
        %2149 = vset.pattern.permute.xlu0 0
        %2150 = vperm.xlu0 %2149, %v2142
        %v2151 = vpop.permute.xlu0 %2150
        %vm2153 = vcmask 130048
        %v2155 = vsel %vm2153, %v1976, 0
        %v2158 = vsel %vm2153, %v1978, 0
        %2160 = vmatprep.subr.mxu0 %v2115
        %2161 = vmatpush1.msra.mxu0 %v2114
        %2162 = vmatprep.subr.mxu0 %v2106
        %2163 = vmatpush1.msra.mxu0 %v2105
        %2164 = vmatprep.subr.mxu0 %v2097
        %2165 = vmatpush1.msra.mxu0 %v2096
        %2166 = vmatprep.subr.mxu0 %v2088
        %2167 = vmatpush1.msra.mxu0 %v2087
        %2168 = vmatprep.subr.mxu0 %v2079
        %2169 = vmatpush1.msra.mxu0 %v2078
        %2170 = vmatprep.subr.mxu0 %v2070
        %2171 = vmatpush1.msra.mxu0 %v2069
        %2172 = vmatprep.subr.mxu0 %v2061
        %2173 = vmatpush1.msra.mxu0 %v2060
        %2174 = vmatprep.subr.mxu0 %v2052
        %2175 = vmatpush1.msra.mxu0 %v2051
        %2176 = vmatprep.subr.mxu0 %v2043
        %2177 = vmatpush1.msra.mxu0 %v2042
        %2178 = vmatprep.subr.mxu0 %v2034
        %2179 = vmatpush1.msra.mxu0 %v2033
        %2180 = vmatprep.subr.mxu0 %v2025
        %2181 = vmatpush1.msra.mxu0 %v2024
        %2182 = vmatprep.subr.mxu0 %v2016
        %2183 = vmatpush1.msra.mxu0 %v2015
        %2184 = vmatprep.subr.mxu0 %v2007
        %2185 = vmatpush1.msra.mxu0 %v2006
        %2186 = vmatprep.subr.mxu0 %v1998
        %2187 = vmatpush1.msra.mxu0 %v1997
        %2188 = vmatprep.subr.mxu0 %v1989
        %2189 = vmatpush1.msra.mxu0 %v1988
        %2190 = vmatprep.subr.mxu0 %v1980
        %2191 = vmatpush1.msra.mxu0 %v1979
        %2192 = vmatprep.subr.mxu0 0.0
        %2193 = vmatpush2.msra.mxu0 0.0
        %2194 = vmatprep.subr.mxu0 0.0
        %2195 = vmatpush2.msra.mxu0 0.0
        %2196 = vmatprep.subr.mxu0 0.0
        %2197 = vmatpush2.msra.mxu0 0.0
        %2198 = vmatprep.subr.mxu0 0.0
        %2199 = vmatpush2.msra.mxu0 0.0
        %2200 = vmatprep.subr.mxu0 0.0
        %2201 = vmatpush2.msra.mxu0 0.0
        %2202 = vmatprep.subr.mxu0 0.0
        %2203 = vmatpush2.msra.mxu0 0.0
        %2204 = vmatprep.subr.mxu0 0.0
        %2205 = vmatpush2.msra.mxu0 0.0
        %2206 = vmatprep.subr.mxu0 0.0
        %2207 = vmatpush2.msra.mxu0 0.0
        %2208 = vmatprep.subr.mxu0 0.0
        %2209 = vmatpush2.msra.mxu0 0.0
        %2210 = vmatprep.subr.mxu0 0.0
        %2211 = vmatpush2.msra.mxu0 0.0
        %2212 = vmatprep.subr.mxu0 0.0
        %2213 = vmatpush2.msra.mxu0 0.0
        %2214 = vmatprep.subr.mxu0 0.0
        %2215 = vmatpush2.msra.mxu0 0.0
        %2216 = vmatprep.subr.mxu0 0.0
        %2217 = vmatpush2.msra.mxu0 0.0
        %2218 = vmatprep.subr.mxu0 0.0
        %2219 = vmatpush2.msra.mxu0 0.0
        %2220 = vmatprep.subr.mxu0 %v2133
        %2221 = vmatpush2.msra.mxu0 %v2132
        %2222 = vmatprep.subr.mxu0 %v2124
        %2223 = vmatpush2.msra.mxu0 %v2123
        %2224 = vmatprep.mubr.f32.mxu0 %v2155
        %2225 = vmatmul.mubr.f32.gmra.mxu0 %v1975
        %v2226 = vpop.f32.mrf.mxu0
        %v2227 = vadd.f32 %v2146, %v2226
        %v2228 = vpop.f32.mrf.mxu0
        %v2229 = vadd.f32 %v2146, %v2228
        %2230 = vmatprep.mubr.f32.mxu0 %v2158
        %2231 = vmatmul.mubr.f32.gmra.mxu0 %v1977
        %v2232 = vpop.f32.mrf.mxu0
        %v2233 = vadd.f32 %v2151, %v2232
        %v2234 = vpop.f32.mrf.mxu0
        %v2235 = vadd.f32 %v2151, %v2234
        %2236 = vdwg.mxu0
        %2237 = vmatprep.subr.mxu0 %v2117
        %2238 = vmatpush1.msra.mxu0 %v2116
        %2239 = vmatprep.subr.mxu0 %v2108
        %2240 = vmatpush1.msra.mxu0 %v2107
        %2241 = vmatprep.subr.mxu0 %v2099
        %2242 = vmatpush1.msra.mxu0 %v2098
        %2243 = vmatprep.subr.mxu0 %v2090
        %2244 = vmatpush1.msra.mxu0 %v2089
        %2245 = vmatprep.subr.mxu0 %v2081
        %2246 = vmatpush1.msra.mxu0 %v2080
        %2247 = vmatprep.subr.mxu0 %v2072
        %2248 = vmatpush1.msra.mxu0 %v2071
        %2249 = vmatprep.subr.mxu0 %v2063
        %2250 = vmatpush1.msra.mxu0 %v2062
        %2251 = vmatprep.subr.mxu0 %v2054
        %2252 = vmatpush1.msra.mxu0 %v2053
        %2253 = vmatprep.subr.mxu0 %v2045
        %2254 = vmatpush1.msra.mxu0 %v2044
        %2255 = vmatprep.subr.mxu0 %v2036
        %2256 = vmatpush1.msra.mxu0 %v2035
        %2257 = vmatprep.subr.mxu0 %v2027
        %2258 = vmatpush1.msra.mxu0 %v2026
        %2259 = vmatprep.subr.mxu0 %v2018
        %2260 = vmatpush1.msra.mxu0 %v2017
        %2261 = vmatprep.subr.mxu0 %v2009
        %2262 = vmatpush1.msra.mxu0 %v2008
        %2263 = vmatprep.subr.mxu0 %v2000
        %2264 = vmatpush1.msra.mxu0 %v1999
        %2265 = vmatprep.subr.mxu0 %v1991
        %2266 = vmatpush1.msra.mxu0 %v1990
        %2267 = vmatprep.subr.mxu0 %v1982
        %2268 = vmatpush1.msra.mxu0 %v1981
        %2269 = vmatprep.subr.mxu0 0.0
        %2270 = vmatpush2.msra.mxu0 0.0
        %2271 = vmatprep.subr.mxu0 0.0
        %2272 = vmatpush2.msra.mxu0 0.0
        %2273 = vmatprep.subr.mxu0 0.0
        %2274 = vmatpush2.msra.mxu0 0.0
        %2275 = vmatprep.subr.mxu0 0.0
        %2276 = vmatpush2.msra.mxu0 0.0
        %2277 = vmatprep.subr.mxu0 0.0
        %2278 = vmatpush2.msra.mxu0 0.0
        %2279 = vmatprep.subr.mxu0 0.0
        %2280 = vmatpush2.msra.mxu0 0.0
        %2281 = vmatprep.subr.mxu0 0.0
        %2282 = vmatpush2.msra.mxu0 0.0
        %2283 = vmatprep.subr.mxu0 0.0
        %2284 = vmatpush2.msra.mxu0 0.0
        %2285 = vmatprep.subr.mxu0 0.0
        %2286 = vmatpush2.msra.mxu0 0.0
        %2287 = vmatprep.subr.mxu0 0.0
        %2288 = vmatpush2.msra.mxu0 0.0
        %2289 = vmatprep.subr.mxu0 0.0
        %2290 = vmatpush2.msra.mxu0 0.0
        %2291 = vmatprep.subr.mxu0 0.0
        %2292 = vmatpush2.msra.mxu0 0.0
        %2293 = vmatprep.subr.mxu0 0.0
        %2294 = vmatpush2.msra.mxu0 0.0
        %2295 = vmatprep.subr.mxu0 0.0
        %2296 = vmatpush2.msra.mxu0 0.0
        %2297 = vmatprep.subr.mxu0 %v2135
        %2298 = vmatpush2.msra.mxu0 %v2134
        %2299 = vmatprep.subr.mxu0 %v2126
        %2300 = vmatpush2.msra.mxu0 %v2125
        %2301 = vmatprep.mubr.f32.mxu0 %v2155
        %2302 = vmatmul.mubr.f32.gmra.mxu0 %v1975
        %v2303 = vpop.f32.mrf.mxu0
        %v2304 = vadd.f32 %v2146, %v2303
        %v2305 = vpop.f32.mrf.mxu0
        %v2306 = vadd.f32 %v2146, %v2305
        %2307 = vmatprep.mubr.f32.mxu0 %v2158
        %2308 = vmatmul.mubr.f32.gmra.mxu0 %v1977
        %v2309 = vpop.f32.mrf.mxu0
        %v2310 = vadd.f32 %v2151, %v2309
        %v2311 = vpop.f32.mrf.mxu0
        %v2312 = vadd.f32 %v2151, %v2311
        %2313 = vdwg.mxu0
        %2314 = vmatprep.subr.mxu0 %v2119
        %2315 = vmatpush1.msra.mxu0 %v2118
        %2316 = vmatprep.subr.mxu0 %v2110
        %2317 = vmatpush1.msra.mxu0 %v2109
        %2318 = vmatprep.subr.mxu0 %v2101
        %2319 = vmatpush1.msra.mxu0 %v2100
        %2320 = vmatprep.subr.mxu0 %v2092
        %2321 = vmatpush1.msra.mxu0 %v2091
        %2322 = vmatprep.subr.mxu0 %v2083
        %2323 = vmatpush1.msra.mxu0 %v2082
        %2324 = vmatprep.subr.mxu0 %v2074
        %2325 = vmatpush1.msra.mxu0 %v2073
        %2326 = vmatprep.subr.mxu0 %v2065
        %2327 = vmatpush1.msra.mxu0 %v2064
        %2328 = vmatprep.subr.mxu0 %v2056
        %2329 = vmatpush1.msra.mxu0 %v2055
        %2330 = vmatprep.subr.mxu0 %v2047
        %2331 = vmatpush1.msra.mxu0 %v2046
        %2332 = vmatprep.subr.mxu0 %v2038
        %2333 = vmatpush1.msra.mxu0 %v2037
        %2334 = vmatprep.subr.mxu0 %v2029
        %2335 = vmatpush1.msra.mxu0 %v2028
        %2336 = vmatprep.subr.mxu0 %v2020
        %2337 = vmatpush1.msra.mxu0 %v2019
        %2338 = vmatprep.subr.mxu0 %v2011
        %2339 = vmatpush1.msra.mxu0 %v2010
        %2340 = vmatprep.subr.mxu0 %v2002
        %2341 = vmatpush1.msra.mxu0 %v2001
        %2342 = vmatprep.subr.mxu0 %v1993
        %2343 = vmatpush1.msra.mxu0 %v1992
        %2344 = vmatprep.subr.mxu0 %v1984
        %2345 = vmatpush1.msra.mxu0 %v1983
        %2346 = vmatprep.subr.mxu0 0.0
        %2347 = vmatpush2.msra.mxu0 0.0
        %2348 = vmatprep.subr.mxu0 0.0
        %2349 = vmatpush2.msra.mxu0 0.0
        %2350 = vmatprep.subr.mxu0 0.0
        %2351 = vmatpush2.msra.mxu0 0.0
        %2352 = vmatprep.subr.mxu0 0.0
        %2353 = vmatpush2.msra.mxu0 0.0
        %2354 = vmatprep.subr.mxu0 0.0
        %2355 = vmatpush2.msra.mxu0 0.0
        %2356 = vmatprep.subr.mxu0 0.0
        %2357 = vmatpush2.msra.mxu0 0.0
        %2358 = vmatprep.subr.mxu0 0.0
        %2359 = vmatpush2.msra.mxu0 0.0
        %2360 = vmatprep.subr.mxu0 0.0
        %2361 = vmatpush2.msra.mxu0 0.0
        %2362 = vmatprep.subr.mxu0 0.0
        %2363 = vmatpush2.msra.mxu0 0.0
        %2364 = vmatprep.subr.mxu0 0.0
        %2365 = vmatpush2.msra.mxu0 0.0
        %2366 = vmatprep.subr.mxu0 0.0
        %2367 = vmatpush2.msra.mxu0 0.0
        %2368 = vmatprep.subr.mxu0 0.0
        %2369 = vmatpush2.msra.mxu0 0.0
        %2370 = vmatprep.subr.mxu0 0.0
        %2371 = vmatpush2.msra.mxu0 0.0
        %2372 = vmatprep.subr.mxu0 0.0
        %2373 = vmatpush2.msra.mxu0 0.0
        %2374 = vmatprep.subr.mxu0 %v2137
        %2375 = vmatpush2.msra.mxu0 %v2136
        %2376 = vmatprep.subr.mxu0 %v2128
        %2377 = vmatpush2.msra.mxu0 %v2127
        %2378 = vmatprep.mubr.f32.mxu0 %v2155
        %2379 = vmatmul.mubr.f32.gmra.mxu0 %v1975
        %v2380 = vpop.f32.mrf.mxu0
        %v2381 = vadd.f32 %v2146, %v2380
        %v2382 = vpop.f32.mrf.mxu0
        %v2383 = vadd.f32 %v2146, %v2382
        %2384 = vmatprep.mubr.f32.mxu0 %v2158
        %2385 = vmatmul.mubr.f32.gmra.mxu0 %v1977
        %v2386 = vpop.f32.mrf.mxu0
        %v2387 = vadd.f32 %v2151, %v2386
        %v2388 = vpop.f32.mrf.mxu0
        %v2389 = vadd.f32 %v2151, %v2388
        %2390 = vdwg.mxu0
        %2391 = vmatprep.subr.mxu0 %v2121
        %2392 = vmatpush1.msra.mxu0 %v2120
        %2393 = vmatprep.subr.mxu0 %v2112
        %2394 = vmatpush1.msra.mxu0 %v2111
        %2395 = vmatprep.subr.mxu0 %v2103
        %2396 = vmatpush1.msra.mxu0 %v2102
        %2397 = vmatprep.subr.mxu0 %v2094
        %2398 = vmatpush1.msra.mxu0 %v2093
        %2399 = vmatprep.subr.mxu0 %v2085
        %2400 = vmatpush1.msra.mxu0 %v2084
        %2401 = vmatprep.subr.mxu0 %v2076
        %2402 = vmatpush1.msra.mxu0 %v2075
        %2403 = vmatprep.subr.mxu0 %v2067
        %2404 = vmatpush1.msra.mxu0 %v2066
        %2405 = vmatprep.subr.mxu0 %v2058
        %2406 = vmatpush1.msra.mxu0 %v2057
        %2407 = vmatprep.subr.mxu0 %v2049
        %2408 = vmatpush1.msra.mxu0 %v2048
        %2409 = vmatprep.subr.mxu0 %v2040
        %2410 = vmatpush1.msra.mxu0 %v2039
        %2411 = vmatprep.subr.mxu0 %v2031
        %2412 = vmatpush1.msra.mxu0 %v2030
        %2413 = vmatprep.subr.mxu0 %v2022
        %2414 = vmatpush1.msra.mxu0 %v2021
        %2415 = vmatprep.subr.mxu0 %v2013
        %2416 = vmatpush1.msra.mxu0 %v2012
        %2417 = vmatprep.subr.mxu0 %v2004
        %2418 = vmatpush1.msra.mxu0 %v2003
        %2419 = vmatprep.subr.mxu0 %v1995
        %2420 = vmatpush1.msra.mxu0 %v1994
        %2421 = vmatprep.subr.mxu0 %v1986
        %2422 = vmatpush1.msra.mxu0 %v1985
        %2423 = vmatprep.subr.mxu0 0.0
        %2424 = vmatpush2.msra.mxu0 0.0
        %2425 = vmatprep.subr.mxu0 0.0
        %2426 = vmatpush2.msra.mxu0 0.0
        %2427 = vmatprep.subr.mxu0 0.0
        %2428 = vmatpush2.msra.mxu0 0.0
        %2429 = vmatprep.subr.mxu0 0.0
        %2430 = vmatpush2.msra.mxu0 0.0
        %2431 = vmatprep.subr.mxu0 0.0
        %2432 = vmatpush2.msra.mxu0 0.0
        %2433 = vmatprep.subr.mxu0 0.0
        %2434 = vmatpush2.msra.mxu0 0.0
        %2435 = vmatprep.subr.mxu0 0.0
        %2436 = vmatpush2.msra.mxu0 0.0
        %2437 = vmatprep.subr.mxu0 0.0
        %2438 = vmatpush2.msra.mxu0 0.0
        %2439 = vmatprep.subr.mxu0 0.0
        %2440 = vmatpush2.msra.mxu0 0.0
        %2441 = vmatprep.subr.mxu0 0.0
        %2442 = vmatpush2.msra.mxu0 0.0
        %2443 = vmatprep.subr.mxu0 0.0
        %2444 = vmatpush2.msra.mxu0 0.0
        %2445 = vmatprep.subr.mxu0 0.0
        %2446 = vmatpush2.msra.mxu0 0.0
        %2447 = vmatprep.subr.mxu0 0.0
        %2448 = vmatpush2.msra.mxu0 0.0
        %2449 = vmatprep.subr.mxu0 0.0
        %2450 = vmatpush2.msra.mxu0 0.0
        %2451 = vmatprep.subr.mxu0 %v2139
        %2452 = vmatpush2.msra.mxu0 %v2138
        %2453 = vmatprep.subr.mxu0 %v2130
        %2454 = vmatpush2.msra.mxu0 %v2129
        %2455 = vmatprep.mubr.f32.mxu0 %v2155
        %2456 = vmatmul.mubr.f32.gmra.mxu0 %v1975
        %v2457 = vpop.f32.mrf.mxu0
        %v2458 = vadd.f32 %v2146, %v2457
        %v2459 = vpop.f32.mrf.mxu0
        %v2460 = vadd.f32 %v2146, %v2459
        %2461 = vmatprep.mubr.f32.mxu0 %v2158
        %2462 = vmatmul.mubr.f32.gmra.mxu0 %v1977
        %v2463 = vpop.f32.mrf.mxu0
        %v2464 = vadd.f32 %v2151, %v2463
        %v2465 = vpop.f32.mrf.mxu0
        %v2466 = vadd.f32 %v2151, %v2465
        %2467 = vdwg.mxu0
        %2468 = vmatprep.subr.mxu0 0.0
        %2469 = vmatpush1.msra.mxu0 %v2122
        %2470 = vmatprep.subr.mxu0 0.0
        %2471 = vmatpush1.msra.mxu0 %v2113
        %2472 = vmatprep.subr.mxu0 0.0
        %2473 = vmatpush1.msra.mxu0 %v2104
        %2474 = vmatprep.subr.mxu0 0.0
        %2475 = vmatpush1.msra.mxu0 %v2095
        %2476 = vmatprep.subr.mxu0 0.0
        %2477 = vmatpush1.msra.mxu0 %v2086
        %2478 = vmatprep.subr.mxu0 0.0
        %2479 = vmatpush1.msra.mxu0 %v2077
        %2480 = vmatprep.subr.mxu0 0.0
        %2481 = vmatpush1.msra.mxu0 %v2068
        %2482 = vmatprep.subr.mxu0 0.0
        %2483 = vmatpush1.msra.mxu0 %v2059
        %2484 = vmatprep.subr.mxu0 0.0
        %2485 = vmatpush1.msra.mxu0 %v2050
        %2486 = vmatprep.subr.mxu0 0.0
        %2487 = vmatpush1.msra.mxu0 %v2041
        %2488 = vmatprep.subr.mxu0 0.0
        %2489 = vmatpush1.msra.mxu0 %v2032
        %2490 = vmatprep.subr.mxu0 0.0
        %2491 = vmatpush1.msra.mxu0 %v2023
        %2492 = vmatprep.subr.mxu0 0.0
        %2493 = vmatpush1.msra.mxu0 %v2014
        %2494 = vmatprep.subr.mxu0 0.0
        %2495 = vmatpush1.msra.mxu0 %v2005
        %2496 = vmatprep.subr.mxu0 0.0
        %2497 = vmatpush1.msra.mxu0 %v1996
        %2498 = vmatprep.subr.mxu0 0.0
        %2499 = vmatpush1.msra.mxu0 %v1987
        %2500 = vmatprep.subr.mxu0 0.0
        %2501 = vmatpush2.msra.mxu0 0.0
        %2502 = vmatprep.subr.mxu0 0.0
        %2503 = vmatpush2.msra.mxu0 0.0
        %2504 = vmatprep.subr.mxu0 0.0
        %2505 = vmatpush2.msra.mxu0 0.0
        %2506 = vmatprep.subr.mxu0 0.0
        %2507 = vmatpush2.msra.mxu0 0.0
        %2508 = vmatprep.subr.mxu0 0.0
        %2509 = vmatpush2.msra.mxu0 0.0
        %2510 = vmatprep.subr.mxu0 0.0
        %2511 = vmatpush2.msra.mxu0 0.0
        %2512 = vmatprep.subr.mxu0 0.0
        %2513 = vmatpush2.msra.mxu0 0.0
        %2514 = vmatprep.subr.mxu0 0.0
        %2515 = vmatpush2.msra.mxu0 0.0
        %2516 = vmatprep.subr.mxu0 0.0
        %2517 = vmatpush2.msra.mxu0 0.0
        %2518 = vmatprep.subr.mxu0 0.0
        %2519 = vmatpush2.msra.mxu0 0.0
        %2520 = vmatprep.subr.mxu0 0.0
        %2521 = vmatpush2.msra.mxu0 0.0
        %2522 = vmatprep.subr.mxu0 0.0
        %2523 = vmatpush2.msra.mxu0 0.0
        %2524 = vmatprep.subr.mxu0 0.0
        %2525 = vmatpush2.msra.mxu0 0.0
        %2526 = vmatprep.subr.mxu0 0.0
        %2527 = vmatpush2.msra.mxu0 0.0
        %2528 = vmatprep.subr.mxu0 0.0
        %2529 = vmatpush2.msra.mxu0 %v2140
        %2530 = vmatprep.subr.mxu0 0.0
        %2531 = vmatpush2.msra.mxu0 %v2131
        %2532 = vmatprep.mubr.f32.mxu0 %v2155
        %2533 = vmatmul.mubr.f32.gmra.mxu0 %v1975
        %v2534 = vpop.f32.mrf.mxu0
        %v2535 = vadd.f32 %v2146, %v2534
        %v2536 = vpop.f32.mrf.mxu0
        %2537 = vmatprep.mubr.f32.mxu0 %v2158
        %2538 = vmatmul.mubr.f32.gmra.mxu0 %v1977
        %v2539 = vpop.f32.mrf.mxu0
        %v2540 = vadd.f32 %v2151, %v2539
        %v2541 = vpop.f32.mrf.mxu0
        %2542 = vdwg.mxu0
        %2543 = vst [vmem:[%s550] sm:$0xff] %v2227
        %2544 = vst [vmem:[%s550 + $0x8] sm:$0xff] %v2229
        %2545 = vst [vmem:[%s550 + $0x10] sm:$0xff] %v2304
        %2546 = vst [vmem:[%s550 + $0x18] sm:$0xff] %v2306
        %2547 = vst [vmem:[%s550 + $0x20] sm:$0xff] %v2381
        %2548 = vst [vmem:[%s550 + $0x28] sm:$0xff] %v2383
        %2549 = vst [vmem:[%s550 + $0x30] sm:$0xff] %v2458
        %2550 = vst [vmem:[%s550 + $0x38] sm:$0xff] %v2460
        %2551 = vst.msk [vmem:[%s550 + $0x40] sm:$0xff] %vm1204, %v2535
        %2552 = vst [vmem:[%s550 + $0x48] sm:$0xff] %v2233
        %2553 = vst [vmem:[%s550 + $0x50] sm:$0xff] %v2235
        %2554 = vst [vmem:[%s550 + $0x58] sm:$0xff] %v2310
        %2555 = vst [vmem:[%s550 + $0x60] sm:$0xff] %v2312
        %2556 = vst [vmem:[%s550 + $0x68] sm:$0xff] %v2387
        %2557 = vst [vmem:[%s550 + $0x70] sm:$0xff] %v2389
        %2558 = vst [vmem:[%s550 + $0x78] sm:$0xff] %v2464
        %2559 = vst [vmem:[%s550 + $0x80] sm:$0xff] %v2466
        %2560 = vst.msk [vmem:[%s550 + $0x88] sm:$0xff] %vm1204, %v2540
        %2579 = vrot.lane.b32.xlu0 %v2227, 127
        %v2580 = vpop.permute.xlu0 %2579
        %2581 = vrot.lane.b32.xlu0 %v2229, 127
        %v2582 = vpop.permute.xlu0 %2581
        %2583 = vrot.lane.b32.xlu0 %v2304, 127
        %v2584 = vpop.permute.xlu0 %2583
        %2585 = vrot.lane.b32.xlu0 %v2306, 127
        %v2586 = vpop.permute.xlu0 %2585
        %2587 = vrot.lane.b32.xlu0 %v2381, 127
        %v2588 = vpop.permute.xlu0 %2587
        %2589 = vrot.lane.b32.xlu0 %v2383, 127
        %v2590 = vpop.permute.xlu0 %2589
        %2591 = vrot.lane.b32.xlu0 %v2458, 127
        %v2592 = vpop.permute.xlu0 %2591
        %2593 = vrot.lane.b32.xlu0 %v2460, 127
        %v2594 = vpop.permute.xlu0 %2593
        %2595 = vrot.lane.b32.xlu0 %v2535, 127
        %v2596 = vpop.permute.xlu0 %2595
        %2597 = vrot.lane.b32.xlu0 %v2233, 127
        %v2598 = vpop.permute.xlu0 %2597
        %2599 = vrot.lane.b32.xlu0 %v2235, 127
        %v2600 = vpop.permute.xlu0 %2599
        %2601 = vrot.lane.b32.xlu0 %v2310, 127
        %v2602 = vpop.permute.xlu0 %2601
        %2603 = vrot.lane.b32.xlu0 %v2312, 127
        %v2604 = vpop.permute.xlu0 %2603
        %2605 = vrot.lane.b32.xlu0 %v2387, 127
        %v2606 = vpop.permute.xlu0 %2605
        %2607 = vrot.lane.b32.xlu0 %v2389, 127
        %v2608 = vpop.permute.xlu0 %2607
        %2609 = vrot.lane.b32.xlu0 %v2464, 127
        %v2610 = vpop.permute.xlu0 %2609
        %2611 = vrot.lane.b32.xlu0 %v2466, 127
        %v2612 = vpop.permute.xlu0 %2611
        %2613 = vrot.lane.b32.xlu0 %v2540, 127
        %v2614 = vpop.permute.xlu0 %2613
        %v2615 = vsel %vm582, %v2580, %v2582
        %v2616 = vsel %vm582, %v2582, %v2584
        %v2617 = vsel %vm582, %v2584, %v2586
        %v2618 = vsel %vm582, %v2586, %v2588
        %v2619 = vsel %vm582, %v2588, %v2590
        %v2620 = vsel %vm582, %v2590, %v2592
        %v2621 = vsel %vm582, %v2592, %v2594
        %v2622 = vsel %vm582, %v2594, %v2596
        %v2623 = vsel %vm582, %v2598, %v2600
        %v2624 = vsel %vm582, %v2600, %v2602
        %v2625 = vsel %vm582, %v2602, %v2604
        %v2626 = vsel %vm582, %v2604, %v2606
        %v2627 = vsel %vm582, %v2606, %v2608
        %v2628 = vsel %vm582, %v2608, %v2610
        %v2629 = vsel %vm582, %v2610, %v2612
        %v2630 = vsel %vm582, %v2612, %v2614
        %v2649 = vmax.f32 %v2227, %v2615
        %v2650 = vmax.f32 %v2229, %v2616
        %v2651 = vmax.f32 %v2304, %v2617
        %v2652 = vmax.f32 %v2306, %v2618
        %v2653 = vmax.f32 %v2381, %v2619
        %v2654 = vmax.f32 %v2383, %v2620
        %v2655 = vmax.f32 %v2458, %v2621
        %v2656 = vmax.f32 %v2460, %v2622
        %v2657 = vmax.f32 %v2535, %v2596
        %v2658 = vmax.f32 %v2233, %v2623
        %v2659 = vmax.f32 %v2235, %v2624
        %v2660 = vmax.f32 %v2310, %v2625
        %v2661 = vmax.f32 %v2312, %v2626
        %v2662 = vmax.f32 %v2387, %v2627
        %v2663 = vmax.f32 %v2389, %v2628
        %v2664 = vmax.f32 %v2464, %v2629
        %v2665 = vmax.f32 %v2466, %v2630
        %v2666 = vmax.f32 %v2540, %v2614
        %2685 = vrot.lane.b32.xlu0 %v2649, 92
        %v2686 = vpop.permute.xlu0 %2685
        %2687 = vrot.lane.b32.xlu0 %v2650, 92
        %v2688 = vpop.permute.xlu0 %2687
        %2689 = vrot.lane.b32.xlu0 %v2651, 92
        %v2690 = vpop.permute.xlu0 %2689
        %2691 = vrot.lane.b32.xlu0 %v2652, 92
        %v2692 = vpop.permute.xlu0 %2691
        %2693 = vrot.lane.b32.xlu0 %v2653, 92
        %v2694 = vpop.permute.xlu0 %2693
        %2695 = vrot.lane.b32.xlu0 %v2654, 92
        %v2696 = vpop.permute.xlu0 %2695
        %2697 = vrot.lane.b32.xlu0 %v2655, 92
        %v2698 = vpop.permute.xlu0 %2697
        %2699 = vrot.lane.b32.xlu0 %v2656, 92
        %v2700 = vpop.permute.xlu0 %2699
        %2701 = vrot.lane.b32.xlu0 %v2657, 92
        %v2702 = vpop.permute.xlu0 %2701
        %2703 = vrot.lane.b32.xlu0 %v2658, 92
        %v2704 = vpop.permute.xlu0 %2703
        %2705 = vrot.lane.b32.xlu0 %v2659, 92
        %v2706 = vpop.permute.xlu0 %2705
        %2707 = vrot.lane.b32.xlu0 %v2660, 92
        %v2708 = vpop.permute.xlu0 %2707
        %2709 = vrot.lane.b32.xlu0 %v2661, 92
        %v2710 = vpop.permute.xlu0 %2709
        %2711 = vrot.lane.b32.xlu0 %v2662, 92
        %v2712 = vpop.permute.xlu0 %2711
        %2713 = vrot.lane.b32.xlu0 %v2663, 92
        %v2714 = vpop.permute.xlu0 %2713
        %2715 = vrot.lane.b32.xlu0 %v2664, 92
        %v2716 = vpop.permute.xlu0 %2715
        %2717 = vrot.lane.b32.xlu0 %v2665, 92
        %v2718 = vpop.permute.xlu0 %2717
        %2719 = vrot.lane.b32.xlu0 %v2666, 92
        %v2720 = vpop.permute.xlu0 %2719
        %v2721 = vsel %vm618, %v2686, %v2688
        %v2722 = vsel %vm618, %v2688, %v2690
        %v2723 = vsel %vm618, %v2690, %v2692
        %v2724 = vsel %vm618, %v2692, %v2694
        %v2725 = vsel %vm618, %v2694, %v2696
        %v2726 = vsel %vm618, %v2696, %v2698
        %v2727 = vsel %vm618, %v2698, %v2700
        %v2728 = vsel %vm618, %v2700, %v2702
        %v2729 = vsel %vm618, %v2704, %v2706
        %v2730 = vsel %vm618, %v2706, %v2708
        %v2731 = vsel %vm618, %v2708, %v2710
        %v2732 = vsel %vm618, %v2710, %v2712
        %v2733 = vsel %vm618, %v2712, %v2714
        %v2734 = vsel %vm618, %v2714, %v2716
        %v2735 = vsel %vm618, %v2716, %v2718
        %v2736 = vsel %vm618, %v2718, %v2720
        %v2755 = vmax.f32 %v2649, %v2721
        %v2756 = vmax.f32 %v2650, %v2722
        %v2757 = vmax.f32 %v2651, %v2723
        %v2758 = vmax.f32 %v2652, %v2724
        %v2759 = vmax.f32 %v2653, %v2725
        %v2760 = vmax.f32 %v2654, %v2726
        %v2761 = vmax.f32 %v2655, %v2727
        %v2762 = vmax.f32 %v2656, %v2728
        %v2763 = vmax.f32 %v2657, %v2702
        %v2764 = vmax.f32 %v2658, %v2729
        %v2765 = vmax.f32 %v2659, %v2730
        %v2766 = vmax.f32 %v2660, %v2731
        %v2767 = vmax.f32 %v2661, %v2732
        %v2768 = vmax.f32 %v2662, %v2733
        %v2769 = vmax.f32 %v2663, %v2734
        %v2770 = vmax.f32 %v2664, %v2735
        %v2771 = vmax.f32 %v2665, %v2736
        %v2772 = vmax.f32 %v2666, %v2720
        %2773 = vst [vmem:[#allocation2] sm:$0xff] %v2755
        %2774 = vst [vmem:[#allocation2 + $0x8] sm:$0xff] %v2756
        %2775 = vst [vmem:[#allocation2 + $0x10] sm:$0xff] %v2757
        %2776 = vst [vmem:[#allocation2 + $0x18] sm:$0xff] %v2758
        %2777 = vst [vmem:[#allocation2 + $0x20] sm:$0xff] %v2759
        %2778 = vst [vmem:[#allocation2 + $0x28] sm:$0xff] %v2760
        %2779 = vst [vmem:[#allocation2 + $0x30] sm:$0xff] %v2761
        %vm2780 = vcmask 547840
        %2781 = vst.msk [vmem:[#allocation2 + $0x38] sm:$0xff] %vm2780, %v2762
        %2782 = vst [vmem:[#allocation2 + $0x58] sm:$0xff] %v2764
        %2783 = vst [vmem:[#allocation2 + $0x60] sm:$0xff] %v2765
        %2784 = vst [vmem:[#allocation2 + $0x68] sm:$0xff] %v2766
        %2785 = vst [vmem:[#allocation2 + $0x70] sm:$0xff] %v2767
        %2786 = vst [vmem:[#allocation2 + $0x78] sm:$0xff] %v2768
        %2787 = vst [vmem:[#allocation2 + $0x80] sm:$0xff] %v2769
        %2788 = vst [vmem:[#allocation2 + $0x88] sm:$0xff] %v2770
        %2789 = vst.msk [vmem:[#allocation2 + $0x90] sm:$0xff] %vm2780, %v2771
        %2806 = vrot.lane.b32.xlu0 %v2755, 126
        %v2807 = vpop.permute.xlu0 %2806
        %2808 = vrot.lane.b32.xlu0 %v2756, 126
        %v2809 = vpop.permute.xlu0 %2808
        %2810 = vrot.lane.b32.xlu0 %v2757, 126
        %v2811 = vpop.permute.xlu0 %2810
        %2812 = vrot.lane.b32.xlu0 %v2758, 126
        %v2813 = vpop.permute.xlu0 %2812
        %2814 = vrot.lane.b32.xlu0 %v2759, 126
        %v2815 = vpop.permute.xlu0 %2814
        %2816 = vrot.lane.b32.xlu0 %v2760, 126
        %v2817 = vpop.permute.xlu0 %2816
        %2818 = vrot.lane.b32.xlu0 %v2761, 126
        %v2819 = vpop.permute.xlu0 %2818
        %2820 = vrot.lane.b32.xlu0 %v2762, 126
        %v2821 = vpop.permute.xlu0 %2820
        %2822 = vrot.lane.b32.xlu0 %v2764, 126
        %v2823 = vpop.permute.xlu0 %2822
        %2824 = vrot.lane.b32.xlu0 %v2765, 126
        %v2825 = vpop.permute.xlu0 %2824
        %2826 = vrot.lane.b32.xlu0 %v2766, 126
        %v2827 = vpop.permute.xlu0 %2826
        %2828 = vrot.lane.b32.xlu0 %v2767, 126
        %v2829 = vpop.permute.xlu0 %2828
        %2830 = vrot.lane.b32.xlu0 %v2768, 126
        %v2831 = vpop.permute.xlu0 %2830
        %2832 = vrot.lane.b32.xlu0 %v2769, 126
        %v2833 = vpop.permute.xlu0 %2832
        %2834 = vrot.lane.b32.xlu0 %v2770, 126
        %v2835 = vpop.permute.xlu0 %2834
        %2836 = vrot.lane.b32.xlu0 %v2771, 126
        %v2837 = vpop.permute.xlu0 %2836
        %v2838 = vsel %vm600, %v2807, %v2809
        %v2839 = vsel %vm600, %v2809, %v2811
        %v2840 = vsel %vm600, %v2811, %v2813
        %v2841 = vsel %vm600, %v2813, %v2815
        %v2842 = vsel %vm600, %v2815, %v2817
        %v2843 = vsel %vm600, %v2817, %v2819
        %v2844 = vsel %vm600, %v2819, %v2821
        %v2845 = vsel %vm600, %v2823, %v2825
        %v2846 = vsel %vm600, %v2825, %v2827
        %v2847 = vsel %vm600, %v2827, %v2829
        %v2848 = vsel %vm600, %v2829, %v2831
        %v2849 = vsel %vm600, %v2831, %v2833
        %v2850 = vsel %vm600, %v2833, %v2835
        %v2851 = vsel %vm600, %v2835, %v2837
        %2868 = vst [vmem:[#allocation2 + $0xb0] sm:$0xff] %v2838
        %2869 = vst [vmem:[#allocation2 + $0xb8] sm:$0xff] %v2839
        %2870 = vst [vmem:[#allocation2 + $0xc0] sm:$0xff] %v2840
        %2871 = vst [vmem:[#allocation2 + $0xc8] sm:$0xff] %v2841
        %2872 = vst [vmem:[#allocation2 + $0xd0] sm:$0xff] %v2842
        %2873 = vst [vmem:[#allocation2 + $0xd8] sm:$0xff] %v2843
        %2874 = vst [vmem:[#allocation2 + $0xe0] sm:$0xff] %v2844
        %2875 = vst.msk [vmem:[#allocation2 + $0xe8] sm:$0xff] %vm2780, %v2821
        %2876 = vst [vmem:[#allocation2 + $0x108] sm:$0xff] %v2845
        %2877 = vst [vmem:[#allocation2 + $0x110] sm:$0xff] %v2846
        %2878 = vst [vmem:[#allocation2 + $0x118] sm:$0xff] %v2847
        %2879 = vst [vmem:[#allocation2 + $0x120] sm:$0xff] %v2848
        %2880 = vst [vmem:[#allocation2 + $0x128] sm:$0xff] %v2849
        %2881 = vst [vmem:[#allocation2 + $0x130] sm:$0xff] %v2850
        %2882 = vst [vmem:[#allocation2 + $0x138] sm:$0xff] %v2851
        %2883 = vst.msk [vmem:[#allocation2 + $0x140] sm:$0xff] %vm2780, %v2837
        %2884 = vrot.lane.b32.xlu0 %v2755, 124
        %v2885 = vpop.permute.xlu0 %2884
        %2886 = vrot.lane.b32.xlu0 %v2756, 124
        %v2887 = vpop.permute.xlu0 %2886
        %2888 = vrot.lane.b32.xlu0 %v2757, 124
        %v2889 = vpop.permute.xlu0 %2888
        %2890 = vrot.lane.b32.xlu0 %v2758, 124
        %v2891 = vpop.permute.xlu0 %2890
        %2892 = vrot.lane.b32.xlu0 %v2759, 124
        %v2893 = vpop.permute.xlu0 %2892
        %2894 = vrot.lane.b32.xlu0 %v2760, 124
        %v2895 = vpop.permute.xlu0 %2894
        %2896 = vrot.lane.b32.xlu0 %v2761, 124
        %v2897 = vpop.permute.xlu0 %2896
        %2898 = vrot.lane.b32.xlu0 %v2762, 124
        %v2899 = vpop.permute.xlu0 %2898
        %2900 = vrot.lane.b32.xlu0 %v2764, 124
        %v2901 = vpop.permute.xlu0 %2900
        %2902 = vrot.lane.b32.xlu0 %v2765, 124
        %v2903 = vpop.permute.xlu0 %2902
        %2904 = vrot.lane.b32.xlu0 %v2766, 124
        %v2905 = vpop.permute.xlu0 %2904
        %2906 = vrot.lane.b32.xlu0 %v2767, 124
        %v2907 = vpop.permute.xlu0 %2906
        %2908 = vrot.lane.b32.xlu0 %v2768, 124
        %v2909 = vpop.permute.xlu0 %2908
        %2910 = vrot.lane.b32.xlu0 %v2769, 124
        %v2911 = vpop.permute.xlu0 %2910
        %2912 = vrot.lane.b32.xlu0 %v2770, 124
        %v2913 = vpop.permute.xlu0 %2912
        %2914 = vrot.lane.b32.xlu0 %v2771, 124
        %v2915 = vpop.permute.xlu0 %2914
        %v2916 = vsel %vm1204, %v2885, %v2887
        %v2917 = vsel %vm1204, %v2887, %v2889
        %v2918 = vsel %vm1204, %v2889, %v2891
        %v2919 = vsel %vm1204, %v2891, %v2893
        %v2920 = vsel %vm1204, %v2893, %v2895
        %v2921 = vsel %vm1204, %v2895, %v2897
        %v2922 = vsel %vm1204, %v2897, %v2899
        %v2923 = vsel %vm1204, %v2901, %v2903
        %v2924 = vsel %vm1204, %v2903, %v2905
        %v2925 = vsel %vm1204, %v2905, %v2907
        %v2926 = vsel %vm1204, %v2907, %v2909
        %v2927 = vsel %vm1204, %v2909, %v2911
        %v2928 = vsel %vm1204, %v2911, %v2913
        %v2929 = vsel %vm1204, %v2913, %v2915
        %2946 = vst [vmem:[#allocation2 + $0x160] sm:$0xff] %v2916
        %2947 = vst [vmem:[#allocation2 + $0x168] sm:$0xff] %v2917
        %2948 = vst [vmem:[#allocation2 + $0x170] sm:$0xff] %v2918
        %2949 = vst [vmem:[#allocation2 + $0x178] sm:$0xff] %v2919
        %2950 = vst [vmem:[#allocation2 + $0x180] sm:$0xff] %v2920
        %2951 = vst [vmem:[#allocation2 + $0x188] sm:$0xff] %v2921
        %2952 = vst [vmem:[#allocation2 + $0x190] sm:$0xff] %v2922
        %2953 = vst.msk [vmem:[#allocation2 + $0x198] sm:$0xff] %vm2780, %v2899
        %2954 = vst [vmem:[#allocation2 + $0x1b8] sm:$0xff] %v2923
        %2955 = vst [vmem:[#allocation2 + $0x1c0] sm:$0xff] %v2924
        %2956 = vst [vmem:[#allocation2 + $0x1c8] sm:$0xff] %v2925
        %2957 = vst [vmem:[#allocation2 + $0x1d0] sm:$0xff] %v2926
        %2958 = vst [vmem:[#allocation2 + $0x1d8] sm:$0xff] %v2927
        %2959 = vst [vmem:[#allocation2 + $0x1e0] sm:$0xff] %v2928
        %2960 = vst [vmem:[#allocation2 + $0x1e8] sm:$0xff] %v2929
        %2961 = vst.msk [vmem:[#allocation2 + $0x1f0] sm:$0xff] %vm2780, %v2915
        %2964 = vrot.lane.b32.xlu0 %v2755, 56
        %v2965 = vpop.permute.xlu0 %2964
        %2966 = vrot.lane.b32.xlu0 %v2756, 56
        %v2967 = vpop.permute.xlu0 %2966
        %2968 = vrot.lane.b32.xlu0 %v2757, 56
        %v2969 = vpop.permute.xlu0 %2968
        %2970 = vrot.lane.b32.xlu0 %v2758, 56
        %v2971 = vpop.permute.xlu0 %2970
        %2972 = vrot.lane.b32.xlu0 %v2759, 56
        %v2973 = vpop.permute.xlu0 %2972
        %2974 = vrot.lane.b32.xlu0 %v2760, 56
        %v2975 = vpop.permute.xlu0 %2974
        %2976 = vrot.lane.b32.xlu0 %v2761, 56
        %v2977 = vpop.permute.xlu0 %2976
        %2978 = vrot.lane.b32.xlu0 %v2762, 56
        %v2979 = vpop.permute.xlu0 %2978
        %2980 = vrot.lane.b32.xlu0 %v2763, 56
        %v2981 = vpop.permute.xlu0 %2980
        %2982 = vrot.lane.b32.xlu0 %v2764, 56
        %v2983 = vpop.permute.xlu0 %2982
        %2984 = vrot.lane.b32.xlu0 %v2765, 56
        %v2985 = vpop.permute.xlu0 %2984
        %2986 = vrot.lane.b32.xlu0 %v2766, 56
        %v2987 = vpop.permute.xlu0 %2986
        %2988 = vrot.lane.b32.xlu0 %v2767, 56
        %v2989 = vpop.permute.xlu0 %2988
        %2990 = vrot.lane.b32.xlu0 %v2768, 56
        %v2991 = vpop.permute.xlu0 %2990
        %2992 = vrot.lane.b32.xlu0 %v2769, 56
        %v2993 = vpop.permute.xlu0 %2992
        %2994 = vrot.lane.b32.xlu0 %v2770, 56
        %v2995 = vpop.permute.xlu0 %2994
        %2996 = vrot.lane.b32.xlu0 %v2771, 56
        %v2997 = vpop.permute.xlu0 %2996
        %2998 = vrot.lane.b32.xlu0 %v2772, 56
        %v2999 = vpop.permute.xlu0 %2998
        %v3000 = vsel %vm672, %v2965, %v2967
        %v3001 = vsel %vm672, %v2967, %v2969
        %v3002 = vsel %vm672, %v2969, %v2971
        %v3003 = vsel %vm672, %v2971, %v2973
        %v3004 = vsel %vm672, %v2973, %v2975
        %v3005 = vsel %vm672, %v2975, %v2977
        %v3006 = vsel %vm672, %v2977, %v2979
        %v3007 = vsel %vm672, %v2979, %v2981
        %v3008 = vsel %vm672, %v2983, %v2985
        %v3009 = vsel %vm672, %v2985, %v2987
        %v3010 = vsel %vm672, %v2987, %v2989
        %v3011 = vsel %vm672, %v2989, %v2991
        %v3012 = vsel %vm672, %v2991, %v2993
        %v3013 = vsel %vm672, %v2993, %v2995
        %v3014 = vsel %vm672, %v2995, %v2997
        %v3015 = vsel %vm672, %v2997, %v2999
        %3032 = vst [vmem:[#allocation2 + $0x210] sm:$0xff] %v3000
        %3033 = vst [vmem:[#allocation2 + $0x218] sm:$0xff] %v3001
        %3034 = vst [vmem:[#allocation2 + $0x220] sm:$0xff] %v3002
        %3035 = vst [vmem:[#allocation2 + $0x228] sm:$0xff] %v3003
        %3036 = vst [vmem:[#allocation2 + $0x230] sm:$0xff] %v3004
        %3037 = vst [vmem:[#allocation2 + $0x238] sm:$0xff] %v3005
        %3038 = vst [vmem:[#allocation2 + $0x240] sm:$0xff] %v3006
        %3039 = vst.msk [vmem:[#allocation2 + $0x248] sm:$0xff] %vm2780, %v3007
        %3040 = vst [vmem:[#allocation2 + $0x268] sm:$0xff] %v3008
        %3041 = vst [vmem:[#allocation2 + $0x270] sm:$0xff] %v3009
        %3042 = vst [vmem:[#allocation2 + $0x278] sm:$0xff] %v3010
        %3043 = vst [vmem:[#allocation2 + $0x280] sm:$0xff] %v3011
        %3044 = vst [vmem:[#allocation2 + $0x288] sm:$0xff] %v3012
        %3045 = vst [vmem:[#allocation2 + $0x290] sm:$0xff] %v3013
        %3046 = vst [vmem:[#allocation2 + $0x298] sm:$0xff] %v3014
        %3047 = vst.msk [vmem:[#allocation2 + $0x2a0] sm:$0xff] %vm2780, %v3015
        %3048 = vrot.lane.b32.xlu0 %v2755, 54
        %v3049 = vpop.permute.xlu0 %3048
        %3050 = vrot.lane.b32.xlu0 %v2756, 54
        %v3051 = vpop.permute.xlu0 %3050
        %3052 = vrot.lane.b32.xlu0 %v2757, 54
        %v3053 = vpop.permute.xlu0 %3052
        %3054 = vrot.lane.b32.xlu0 %v2758, 54
        %v3055 = vpop.permute.xlu0 %3054
        %3056 = vrot.lane.b32.xlu0 %v2759, 54
        %v3057 = vpop.permute.xlu0 %3056
        %3058 = vrot.lane.b32.xlu0 %v2760, 54
        %v3059 = vpop.permute.xlu0 %3058
        %3060 = vrot.lane.b32.xlu0 %v2761, 54
        %v3061 = vpop.permute.xlu0 %3060
        %3062 = vrot.lane.b32.xlu0 %v2762, 54
        %v3063 = vpop.permute.xlu0 %3062
        %3064 = vrot.lane.b32.xlu0 %v2763, 54
        %v3065 = vpop.permute.xlu0 %3064
        %3066 = vrot.lane.b32.xlu0 %v2764, 54
        %v3067 = vpop.permute.xlu0 %3066
        %3068 = vrot.lane.b32.xlu0 %v2765, 54
        %v3069 = vpop.permute.xlu0 %3068
        %3070 = vrot.lane.b32.xlu0 %v2766, 54
        %v3071 = vpop.permute.xlu0 %3070
        %3072 = vrot.lane.b32.xlu0 %v2767, 54
        %v3073 = vpop.permute.xlu0 %3072
        %3074 = vrot.lane.b32.xlu0 %v2768, 54
        %v3075 = vpop.permute.xlu0 %3074
        %3076 = vrot.lane.b32.xlu0 %v2769, 54
        %v3077 = vpop.permute.xlu0 %3076
        %3078 = vrot.lane.b32.xlu0 %v2770, 54
        %v3079 = vpop.permute.xlu0 %3078
        %3080 = vrot.lane.b32.xlu0 %v2771, 54
        %v3081 = vpop.permute.xlu0 %3080
        %3082 = vrot.lane.b32.xlu0 %v2772, 54
        %v3083 = vpop.permute.xlu0 %3082
        %v3084 = vsel %vm708, %v3049, %v3051
        %v3085 = vsel %vm708, %v3051, %v3053
        %v3086 = vsel %vm708, %v3053, %v3055
        %v3087 = vsel %vm708, %v3055, %v3057
        %v3088 = vsel %vm708, %v3057, %v3059
        %v3089 = vsel %vm708, %v3059, %v3061
        %v3090 = vsel %vm708, %v3061, %v3063
        %v3091 = vsel %vm708, %v3063, %v3065
        %v3092 = vsel %vm708, %v3067, %v3069
        %v3093 = vsel %vm708, %v3069, %v3071
        %v3094 = vsel %vm708, %v3071, %v3073
        %v3095 = vsel %vm708, %v3073, %v3075
        %v3096 = vsel %vm708, %v3075, %v3077
        %v3097 = vsel %vm708, %v3077, %v3079
        %v3098 = vsel %vm708, %v3079, %v3081
        %v3099 = vsel %vm708, %v3081, %v3083
        %3116 = vst [vmem:[#allocation2 + $0x2c0] sm:$0xff] %v3084
        %3117 = vst [vmem:[#allocation2 + $0x2c8] sm:$0xff] %v3085
        %3118 = vst [vmem:[#allocation2 + $0x2d0] sm:$0xff] %v3086
        %3119 = vst [vmem:[#allocation2 + $0x2d8] sm:$0xff] %v3087
        %3120 = vst [vmem:[#allocation2 + $0x2e0] sm:$0xff] %v3088
        %3121 = vst [vmem:[#allocation2 + $0x2e8] sm:$0xff] %v3089
        %3122 = vst [vmem:[#allocation2 + $0x2f0] sm:$0xff] %v3090
        %3123 = vst.msk [vmem:[#allocation2 + $0x2f8] sm:$0xff] %vm2780, %v3091
        %3124 = vst [vmem:[#allocation2 + $0x318] sm:$0xff] %v3092
        %3125 = vst [vmem:[#allocation2 + $0x320] sm:$0xff] %v3093
        %3126 = vst [vmem:[#allocation2 + $0x328] sm:$0xff] %v3094
        %3127 = vst [vmem:[#allocation2 + $0x330] sm:$0xff] %v3095
        %3128 = vst [vmem:[#allocation2 + $0x338] sm:$0xff] %v3096
        %3129 = vst [vmem:[#allocation2 + $0x340] sm:$0xff] %v3097
        %3130 = vst [vmem:[#allocation2 + $0x348] sm:$0xff] %v3098
        %3131 = vst.msk [vmem:[#allocation2 + $0x350] sm:$0xff] %vm2780, %v3099
        %3132 = vrot.lane.b32.xlu0 %v2755, 52
        %v3133 = vpop.permute.xlu0 %3132
        %3134 = vrot.lane.b32.xlu0 %v2756, 52
        %v3135 = vpop.permute.xlu0 %3134
        %3136 = vrot.lane.b32.xlu0 %v2757, 52
        %v3137 = vpop.permute.xlu0 %3136
        %3138 = vrot.lane.b32.xlu0 %v2758, 52
        %v3139 = vpop.permute.xlu0 %3138
        %3140 = vrot.lane.b32.xlu0 %v2759, 52
        %v3141 = vpop.permute.xlu0 %3140
        %3142 = vrot.lane.b32.xlu0 %v2760, 52
        %v3143 = vpop.permute.xlu0 %3142
        %3144 = vrot.lane.b32.xlu0 %v2761, 52
        %v3145 = vpop.permute.xlu0 %3144
        %3146 = vrot.lane.b32.xlu0 %v2762, 52
        %v3147 = vpop.permute.xlu0 %3146
        %3148 = vrot.lane.b32.xlu0 %v2763, 52
        %v3149 = vpop.permute.xlu0 %3148
        %3150 = vrot.lane.b32.xlu0 %v2764, 52
        %v3151 = vpop.permute.xlu0 %3150
        %3152 = vrot.lane.b32.xlu0 %v2765, 52
        %v3153 = vpop.permute.xlu0 %3152
        %3154 = vrot.lane.b32.xlu0 %v2766, 52
        %v3155 = vpop.permute.xlu0 %3154
        %3156 = vrot.lane.b32.xlu0 %v2767, 52
        %v3157 = vpop.permute.xlu0 %3156
        %3158 = vrot.lane.b32.xlu0 %v2768, 52
        %v3159 = vpop.permute.xlu0 %3158
        %3160 = vrot.lane.b32.xlu0 %v2769, 52
        %v3161 = vpop.permute.xlu0 %3160
        %3162 = vrot.lane.b32.xlu0 %v2770, 52
        %v3163 = vpop.permute.xlu0 %3162
        %3164 = vrot.lane.b32.xlu0 %v2771, 52
        %v3165 = vpop.permute.xlu0 %3164
        %3166 = vrot.lane.b32.xlu0 %v2772, 52
        %v3167 = vpop.permute.xlu0 %3166
        %vm3168 = vcmask 424960
        %v3169 = vsel %vm3168, %v3133, %v3135
        %v3170 = vsel %vm3168, %v3135, %v3137
        %v3171 = vsel %vm3168, %v3137, %v3139
        %v3172 = vsel %vm3168, %v3139, %v3141
        %v3173 = vsel %vm3168, %v3141, %v3143
        %v3174 = vsel %vm3168, %v3143, %v3145
        %v3175 = vsel %vm3168, %v3145, %v3147
        %v3176 = vsel %vm3168, %v3147, %v3149
        %v3177 = vsel %vm3168, %v3151, %v3153
        %v3178 = vsel %vm3168, %v3153, %v3155
        %v3179 = vsel %vm3168, %v3155, %v3157
        %v3180 = vsel %vm3168, %v3157, %v3159
        %v3181 = vsel %vm3168, %v3159, %v3161
        %v3182 = vsel %vm3168, %v3161, %v3163
        %v3183 = vsel %vm3168, %v3163, %v3165
        %v3184 = vsel %vm3168, %v3165, %v3167
        %3201 = vst [vmem:[#allocation2 + $0x370] sm:$0xff] %v3169
        %3202 = vst [vmem:[#allocation2 + $0x378] sm:$0xff] %v3170
        %3203 = vst [vmem:[#allocation2 + $0x380] sm:$0xff] %v3171
        %3204 = vst [vmem:[#allocation2 + $0x388] sm:$0xff] %v3172
        %3205 = vst [vmem:[#allocation2 + $0x390] sm:$0xff] %v3173
        %3206 = vst [vmem:[#allocation2 + $0x398] sm:$0xff] %v3174
        %3207 = vst [vmem:[#allocation2 + $0x3a0] sm:$0xff] %v3175
        %3208 = vst.msk [vmem:[#allocation2 + $0x3a8] sm:$0xff] %vm2780, %v3176
        %3209 = vst [vmem:[#allocation2 + $0x3c8] sm:$0xff] %v3177
        %3210 = vst [vmem:[#allocation2 + $0x3d0] sm:$0xff] %v3178
        %3211 = vst [vmem:[#allocation2 + $0x3d8] sm:$0xff] %v3179
        %3212 = vst [vmem:[#allocation2 + $0x3e0] sm:$0xff] %v3180
        %3213 = vst [vmem:[#allocation2 + $0x3e8] sm:$0xff] %v3181
        %3214 = vst [vmem:[#allocation2 + $0x3f0] sm:$0xff] %v3182
        %3215 = vst [vmem:[#allocation2 + $0x3f8] sm:$0xff] %v3183
        %3216 = vst.msk [vmem:[#allocation2 + $0x400] sm:$0xff] %vm2780, %v3184
        %3217 = vrot.lane.b32.xlu0 %v2756, 112
        %v3218 = vpop.permute.xlu0 %3217
        %3219 = vrot.lane.b32.xlu0 %v2757, 112
        %v3220 = vpop.permute.xlu0 %3219
        %3221 = vrot.lane.b32.xlu0 %v2758, 112
        %v3222 = vpop.permute.xlu0 %3221
        %3223 = vrot.lane.b32.xlu0 %v2759, 112
        %v3224 = vpop.permute.xlu0 %3223
        %3225 = vrot.lane.b32.xlu0 %v2760, 112
        %v3226 = vpop.permute.xlu0 %3225
        %3227 = vrot.lane.b32.xlu0 %v2761, 112
        %v3228 = vpop.permute.xlu0 %3227
        %3229 = vrot.lane.b32.xlu0 %v2762, 112
        %v3230 = vpop.permute.xlu0 %3229
        %3231 = vrot.lane.b32.xlu0 %v2763, 112
        %v3232 = vpop.permute.xlu0 %3231
        %3233 = vrot.lane.b32.xlu0 %v2765, 112
        %v3234 = vpop.permute.xlu0 %3233
        %3235 = vrot.lane.b32.xlu0 %v2766, 112
        %v3236 = vpop.permute.xlu0 %3235
        %3237 = vrot.lane.b32.xlu0 %v2767, 112
        %v3238 = vpop.permute.xlu0 %3237
        %3239 = vrot.lane.b32.xlu0 %v2768, 112
        %v3240 = vpop.permute.xlu0 %3239
        %3241 = vrot.lane.b32.xlu0 %v2769, 112
        %v3242 = vpop.permute.xlu0 %3241
        %3243 = vrot.lane.b32.xlu0 %v2770, 112
        %v3244 = vpop.permute.xlu0 %3243
        %3245 = vrot.lane.b32.xlu0 %v2771, 112
        %v3246 = vpop.permute.xlu0 %3245
        %3247 = vrot.lane.b32.xlu0 %v2772, 112
        %v3248 = vpop.permute.xlu0 %3247
        %vm3249 = vcmask 916480
        %v3250 = vsel %vm3249, %v3218, %v3220
        %v3251 = vsel %vm3249, %v3220, %v3222
        %v3252 = vsel %vm3249, %v3222, %v3224
        %v3253 = vsel %vm3249, %v3224, %v3226
        %v3254 = vsel %vm3249, %v3226, %v3228
        %v3255 = vsel %vm3249, %v3228, %v3230
        %v3256 = vsel %vm3249, %v3230, %v3232
        %v3257 = vsel %vm3249, %v3234, %v3236
        %v3258 = vsel %vm3249, %v3236, %v3238
        %v3259 = vsel %vm3249, %v3238, %v3240
        %v3260 = vsel %vm3249, %v3240, %v3242
        %v3261 = vsel %vm3249, %v3242, %v3244
        %v3262 = vsel %vm3249, %v3244, %v3246
        %v3263 = vsel %vm3249, %v3246, %v3248
        %3280 = vst [vmem:[#allocation2 + $0x420] sm:$0xff] %v3250
        %3281 = vst [vmem:[#allocation2 + $0x428] sm:$0xff] %v3251
        %3282 = vst [vmem:[#allocation2 + $0x430] sm:$0xff] %v3252
        %3283 = vst [vmem:[#allocation2 + $0x438] sm:$0xff] %v3253
        %3284 = vst [vmem:[#allocation2 + $0x440] sm:$0xff] %v3254
        %3285 = vst [vmem:[#allocation2 + $0x448] sm:$0xff] %v3255
        %3286 = vst [vmem:[#allocation2 + $0x450] sm:$0xff] %v3256
        %3287 = vst.msk [vmem:[#allocation2 + $0x458] sm:$0xff] %vm2780, %v3232
        %3288 = vst [vmem:[#allocation2 + $0x478] sm:$0xff] %v3257
        %3289 = vst [vmem:[#allocation2 + $0x480] sm:$0xff] %v3258
        %3290 = vst [vmem:[#allocation2 + $0x488] sm:$0xff] %v3259
        %3291 = vst [vmem:[#allocation2 + $0x490] sm:$0xff] %v3260
        %3292 = vst [vmem:[#allocation2 + $0x498] sm:$0xff] %v3261
        %3293 = vst [vmem:[#allocation2 + $0x4a0] sm:$0xff] %v3262
        %3294 = vst [vmem:[#allocation2 + $0x4a8] sm:$0xff] %v3263
        %3295 = vst.msk [vmem:[#allocation2 + $0x4b0] sm:$0xff] %vm2780, %v3248
        %3296 = vrot.lane.b32.xlu0 %v2756, 110
        %v3297 = vpop.permute.xlu0 %3296
        %3298 = vrot.lane.b32.xlu0 %v2757, 110
        %v3299 = vpop.permute.xlu0 %3298
        %3300 = vrot.lane.b32.xlu0 %v2758, 110
        %v3301 = vpop.permute.xlu0 %3300
        %3302 = vrot.lane.b32.xlu0 %v2759, 110
        %v3303 = vpop.permute.xlu0 %3302
        %3304 = vrot.lane.b32.xlu0 %v2760, 110
        %v3305 = vpop.permute.xlu0 %3304
        %3306 = vrot.lane.b32.xlu0 %v2761, 110
        %v3307 = vpop.permute.xlu0 %3306
        %3308 = vrot.lane.b32.xlu0 %v2762, 110
        %v3309 = vpop.permute.xlu0 %3308
        %3310 = vrot.lane.b32.xlu0 %v2763, 110
        %v3311 = vpop.permute.xlu0 %3310
        %3312 = vrot.lane.b32.xlu0 %v2765, 110
        %v3313 = vpop.permute.xlu0 %3312
        %3314 = vrot.lane.b32.xlu0 %v2766, 110
        %v3315 = vpop.permute.xlu0 %3314
        %3316 = vrot.lane.b32.xlu0 %v2767, 110
        %v3317 = vpop.permute.xlu0 %3316
        %3318 = vrot.lane.b32.xlu0 %v2768, 110
        %v3319 = vpop.permute.xlu0 %3318
        %3320 = vrot.lane.b32.xlu0 %v2769, 110
        %v3321 = vpop.permute.xlu0 %3320
        %3322 = vrot.lane.b32.xlu0 %v2770, 110
        %v3323 = vpop.permute.xlu0 %3322
        %3324 = vrot.lane.b32.xlu0 %v2771, 110
        %v3325 = vpop.permute.xlu0 %3324
        %3326 = vrot.lane.b32.xlu0 %v2772, 110
        %v3327 = vpop.permute.xlu0 %3326
        %vm3328 = vcmask 900096
        %v3329 = vsel %vm3328, %v3297, %v3299
        %v3330 = vsel %vm3328, %v3299, %v3301
        %v3331 = vsel %vm3328, %v3301, %v3303
        %v3332 = vsel %vm3328, %v3303, %v3305
        %v3333 = vsel %vm3328, %v3305, %v3307
        %v3334 = vsel %vm3328, %v3307, %v3309
        %v3335 = vsel %vm3328, %v3309, %v3311
        %v3336 = vsel %vm3328, %v3313, %v3315
        %v3337 = vsel %vm3328, %v3315, %v3317
        %v3338 = vsel %vm3328, %v3317, %v3319
        %v3339 = vsel %vm3328, %v3319, %v3321
        %v3340 = vsel %vm3328, %v3321, %v3323
        %v3341 = vsel %vm3328, %v3323, %v3325
        %v3342 = vsel %vm3328, %v3325, %v3327
        %3359 = vst [vmem:[#allocation2 + $0x4d0] sm:$0xff] %v3329
        %3360 = vst [vmem:[#allocation2 + $0x4d8] sm:$0xff] %v3330
        %3361 = vst [vmem:[#allocation2 + $0x4e0] sm:$0xff] %v3331
        %3362 = vst [vmem:[#allocation2 + $0x4e8] sm:$0xff] %v3332
        %3363 = vst [vmem:[#allocation2 + $0x4f0] sm:$0xff] %v3333
        %3364 = vst [vmem:[#allocation2 + $0x4f8] sm:$0xff] %v3334
        %3365 = vst [vmem:[#allocation2 + $0x500] sm:$0xff] %v3335
        %3366 = vst.msk [vmem:[#allocation2 + $0x508] sm:$0xff] %vm2780, %v3311
        %3367 = vst [vmem:[#allocation2 + $0x528] sm:$0xff] %v3336
        %3368 = vst [vmem:[#allocation2 + $0x530] sm:$0xff] %v3337
        %3369 = vst [vmem:[#allocation2 + $0x538] sm:$0xff] %v3338
        %3370 = vst [vmem:[#allocation2 + $0x540] sm:$0xff] %v3339
        %3371 = vst [vmem:[#allocation2 + $0x548] sm:$0xff] %v3340
        %3372 = vst [vmem:[#allocation2 + $0x550] sm:$0xff] %v3341
        %3373 = vst [vmem:[#allocation2 + $0x558] sm:$0xff] %v3342
        %3374 = vst.msk [vmem:[#allocation2 + $0x560] sm:$0xff] %vm2780, %v3327
        %3375 = vrot.lane.b32.xlu0 %v2756, 108
        %v3376 = vpop.permute.xlu0 %3375
        %3377 = vrot.lane.b32.xlu0 %v2757, 108
        %v3378 = vpop.permute.xlu0 %3377
        %3379 = vrot.lane.b32.xlu0 %v2758, 108
        %v3380 = vpop.permute.xlu0 %3379
        %3381 = vrot.lane.b32.xlu0 %v2759, 108
        %v3382 = vpop.permute.xlu0 %3381
        %3383 = vrot.lane.b32.xlu0 %v2760, 108
        %v3384 = vpop.permute.xlu0 %3383
        %3385 = vrot.lane.b32.xlu0 %v2761, 108
        %v3386 = vpop.permute.xlu0 %3385
        %3387 = vrot.lane.b32.xlu0 %v2762, 108
        %v3388 = vpop.permute.xlu0 %3387
        %3389 = vrot.lane.b32.xlu0 %v2763, 108
        %v3390 = vpop.permute.xlu0 %3389
        %3391 = vrot.lane.b32.xlu0 %v2765, 108
        %v3392 = vpop.permute.xlu0 %3391
        %3393 = vrot.lane.b32.xlu0 %v2766, 108
        %v3394 = vpop.permute.xlu0 %3393
        %3395 = vrot.lane.b32.xlu0 %v2767, 108
        %v3396 = vpop.permute.xlu0 %3395
        %3397 = vrot.lane.b32.xlu0 %v2768, 108
        %v3398 = vpop.permute.xlu0 %3397
        %3399 = vrot.lane.b32.xlu0 %v2769, 108
        %v3400 = vpop.permute.xlu0 %3399
        %3401 = vrot.lane.b32.xlu0 %v2770, 108
        %v3402 = vpop.permute.xlu0 %3401
        %3403 = vrot.lane.b32.xlu0 %v2771, 108
        %v3404 = vpop.permute.xlu0 %3403
        %3405 = vrot.lane.b32.xlu0 %v2772, 108
        %v3406 = vpop.permute.xlu0 %3405
        %vm3407 = vcmask 883712
        %v3408 = vsel %vm3407, %v3376, %v3378
        %v3409 = vsel %vm3407, %v3378, %v3380
        %v3410 = vsel %vm3407, %v3380, %v3382
        %v3411 = vsel %vm3407, %v3382, %v3384
        %v3412 = vsel %vm3407, %v3384, %v3386
        %v3413 = vsel %vm3407, %v3386, %v3388
        %v3414 = vsel %vm3407, %v3388, %v3390
        %v3415 = vsel %vm3407, %v3392, %v3394
        %v3416 = vsel %vm3407, %v3394, %v3396
        %v3417 = vsel %vm3407, %v3396, %v3398
        %v3418 = vsel %vm3407, %v3398, %v3400
        %v3419 = vsel %vm3407, %v3400, %v3402
        %v3420 = vsel %vm3407, %v3402, %v3404
        %v3421 = vsel %vm3407, %v3404, %v3406
        %3438 = vst [vmem:[#allocation2 + $0x580] sm:$0xff] %v3408
        %3439 = vst [vmem:[#allocation2 + $0x588] sm:$0xff] %v3409
        %3440 = vst [vmem:[#allocation2 + $0x590] sm:$0xff] %v3410
        %3441 = vst [vmem:[#allocation2 + $0x598] sm:$0xff] %v3411
        %3442 = vst [vmem:[#allocation2 + $0x5a0] sm:$0xff] %v3412
        %3443 = vst [vmem:[#allocation2 + $0x5a8] sm:$0xff] %v3413
        %3444 = vst [vmem:[#allocation2 + $0x5b0] sm:$0xff] %v3414
        %3445 = vst.msk [vmem:[#allocation2 + $0x5b8] sm:$0xff] %vm2780, %v3390
        %3446 = vst [vmem:[#allocation2 + $0x5d8] sm:$0xff] %v3415
        %3447 = vst [vmem:[#allocation2 + $0x5e0] sm:$0xff] %v3416
        %3448 = vst [vmem:[#allocation2 + $0x5e8] sm:$0xff] %v3417
        %3449 = vst [vmem:[#allocation2 + $0x5f0] sm:$0xff] %v3418
        %3450 = vst [vmem:[#allocation2 + $0x5f8] sm:$0xff] %v3419
        %3451 = vst [vmem:[#allocation2 + $0x600] sm:$0xff] %v3420
        %3452 = vst [vmem:[#allocation2 + $0x608] sm:$0xff] %v3421
        %3453 = vst.msk [vmem:[#allocation2 + $0x610] sm:$0xff] %vm2780, %v3406
        %v3454 = vld [vmem:[#allocation5] sm:$0xff]
        %v3455 = vld [vmem:[#allocation5 + $0x8] sm:$0xff]
        %v3456 = vld [vmem:[#allocation5 + $0x10] sm:$0xff]
        %v3457 = vld [vmem:[#allocation5 + $0x18] sm:$0xff]
        %v3458 = vld [vmem:[#allocation5 + $0x20] sm:$0xff]
        %v3459 = vld [vmem:[#allocation5 + $0x28] sm:$0xff]
        %v3460 = vld [vmem:[#allocation5 + $0x30] sm:$0xff]
        %v3461 = vld [vmem:[#allocation5 + $0x38] sm:$0xff]
        %v3462 = vld [vmem:[#allocation2] sm:$0xff]
        %v3463 = vld [vmem:[#allocation2 + $0x8] sm:$0xff]
        %v3464 = vld [vmem:[#allocation2 + $0x10] sm:$0xff]
        %v3465 = vld [vmem:[#allocation2 + $0x18] sm:$0xff]
        %v3466 = vld [vmem:[#allocation2 + $0x20] sm:$0xff]
        %v3467 = vld [vmem:[#allocation2 + $0x28] sm:$0xff]
        %v3468 = vld [vmem:[#allocation2 + $0x30] sm:$0xff]
        %v3469 = vld [vmem:[#allocation2 + $0x38] sm:$0xff]
        %v3470 = vld [vmem:[#allocation2 + $0x58] sm:$0xff]
        %v3471 = vld [vmem:[#allocation2 + $0x60] sm:$0xff]
        %v3472 = vld [vmem:[#allocation2 + $0x68] sm:$0xff]
        %v3473 = vld [vmem:[#allocation2 + $0x70] sm:$0xff]
        %v3474 = vld [vmem:[#allocation2 + $0x78] sm:$0xff]
        %v3475 = vld [vmem:[#allocation2 + $0x80] sm:$0xff]
        %v3476 = vld [vmem:[#allocation2 + $0x88] sm:$0xff]
        %v3477 = vld [vmem:[#allocation2 + $0x90] sm:$0xff]
        %v3478 = vld [vmem:[#allocation2 + $0xb0] sm:$0xff]
        %v3479 = vld [vmem:[#allocation2 + $0xb8] sm:$0xff]
        %v3480 = vld [vmem:[#allocation2 + $0xc0] sm:$0xff]
        %v3481 = vld [vmem:[#allocation2 + $0xc8] sm:$0xff]
        %v3482 = vld [vmem:[#allocation2 + $0xd0] sm:$0xff]
        %v3483 = vld [vmem:[#allocation2 + $0xd8] sm:$0xff]
        %v3484 = vld [vmem:[#allocation2 + $0xe0] sm:$0xff]
        %v3485 = vld [vmem:[#allocation2 + $0xe8] sm:$0xff]
        %v3486 = vld [vmem:[#allocation2 + $0x108] sm:$0xff]
        %v3487 = vld [vmem:[#allocation2 + $0x110] sm:$0xff]
        %v3488 = vld [vmem:[#allocation2 + $0x118] sm:$0xff]
        %v3489 = vld [vmem:[#allocation2 + $0x120] sm:$0xff]
        %v3490 = vld [vmem:[#allocation2 + $0x128] sm:$0xff]
        %v3491 = vld [vmem:[#allocation2 + $0x130] sm:$0xff]
        %v3492 = vld [vmem:[#allocation2 + $0x138] sm:$0xff]
        %v3493 = vld [vmem:[#allocation2 + $0x140] sm:$0xff]
        %v3494 = vld [vmem:[#allocation2 + $0x160] sm:$0xff]
        %v3495 = vld [vmem:[#allocation2 + $0x168] sm:$0xff]
        %v3496 = vld [vmem:[#allocation2 + $0x170] sm:$0xff]
        %v3497 = vld [vmem:[#allocation2 + $0x178] sm:$0xff]
        %v3498 = vld [vmem:[#allocation2 + $0x180] sm:$0xff]
        %v3499 = vld [vmem:[#allocation2 + $0x188] sm:$0xff]
        %v3500 = vld [vmem:[#allocation2 + $0x190] sm:$0xff]
        %v3501 = vld [vmem:[#allocation2 + $0x198] sm:$0xff]
        %v3502 = vld [vmem:[#allocation2 + $0x1b8] sm:$0xff]
        %v3503 = vld [vmem:[#allocation2 + $0x1c0] sm:$0xff]
        %v3504 = vld [vmem:[#allocation2 + $0x1c8] sm:$0xff]
        %v3505 = vld [vmem:[#allocation2 + $0x1d0] sm:$0xff]
        %v3506 = vld [vmem:[#allocation2 + $0x1d8] sm:$0xff]
        %v3507 = vld [vmem:[#allocation2 + $0x1e0] sm:$0xff]
        %v3508 = vld [vmem:[#allocation2 + $0x1e8] sm:$0xff]
        %v3509 = vld [vmem:[#allocation2 + $0x1f0] sm:$0xff]
        %v3510 = vld [vmem:[#allocation2 + $0x210] sm:$0xff]
        %v3511 = vld [vmem:[#allocation2 + $0x218] sm:$0xff]
        %v3512 = vld [vmem:[#allocation2 + $0x220] sm:$0xff]
        %v3513 = vld [vmem:[#allocation2 + $0x228] sm:$0xff]
        %v3514 = vld [vmem:[#allocation2 + $0x230] sm:$0xff]
        %v3515 = vld [vmem:[#allocation2 + $0x238] sm:$0xff]
        %v3516 = vld [vmem:[#allocation2 + $0x240] sm:$0xff]
        %v3517 = vld [vmem:[#allocation2 + $0x248] sm:$0xff]
        %v3518 = vld [vmem:[#allocation2 + $0x268] sm:$0xff]
        %v3519 = vld [vmem:[#allocation2 + $0x270] sm:$0xff]
        %v3520 = vld [vmem:[#allocation2 + $0x278] sm:$0xff]
        %v3521 = vld [vmem:[#allocation2 + $0x280] sm:$0xff]
        %v3522 = vld [vmem:[#allocation2 + $0x288] sm:$0xff]
        %v3523 = vld [vmem:[#allocation2 + $0x290] sm:$0xff]
        %v3524 = vld [vmem:[#allocation2 + $0x298] sm:$0xff]
        %v3525 = vld [vmem:[#allocation2 + $0x2a0] sm:$0xff]
        %v3526 = vld [vmem:[#allocation2 + $0x2c0] sm:$0xff]
        %v3527 = vld [vmem:[#allocation2 + $0x2c8] sm:$0xff]
        %v3528 = vld [vmem:[#allocation2 + $0x2d0] sm:$0xff]
        %v3529 = vld [vmem:[#allocation2 + $0x2d8] sm:$0xff]
        %v3530 = vld [vmem:[#allocation2 + $0x2e0] sm:$0xff]
        %v3531 = vld [vmem:[#allocation2 + $0x2e8] sm:$0xff]
        %v3532 = vld [vmem:[#allocation2 + $0x2f0] sm:$0xff]
        %v3533 = vld [vmem:[#allocation2 + $0x2f8] sm:$0xff]
        %v3534 = vld [vmem:[#allocation2 + $0x318] sm:$0xff]
        %v3535 = vld [vmem:[#allocation2 + $0x320] sm:$0xff]
        %v3536 = vld [vmem:[#allocation2 + $0x328] sm:$0xff]
        %v3537 = vld [vmem:[#allocation2 + $0x330] sm:$0xff]
        %v3538 = vld [vmem:[#allocation2 + $0x338] sm:$0xff]
        %v3539 = vld [vmem:[#allocation2 + $0x340] sm:$0xff]
        %v3540 = vld [vmem:[#allocation2 + $0x348] sm:$0xff]
        %v3541 = vld [vmem:[#allocation2 + $0x350] sm:$0xff]
        %v3542 = vld [vmem:[#allocation2 + $0x370] sm:$0xff]
        %v3543 = vld [vmem:[#allocation2 + $0x378] sm:$0xff]
        %v3544 = vld [vmem:[#allocation2 + $0x380] sm:$0xff]
        %v3545 = vld [vmem:[#allocation2 + $0x388] sm:$0xff]
        %v3546 = vld [vmem:[#allocation2 + $0x390] sm:$0xff]
        %v3547 = vld [vmem:[#allocation2 + $0x398] sm:$0xff]
        %v3548 = vld [vmem:[#allocation2 + $0x3a0] sm:$0xff]
        %v3549 = vld [vmem:[#allocation2 + $0x3a8] sm:$0xff]
        %v3550 = vld [vmem:[#allocation2 + $0x3c8] sm:$0xff]
        %v3551 = vld [vmem:[#allocation2 + $0x3d0] sm:$0xff]
        %v3552 = vld [vmem:[#allocation2 + $0x3d8] sm:$0xff]
        %v3553 = vld [vmem:[#allocation2 + $0x3e0] sm:$0xff]
        %v3554 = vld [vmem:[#allocation2 + $0x3e8] sm:$0xff]
        %v3555 = vld [vmem:[#allocation2 + $0x3f0] sm:$0xff]
        %v3556 = vld [vmem:[#allocation2 + $0x3f8] sm:$0xff]
        %v3557 = vld [vmem:[#allocation2 + $0x400] sm:$0xff]
        %v3558 = vld [vmem:[#allocation2 + $0x420] sm:$0xff]
        %v3559 = vld [vmem:[#allocation2 + $0x428] sm:$0xff]
        %v3560 = vld [vmem:[#allocation2 + $0x430] sm:$0xff]
        %v3561 = vld [vmem:[#allocation2 + $0x438] sm:$0xff]
        %v3562 = vld [vmem:[#allocation2 + $0x440] sm:$0xff]
        %v3563 = vld [vmem:[#allocation2 + $0x448] sm:$0xff]
        %v3564 = vld [vmem:[#allocation2 + $0x450] sm:$0xff]
        %v3565 = vld [vmem:[#allocation2 + $0x458] sm:$0xff]
        %v3566 = vld [vmem:[#allocation2 + $0x478] sm:$0xff]
        %v3567 = vld [vmem:[#allocation2 + $0x480] sm:$0xff]
        %v3568 = vld [vmem:[#allocation2 + $0x488] sm:$0xff]
        %v3569 = vld [vmem:[#allocation2 + $0x490] sm:$0xff]
        %v3570 = vld [vmem:[#allocation2 + $0x498] sm:$0xff]
        %v3571 = vld [vmem:[#allocation2 + $0x4a0] sm:$0xff]
        %v3572 = vld [vmem:[#allocation2 + $0x4a8] sm:$0xff]
        %v3573 = vld [vmem:[#allocation2 + $0x4b0] sm:$0xff]
        %v3574 = vld [vmem:[#allocation2 + $0x4d0] sm:$0xff]
        %v3575 = vld [vmem:[#allocation2 + $0x4d8] sm:$0xff]
        %v3576 = vld [vmem:[#allocation2 + $0x4e0] sm:$0xff]
        %v3577 = vld [vmem:[#allocation2 + $0x4e8] sm:$0xff]
        %v3578 = vld [vmem:[#allocation2 + $0x4f0] sm:$0xff]
        %v3579 = vld [vmem:[#allocation2 + $0x4f8] sm:$0xff]
        %v3580 = vld [vmem:[#allocation2 + $0x500] sm:$0xff]
        %v3581 = vld [vmem:[#allocation2 + $0x508] sm:$0xff]
        %v3582 = vld [vmem:[#allocation2 + $0x528] sm:$0xff]
        %v3583 = vld [vmem:[#allocation2 + $0x530] sm:$0xff]
        %v3584 = vld [vmem:[#allocation2 + $0x538] sm:$0xff]
        %v3585 = vld [vmem:[#allocation2 + $0x540] sm:$0xff]
        %v3586 = vld [vmem:[#allocation2 + $0x548] sm:$0xff]
        %v3587 = vld [vmem:[#allocation2 + $0x550] sm:$0xff]
        %v3588 = vld [vmem:[#allocation2 + $0x558] sm:$0xff]
        %v3589 = vld [vmem:[#allocation2 + $0x560] sm:$0xff]
        %v3590 = vld [vmem:[#allocation2 + $0x580] sm:$0xff]
        %v3591 = vld [vmem:[#allocation2 + $0x588] sm:$0xff]
        %v3592 = vld [vmem:[#allocation2 + $0x590] sm:$0xff]
        %v3593 = vld [vmem:[#allocation2 + $0x598] sm:$0xff]
        %v3594 = vld [vmem:[#allocation2 + $0x5a0] sm:$0xff]
        %v3595 = vld [vmem:[#allocation2 + $0x5a8] sm:$0xff]
        %v3596 = vld [vmem:[#allocation2 + $0x5b0] sm:$0xff]
        %v3597 = vld [vmem:[#allocation2 + $0x5b8] sm:$0xff]
        %v3598 = vld [vmem:[#allocation2 + $0x5d8] sm:$0xff]
        %v3599 = vld [vmem:[#allocation2 + $0x5e0] sm:$0xff]
        %v3600 = vld [vmem:[#allocation2 + $0x5e8] sm:$0xff]
        %v3601 = vld [vmem:[#allocation2 + $0x5f0] sm:$0xff]
        %v3602 = vld [vmem:[#allocation2 + $0x5f8] sm:$0xff]
        %v3603 = vld [vmem:[#allocation2 + $0x600] sm:$0xff]
        %v3604 = vld [vmem:[#allocation2 + $0x608] sm:$0xff]
        %v3605 = vld [vmem:[#allocation2 + $0x610] sm:$0xff]
        %v3606 = vld [vmem:[%s6] sm:$0xff]
        %v3607 = vld [vmem:[%s6 + $0x8] sm:$0xff]
        %v3608 = vld [vmem:[%s6 + $0x10] sm:$0xff]
        %v3609 = vld [vmem:[%s6 + $0x18] sm:$0xff]
        %3611 = vset.pattern.permute.xlu0 0
        %3612 = vperm.xlu0 %3611, %v3606
        %v3613 = vpop.permute.xlu0 %3612
        %3616 = vset.pattern.permute.xlu0 0
        %3617 = vperm.xlu0 %3616, %v3607
        %v3618 = vpop.permute.xlu0 %3617
        %3621 = vset.pattern.permute.xlu0 0
        %3622 = vperm.xlu0 %3621, %v3608
        %v3623 = vpop.permute.xlu0 %3622
        %3626 = vset.pattern.permute.xlu0 0
        %3627 = vperm.xlu0 %3626, %v3609
        %v3628 = vpop.permute.xlu0 %3627
        %v3631 = vsel %vm2153, %v3455, 0
        %v3634 = vsel %vm2153, %v3457, 0
        %v3637 = vsel %vm2153, %v3459, 0
        %v3640 = vsel %vm2153, %v3461, 0
        %3642 = vmatprep.subr.mxu0 %v3583
        %3643 = vmatpush1.msra.mxu0 %v3582
        %3644 = vmatprep.subr.mxu0 %v3575
        %3645 = vmatpush1.msra.mxu0 %v3574
        %3646 = vmatprep.subr.mxu0 %v3567
        %3647 = vmatpush1.msra.mxu0 %v3566
        %3648 = vmatprep.subr.mxu0 %v3559
        %3649 = vmatpush1.msra.mxu0 %v3558
        %3650 = vmatprep.subr.mxu0 %v3551
        %3651 = vmatpush1.msra.mxu0 %v3550
        %3652 = vmatprep.subr.mxu0 %v3543
        %3653 = vmatpush1.msra.mxu0 %v3542
        %3654 = vmatprep.subr.mxu0 %v3535
        %3655 = vmatpush1.msra.mxu0 %v3534
        %3656 = vmatprep.subr.mxu0 %v3527
        %3657 = vmatpush1.msra.mxu0 %v3526
        %3658 = vmatprep.subr.mxu0 %v3519
        %3659 = vmatpush1.msra.mxu0 %v3518
        %3660 = vmatprep.subr.mxu0 %v3511
        %3661 = vmatpush1.msra.mxu0 %v3510
        %3662 = vmatprep.subr.mxu0 %v3503
        %3663 = vmatpush1.msra.mxu0 %v3502
        %3664 = vmatprep.subr.mxu0 %v3495
        %3665 = vmatpush1.msra.mxu0 %v3494
        %3666 = vmatprep.subr.mxu0 %v3487
        %3667 = vmatpush1.msra.mxu0 %v3486
        %3668 = vmatprep.subr.mxu0 %v3479
        %3669 = vmatpush1.msra.mxu0 %v3478
        %3670 = vmatprep.subr.mxu0 %v3471
        %3671 = vmatpush1.msra.mxu0 %v3470
        %3672 = vmatprep.subr.mxu0 %v3463
        %3673 = vmatpush1.msra.mxu0 %v3462
        %3674 = vmatprep.subr.mxu0 0.0
        %3675 = vmatpush2.msra.mxu0 0.0
        %3676 = vmatprep.subr.mxu0 0.0
        %3677 = vmatpush2.msra.mxu0 0.0
        %3678 = vmatprep.subr.mxu0 0.0
        %3679 = vmatpush2.msra.mxu0 0.0
        %3680 = vmatprep.subr.mxu0 0.0
        %3681 = vmatpush2.msra.mxu0 0.0
        %3682 = vmatprep.subr.mxu0 0.0
        %3683 = vmatpush2.msra.mxu0 0.0
        %3684 = vmatprep.subr.mxu0 0.0
        %3685 = vmatpush2.msra.mxu0 0.0
        %3686 = vmatprep.subr.mxu0 0.0
        %3687 = vmatpush2.msra.mxu0 0.0
        %3688 = vmatprep.subr.mxu0 0.0
        %3689 = vmatpush2.msra.mxu0 0.0
        %3690 = vmatprep.subr.mxu0 0.0
        %3691 = vmatpush2.msra.mxu0 0.0
        %3692 = vmatprep.subr.mxu0 0.0
        %3693 = vmatpush2.msra.mxu0 0.0
        %3694 = vmatprep.subr.mxu0 0.0
        %3695 = vmatpush2.msra.mxu0 0.0
        %3696 = vmatprep.subr.mxu0 0.0
        %3697 = vmatpush2.msra.mxu0 0.0
        %3698 = vmatprep.subr.mxu0 0.0
        %3699 = vmatpush2.msra.mxu0 0.0
        %3700 = vmatprep.subr.mxu0 0.0
        %3701 = vmatpush2.msra.mxu0 0.0
        %3702 = vmatprep.subr.mxu0 %v3599
        %3703 = vmatpush2.msra.mxu0 %v3598
        %3704 = vmatprep.subr.mxu0 %v3591
        %3705 = vmatpush2.msra.mxu0 %v3590
        %3706 = vmatprep.mubr.f32.mxu0 %v3631
        %3707 = vmatmul.mubr.f32.gmra.mxu0 %v3454
        %v3708 = vpop.f32.mrf.mxu0
        %v3709 = vadd.f32 %v3613, %v3708
        %v3710 = vpop.f32.mrf.mxu0
        %v3711 = vadd.f32 %v3613, %v3710
        %3712 = vmatprep.mubr.f32.mxu0 %v3634
        %3713 = vmatmul.mubr.f32.gmra.mxu0 %v3456
        %v3714 = vpop.f32.mrf.mxu0
        %v3715 = vadd.f32 %v3618, %v3714
        %v3716 = vpop.f32.mrf.mxu0
        %v3717 = vadd.f32 %v3618, %v3716
        %3718 = vmatprep.mubr.f32.mxu0 %v3637
        %3719 = vmatmul.mubr.f32.gmra.mxu0 %v3458
        %v3720 = vpop.f32.mrf.mxu0
        %v3721 = vadd.f32 %v3623, %v3720
        %v3722 = vpop.f32.mrf.mxu0
        %v3723 = vadd.f32 %v3623, %v3722
        %3724 = vmatprep.mubr.f32.mxu0 %v3640
        %3725 = vmatmul.mubr.f32.gmra.mxu0 %v3460
        %v3726 = vpop.f32.mrf.mxu0
        %v3727 = vadd.f32 %v3628, %v3726
        %v3728 = vpop.f32.mrf.mxu0
        %v3729 = vadd.f32 %v3628, %v3728
        %3730 = vdwg.mxu0
        %3731 = vmatprep.subr.mxu0 %v3585
        %3732 = vmatpush1.msra.mxu0 %v3584
        %3733 = vmatprep.subr.mxu0 %v3577
        %3734 = vmatpush1.msra.mxu0 %v3576
        %3735 = vmatprep.subr.mxu0 %v3569
        %3736 = vmatpush1.msra.mxu0 %v3568
        %3737 = vmatprep.subr.mxu0 %v3561
        %3738 = vmatpush1.msra.mxu0 %v3560
        %3739 = vmatprep.subr.mxu0 %v3553
        %3740 = vmatpush1.msra.mxu0 %v3552
        %3741 = vmatprep.subr.mxu0 %v3545
        %3742 = vmatpush1.msra.mxu0 %v3544
        %3743 = vmatprep.subr.mxu0 %v3537
        %3744 = vmatpush1.msra.mxu0 %v3536
        %3745 = vmatprep.subr.mxu0 %v3529
        %3746 = vmatpush1.msra.mxu0 %v3528
        %3747 = vmatprep.subr.mxu0 %v3521
        %3748 = vmatpush1.msra.mxu0 %v3520
        %3749 = vmatprep.subr.mxu0 %v3513
        %3750 = vmatpush1.msra.mxu0 %v3512
        %3751 = vmatprep.subr.mxu0 %v3505
        %3752 = vmatpush1.msra.mxu0 %v3504
        %3753 = vmatprep.subr.mxu0 %v3497
        %3754 = vmatpush1.msra.mxu0 %v3496
        %3755 = vmatprep.subr.mxu0 %v3489
        %3756 = vmatpush1.msra.mxu0 %v3488
        %3757 = vmatprep.subr.mxu0 %v3481
        %3758 = vmatpush1.msra.mxu0 %v3480
        %3759 = vmatprep.subr.mxu0 %v3473
        %3760 = vmatpush1.msra.mxu0 %v3472
        %3761 = vmatprep.subr.mxu0 %v3465
        %3762 = vmatpush1.msra.mxu0 %v3464
        %3763 = vmatprep.subr.mxu0 0.0
        %3764 = vmatpush2.msra.mxu0 0.0
        %3765 = vmatprep.subr.mxu0 0.0
        %3766 = vmatpush2.msra.mxu0 0.0
        %3767 = vmatprep.subr.mxu0 0.0
        %3768 = vmatpush2.msra.mxu0 0.0
        %3769 = vmatprep.subr.mxu0 0.0
        %3770 = vmatpush2.msra.mxu0 0.0
        %3771 = vmatprep.subr.mxu0 0.0
        %3772 = vmatpush2.msra.mxu0 0.0
        %3773 = vmatprep.subr.mxu0 0.0
        %3774 = vmatpush2.msra.mxu0 0.0
        %3775 = vmatprep.subr.mxu0 0.0
        %3776 = vmatpush2.msra.mxu0 0.0
        %3777 = vmatprep.subr.mxu0 0.0
        %3778 = vmatpush2.msra.mxu0 0.0
        %3779 = vmatprep.subr.mxu0 0.0
        %3780 = vmatpush2.msra.mxu0 0.0
        %3781 = vmatprep.subr.mxu0 0.0
        %3782 = vmatpush2.msra.mxu0 0.0
        %3783 = vmatprep.subr.mxu0 0.0
        %3784 = vmatpush2.msra.mxu0 0.0
        %3785 = vmatprep.subr.mxu0 0.0
        %3786 = vmatpush2.msra.mxu0 0.0
        %3787 = vmatprep.subr.mxu0 0.0
        %3788 = vmatpush2.msra.mxu0 0.0
        %3789 = vmatprep.subr.mxu0 0.0
        %3790 = vmatpush2.msra.mxu0 0.0
        %3791 = vmatprep.subr.mxu0 %v3601
        %3792 = vmatpush2.msra.mxu0 %v3600
        %3793 = vmatprep.subr.mxu0 %v3593
        %3794 = vmatpush2.msra.mxu0 %v3592
        %3795 = vmatprep.mubr.f32.mxu0 %v3631
        %3796 = vmatmul.mubr.f32.gmra.mxu0 %v3454
        %v3797 = vpop.f32.mrf.mxu0
        %v3798 = vadd.f32 %v3613, %v3797
        %v3799 = vpop.f32.mrf.mxu0
        %v3800 = vadd.f32 %v3613, %v3799
        %3801 = vmatprep.mubr.f32.mxu0 %v3634
        %3802 = vmatmul.mubr.f32.gmra.mxu0 %v3456
        %v3803 = vpop.f32.mrf.mxu0
        %v3804 = vadd.f32 %v3618, %v3803
        %v3805 = vpop.f32.mrf.mxu0
        %v3806 = vadd.f32 %v3618, %v3805
        %3807 = vmatprep.mubr.f32.mxu0 %v3637
        %3808 = vmatmul.mubr.f32.gmra.mxu0 %v3458
        %v3809 = vpop.f32.mrf.mxu0
        %v3810 = vadd.f32 %v3623, %v3809
        %v3811 = vpop.f32.mrf.mxu0
        %v3812 = vadd.f32 %v3623, %v3811
        %3813 = vmatprep.mubr.f32.mxu0 %v3640
        %3814 = vmatmul.mubr.f32.gmra.mxu0 %v3460
        %v3815 = vpop.f32.mrf.mxu0
        %v3816 = vadd.f32 %v3628, %v3815
        %v3817 = vpop.f32.mrf.mxu0
        %v3818 = vadd.f32 %v3628, %v3817
        %3819 = vdwg.mxu0
        %3820 = vmatprep.subr.mxu0 %v3587
        %3821 = vmatpush1.msra.mxu0 %v3586
        %3822 = vmatprep.subr.mxu0 %v3579
        %3823 = vmatpush1.msra.mxu0 %v3578
        %3824 = vmatprep.subr.mxu0 %v3571
        %3825 = vmatpush1.msra.mxu0 %v3570
        %3826 = vmatprep.subr.mxu0 %v3563
        %3827 = vmatpush1.msra.mxu0 %v3562
        %3828 = vmatprep.subr.mxu0 %v3555
        %3829 = vmatpush1.msra.mxu0 %v3554
        %3830 = vmatprep.subr.mxu0 %v3547
        %3831 = vmatpush1.msra.mxu0 %v3546
        %3832 = vmatprep.subr.mxu0 %v3539
        %3833 = vmatpush1.msra.mxu0 %v3538
        %3834 = vmatprep.subr.mxu0 %v3531
        %3835 = vmatpush1.msra.mxu0 %v3530
        %3836 = vmatprep.subr.mxu0 %v3523
        %3837 = vmatpush1.msra.mxu0 %v3522
        %3838 = vmatprep.subr.mxu0 %v3515
        %3839 = vmatpush1.msra.mxu0 %v3514
        %3840 = vmatprep.subr.mxu0 %v3507
        %3841 = vmatpush1.msra.mxu0 %v3506
        %3842 = vmatprep.subr.mxu0 %v3499
        %3843 = vmatpush1.msra.mxu0 %v3498
        %3844 = vmatprep.subr.mxu0 %v3491
        %3845 = vmatpush1.msra.mxu0 %v3490
        %3846 = vmatprep.subr.mxu0 %v3483
        %3847 = vmatpush1.msra.mxu0 %v3482
        %3848 = vmatprep.subr.mxu0 %v3475
        %3849 = vmatpush1.msra.mxu0 %v3474
        %3850 = vmatprep.subr.mxu0 %v3467
        %3851 = vmatpush1.msra.mxu0 %v3466
        %3852 = vmatprep.subr.mxu0 0.0
        %3853 = vmatpush2.msra.mxu0 0.0
        %3854 = vmatprep.subr.mxu0 0.0
        %3855 = vmatpush2.msra.mxu0 0.0
        %3856 = vmatprep.subr.mxu0 0.0
        %3857 = vmatpush2.msra.mxu0 0.0
        %3858 = vmatprep.subr.mxu0 0.0
        %3859 = vmatpush2.msra.mxu0 0.0
        %3860 = vmatprep.subr.mxu0 0.0
        %3861 = vmatpush2.msra.mxu0 0.0
        %3862 = vmatprep.subr.mxu0 0.0
        %3863 = vmatpush2.msra.mxu0 0.0
        %3864 = vmatprep.subr.mxu0 0.0
        %3865 = vmatpush2.msra.mxu0 0.0
        %3866 = vmatprep.subr.mxu0 0.0
        %3867 = vmatpush2.msra.mxu0 0.0
        %3868 = vmatprep.subr.mxu0 0.0
        %3869 = vmatpush2.msra.mxu0 0.0
        %3870 = vmatprep.subr.mxu0 0.0
        %3871 = vmatpush2.msra.mxu0 0.0
        %3872 = vmatprep.subr.mxu0 0.0
        %3873 = vmatpush2.msra.mxu0 0.0
        %3874 = vmatprep.subr.mxu0 0.0
        %3875 = vmatpush2.msra.mxu0 0.0
        %3876 = vmatprep.subr.mxu0 0.0
        %3877 = vmatpush2.msra.mxu0 0.0
        %3878 = vmatprep.subr.mxu0 0.0
        %3879 = vmatpush2.msra.mxu0 0.0
        %3880 = vmatprep.subr.mxu0 %v3603
        %3881 = vmatpush2.msra.mxu0 %v3602
        %3882 = vmatprep.subr.mxu0 %v3595
        %3883 = vmatpush2.msra.mxu0 %v3594
        %3884 = vmatprep.mubr.f32.mxu0 %v3631
        %3885 = vmatmul.mubr.f32.gmra.mxu0 %v3454
        %v3886 = vpop.f32.mrf.mxu0
        %v3887 = vadd.f32 %v3613, %v3886
        %v3888 = vpop.f32.mrf.mxu0
        %v3889 = vadd.f32 %v3613, %v3888
        %3890 = vmatprep.mubr.f32.mxu0 %v3634
        %3891 = vmatmul.mubr.f32.gmra.mxu0 %v3456
        %v3892 = vpop.f32.mrf.mxu0
        %v3893 = vadd.f32 %v3618, %v3892
        %v3894 = vpop.f32.mrf.mxu0
        %v3895 = vadd.f32 %v3618, %v3894
        %3896 = vmatprep.mubr.f32.mxu0 %v3637
        %3897 = vmatmul.mubr.f32.gmra.mxu0 %v3458
        %v3898 = vpop.f32.mrf.mxu0
        %v3899 = vadd.f32 %v3623, %v3898
        %v3900 = vpop.f32.mrf.mxu0
        %v3901 = vadd.f32 %v3623, %v3900
        %3902 = vmatprep.mubr.f32.mxu0 %v3640
        %3903 = vmatmul.mubr.f32.gmra.mxu0 %v3460
        %v3904 = vpop.f32.mrf.mxu0
        %v3905 = vadd.f32 %v3628, %v3904
        %v3906 = vpop.f32.mrf.mxu0
        %v3907 = vadd.f32 %v3628, %v3906
        %3908 = vdwg.mxu0
        %3909 = vmatprep.subr.mxu0 %v3589
        %3910 = vmatpush1.msra.mxu0 %v3588
        %3911 = vmatprep.subr.mxu0 %v3581
        %3912 = vmatpush1.msra.mxu0 %v3580
        %3913 = vmatprep.subr.mxu0 %v3573
        %3914 = vmatpush1.msra.mxu0 %v3572
        %3915 = vmatprep.subr.mxu0 %v3565
        %3916 = vmatpush1.msra.mxu0 %v3564
        %3917 = vmatprep.subr.mxu0 %v3557
        %3918 = vmatpush1.msra.mxu0 %v3556
        %3919 = vmatprep.subr.mxu0 %v3549
        %3920 = vmatpush1.msra.mxu0 %v3548
        %3921 = vmatprep.subr.mxu0 %v3541
        %3922 = vmatpush1.msra.mxu0 %v3540
        %3923 = vmatprep.subr.mxu0 %v3533
        %3924 = vmatpush1.msra.mxu0 %v3532
        %3925 = vmatprep.subr.mxu0 %v3525
        %3926 = vmatpush1.msra.mxu0 %v3524
        %3927 = vmatprep.subr.mxu0 %v3517
        %3928 = vmatpush1.msra.mxu0 %v3516
        %3929 = vmatprep.subr.mxu0 %v3509
        %3930 = vmatpush1.msra.mxu0 %v3508
        %3931 = vmatprep.subr.mxu0 %v3501
        %3932 = vmatpush1.msra.mxu0 %v3500
        %3933 = vmatprep.subr.mxu0 %v3493
        %3934 = vmatpush1.msra.mxu0 %v3492
        %3935 = vmatprep.subr.mxu0 %v3485
        %3936 = vmatpush1.msra.mxu0 %v3484
        %3937 = vmatprep.subr.mxu0 %v3477
        %3938 = vmatpush1.msra.mxu0 %v3476
        %3939 = vmatprep.subr.mxu0 %v3469
        %3940 = vmatpush1.msra.mxu0 %v3468
        %3941 = vmatprep.subr.mxu0 0.0
        %3942 = vmatpush2.msra.mxu0 0.0
        %3943 = vmatprep.subr.mxu0 0.0
        %3944 = vmatpush2.msra.mxu0 0.0
        %3945 = vmatprep.subr.mxu0 0.0
        %3946 = vmatpush2.msra.mxu0 0.0
        %3947 = vmatprep.subr.mxu0 0.0
        %3948 = vmatpush2.msra.mxu0 0.0
        %3949 = vmatprep.subr.mxu0 0.0
        %3950 = vmatpush2.msra.mxu0 0.0
        %3951 = vmatprep.subr.mxu0 0.0
        %3952 = vmatpush2.msra.mxu0 0.0
        %3953 = vmatprep.subr.mxu0 0.0
        %3954 = vmatpush2.msra.mxu0 0.0
        %3955 = vmatprep.subr.mxu0 0.0
        %3956 = vmatpush2.msra.mxu0 0.0
        %3957 = vmatprep.subr.mxu0 0.0
        %3958 = vmatpush2.msra.mxu0 0.0
        %3959 = vmatprep.subr.mxu0 0.0
        %3960 = vmatpush2.msra.mxu0 0.0
        %3961 = vmatprep.subr.mxu0 0.0
        %3962 = vmatpush2.msra.mxu0 0.0
        %3963 = vmatprep.subr.mxu0 0.0
        %3964 = vmatpush2.msra.mxu0 0.0
        %3965 = vmatprep.subr.mxu0 0.0
        %3966 = vmatpush2.msra.mxu0 0.0
        %3967 = vmatprep.subr.mxu0 0.0
        %3968 = vmatpush2.msra.mxu0 0.0
        %3969 = vmatprep.subr.mxu0 %v3605
        %3970 = vmatpush2.msra.mxu0 %v3604
        %3971 = vmatprep.subr.mxu0 %v3597
        %3972 = vmatpush2.msra.mxu0 %v3596
        %3973 = vmatprep.mubr.f32.mxu0 %v3631
        %3974 = vmatmul.mubr.f32.gmra.mxu0 %v3454
        %v3975 = vpop.f32.mrf.mxu0
        %v3976 = vadd.f32 %v3613, %v3975
        %v3977 = vpop.f32.mrf.mxu0
        %v3978 = vadd.f32 %v3613, %v3977
        %3979 = vmatprep.mubr.f32.mxu0 %v3634
        %3980 = vmatmul.mubr.f32.gmra.mxu0 %v3456
        %v3981 = vpop.f32.mrf.mxu0
        %v3982 = vadd.f32 %v3618, %v3981
        %v3983 = vpop.f32.mrf.mxu0
        %v3984 = vadd.f32 %v3618, %v3983
        %3985 = vmatprep.mubr.f32.mxu0 %v3637
        %3986 = vmatmul.mubr.f32.gmra.mxu0 %v3458
        %v3987 = vpop.f32.mrf.mxu0
        %v3988 = vadd.f32 %v3623, %v3987
        %v3989 = vpop.f32.mrf.mxu0
        %v3990 = vadd.f32 %v3623, %v3989
        %3991 = vmatprep.mubr.f32.mxu0 %v3640
        %3992 = vmatmul.mubr.f32.gmra.mxu0 %v3460
        %v3993 = vpop.f32.mrf.mxu0
        %v3994 = vadd.f32 %v3628, %v3993
        %v3995 = vpop.f32.mrf.mxu0
        %v3996 = vadd.f32 %v3628, %v3995
        %3997 = vdwg.mxu0
        %v3998 = vmax.f32 %v3709, 0.0
        %v3999 = vmax.f32 %v3711, 0.0
        %v4000 = vmax.f32 %v3798, 0.0
        %v4001 = vmax.f32 %v3800, 0.0
        %v4002 = vmax.f32 %v3887, 0.0
        %v4003 = vmax.f32 %v3889, 0.0
        %v4004 = vmax.f32 %v3976, 0.0
        %v4005 = vmax.f32 %v3978, 0.0
        %v4006 = vmax.f32 %v3715, 0.0
        %v4007 = vmax.f32 %v3717, 0.0
        %v4008 = vmax.f32 %v3804, 0.0
        %v4009 = vmax.f32 %v3806, 0.0
        %v4010 = vmax.f32 %v3893, 0.0
        %v4011 = vmax.f32 %v3895, 0.0
        %v4012 = vmax.f32 %v3982, 0.0
        %v4013 = vmax.f32 %v3984, 0.0
        %v4014 = vmax.f32 %v3721, 0.0
        %v4015 = vmax.f32 %v3723, 0.0
        %v4016 = vmax.f32 %v3810, 0.0
        %v4017 = vmax.f32 %v3812, 0.0
        %v4018 = vmax.f32 %v3899, 0.0
        %v4019 = vmax.f32 %v3901, 0.0
        %v4020 = vmax.f32 %v3988, 0.0
        %v4021 = vmax.f32 %v3990, 0.0
        %v4022 = vmax.f32 %v3727, 0.0
        %v4023 = vmax.f32 %v3729, 0.0
        %v4024 = vmax.f32 %v3816, 0.0
        %v4025 = vmax.f32 %v3818, 0.0
        %v4026 = vmax.f32 %v3905, 0.0
        %v4027 = vmax.f32 %v3907, 0.0
        %v4028 = vmax.f32 %v3994, 0.0
        %v4029 = vmax.f32 %v3996, 0.0
        %4030 = vst [vmem:[#allocation2] sm:$0xff] %v3998
        %4031 = vst [vmem:[#allocation2 + $0x8] sm:$0xff] %v3999
        %4032 = vst [vmem:[#allocation2 + $0x10] sm:$0xff] %v4000
        %4033 = vst [vmem:[#allocation2 + $0x18] sm:$0xff] %v4001
        %4034 = vst [vmem:[#allocation2 + $0x20] sm:$0xff] %v4002
        %4035 = vst [vmem:[#allocation2 + $0x28] sm:$0xff] %v4003
        %vm4036 = vcmask 384000
        %4037 = vst.msk [vmem:[#allocation2 + $0x30] sm:$0xff] %vm4036, %v4004
        %4038 = vst [vmem:[#allocation2 + $0x58] sm:$0xff] %v4006
        %4039 = vst [vmem:[#allocation2 + $0x60] sm:$0xff] %v4007
        %4040 = vst [vmem:[#allocation2 + $0x68] sm:$0xff] %v4008
        %4041 = vst [vmem:[#allocation2 + $0x70] sm:$0xff] %v4009
        %4042 = vst [vmem:[#allocation2 + $0x78] sm:$0xff] %v4010
        %4043 = vst [vmem:[#allocation2 + $0x80] sm:$0xff] %v4011
        %4044 = vst.msk [vmem:[#allocation2 + $0x88] sm:$0xff] %vm4036, %v4012
        %4045 = vst [vmem:[#allocation2 + $0xb0] sm:$0xff] %v4014
        %4046 = vst [vmem:[#allocation2 + $0xb8] sm:$0xff] %v4015
        %4047 = vst [vmem:[#allocation2 + $0xc0] sm:$0xff] %v4016
        %4048 = vst [vmem:[#allocation2 + $0xc8] sm:$0xff] %v4017
        %4049 = vst [vmem:[#allocation2 + $0xd0] sm:$0xff] %v4018
        %4050 = vst [vmem:[#allocation2 + $0xd8] sm:$0xff] %v4019
        %4051 = vst.msk [vmem:[#allocation2 + $0xe0] sm:$0xff] %vm4036, %v4020
        %4052 = vst [vmem:[#allocation2 + $0x108] sm:$0xff] %v4022
        %4053 = vst [vmem:[#allocation2 + $0x110] sm:$0xff] %v4023
        %4054 = vst [vmem:[#allocation2 + $0x118] sm:$0xff] %v4024
        %4055 = vst [vmem:[#allocation2 + $0x120] sm:$0xff] %v4025
        %4056 = vst [vmem:[#allocation2 + $0x128] sm:$0xff] %v4026
        %4057 = vst [vmem:[#allocation2 + $0x130] sm:$0xff] %v4027
        %4058 = vst.msk [vmem:[#allocation2 + $0x138] sm:$0xff] %vm4036, %v4028
        %4087 = vrot.lane.b32.xlu0 %v3998, 126
        %v4088 = vpop.permute.xlu0 %4087
        %4089 = vrot.lane.b32.xlu0 %v3999, 126
        %v4090 = vpop.permute.xlu0 %4089
        %4091 = vrot.lane.b32.xlu0 %v4000, 126
        %v4092 = vpop.permute.xlu0 %4091
        %4093 = vrot.lane.b32.xlu0 %v4001, 126
        %v4094 = vpop.permute.xlu0 %4093
        %4095 = vrot.lane.b32.xlu0 %v4002, 126
        %v4096 = vpop.permute.xlu0 %4095
        %4097 = vrot.lane.b32.xlu0 %v4003, 126
        %v4098 = vpop.permute.xlu0 %4097
        %4099 = vrot.lane.b32.xlu0 %v4004, 126
        %v4100 = vpop.permute.xlu0 %4099
        %4101 = vrot.lane.b32.xlu0 %v4006, 126
        %v4102 = vpop.permute.xlu0 %4101
        %4103 = vrot.lane.b32.xlu0 %v4007, 126
        %v4104 = vpop.permute.xlu0 %4103
        %4105 = vrot.lane.b32.xlu0 %v4008, 126
        %v4106 = vpop.permute.xlu0 %4105
        %4107 = vrot.lane.b32.xlu0 %v4009, 126
        %v4108 = vpop.permute.xlu0 %4107
        %4109 = vrot.lane.b32.xlu0 %v4010, 126
        %v4110 = vpop.permute.xlu0 %4109
        %4111 = vrot.lane.b32.xlu0 %v4011, 126
        %v4112 = vpop.permute.xlu0 %4111
        %4113 = vrot.lane.b32.xlu0 %v4012, 126
        %v4114 = vpop.permute.xlu0 %4113
        %4115 = vrot.lane.b32.xlu0 %v4014, 126
        %v4116 = vpop.permute.xlu0 %4115
        %4117 = vrot.lane.b32.xlu0 %v4015, 126
        %v4118 = vpop.permute.xlu0 %4117
        %4119 = vrot.lane.b32.xlu0 %v4016, 126
        %v4120 = vpop.permute.xlu0 %4119
        %4121 = vrot.lane.b32.xlu0 %v4017, 126
        %v4122 = vpop.permute.xlu0 %4121
        %4123 = vrot.lane.b32.xlu0 %v4018, 126
        %v4124 = vpop.permute.xlu0 %4123
        %4125 = vrot.lane.b32.xlu0 %v4019, 126
        %v4126 = vpop.permute.xlu0 %4125
        %4127 = vrot.lane.b32.xlu0 %v4020, 126
        %v4128 = vpop.permute.xlu0 %4127
        %4129 = vrot.lane.b32.xlu0 %v4022, 126
        %v4130 = vpop.permute.xlu0 %4129
        %4131 = vrot.lane.b32.xlu0 %v4023, 126
        %v4132 = vpop.permute.xlu0 %4131
        %4133 = vrot.lane.b32.xlu0 %v4024, 126
        %v4134 = vpop.permute.xlu0 %4133
        %4135 = vrot.lane.b32.xlu0 %v4025, 126
        %v4136 = vpop.permute.xlu0 %4135
        %4137 = vrot.lane.b32.xlu0 %v4026, 126
        %v4138 = vpop.permute.xlu0 %4137
        %4139 = vrot.lane.b32.xlu0 %v4027, 126
        %v4140 = vpop.permute.xlu0 %4139
        %4141 = vrot.lane.b32.xlu0 %v4028, 126
        %v4142 = vpop.permute.xlu0 %4141
        %v4143 = vsel %vm600, %v4088, %v4090
        %v4144 = vsel %vm600, %v4090, %v4092
        %v4145 = vsel %vm600, %v4092, %v4094
        %v4146 = vsel %vm600, %v4094, %v4096
        %v4147 = vsel %vm600, %v4096, %v4098
        %v4148 = vsel %vm600, %v4098, %v4100
        %v4149 = vsel %vm600, %v4102, %v4104
        %v4150 = vsel %vm600, %v4104, %v4106
        %v4151 = vsel %vm600, %v4106, %v4108
        %v4152 = vsel %vm600, %v4108, %v4110
        %v4153 = vsel %vm600, %v4110, %v4112
        %v4154 = vsel %vm600, %v4112, %v4114
        %v4155 = vsel %vm600, %v4116, %v4118
        %v4156 = vsel %vm600, %v4118, %v4120
        %v4157 = vsel %vm600, %v4120, %v4122
        %v4158 = vsel %vm600, %v4122, %v4124
        %v4159 = vsel %vm600, %v4124, %v4126
        %v4160 = vsel %vm600, %v4126, %v4128
        %v4161 = vsel %vm600, %v4130, %v4132
        %v4162 = vsel %vm600, %v4132, %v4134
        %v4163 = vsel %vm600, %v4134, %v4136
        %v4164 = vsel %vm600, %v4136, %v4138
        %v4165 = vsel %vm600, %v4138, %v4140
        %v4166 = vsel %vm600, %v4140, %v4142
        %4195 = vst [vmem:[#allocation2 + $0x160] sm:$0xff] %v4143
        %4196 = vst [vmem:[#allocation2 + $0x168] sm:$0xff] %v4144
        %4197 = vst [vmem:[#allocation2 + $0x170] sm:$0xff] %v4145
        %4198 = vst [vmem:[#allocation2 + $0x178] sm:$0xff] %v4146
        %4199 = vst [vmem:[#allocation2 + $0x180] sm:$0xff] %v4147
        %4200 = vst [vmem:[#allocation2 + $0x188] sm:$0xff] %v4148
        %4201 = vst.msk [vmem:[#allocation2 + $0x190] sm:$0xff] %vm4036, %v4100
        %4202 = vst [vmem:[#allocation2 + $0x1b8] sm:$0xff] %v4149
        %4203 = vst [vmem:[#allocation2 + $0x1c0] sm:$0xff] %v4150
        %4204 = vst [vmem:[#allocation2 + $0x1c8] sm:$0xff] %v4151
        %4205 = vst [vmem:[#allocation2 + $0x1d0] sm:$0xff] %v4152
        %4206 = vst [vmem:[#allocation2 + $0x1d8] sm:$0xff] %v4153
        %4207 = vst [vmem:[#allocation2 + $0x1e0] sm:$0xff] %v4154
        %4208 = vst.msk [vmem:[#allocation2 + $0x1e8] sm:$0xff] %vm4036, %v4114
        %4209 = vst [vmem:[#allocation2 + $0x210] sm:$0xff] %v4155
        %4210 = vst [vmem:[#allocation2 + $0x218] sm:$0xff] %v4156
        %4211 = vst [vmem:[#allocation2 + $0x220] sm:$0xff] %v4157
        %4212 = vst [vmem:[#allocation2 + $0x228] sm:$0xff] %v4158
        %4213 = vst [vmem:[#allocation2 + $0x230] sm:$0xff] %v4159
        %4214 = vst [vmem:[#allocation2 + $0x238] sm:$0xff] %v4160
        %4215 = vst.msk [vmem:[#allocation2 + $0x240] sm:$0xff] %vm4036, %v4128
        %4216 = vst [vmem:[#allocation2 + $0x268] sm:$0xff] %v4161
        %4217 = vst [vmem:[#allocation2 + $0x270] sm:$0xff] %v4162
        %4218 = vst [vmem:[#allocation2 + $0x278] sm:$0xff] %v4163
        %4219 = vst [vmem:[#allocation2 + $0x280] sm:$0xff] %v4164
        %4220 = vst [vmem:[#allocation2 + $0x288] sm:$0xff] %v4165
        %4221 = vst [vmem:[#allocation2 + $0x290] sm:$0xff] %v4166
        %4222 = vst.msk [vmem:[#allocation2 + $0x298] sm:$0xff] %vm4036, %v4142
        %4223 = vrot.lane.b32.xlu0 %v3998, 124
        %v4224 = vpop.permute.xlu0 %4223
        %4225 = vrot.lane.b32.xlu0 %v3999, 124
        %v4226 = vpop.permute.xlu0 %4225
        %4227 = vrot.lane.b32.xlu0 %v4000, 124
        %v4228 = vpop.permute.xlu0 %4227
        %4229 = vrot.lane.b32.xlu0 %v4001, 124
        %v4230 = vpop.permute.xlu0 %4229
        %4231 = vrot.lane.b32.xlu0 %v4002, 124
        %v4232 = vpop.permute.xlu0 %4231
        %4233 = vrot.lane.b32.xlu0 %v4003, 124
        %v4234 = vpop.permute.xlu0 %4233
        %4235 = vrot.lane.b32.xlu0 %v4004, 124
        %v4236 = vpop.permute.xlu0 %4235
        %4237 = vrot.lane.b32.xlu0 %v4006, 124
        %v4238 = vpop.permute.xlu0 %4237
        %4239 = vrot.lane.b32.xlu0 %v4007, 124
        %v4240 = vpop.permute.xlu0 %4239
        %4241 = vrot.lane.b32.xlu0 %v4008, 124
        %v4242 = vpop.permute.xlu0 %4241
        %4243 = vrot.lane.b32.xlu0 %v4009, 124
        %v4244 = vpop.permute.xlu0 %4243
        %4245 = vrot.lane.b32.xlu0 %v4010, 124
        %v4246 = vpop.permute.xlu0 %4245
        %4247 = vrot.lane.b32.xlu0 %v4011, 124
        %v4248 = vpop.permute.xlu0 %4247
        %4249 = vrot.lane.b32.xlu0 %v4012, 124
        %v4250 = vpop.permute.xlu0 %4249
        %4251 = vrot.lane.b32.xlu0 %v4014, 124
        %v4252 = vpop.permute.xlu0 %4251
        %4253 = vrot.lane.b32.xlu0 %v4015, 124
        %v4254 = vpop.permute.xlu0 %4253
        %4255 = vrot.lane.b32.xlu0 %v4016, 124
        %v4256 = vpop.permute.xlu0 %4255
        %4257 = vrot.lane.b32.xlu0 %v4017, 124
        %v4258 = vpop.permute.xlu0 %4257
        %4259 = vrot.lane.b32.xlu0 %v4018, 124
        %v4260 = vpop.permute.xlu0 %4259
        %4261 = vrot.lane.b32.xlu0 %v4019, 124
        %v4262 = vpop.permute.xlu0 %4261
        %4263 = vrot.lane.b32.xlu0 %v4020, 124
        %v4264 = vpop.permute.xlu0 %4263
        %4265 = vrot.lane.b32.xlu0 %v4022, 124
        %v4266 = vpop.permute.xlu0 %4265
        %4267 = vrot.lane.b32.xlu0 %v4023, 124
        %v4268 = vpop.permute.xlu0 %4267
        %4269 = vrot.lane.b32.xlu0 %v4024, 124
        %v4270 = vpop.permute.xlu0 %4269
        %4271 = vrot.lane.b32.xlu0 %v4025, 124
        %v4272 = vpop.permute.xlu0 %4271
        %4273 = vrot.lane.b32.xlu0 %v4026, 124
        %v4274 = vpop.permute.xlu0 %4273
        %4275 = vrot.lane.b32.xlu0 %v4027, 124
        %v4276 = vpop.permute.xlu0 %4275
        %4277 = vrot.lane.b32.xlu0 %v4028, 124
        %v4278 = vpop.permute.xlu0 %4277
        %v4279 = vsel %vm1204, %v4224, %v4226
        %v4280 = vsel %vm1204, %v4226, %v4228
        %v4281 = vsel %vm1204, %v4228, %v4230
        %v4282 = vsel %vm1204, %v4230, %v4232
        %v4283 = vsel %vm1204, %v4232, %v4234
        %v4284 = vsel %vm1204, %v4234, %v4236
        %v4285 = vsel %vm1204, %v4238, %v4240
        %v4286 = vsel %vm1204, %v4240, %v4242
        %v4287 = vsel %vm1204, %v4242, %v4244
        %v4288 = vsel %vm1204, %v4244, %v4246
        %v4289 = vsel %vm1204, %v4246, %v4248
        %v4290 = vsel %vm1204, %v4248, %v4250
        %v4291 = vsel %vm1204, %v4252, %v4254
        %v4292 = vsel %vm1204, %v4254, %v4256
        %v4293 = vsel %vm1204, %v4256, %v4258
        %v4294 = vsel %vm1204, %v4258, %v4260
        %v4295 = vsel %vm1204, %v4260, %v4262
        %v4296 = vsel %vm1204, %v4262, %v4264
        %v4297 = vsel %vm1204, %v4266, %v4268
        %v4298 = vsel %vm1204, %v4268, %v4270
        %v4299 = vsel %vm1204, %v4270, %v4272
        %v4300 = vsel %vm1204, %v4272, %v4274
        %v4301 = vsel %vm1204, %v4274, %v4276
        %v4302 = vsel %vm1204, %v4276, %v4278
        %4331 = vst [vmem:[#allocation2 + $0x2c0] sm:$0xff] %v4279
        %4332 = vst [vmem:[#allocation2 + $0x2c8] sm:$0xff] %v4280
        %4333 = vst [vmem:[#allocation2 + $0x2d0] sm:$0xff] %v4281
        %4334 = vst [vmem:[#allocation2 + $0x2d8] sm:$0xff] %v4282
        %4335 = vst [vmem:[#allocation2 + $0x2e0] sm:$0xff] %v4283
        %4336 = vst [vmem:[#allocation2 + $0x2e8] sm:$0xff] %v4284
        %4337 = vst.msk [vmem:[#allocation2 + $0x2f0] sm:$0xff] %vm4036, %v4236
        %4338 = vst [vmem:[#allocation2 + $0x318] sm:$0xff] %v4285
        %4339 = vst [vmem:[#allocation2 + $0x320] sm:$0xff] %v4286
        %4340 = vst [vmem:[#allocation2 + $0x328] sm:$0xff] %v4287
        %4341 = vst [vmem:[#allocation2 + $0x330] sm:$0xff] %v4288
        %4342 = vst [vmem:[#allocation2 + $0x338] sm:$0xff] %v4289
        %4343 = vst [vmem:[#allocation2 + $0x340] sm:$0xff] %v4290
        %4344 = vst.msk [vmem:[#allocation2 + $0x348] sm:$0xff] %vm4036, %v4250
        %4345 = vst [vmem:[#allocation2 + $0x370] sm:$0xff] %v4291
        %4346 = vst [vmem:[#allocation2 + $0x378] sm:$0xff] %v4292
        %4347 = vst [vmem:[#allocation2 + $0x380] sm:$0xff] %v4293
        %4348 = vst [vmem:[#allocation2 + $0x388] sm:$0xff] %v4294
        %4349 = vst [vmem:[#allocation2 + $0x390] sm:$0xff] %v4295
        %4350 = vst [vmem:[#allocation2 + $0x398] sm:$0xff] %v4296
        %4351 = vst.msk [vmem:[#allocation2 + $0x3a0] sm:$0xff] %vm4036, %v4264
        %4352 = vst [vmem:[#allocation2 + $0x3c8] sm:$0xff] %v4297
        %4353 = vst [vmem:[#allocation2 + $0x3d0] sm:$0xff] %v4298
        %4354 = vst [vmem:[#allocation2 + $0x3d8] sm:$0xff] %v4299
        %4355 = vst [vmem:[#allocation2 + $0x3e0] sm:$0xff] %v4300
        %4356 = vst [vmem:[#allocation2 + $0x3e8] sm:$0xff] %v4301
        %4357 = vst [vmem:[#allocation2 + $0x3f0] sm:$0xff] %v4302
        %4358 = vst.msk [vmem:[#allocation2 + $0x3f8] sm:$0xff] %vm4036, %v4278
        %4359 = vrot.lane.b32.xlu0 %v3998, 56
        %v4360 = vpop.permute.xlu0 %4359
        %4361 = vrot.lane.b32.xlu0 %v3999, 56
        %v4362 = vpop.permute.xlu0 %4361
        %4363 = vrot.lane.b32.xlu0 %v4000, 56
        %v4364 = vpop.permute.xlu0 %4363
        %4365 = vrot.lane.b32.xlu0 %v4001, 56
        %v4366 = vpop.permute.xlu0 %4365
        %4367 = vrot.lane.b32.xlu0 %v4002, 56
        %v4368 = vpop.permute.xlu0 %4367
        %4369 = vrot.lane.b32.xlu0 %v4003, 56
        %v4370 = vpop.permute.xlu0 %4369
        %4371 = vrot.lane.b32.xlu0 %v4004, 56
        %v4372 = vpop.permute.xlu0 %4371
        %4373 = vrot.lane.b32.xlu0 %v4006, 56
        %v4374 = vpop.permute.xlu0 %4373
        %4375 = vrot.lane.b32.xlu0 %v4007, 56
        %v4376 = vpop.permute.xlu0 %4375
        %4377 = vrot.lane.b32.xlu0 %v4008, 56
        %v4378 = vpop.permute.xlu0 %4377
        %4379 = vrot.lane.b32.xlu0 %v4009, 56
        %v4380 = vpop.permute.xlu0 %4379
        %4381 = vrot.lane.b32.xlu0 %v4010, 56
        %v4382 = vpop.permute.xlu0 %4381
        %4383 = vrot.lane.b32.xlu0 %v4011, 56
        %v4384 = vpop.permute.xlu0 %4383
        %4385 = vrot.lane.b32.xlu0 %v4012, 56
        %v4386 = vpop.permute.xlu0 %4385
        %4387 = vrot.lane.b32.xlu0 %v4014, 56
        %v4388 = vpop.permute.xlu0 %4387
        %4389 = vrot.lane.b32.xlu0 %v4015, 56
        %v4390 = vpop.permute.xlu0 %4389
        %4391 = vrot.lane.b32.xlu0 %v4016, 56
        %v4392 = vpop.permute.xlu0 %4391
        %4393 = vrot.lane.b32.xlu0 %v4017, 56
        %v4394 = vpop.permute.xlu0 %4393
        %4395 = vrot.lane.b32.xlu0 %v4018, 56
        %v4396 = vpop.permute.xlu0 %4395
        %4397 = vrot.lane.b32.xlu0 %v4019, 56
        %v4398 = vpop.permute.xlu0 %4397
        %4399 = vrot.lane.b32.xlu0 %v4020, 56
        %v4400 = vpop.permute.xlu0 %4399
        %4401 = vrot.lane.b32.xlu0 %v4022, 56
        %v4402 = vpop.permute.xlu0 %4401
        %4403 = vrot.lane.b32.xlu0 %v4023, 56
        %v4404 = vpop.permute.xlu0 %4403
        %4405 = vrot.lane.b32.xlu0 %v4024, 56
        %v4406 = vpop.permute.xlu0 %4405
        %4407 = vrot.lane.b32.xlu0 %v4025, 56
        %v4408 = vpop.permute.xlu0 %4407
        %4409 = vrot.lane.b32.xlu0 %v4026, 56
        %v4410 = vpop.permute.xlu0 %4409
        %4411 = vrot.lane.b32.xlu0 %v4027, 56
        %v4412 = vpop.permute.xlu0 %4411
        %4413 = vrot.lane.b32.xlu0 %v4028, 56
        %v4414 = vpop.permute.xlu0 %4413
        %v4415 = vsel %vm672, %v4360, %v4362
        %v4416 = vsel %vm672, %v4362, %v4364
        %v4417 = vsel %vm672, %v4364, %v4366
        %v4418 = vsel %vm672, %v4366, %v4368
        %v4419 = vsel %vm672, %v4368, %v4370
        %v4420 = vsel %vm672, %v4370, %v4372
        %v4421 = vsel %vm672, %v4374, %v4376
        %v4422 = vsel %vm672, %v4376, %v4378
        %v4423 = vsel %vm672, %v4378, %v4380
        %v4424 = vsel %vm672, %v4380, %v4382
        %v4425 = vsel %vm672, %v4382, %v4384
        %v4426 = vsel %vm672, %v4384, %v4386
        %v4427 = vsel %vm672, %v4388, %v4390
        %v4428 = vsel %vm672, %v4390, %v4392
        %v4429 = vsel %vm672, %v4392, %v4394
        %v4430 = vsel %vm672, %v4394, %v4396
        %v4431 = vsel %vm672, %v4396, %v4398
        %v4432 = vsel %vm672, %v4398, %v4400
        %v4433 = vsel %vm672, %v4402, %v4404
        %v4434 = vsel %vm672, %v4404, %v4406
        %v4435 = vsel %vm672, %v4406, %v4408
        %v4436 = vsel %vm672, %v4408, %v4410
        %v4437 = vsel %vm672, %v4410, %v4412
        %v4438 = vsel %vm672, %v4412, %v4414
        %4467 = vst [vmem:[#allocation2 + $0x420] sm:$0xff] %v4415
        %4468 = vst [vmem:[#allocation2 + $0x428] sm:$0xff] %v4416
        %4469 = vst [vmem:[#allocation2 + $0x430] sm:$0xff] %v4417
        %4470 = vst [vmem:[#allocation2 + $0x438] sm:$0xff] %v4418
        %4471 = vst [vmem:[#allocation2 + $0x440] sm:$0xff] %v4419
        %4472 = vst [vmem:[#allocation2 + $0x448] sm:$0xff] %v4420
        %4473 = vst.msk [vmem:[#allocation2 + $0x450] sm:$0xff] %vm4036, %v4372
        %4474 = vst [vmem:[#allocation2 + $0x478] sm:$0xff] %v4421
        %4475 = vst [vmem:[#allocation2 + $0x480] sm:$0xff] %v4422
        %4476 = vst [vmem:[#allocation2 + $0x488] sm:$0xff] %v4423
        %4477 = vst [vmem:[#allocation2 + $0x490] sm:$0xff] %v4424
        %4478 = vst [vmem:[#allocation2 + $0x498] sm:$0xff] %v4425
        %4479 = vst [vmem:[#allocation2 + $0x4a0] sm:$0xff] %v4426
        %4480 = vst.msk [vmem:[#allocation2 + $0x4a8] sm:$0xff] %vm4036, %v4386
        %4481 = vst [vmem:[#allocation2 + $0x4d0] sm:$0xff] %v4427
        %4482 = vst [vmem:[#allocation2 + $0x4d8] sm:$0xff] %v4428
        %4483 = vst [vmem:[#allocation2 + $0x4e0] sm:$0xff] %v4429
        %4484 = vst [vmem:[#allocation2 + $0x4e8] sm:$0xff] %v4430
        %4485 = vst [vmem:[#allocation2 + $0x4f0] sm:$0xff] %v4431
        %4486 = vst [vmem:[#allocation2 + $0x4f8] sm:$0xff] %v4432
        %4487 = vst.msk [vmem:[#allocation2 + $0x500] sm:$0xff] %vm4036, %v4400
        %4488 = vst [vmem:[#allocation2 + $0x528] sm:$0xff] %v4433
        %4489 = vst [vmem:[#allocation2 + $0x530] sm:$0xff] %v4434
        %4490 = vst [vmem:[#allocation2 + $0x538] sm:$0xff] %v4435
        %4491 = vst [vmem:[#allocation2 + $0x540] sm:$0xff] %v4436
        %4492 = vst [vmem:[#allocation2 + $0x548] sm:$0xff] %v4437
        %4493 = vst [vmem:[#allocation2 + $0x550] sm:$0xff] %v4438
        %4494 = vst.msk [vmem:[#allocation2 + $0x558] sm:$0xff] %vm4036, %v4414
        %4495 = vrot.lane.b32.xlu0 %v3998, 54
        %v4496 = vpop.permute.xlu0 %4495
        %4497 = vrot.lane.b32.xlu0 %v3999, 54
        %v4498 = vpop.permute.xlu0 %4497
        %4499 = vrot.lane.b32.xlu0 %v4000, 54
        %v4500 = vpop.permute.xlu0 %4499
        %4501 = vrot.lane.b32.xlu0 %v4001, 54
        %v4502 = vpop.permute.xlu0 %4501
        %4503 = vrot.lane.b32.xlu0 %v4002, 54
        %v4504 = vpop.permute.xlu0 %4503
        %4505 = vrot.lane.b32.xlu0 %v4003, 54
        %v4506 = vpop.permute.xlu0 %4505
        %4507 = vrot.lane.b32.xlu0 %v4004, 54
        %v4508 = vpop.permute.xlu0 %4507
        %4509 = vrot.lane.b32.xlu0 %v4006, 54
        %v4510 = vpop.permute.xlu0 %4509
        %4511 = vrot.lane.b32.xlu0 %v4007, 54
        %v4512 = vpop.permute.xlu0 %4511
        %4513 = vrot.lane.b32.xlu0 %v4008, 54
        %v4514 = vpop.permute.xlu0 %4513
        %4515 = vrot.lane.b32.xlu0 %v4009, 54
        %v4516 = vpop.permute.xlu0 %4515
        %4517 = vrot.lane.b32.xlu0 %v4010, 54
        %v4518 = vpop.permute.xlu0 %4517
        %4519 = vrot.lane.b32.xlu0 %v4011, 54
        %v4520 = vpop.permute.xlu0 %4519
        %4521 = vrot.lane.b32.xlu0 %v4012, 54
        %v4522 = vpop.permute.xlu0 %4521
        %4523 = vrot.lane.b32.xlu0 %v4014, 54
        %v4524 = vpop.permute.xlu0 %4523
        %4525 = vrot.lane.b32.xlu0 %v4015, 54
        %v4526 = vpop.permute.xlu0 %4525
        %4527 = vrot.lane.b32.xlu0 %v4016, 54
        %v4528 = vpop.permute.xlu0 %4527
        %4529 = vrot.lane.b32.xlu0 %v4017, 54
        %v4530 = vpop.permute.xlu0 %4529
        %4531 = vrot.lane.b32.xlu0 %v4018, 54
        %v4532 = vpop.permute.xlu0 %4531
        %4533 = vrot.lane.b32.xlu0 %v4019, 54
        %v4534 = vpop.permute.xlu0 %4533
        %4535 = vrot.lane.b32.xlu0 %v4020, 54
        %v4536 = vpop.permute.xlu0 %4535
        %4537 = vrot.lane.b32.xlu0 %v4022, 54
        %v4538 = vpop.permute.xlu0 %4537
        %4539 = vrot.lane.b32.xlu0 %v4023, 54
        %v4540 = vpop.permute.xlu0 %4539
        %4541 = vrot.lane.b32.xlu0 %v4024, 54
        %v4542 = vpop.permute.xlu0 %4541
        %4543 = vrot.lane.b32.xlu0 %v4025, 54
        %v4544 = vpop.permute.xlu0 %4543
        %4545 = vrot.lane.b32.xlu0 %v4026, 54
        %v4546 = vpop.permute.xlu0 %4545
        %4547 = vrot.lane.b32.xlu0 %v4027, 54
        %v4548 = vpop.permute.xlu0 %4547
        %4549 = vrot.lane.b32.xlu0 %v4028, 54
        %v4550 = vpop.permute.xlu0 %4549
        %v4551 = vsel %vm708, %v4496, %v4498
        %v4552 = vsel %vm708, %v4498, %v4500
        %v4553 = vsel %vm708, %v4500, %v4502
        %v4554 = vsel %vm708, %v4502, %v4504
        %v4555 = vsel %vm708, %v4504, %v4506
        %v4556 = vsel %vm708, %v4506, %v4508
        %v4557 = vsel %vm708, %v4510, %v4512
        %v4558 = vsel %vm708, %v4512, %v4514
        %v4559 = vsel %vm708, %v4514, %v4516
        %v4560 = vsel %vm708, %v4516, %v4518
        %v4561 = vsel %vm708, %v4518, %v4520
        %v4562 = vsel %vm708, %v4520, %v4522
        %v4563 = vsel %vm708, %v4524, %v4526
        %v4564 = vsel %vm708, %v4526, %v4528
        %v4565 = vsel %vm708, %v4528, %v4530
        %v4566 = vsel %vm708, %v4530, %v4532
        %v4567 = vsel %vm708, %v4532, %v4534
        %v4568 = vsel %vm708, %v4534, %v4536
        %v4569 = vsel %vm708, %v4538, %v4540
        %v4570 = vsel %vm708, %v4540, %v4542
        %v4571 = vsel %vm708, %v4542, %v4544
        %v4572 = vsel %vm708, %v4544, %v4546
        %v4573 = vsel %vm708, %v4546, %v4548
        %v4574 = vsel %vm708, %v4548, %v4550
        %4603 = vst [vmem:[#allocation2 + $0x580] sm:$0xff] %v4551
        %4604 = vst [vmem:[#allocation2 + $0x588] sm:$0xff] %v4552
        %4605 = vst [vmem:[#allocation2 + $0x590] sm:$0xff] %v4553
        %4606 = vst [vmem:[#allocation2 + $0x598] sm:$0xff] %v4554
        %4607 = vst [vmem:[#allocation2 + $0x5a0] sm:$0xff] %v4555
        %4608 = vst [vmem:[#allocation2 + $0x5a8] sm:$0xff] %v4556
        %4609 = vst.msk [vmem:[#allocation2 + $0x5b0] sm:$0xff] %vm4036, %v4508
        %4610 = vst [vmem:[#allocation2 + $0x5d8] sm:$0xff] %v4557
        %4611 = vst [vmem:[#allocation2 + $0x5e0] sm:$0xff] %v4558
        %4612 = vst [vmem:[#allocation2 + $0x5e8] sm:$0xff] %v4559
        %4613 = vst [vmem:[#allocation2 + $0x5f0] sm:$0xff] %v4560
        %4614 = vst [vmem:[#allocation2 + $0x5f8] sm:$0xff] %v4561
        %4615 = vst [vmem:[#allocation2 + $0x600] sm:$0xff] %v4562
        %4616 = vst.msk [vmem:[#allocation2 + $0x608] sm:$0xff] %vm4036, %v4522
        %4617 = vst [vmem:[#allocation2 + $0x630] sm:$0xff] %v4563
        %4618 = vst [vmem:[#allocation2 + $0x638] sm:$0xff] %v4564
        %4619 = vst [vmem:[#allocation2 + $0x640] sm:$0xff] %v4565
        %4620 = vst [vmem:[#allocation2 + $0x648] sm:$0xff] %v4566
        %4621 = vst [vmem:[#allocation2 + $0x650] sm:$0xff] %v4567
        %4622 = vst [vmem:[#allocation2 + $0x658] sm:$0xff] %v4568
        %4623 = vst.msk [vmem:[#allocation2 + $0x660] sm:$0xff] %vm4036, %v4536
        %4624 = vst [vmem:[#allocation2 + $0x688] sm:$0xff] %v4569
        %4625 = vst [vmem:[#allocation2 + $0x690] sm:$0xff] %v4570
        %4626 = vst [vmem:[#allocation2 + $0x698] sm:$0xff] %v4571
        %4627 = vst [vmem:[#allocation2 + $0x6a0] sm:$0xff] %v4572
        %4628 = vst [vmem:[#allocation2 + $0x6a8] sm:$0xff] %v4573
        %4629 = vst [vmem:[#allocation2 + $0x6b0] sm:$0xff] %v4574
        %4630 = vst.msk [vmem:[#allocation2 + $0x6b8] sm:$0xff] %vm4036, %v4550
        %4631 = vrot.lane.b32.xlu0 %v3998, 52
        %v4632 = vpop.permute.xlu0 %4631
        %4633 = vrot.lane.b32.xlu0 %v3999, 52
        %v4634 = vpop.permute.xlu0 %4633
        %4635 = vrot.lane.b32.xlu0 %v4000, 52
        %v4636 = vpop.permute.xlu0 %4635
        %4637 = vrot.lane.b32.xlu0 %v4001, 52
        %v4638 = vpop.permute.xlu0 %4637
        %4639 = vrot.lane.b32.xlu0 %v4002, 52
        %v4640 = vpop.permute.xlu0 %4639
        %4641 = vrot.lane.b32.xlu0 %v4003, 52
        %v4642 = vpop.permute.xlu0 %4641
        %4643 = vrot.lane.b32.xlu0 %v4004, 52
        %v4644 = vpop.permute.xlu0 %4643
        %4645 = vrot.lane.b32.xlu0 %v4006, 52
        %v4646 = vpop.permute.xlu0 %4645
        %4647 = vrot.lane.b32.xlu0 %v4007, 52
        %v4648 = vpop.permute.xlu0 %4647
        %4649 = vrot.lane.b32.xlu0 %v4008, 52
        %v4650 = vpop.permute.xlu0 %4649
        %4651 = vrot.lane.b32.xlu0 %v4009, 52
        %v4652 = vpop.permute.xlu0 %4651
        %4653 = vrot.lane.b32.xlu0 %v4010, 52
        %v4654 = vpop.permute.xlu0 %4653
        %4655 = vrot.lane.b32.xlu0 %v4011, 52
        %v4656 = vpop.permute.xlu0 %4655
        %4657 = vrot.lane.b32.xlu0 %v4012, 52
        %v4658 = vpop.permute.xlu0 %4657
        %4659 = vrot.lane.b32.xlu0 %v4014, 52
        %v4660 = vpop.permute.xlu0 %4659
        %4661 = vrot.lane.b32.xlu0 %v4015, 52
        %v4662 = vpop.permute.xlu0 %4661
        %4663 = vrot.lane.b32.xlu0 %v4016, 52
        %v4664 = vpop.permute.xlu0 %4663
        %4665 = vrot.lane.b32.xlu0 %v4017, 52
        %v4666 = vpop.permute.xlu0 %4665
        %4667 = vrot.lane.b32.xlu0 %v4018, 52
        %v4668 = vpop.permute.xlu0 %4667
        %4669 = vrot.lane.b32.xlu0 %v4019, 52
        %v4670 = vpop.permute.xlu0 %4669
        %4671 = vrot.lane.b32.xlu0 %v4020, 52
        %v4672 = vpop.permute.xlu0 %4671
        %4673 = vrot.lane.b32.xlu0 %v4022, 52
        %v4674 = vpop.permute.xlu0 %4673
        %4675 = vrot.lane.b32.xlu0 %v4023, 52
        %v4676 = vpop.permute.xlu0 %4675
        %4677 = vrot.lane.b32.xlu0 %v4024, 52
        %v4678 = vpop.permute.xlu0 %4677
        %4679 = vrot.lane.b32.xlu0 %v4025, 52
        %v4680 = vpop.permute.xlu0 %4679
        %4681 = vrot.lane.b32.xlu0 %v4026, 52
        %v4682 = vpop.permute.xlu0 %4681
        %4683 = vrot.lane.b32.xlu0 %v4027, 52
        %v4684 = vpop.permute.xlu0 %4683
        %4685 = vrot.lane.b32.xlu0 %v4028, 52
        %v4686 = vpop.permute.xlu0 %4685
        %v4687 = vsel %vm3168, %v4632, %v4634
        %v4688 = vsel %vm3168, %v4634, %v4636
        %v4689 = vsel %vm3168, %v4636, %v4638
        %v4690 = vsel %vm3168, %v4638, %v4640
        %v4691 = vsel %vm3168, %v4640, %v4642
        %v4692 = vsel %vm3168, %v4642, %v4644
        %v4693 = vsel %vm3168, %v4646, %v4648
        %v4694 = vsel %vm3168, %v4648, %v4650
        %v4695 = vsel %vm3168, %v4650, %v4652
        %v4696 = vsel %vm3168, %v4652, %v4654
        %v4697 = vsel %vm3168, %v4654, %v4656
        %v4698 = vsel %vm3168, %v4656, %v4658
        %v4699 = vsel %vm3168, %v4660, %v4662
        %v4700 = vsel %vm3168, %v4662, %v4664
        %v4701 = vsel %vm3168, %v4664, %v4666
        %v4702 = vsel %vm3168, %v4666, %v4668
        %v4703 = vsel %vm3168, %v4668, %v4670
        %v4704 = vsel %vm3168, %v4670, %v4672
        %v4705 = vsel %vm3168, %v4674, %v4676
        %v4706 = vsel %vm3168, %v4676, %v4678
        %v4707 = vsel %vm3168, %v4678, %v4680
        %v4708 = vsel %vm3168, %v4680, %v4682
        %v4709 = vsel %vm3168, %v4682, %v4684
        %v4710 = vsel %vm3168, %v4684, %v4686
        %4739 = vst [vmem:[#allocation2 + $0x6e0] sm:$0xff] %v4687
        %4740 = vst [vmem:[#allocation2 + $0x6e8] sm:$0xff] %v4688
        %4741 = vst [vmem:[#allocation2 + $0x6f0] sm:$0xff] %v4689
        %4742 = vst [vmem:[#allocation2 + $0x6f8] sm:$0xff] %v4690
        %4743 = vst [vmem:[#allocation2 + $0x700] sm:$0xff] %v4691
        %4744 = vst [vmem:[#allocation2 + $0x708] sm:$0xff] %v4692
        %4745 = vst.msk [vmem:[#allocation2 + $0x710] sm:$0xff] %vm4036, %v4644
        %4746 = vst [vmem:[#allocation2 + $0x738] sm:$0xff] %v4693
        %4747 = vst [vmem:[#allocation2 + $0x740] sm:$0xff] %v4694
        %4748 = vst [vmem:[#allocation2 + $0x748] sm:$0xff] %v4695
        %4749 = vst [vmem:[#allocation2 + $0x750] sm:$0xff] %v4696
        %4750 = vst [vmem:[#allocation2 + $0x758] sm:$0xff] %v4697
        %4751 = vst [vmem:[#allocation2 + $0x760] sm:$0xff] %v4698
        %4752 = vst.msk [vmem:[#allocation2 + $0x768] sm:$0xff] %vm4036, %v4658
        %4753 = vst [vmem:[#allocation2 + $0x790] sm:$0xff] %v4699
        %4754 = vst [vmem:[#allocation2 + $0x798] sm:$0xff] %v4700
        %4755 = vst [vmem:[#allocation2 + $0x7a0] sm:$0xff] %v4701
        %4756 = vst [vmem:[#allocation2 + $0x7a8] sm:$0xff] %v4702
        %4757 = vst [vmem:[#allocation2 + $0x7b0] sm:$0xff] %v4703
        %4758 = vst [vmem:[#allocation2 + $0x7b8] sm:$0xff] %v4704
        %4759 = vst.msk [vmem:[#allocation2 + $0x7c0] sm:$0xff] %vm4036, %v4672
        %4760 = vst [vmem:[#allocation2 + $0x7e8] sm:$0xff] %v4705
        %4761 = vst [vmem:[#allocation2 + $0x7f0] sm:$0xff] %v4706
        %4762 = vst [vmem:[#allocation2 + $0x7f8] sm:$0xff] %v4707
        %4763 = vst [vmem:[#allocation2 + $0x800] sm:$0xff] %v4708
        %4764 = vst [vmem:[#allocation2 + $0x808] sm:$0xff] %v4709
        %4765 = vst [vmem:[#allocation2 + $0x810] sm:$0xff] %v4710
        %4766 = vst.msk [vmem:[#allocation2 + $0x818] sm:$0xff] %vm4036, %v4686
        %4771 = vrot.lane.b32.xlu0 %v3999, 112
        %v4772 = vpop.permute.xlu0 %4771
        %4773 = vrot.lane.b32.xlu0 %v4000, 112
        %v4774 = vpop.permute.xlu0 %4773
        %4775 = vrot.lane.b32.xlu0 %v4001, 112
        %v4776 = vpop.permute.xlu0 %4775
        %4777 = vrot.lane.b32.xlu0 %v4002, 112
        %v4778 = vpop.permute.xlu0 %4777
        %4779 = vrot.lane.b32.xlu0 %v4003, 112
        %v4780 = vpop.permute.xlu0 %4779
        %4781 = vrot.lane.b32.xlu0 %v4004, 112
        %v4782 = vpop.permute.xlu0 %4781
        %4783 = vrot.lane.b32.xlu0 %v4005, 112
        %v4784 = vpop.permute.xlu0 %4783
        %4785 = vrot.lane.b32.xlu0 %v4007, 112
        %v4786 = vpop.permute.xlu0 %4785
        %4787 = vrot.lane.b32.xlu0 %v4008, 112
        %v4788 = vpop.permute.xlu0 %4787
        %4789 = vrot.lane.b32.xlu0 %v4009, 112
        %v4790 = vpop.permute.xlu0 %4789
        %4791 = vrot.lane.b32.xlu0 %v4010, 112
        %v4792 = vpop.permute.xlu0 %4791
        %4793 = vrot.lane.b32.xlu0 %v4011, 112
        %v4794 = vpop.permute.xlu0 %4793
        %4795 = vrot.lane.b32.xlu0 %v4012, 112
        %v4796 = vpop.permute.xlu0 %4795
        %4797 = vrot.lane.b32.xlu0 %v4013, 112
        %v4798 = vpop.permute.xlu0 %4797
        %4799 = vrot.lane.b32.xlu0 %v4015, 112
        %v4800 = vpop.permute.xlu0 %4799
        %4801 = vrot.lane.b32.xlu0 %v4016, 112
        %v4802 = vpop.permute.xlu0 %4801
        %4803 = vrot.lane.b32.xlu0 %v4017, 112
        %v4804 = vpop.permute.xlu0 %4803
        %4805 = vrot.lane.b32.xlu0 %v4018, 112
        %v4806 = vpop.permute.xlu0 %4805
        %4807 = vrot.lane.b32.xlu0 %v4019, 112
        %v4808 = vpop.permute.xlu0 %4807
        %4809 = vrot.lane.b32.xlu0 %v4020, 112
        %v4810 = vpop.permute.xlu0 %4809
        %4811 = vrot.lane.b32.xlu0 %v4021, 112
        %v4812 = vpop.permute.xlu0 %4811
        %4813 = vrot.lane.b32.xlu0 %v4023, 112
        %v4814 = vpop.permute.xlu0 %4813
        %4815 = vrot.lane.b32.xlu0 %v4024, 112
        %v4816 = vpop.permute.xlu0 %4815
        %4817 = vrot.lane.b32.xlu0 %v4025, 112
        %v4818 = vpop.permute.xlu0 %4817
        %4819 = vrot.lane.b32.xlu0 %v4026, 112
        %v4820 = vpop.permute.xlu0 %4819
        %4821 = vrot.lane.b32.xlu0 %v4027, 112
        %v4822 = vpop.permute.xlu0 %4821
        %4823 = vrot.lane.b32.xlu0 %v4028, 112
        %v4824 = vpop.permute.xlu0 %4823
        %4825 = vrot.lane.b32.xlu0 %v4029, 112
        %v4826 = vpop.permute.xlu0 %4825
        %v4827 = vsel %vm3249, %v4772, %v4774
        %v4828 = vsel %vm3249, %v4774, %v4776
        %v4829 = vsel %vm3249, %v4776, %v4778
        %v4830 = vsel %vm3249, %v4778, %v4780
        %v4831 = vsel %vm3249, %v4780, %v4782
        %v4832 = vsel %vm3249, %v4782, %v4784
        %v4833 = vsel %vm3249, %v4786, %v4788
        %v4834 = vsel %vm3249, %v4788, %v4790
        %v4835 = vsel %vm3249, %v4790, %v4792
        %v4836 = vsel %vm3249, %v4792, %v4794
        %v4837 = vsel %vm3249, %v4794, %v4796
        %v4838 = vsel %vm3249, %v4796, %v4798
        %v4839 = vsel %vm3249, %v4800, %v4802
        %v4840 = vsel %vm3249, %v4802, %v4804
        %v4841 = vsel %vm3249, %v4804, %v4806
        %v4842 = vsel %vm3249, %v4806, %v4808
        %v4843 = vsel %vm3249, %v4808, %v4810
        %v4844 = vsel %vm3249, %v4810, %v4812
        %v4845 = vsel %vm3249, %v4814, %v4816
        %v4846 = vsel %vm3249, %v4816, %v4818
        %v4847 = vsel %vm3249, %v4818, %v4820
        %v4848 = vsel %vm3249, %v4820, %v4822
        %v4849 = vsel %vm3249, %v4822, %v4824
        %v4850 = vsel %vm3249, %v4824, %v4826
        %4879 = vst [vmem:[#allocation2 + $0x840] sm:$0xff] %v4827
        %4880 = vst [vmem:[#allocation2 + $0x848] sm:$0xff] %v4828
        %4881 = vst [vmem:[#allocation2 + $0x850] sm:$0xff] %v4829
        %4882 = vst [vmem:[#allocation2 + $0x858] sm:$0xff] %v4830
        %4883 = vst [vmem:[#allocation2 + $0x860] sm:$0xff] %v4831
        %4884 = vst [vmem:[#allocation2 + $0x868] sm:$0xff] %v4832
        %4885 = vst.msk [vmem:[#allocation2 + $0x870] sm:$0xff] %vm4036, %v4784
        %4886 = vst [vmem:[#allocation2 + $0x898] sm:$0xff] %v4833
        %4887 = vst [vmem:[#allocation2 + $0x8a0] sm:$0xff] %v4834
        %4888 = vst [vmem:[#allocation2 + $0x8a8] sm:$0xff] %v4835
        %4889 = vst [vmem:[#allocation2 + $0x8b0] sm:$0xff] %v4836
        %4890 = vst [vmem:[#allocation2 + $0x8b8] sm:$0xff] %v4837
        %4891 = vst [vmem:[#allocation2 + $0x8c0] sm:$0xff] %v4838
        %4892 = vst.msk [vmem:[#allocation2 + $0x8c8] sm:$0xff] %vm4036, %v4798
        %4893 = vst [vmem:[#allocation2 + $0x8f0] sm:$0xff] %v4839
        %4894 = vst [vmem:[#allocation2 + $0x8f8] sm:$0xff] %v4840
        %4895 = vst [vmem:[#allocation2 + $0x900] sm:$0xff] %v4841
        %4896 = vst [vmem:[#allocation2 + $0x908] sm:$0xff] %v4842
        %4897 = vst [vmem:[#allocation2 + $0x910] sm:$0xff] %v4843
        %4898 = vst [vmem:[#allocation2 + $0x918] sm:$0xff] %v4844
        %4899 = vst.msk [vmem:[#allocation2 + $0x920] sm:$0xff] %vm4036, %v4812
        %4900 = vst [vmem:[#allocation2 + $0x948] sm:$0xff] %v4845
        %4901 = vst [vmem:[#allocation2 + $0x950] sm:$0xff] %v4846
        %4902 = vst [vmem:[#allocation2 + $0x958] sm:$0xff] %v4847
        %4903 = vst [vmem:[#allocation2 + $0x960] sm:$0xff] %v4848
        %4904 = vst [vmem:[#allocation2 + $0x968] sm:$0xff] %v4849
        %4905 = vst [vmem:[#allocation2 + $0x970] sm:$0xff] %v4850
        %4906 = vst.msk [vmem:[#allocation2 + $0x978] sm:$0xff] %vm4036, %v4826
        %4907 = vrot.lane.b32.xlu0 %v3999, 110
        %v4908 = vpop.permute.xlu0 %4907
        %4909 = vrot.lane.b32.xlu0 %v4000, 110
        %v4910 = vpop.permute.xlu0 %4909
        %4911 = vrot.lane.b32.xlu0 %v4001, 110
        %v4912 = vpop.permute.xlu0 %4911
        %4913 = vrot.lane.b32.xlu0 %v4002, 110
        %v4914 = vpop.permute.xlu0 %4913
        %4915 = vrot.lane.b32.xlu0 %v4003, 110
        %v4916 = vpop.permute.xlu0 %4915
        %4917 = vrot.lane.b32.xlu0 %v4004, 110
        %v4918 = vpop.permute.xlu0 %4917
        %4919 = vrot.lane.b32.xlu0 %v4005, 110
        %v4920 = vpop.permute.xlu0 %4919
        %4921 = vrot.lane.b32.xlu0 %v4007, 110
        %v4922 = vpop.permute.xlu0 %4921
        %4923 = vrot.lane.b32.xlu0 %v4008, 110
        %v4924 = vpop.permute.xlu0 %4923
        %4925 = vrot.lane.b32.xlu0 %v4009, 110
        %v4926 = vpop.permute.xlu0 %4925
        %4927 = vrot.lane.b32.xlu0 %v4010, 110
        %v4928 = vpop.permute.xlu0 %4927
        %4929 = vrot.lane.b32.xlu0 %v4011, 110
        %v4930 = vpop.permute.xlu0 %4929
        %4931 = vrot.lane.b32.xlu0 %v4012, 110
        %v4932 = vpop.permute.xlu0 %4931
        %4933 = vrot.lane.b32.xlu0 %v4013, 110
        %v4934 = vpop.permute.xlu0 %4933
        %4935 = vrot.lane.b32.xlu0 %v4015, 110
        %v4936 = vpop.permute.xlu0 %4935
        %4937 = vrot.lane.b32.xlu0 %v4016, 110
        %v4938 = vpop.permute.xlu0 %4937
        %4939 = vrot.lane.b32.xlu0 %v4017, 110
        %v4940 = vpop.permute.xlu0 %4939
        %4941 = vrot.lane.b32.xlu0 %v4018, 110
        %v4942 = vpop.permute.xlu0 %4941
        %4943 = vrot.lane.b32.xlu0 %v4019, 110
        %v4944 = vpop.permute.xlu0 %4943
        %4945 = vrot.lane.b32.xlu0 %v4020, 110
        %v4946 = vpop.permute.xlu0 %4945
        %4947 = vrot.lane.b32.xlu0 %v4021, 110
        %v4948 = vpop.permute.xlu0 %4947
        %4949 = vrot.lane.b32.xlu0 %v4023, 110
        %v4950 = vpop.permute.xlu0 %4949
        %4951 = vrot.lane.b32.xlu0 %v4024, 110
        %v4952 = vpop.permute.xlu0 %4951
        %4953 = vrot.lane.b32.xlu0 %v4025, 110
        %v4954 = vpop.permute.xlu0 %4953
        %4955 = vrot.lane.b32.xlu0 %v4026, 110
        %v4956 = vpop.permute.xlu0 %4955
        %4957 = vrot.lane.b32.xlu0 %v4027, 110
        %v4958 = vpop.permute.xlu0 %4957
        %4959 = vrot.lane.b32.xlu0 %v4028, 110
        %v4960 = vpop.permute.xlu0 %4959
        %4961 = vrot.lane.b32.xlu0 %v4029, 110
        %v4962 = vpop.permute.xlu0 %4961
        %v4963 = vsel %vm3328, %v4908, %v4910
        %v4964 = vsel %vm3328, %v4910, %v4912
        %v4965 = vsel %vm3328, %v4912, %v4914
        %v4966 = vsel %vm3328, %v4914, %v4916
        %v4967 = vsel %vm3328, %v4916, %v4918
        %v4968 = vsel %vm3328, %v4918, %v4920
        %v4969 = vsel %vm3328, %v4922, %v4924
        %v4970 = vsel %vm3328, %v4924, %v4926
        %v4971 = vsel %vm3328, %v4926, %v4928
        %v4972 = vsel %vm3328, %v4928, %v4930
        %v4973 = vsel %vm3328, %v4930, %v4932
        %v4974 = vsel %vm3328, %v4932, %v4934
        %v4975 = vsel %vm3328, %v4936, %v4938
        %v4976 = vsel %vm3328, %v4938, %v4940
        %v4977 = vsel %vm3328, %v4940, %v4942
        %v4978 = vsel %vm3328, %v4942, %v4944
        %v4979 = vsel %vm3328, %v4944, %v4946
        %v4980 = vsel %vm3328, %v4946, %v4948
        %v4981 = vsel %vm3328, %v4950, %v4952
        %v4982 = vsel %vm3328, %v4952, %v4954
        %v4983 = vsel %vm3328, %v4954, %v4956
        %v4984 = vsel %vm3328, %v4956, %v4958
        %v4985 = vsel %vm3328, %v4958, %v4960
        %v4986 = vsel %vm3328, %v4960, %v4962
        %5015 = vst [vmem:[#allocation2 + $0x9a0] sm:$0xff] %v4963
        %5016 = vst [vmem:[#allocation2 + $0x9a8] sm:$0xff] %v4964
        %5017 = vst [vmem:[#allocation2 + $0x9b0] sm:$0xff] %v4965
        %5018 = vst [vmem:[#allocation2 + $0x9b8] sm:$0xff] %v4966
        %5019 = vst [vmem:[#allocation2 + $0x9c0] sm:$0xff] %v4967
        %5020 = vst [vmem:[#allocation2 + $0x9c8] sm:$0xff] %v4968
        %5021 = vst.msk [vmem:[#allocation2 + $0x9d0] sm:$0xff] %vm4036, %v4920
        %5022 = vst [vmem:[#allocation2 + $0x9f8] sm:$0xff] %v4969
        %5023 = vst [vmem:[#allocation2 + $0xa00] sm:$0xff] %v4970
        %5024 = vst [vmem:[#allocation2 + $0xa08] sm:$0xff] %v4971
        %5025 = vst [vmem:[#allocation2 + $0xa10] sm:$0xff] %v4972
        %5026 = vst [vmem:[#allocation2 + $0xa18] sm:$0xff] %v4973
        %5027 = vst [vmem:[#allocation2 + $0xa20] sm:$0xff] %v4974
        %5028 = vst.msk [vmem:[#allocation2 + $0xa28] sm:$0xff] %vm4036, %v4934
        %5029 = vst [vmem:[#allocation2 + $0xa50] sm:$0xff] %v4975
        %5030 = vst [vmem:[#allocation2 + $0xa58] sm:$0xff] %v4976
        %5031 = vst [vmem:[#allocation2 + $0xa60] sm:$0xff] %v4977
        %5032 = vst [vmem:[#allocation2 + $0xa68] sm:$0xff] %v4978
        %5033 = vst [vmem:[#allocation2 + $0xa70] sm:$0xff] %v4979
        %5034 = vst [vmem:[#allocation2 + $0xa78] sm:$0xff] %v4980
        %5035 = vst.msk [vmem:[#allocation2 + $0xa80] sm:$0xff] %vm4036, %v4948
        %5036 = vst [vmem:[#allocation2 + $0xaa8] sm:$0xff] %v4981
        %5037 = vst [vmem:[#allocation2 + $0xab0] sm:$0xff] %v4982
        %5038 = vst [vmem:[#allocation2 + $0xab8] sm:$0xff] %v4983
        %5039 = vst [vmem:[#allocation2 + $0xac0] sm:$0xff] %v4984
        %5040 = vst [vmem:[#allocation2 + $0xac8] sm:$0xff] %v4985
        %5041 = vst [vmem:[#allocation2 + $0xad0] sm:$0xff] %v4986
        %5042 = vst.msk [vmem:[#allocation2 + $0xad8] sm:$0xff] %vm4036, %v4962
        %5043 = vrot.lane.b32.xlu0 %v3999, 108
        %v5044 = vpop.permute.xlu0 %5043
        %5045 = vrot.lane.b32.xlu0 %v4000, 108
        %v5046 = vpop.permute.xlu0 %5045
        %5047 = vrot.lane.b32.xlu0 %v4001, 108
        %v5048 = vpop.permute.xlu0 %5047
        %5049 = vrot.lane.b32.xlu0 %v4002, 108
        %v5050 = vpop.permute.xlu0 %5049
        %5051 = vrot.lane.b32.xlu0 %v4003, 108
        %v5052 = vpop.permute.xlu0 %5051
        %5053 = vrot.lane.b32.xlu0 %v4004, 108
        %v5054 = vpop.permute.xlu0 %5053
        %5055 = vrot.lane.b32.xlu0 %v4005, 108
        %v5056 = vpop.permute.xlu0 %5055
        %5057 = vrot.lane.b32.xlu0 %v4007, 108
        %v5058 = vpop.permute.xlu0 %5057
        %5059 = vrot.lane.b32.xlu0 %v4008, 108
        %v5060 = vpop.permute.xlu0 %5059
        %5061 = vrot.lane.b32.xlu0 %v4009, 108
        %v5062 = vpop.permute.xlu0 %5061
        %5063 = vrot.lane.b32.xlu0 %v4010, 108
        %v5064 = vpop.permute.xlu0 %5063
        %5065 = vrot.lane.b32.xlu0 %v4011, 108
        %v5066 = vpop.permute.xlu0 %5065
        %5067 = vrot.lane.b32.xlu0 %v4012, 108
        %v5068 = vpop.permute.xlu0 %5067
        %5069 = vrot.lane.b32.xlu0 %v4013, 108
        %v5070 = vpop.permute.xlu0 %5069
        %5071 = vrot.lane.b32.xlu0 %v4015, 108
        %v5072 = vpop.permute.xlu0 %5071
        %5073 = vrot.lane.b32.xlu0 %v4016, 108
        %v5074 = vpop.permute.xlu0 %5073
        %5075 = vrot.lane.b32.xlu0 %v4017, 108
        %v5076 = vpop.permute.xlu0 %5075
        %5077 = vrot.lane.b32.xlu0 %v4018, 108
        %v5078 = vpop.permute.xlu0 %5077
        %5079 = vrot.lane.b32.xlu0 %v4019, 108
        %v5080 = vpop.permute.xlu0 %5079
        %5081 = vrot.lane.b32.xlu0 %v4020, 108
        %v5082 = vpop.permute.xlu0 %5081
        %5083 = vrot.lane.b32.xlu0 %v4021, 108
        %v5084 = vpop.permute.xlu0 %5083
        %5085 = vrot.lane.b32.xlu0 %v4023, 108
        %v5086 = vpop.permute.xlu0 %5085
        %5087 = vrot.lane.b32.xlu0 %v4024, 108
        %v5088 = vpop.permute.xlu0 %5087
        %5089 = vrot.lane.b32.xlu0 %v4025, 108
        %v5090 = vpop.permute.xlu0 %5089
        %5091 = vrot.lane.b32.xlu0 %v4026, 108
        %v5092 = vpop.permute.xlu0 %5091
        %5093 = vrot.lane.b32.xlu0 %v4027, 108
        %v5094 = vpop.permute.xlu0 %5093
        %5095 = vrot.lane.b32.xlu0 %v4028, 108
        %v5096 = vpop.permute.xlu0 %5095
        %5097 = vrot.lane.b32.xlu0 %v4029, 108
        %v5098 = vpop.permute.xlu0 %5097
        %v5099 = vsel %vm3407, %v5044, %v5046
        %v5100 = vsel %vm3407, %v5046, %v5048
        %v5101 = vsel %vm3407, %v5048, %v5050
        %v5102 = vsel %vm3407, %v5050, %v5052
        %v5103 = vsel %vm3407, %v5052, %v5054
        %v5104 = vsel %vm3407, %v5054, %v5056
        %v5105 = vsel %vm3407, %v5058, %v5060
        %v5106 = vsel %vm3407, %v5060, %v5062
        %v5107 = vsel %vm3407, %v5062, %v5064
        %v5108 = vsel %vm3407, %v5064, %v5066
        %v5109 = vsel %vm3407, %v5066, %v5068
        %v5110 = vsel %vm3407, %v5068, %v5070
        %v5111 = vsel %vm3407, %v5072, %v5074
        %v5112 = vsel %vm3407, %v5074, %v5076
        %v5113 = vsel %vm3407, %v5076, %v5078
        %v5114 = vsel %vm3407, %v5078, %v5080
        %v5115 = vsel %vm3407, %v5080, %v5082
        %v5116 = vsel %vm3407, %v5082, %v5084
        %v5117 = vsel %vm3407, %v5086, %v5088
        %v5118 = vsel %vm3407, %v5088, %v5090
        %v5119 = vsel %vm3407, %v5090, %v5092
        %v5120 = vsel %vm3407, %v5092, %v5094
        %v5121 = vsel %vm3407, %v5094, %v5096
        %v5122 = vsel %vm3407, %v5096, %v5098
        %5151 = vst [vmem:[#allocation2 + $0xb00] sm:$0xff] %v5099
        %5152 = vst [vmem:[#allocation2 + $0xb08] sm:$0xff] %v5100
        %5153 = vst [vmem:[#allocation2 + $0xb10] sm:$0xff] %v5101
        %5154 = vst [vmem:[#allocation2 + $0xb18] sm:$0xff] %v5102
        %5155 = vst [vmem:[#allocation2 + $0xb20] sm:$0xff] %v5103
        %5156 = vst [vmem:[#allocation2 + $0xb28] sm:$0xff] %v5104
        %5157 = vst.msk [vmem:[#allocation2 + $0xb30] sm:$0xff] %vm4036, %v5056
        %5158 = vst [vmem:[#allocation2 + $0xb58] sm:$0xff] %v5105
        %5159 = vst [vmem:[#allocation2 + $0xb60] sm:$0xff] %v5106
        %5160 = vst [vmem:[#allocation2 + $0xb68] sm:$0xff] %v5107
        %5161 = vst [vmem:[#allocation2 + $0xb70] sm:$0xff] %v5108
        %5162 = vst [vmem:[#allocation2 + $0xb78] sm:$0xff] %v5109
        %5163 = vst [vmem:[#allocation2 + $0xb80] sm:$0xff] %v5110
        %5164 = vst.msk [vmem:[#allocation2 + $0xb88] sm:$0xff] %vm4036, %v5070
        %5165 = vst [vmem:[#allocation2 + $0xbb0] sm:$0xff] %v5111
        %5166 = vst [vmem:[#allocation2 + $0xbb8] sm:$0xff] %v5112
        %5167 = vst [vmem:[#allocation2 + $0xbc0] sm:$0xff] %v5113
        %5168 = vst [vmem:[#allocation2 + $0xbc8] sm:$0xff] %v5114
        %5169 = vst [vmem:[#allocation2 + $0xbd0] sm:$0xff] %v5115
        %5170 = vst [vmem:[#allocation2 + $0xbd8] sm:$0xff] %v5116
        %5171 = vst.msk [vmem:[#allocation2 + $0xbe0] sm:$0xff] %vm4036, %v5084
        %5172 = vst [vmem:[#allocation2 + $0xc08] sm:$0xff] %v5117
        %5173 = vst [vmem:[#allocation2 + $0xc10] sm:$0xff] %v5118
        %5174 = vst [vmem:[#allocation2 + $0xc18] sm:$0xff] %v5119
        %5175 = vst [vmem:[#allocation2 + $0xc20] sm:$0xff] %v5120
        %5176 = vst [vmem:[#allocation2 + $0xc28] sm:$0xff] %v5121
        %5177 = vst [vmem:[#allocation2 + $0xc30] sm:$0xff] %v5122
        %5178 = vst.msk [vmem:[#allocation2 + $0xc38] sm:$0xff] %vm4036, %v5098
        %v5179 = vld [vmem:[%s7] sm:$0xff]
        %v5180 = vld [vmem:[%s7 + $0x8] sm:$0xff]
        %v5181 = vld [vmem:[%s7 + $0x10] sm:$0xff]
        %v5182 = vld [vmem:[%s7 + $0x18] sm:$0xff]
        %v5183 = vld [vmem:[%s7 + $0x20] sm:$0xff]
        %v5184 = vld [vmem:[%s7 + $0x28] sm:$0xff]
        %v5185 = vld [vmem:[%s7 + $0x30] sm:$0xff]
        %v5186 = vld [vmem:[%s7 + $0x38] sm:$0xff]
        %v5187 = vld [vmem:[%s7 + $0x40] sm:$0xff]
        %v5188 = vld [vmem:[%s7 + $0x48] sm:$0xff]
        %v5189 = vld [vmem:[%s7 + $0x50] sm:$0xff]
        %v5190 = vld [vmem:[%s7 + $0x58] sm:$0xff]
        %v5191 = vld [vmem:[#allocation2] sm:$0xff]
        %v5192 = vld [vmem:[#allocation2 + $0x8] sm:$0xff]
        %v5193 = vld [vmem:[#allocation2 + $0x10] sm:$0xff]
        %v5194 = vld [vmem:[#allocation2 + $0x18] sm:$0xff]
        %v5195 = vld [vmem:[#allocation2 + $0x20] sm:$0xff]
        %v5196 = vld [vmem:[#allocation2 + $0x28] sm:$0xff]
        %v5197 = vld [vmem:[#allocation2 + $0x30] sm:$0xff]
        %v5198 = vld [vmem:[#allocation2 + $0x58] sm:$0xff]
        %v5199 = vld [vmem:[#allocation2 + $0x60] sm:$0xff]
        %v5200 = vld [vmem:[#allocation2 + $0x68] sm:$0xff]
        %v5201 = vld [vmem:[#allocation2 + $0x70] sm:$0xff]
        %v5202 = vld [vmem:[#allocation2 + $0x78] sm:$0xff]
        %v5203 = vld [vmem:[#allocation2 + $0x80] sm:$0xff]
        %v5204 = vld [vmem:[#allocation2 + $0x88] sm:$0xff]
        %v5205 = vld [vmem:[#allocation2 + $0xb0] sm:$0xff]
        %v5206 = vld [vmem:[#allocation2 + $0xb8] sm:$0xff]
        %v5207 = vld [vmem:[#allocation2 + $0xc0] sm:$0xff]
        %v5208 = vld [vmem:[#allocation2 + $0xc8] sm:$0xff]
        %v5209 = vld [vmem:[#allocation2 + $0xd0] sm:$0xff]
        %v5210 = vld [vmem:[#allocation2 + $0xd8] sm:$0xff]
        %v5211 = vld [vmem:[#allocation2 + $0xe0] sm:$0xff]
        %v5212 = vld [vmem:[#allocation2 + $0x108] sm:$0xff]
        %v5213 = vld [vmem:[#allocation2 + $0x110] sm:$0xff]
        %v5214 = vld [vmem:[#allocation2 + $0x118] sm:$0xff]
        %v5215 = vld [vmem:[#allocation2 + $0x120] sm:$0xff]
        %v5216 = vld [vmem:[#allocation2 + $0x128] sm:$0xff]
        %v5217 = vld [vmem:[#allocation2 + $0x130] sm:$0xff]
        %v5218 = vld [vmem:[#allocation2 + $0x138] sm:$0xff]
        %v5219 = vld [vmem:[#allocation2 + $0x160] sm:$0xff]
        %v5220 = vld [vmem:[#allocation2 + $0x168] sm:$0xff]
        %v5221 = vld [vmem:[#allocation2 + $0x170] sm:$0xff]
        %v5222 = vld [vmem:[#allocation2 + $0x178] sm:$0xff]
        %v5223 = vld [vmem:[#allocation2 + $0x180] sm:$0xff]
        %v5224 = vld [vmem:[#allocation2 + $0x188] sm:$0xff]
        %v5225 = vld [vmem:[#allocation2 + $0x190] sm:$0xff]
        %v5226 = vld [vmem:[#allocation2 + $0x1b8] sm:$0xff]
        %v5227 = vld [vmem:[#allocation2 + $0x1c0] sm:$0xff]
        %v5228 = vld [vmem:[#allocation2 + $0x1c8] sm:$0xff]
        %v5229 = vld [vmem:[#allocation2 + $0x1d0] sm:$0xff]
        %v5230 = vld [vmem:[#allocation2 + $0x1d8] sm:$0xff]
        %v5231 = vld [vmem:[#allocation2 + $0x1e0] sm:$0xff]
        %v5232 = vld [vmem:[#allocation2 + $0x1e8] sm:$0xff]
        %v5233 = vld [vmem:[#allocation2 + $0x210] sm:$0xff]
        %v5234 = vld [vmem:[#allocation2 + $0x218] sm:$0xff]
        %v5235 = vld [vmem:[#allocation2 + $0x220] sm:$0xff]
        %v5236 = vld [vmem:[#allocation2 + $0x228] sm:$0xff]
        %v5237 = vld [vmem:[#allocation2 + $0x230] sm:$0xff]
        %v5238 = vld [vmem:[#allocation2 + $0x238] sm:$0xff]
        %v5239 = vld [vmem:[#allocation2 + $0x240] sm:$0xff]
        %v5240 = vld [vmem:[#allocation2 + $0x268] sm:$0xff]
        %v5241 = vld [vmem:[#allocation2 + $0x270] sm:$0xff]
        %v5242 = vld [vmem:[#allocation2 + $0x278] sm:$0xff]
        %v5243 = vld [vmem:[#allocation2 + $0x280] sm:$0xff]
        %v5244 = vld [vmem:[#allocation2 + $0x288] sm:$0xff]
        %v5245 = vld [vmem:[#allocation2 + $0x290] sm:$0xff]
        %v5246 = vld [vmem:[#allocation2 + $0x298] sm:$0xff]
        %v5247 = vld [vmem:[#allocation2 + $0x2c0] sm:$0xff]
        %v5248 = vld [vmem:[#allocation2 + $0x2c8] sm:$0xff]
        %v5249 = vld [vmem:[#allocation2 + $0x2d0] sm:$0xff]
        %v5250 = vld [vmem:[#allocation2 + $0x2d8] sm:$0xff]
        %v5251 = vld [vmem:[#allocation2 + $0x2e0] sm:$0xff]
        %v5252 = vld [vmem:[#allocation2 + $0x2e8] sm:$0xff]
        %v5253 = vld [vmem:[#allocation2 + $0x2f0] sm:$0xff]
        %v5254 = vld [vmem:[#allocation2 + $0x318] sm:$0xff]
        %v5255 = vld [vmem:[#allocation2 + $0x320] sm:$0xff]
        %v5256 = vld [vmem:[#allocation2 + $0x328] sm:$0xff]
        %v5257 = vld [vmem:[#allocation2 + $0x330] sm:$0xff]
        %v5258 = vld [vmem:[#allocation2 + $0x338] sm:$0xff]
        %v5259 = vld [vmem:[#allocation2 + $0x340] sm:$0xff]
        %v5260 = vld [vmem:[#allocation2 + $0x348] sm:$0xff]
        %v5261 = vld [vmem:[#allocation2 + $0x370] sm:$0xff]
        %v5262 = vld [vmem:[#allocation2 + $0x378] sm:$0xff]
        %v5263 = vld [vmem:[#allocation2 + $0x380] sm:$0xff]
        %v5264 = vld [vmem:[#allocation2 + $0x388] sm:$0xff]
        %v5265 = vld [vmem:[#allocation2 + $0x390] sm:$0xff]
        %v5266 = vld [vmem:[#allocation2 + $0x398] sm:$0xff]
        %v5267 = vld [vmem:[#allocation2 + $0x3a0] sm:$0xff]
        %v5268 = vld [vmem:[#allocation2 + $0x3c8] sm:$0xff]
        %v5269 = vld [vmem:[#allocation2 + $0x3d0] sm:$0xff]
        %v5270 = vld [vmem:[#allocation2 + $0x3d8] sm:$0xff]
        %v5271 = vld [vmem:[#allocation2 + $0x3e0] sm:$0xff]
        %v5272 = vld [vmem:[#allocation2 + $0x3e8] sm:$0xff]
        %v5273 = vld [vmem:[#allocation2 + $0x3f0] sm:$0xff]
        %v5274 = vld [vmem:[#allocation2 + $0x3f8] sm:$0xff]
        %v5275 = vld [vmem:[#allocation2 + $0x420] sm:$0xff]
        %v5276 = vld [vmem:[#allocation2 + $0x428] sm:$0xff]
        %v5277 = vld [vmem:[#allocation2 + $0x430] sm:$0xff]
        %v5278 = vld [vmem:[#allocation2 + $0x438] sm:$0xff]
        %v5279 = vld [vmem:[#allocation2 + $0x440] sm:$0xff]
        %v5280 = vld [vmem:[#allocation2 + $0x448] sm:$0xff]
        %v5281 = vld [vmem:[#allocation2 + $0x450] sm:$0xff]
        %v5282 = vld [vmem:[#allocation2 + $0x478] sm:$0xff]
        %v5283 = vld [vmem:[#allocation2 + $0x480] sm:$0xff]
        %v5284 = vld [vmem:[#allocation2 + $0x488] sm:$0xff]
        %v5285 = vld [vmem:[#allocation2 + $0x490] sm:$0xff]
        %v5286 = vld [vmem:[#allocation2 + $0x498] sm:$0xff]
        %v5287 = vld [vmem:[#allocation2 + $0x4a0] sm:$0xff]
        %v5288 = vld [vmem:[#allocation2 + $0x4a8] sm:$0xff]
        %v5289 = vld [vmem:[#allocation2 + $0x4d0] sm:$0xff]
        %v5290 = vld [vmem:[#allocation2 + $0x4d8] sm:$0xff]
        %v5291 = vld [vmem:[#allocation2 + $0x4e0] sm:$0xff]
        %v5292 = vld [vmem:[#allocation2 + $0x4e8] sm:$0xff]
        %v5293 = vld [vmem:[#allocation2 + $0x4f0] sm:$0xff]
        %v5294 = vld [vmem:[#allocation2 + $0x4f8] sm:$0xff]
        %v5295 = vld [vmem:[#allocation2 + $0x500] sm:$0xff]
        %v5296 = vld [vmem:[#allocation2 + $0x528] sm:$0xff]
        %v5297 = vld [vmem:[#allocation2 + $0x530] sm:$0xff]
        %v5298 = vld [vmem:[#allocation2 + $0x538] sm:$0xff]
        %v5299 = vld [vmem:[#allocation2 + $0x540] sm:$0xff]
        %v5300 = vld [vmem:[#allocation2 + $0x548] sm:$0xff]
        %v5301 = vld [vmem:[#allocation2 + $0x550] sm:$0xff]
        %v5302 = vld [vmem:[#allocation2 + $0x558] sm:$0xff]
        %v5303 = vld [vmem:[#allocation2 + $0x580] sm:$0xff]
        %v5304 = vld [vmem:[#allocation2 + $0x588] sm:$0xff]
        %v5305 = vld [vmem:[#allocation2 + $0x590] sm:$0xff]
        %v5306 = vld [vmem:[#allocation2 + $0x598] sm:$0xff]
        %v5307 = vld [vmem:[#allocation2 + $0x5a0] sm:$0xff]
        %v5308 = vld [vmem:[#allocation2 + $0x5a8] sm:$0xff]
        %v5309 = vld [vmem:[#allocation2 + $0x5b0] sm:$0xff]
        %v5310 = vld [vmem:[#allocation2 + $0x5d8] sm:$0xff]
        %v5311 = vld [vmem:[#allocation2 + $0x5e0] sm:$0xff]
        %v5312 = vld [vmem:[#allocation2 + $0x5e8] sm:$0xff]
        %v5313 = vld [vmem:[#allocation2 + $0x5f0] sm:$0xff]
        %v5314 = vld [vmem:[#allocation2 + $0x5f8] sm:$0xff]
        %v5315 = vld [vmem:[#allocation2 + $0x600] sm:$0xff]
        %v5316 = vld [vmem:[#allocation2 + $0x608] sm:$0xff]
        %v5317 = vld [vmem:[#allocation2 + $0x630] sm:$0xff]
        %v5318 = vld [vmem:[#allocation2 + $0x638] sm:$0xff]
        %v5319 = vld [vmem:[#allocation2 + $0x640] sm:$0xff]
        %v5320 = vld [vmem:[#allocation2 + $0x648] sm:$0xff]
        %v5321 = vld [vmem:[#allocation2 + $0x650] sm:$0xff]
        %v5322 = vld [vmem:[#allocation2 + $0x658] sm:$0xff]
        %v5323 = vld [vmem:[#allocation2 + $0x660] sm:$0xff]
        %v5324 = vld [vmem:[#allocation2 + $0x688] sm:$0xff]
        %v5325 = vld [vmem:[#allocation2 + $0x690] sm:$0xff]
        %v5326 = vld [vmem:[#allocation2 + $0x698] sm:$0xff]
        %v5327 = vld [vmem:[#allocation2 + $0x6a0] sm:$0xff]
        %v5328 = vld [vmem:[#allocation2 + $0x6a8] sm:$0xff]
        %v5329 = vld [vmem:[#allocation2 + $0x6b0] sm:$0xff]
        %v5330 = vld [vmem:[#allocation2 + $0x6b8] sm:$0xff]
        %v5331 = vld [vmem:[#allocation2 + $0x6e0] sm:$0xff]
        %v5332 = vld [vmem:[#allocation2 + $0x6e8] sm:$0xff]
        %v5333 = vld [vmem:[#allocation2 + $0x6f0] sm:$0xff]
        %v5334 = vld [vmem:[#allocation2 + $0x6f8] sm:$0xff]
        %v5335 = vld [vmem:[#allocation2 + $0x700] sm:$0xff]
        %v5336 = vld [vmem:[#allocation2 + $0x708] sm:$0xff]
        %v5337 = vld [vmem:[#allocation2 + $0x710] sm:$0xff]
        %v5338 = vld [vmem:[#allocation2 + $0x738] sm:$0xff]
        %v5339 = vld [vmem:[#allocation2 + $0x740] sm:$0xff]
        %v5340 = vld [vmem:[#allocation2 + $0x748] sm:$0xff]
        %v5341 = vld [vmem:[#allocation2 + $0x750] sm:$0xff]
        %v5342 = vld [vmem:[#allocation2 + $0x758] sm:$0xff]
        %v5343 = vld [vmem:[#allocation2 + $0x760] sm:$0xff]
        %v5344 = vld [vmem:[#allocation2 + $0x768] sm:$0xff]
        %v5345 = vld [vmem:[#allocation2 + $0x790] sm:$0xff]
        %v5346 = vld [vmem:[#allocation2 + $0x798] sm:$0xff]
        %v5347 = vld [vmem:[#allocation2 + $0x7a0] sm:$0xff]
        %v5348 = vld [vmem:[#allocation2 + $0x7a8] sm:$0xff]
        %v5349 = vld [vmem:[#allocation2 + $0x7b0] sm:$0xff]
        %v5350 = vld [vmem:[#allocation2 + $0x7b8] sm:$0xff]
        %v5351 = vld [vmem:[#allocation2 + $0x7c0] sm:$0xff]
        %v5352 = vld [vmem:[#allocation2 + $0x7e8] sm:$0xff]
        %v5353 = vld [vmem:[#allocation2 + $0x7f0] sm:$0xff]
        %v5354 = vld [vmem:[#allocation2 + $0x7f8] sm:$0xff]
        %v5355 = vld [vmem:[#allocation2 + $0x800] sm:$0xff]
        %v5356 = vld [vmem:[#allocation2 + $0x808] sm:$0xff]
        %v5357 = vld [vmem:[#allocation2 + $0x810] sm:$0xff]
        %v5358 = vld [vmem:[#allocation2 + $0x818] sm:$0xff]
        %v5359 = vld [vmem:[#allocation2 + $0x840] sm:$0xff]
        %v5360 = vld [vmem:[#allocation2 + $0x848] sm:$0xff]
        %v5361 = vld [vmem:[#allocation2 + $0x850] sm:$0xff]
        %v5362 = vld [vmem:[#allocation2 + $0x858] sm:$0xff]
        %v5363 = vld [vmem:[#allocation2 + $0x860] sm:$0xff]
        %v5364 = vld [vmem:[#allocation2 + $0x868] sm:$0xff]
        %v5365 = vld [vmem:[#allocation2 + $0x870] sm:$0xff]
        %v5366 = vld [vmem:[#allocation2 + $0x898] sm:$0xff]
        %v5367 = vld [vmem:[#allocation2 + $0x8a0] sm:$0xff]
        %v5368 = vld [vmem:[#allocation2 + $0x8a8] sm:$0xff]
        %v5369 = vld [vmem:[#allocation2 + $0x8b0] sm:$0xff]
        %v5370 = vld [vmem:[#allocation2 + $0x8b8] sm:$0xff]
        %v5371 = vld [vmem:[#allocation2 + $0x8c0] sm:$0xff]
        %v5372 = vld [vmem:[#allocation2 + $0x8c8] sm:$0xff]
        %v5373 = vld [vmem:[#allocation2 + $0x8f0] sm:$0xff]
        %v5374 = vld [vmem:[#allocation2 + $0x8f8] sm:$0xff]
        %v5375 = vld [vmem:[#allocation2 + $0x900] sm:$0xff]
        %v5376 = vld [vmem:[#allocation2 + $0x908] sm:$0xff]
        %v5377 = vld [vmem:[#allocation2 + $0x910] sm:$0xff]
        %v5378 = vld [vmem:[#allocation2 + $0x918] sm:$0xff]
        %v5379 = vld [vmem:[#allocation2 + $0x920] sm:$0xff]
        %v5380 = vld [vmem:[#allocation2 + $0x948] sm:$0xff]
        %v5381 = vld [vmem:[#allocation2 + $0x950] sm:$0xff]
        %v5382 = vld [vmem:[#allocation2 + $0x958] sm:$0xff]
        %v5383 = vld [vmem:[#allocation2 + $0x960] sm:$0xff]
        %v5384 = vld [vmem:[#allocation2 + $0x968] sm:$0xff]
        %v5385 = vld [vmem:[#allocation2 + $0x970] sm:$0xff]
        %v5386 = vld [vmem:[#allocation2 + $0x978] sm:$0xff]
        %v5387 = vld [vmem:[#allocation2 + $0x9a0] sm:$0xff]
        %v5388 = vld [vmem:[#allocation2 + $0x9a8] sm:$0xff]
        %v5389 = vld [vmem:[#allocation2 + $0x9b0] sm:$0xff]
        %v5390 = vld [vmem:[#allocation2 + $0x9b8] sm:$0xff]
        %v5391 = vld [vmem:[#allocation2 + $0x9c0] sm:$0xff]
        %v5392 = vld [vmem:[#allocation2 + $0x9c8] sm:$0xff]
        %v5393 = vld [vmem:[#allocation2 + $0x9d0] sm:$0xff]
        %v5394 = vld [vmem:[#allocation2 + $0x9f8] sm:$0xff]
        %v5395 = vld [vmem:[#allocation2 + $0xa00] sm:$0xff]
        %v5396 = vld [vmem:[#allocation2 + $0xa08] sm:$0xff]
        %v5397 = vld [vmem:[#allocation2 + $0xa10] sm:$0xff]
        %v5398 = vld [vmem:[#allocation2 + $0xa18] sm:$0xff]
        %v5399 = vld [vmem:[#allocation2 + $0xa20] sm:$0xff]
        %v5400 = vld [vmem:[#allocation2 + $0xa28] sm:$0xff]
        %v5401 = vld [vmem:[#allocation2 + $0xa50] sm:$0xff]
        %v5402 = vld [vmem:[#allocation2 + $0xa58] sm:$0xff]
        %v5403 = vld [vmem:[#allocation2 + $0xa60] sm:$0xff]
        %v5404 = vld [vmem:[#allocation2 + $0xa68] sm:$0xff]
        %v5405 = vld [vmem:[#allocation2 + $0xa70] sm:$0xff]
        %v5406 = vld [vmem:[#allocation2 + $0xa78] sm:$0xff]
        %v5407 = vld [vmem:[#allocation2 + $0xa80] sm:$0xff]
        %v5408 = vld [vmem:[#allocation2 + $0xaa8] sm:$0xff]
        %v5409 = vld [vmem:[#allocation2 + $0xab0] sm:$0xff]
        %v5410 = vld [vmem:[#allocation2 + $0xab8] sm:$0xff]
        %v5411 = vld [vmem:[#allocation2 + $0xac0] sm:$0xff]
        %v5412 = vld [vmem:[#allocation2 + $0xac8] sm:$0xff]
        %v5413 = vld [vmem:[#allocation2 + $0xad0] sm:$0xff]
        %v5414 = vld [vmem:[#allocation2 + $0xad8] sm:$0xff]
        %v5415 = vld [vmem:[#allocation2 + $0xb00] sm:$0xff]
        %v5416 = vld [vmem:[#allocation2 + $0xb08] sm:$0xff]
        %v5417 = vld [vmem:[#allocation2 + $0xb10] sm:$0xff]
        %v5418 = vld [vmem:[#allocation2 + $0xb18] sm:$0xff]
        %v5419 = vld [vmem:[#allocation2 + $0xb20] sm:$0xff]
        %v5420 = vld [vmem:[#allocation2 + $0xb28] sm:$0xff]
        %v5421 = vld [vmem:[#allocation2 + $0xb30] sm:$0xff]
        %v5422 = vld [vmem:[#allocation2 + $0xb58] sm:$0xff]
        %v5423 = vld [vmem:[#allocation2 + $0xb60] sm:$0xff]
        %v5424 = vld [vmem:[#allocation2 + $0xb68] sm:$0xff]
        %v5425 = vld [vmem:[#allocation2 + $0xb70] sm:$0xff]
        %v5426 = vld [vmem:[#allocation2 + $0xb78] sm:$0xff]
        %v5427 = vld [vmem:[#allocation2 + $0xb80] sm:$0xff]
        %v5428 = vld [vmem:[#allocation2 + $0xb88] sm:$0xff]
        %v5429 = vld [vmem:[#allocation2 + $0xbb0] sm:$0xff]
        %v5430 = vld [vmem:[#allocation2 + $0xbb8] sm:$0xff]
        %v5431 = vld [vmem:[#allocation2 + $0xbc0] sm:$0xff]
        %v5432 = vld [vmem:[#allocation2 + $0xbc8] sm:$0xff]
        %v5433 = vld [vmem:[#allocation2 + $0xbd0] sm:$0xff]
        %v5434 = vld [vmem:[#allocation2 + $0xbd8] sm:$0xff]
        %v5435 = vld [vmem:[#allocation2 + $0xbe0] sm:$0xff]
        %v5436 = vld [vmem:[#allocation2 + $0xc08] sm:$0xff]
        %v5437 = vld [vmem:[#allocation2 + $0xc10] sm:$0xff]
        %v5438 = vld [vmem:[#allocation2 + $0xc18] sm:$0xff]
        %v5439 = vld [vmem:[#allocation2 + $0xc20] sm:$0xff]
        %v5440 = vld [vmem:[#allocation2 + $0xc28] sm:$0xff]
        %v5441 = vld [vmem:[#allocation2 + $0xc30] sm:$0xff]
        %v5442 = vld [vmem:[#allocation2 + $0xc38] sm:$0xff]
        %v5443 = vld [vmem:[%s8] sm:$0xff]
        %v5444 = vld [vmem:[%s8 + $0x8] sm:$0xff]
        %v5445 = vld [vmem:[%s8 + $0x10] sm:$0xff]
        %v5446 = vld [vmem:[%s8 + $0x18] sm:$0xff]
        %5448 = vset.pattern.permute.xlu0 0
        %5449 = vperm.xlu0 %5448, %v5443
        %v5450 = vpop.permute.xlu0 %5449
        %5453 = vset.pattern.permute.xlu0 0
        %5454 = vperm.xlu0 %5453, %v5444
        %v5455 = vpop.permute.xlu0 %5454
        %5458 = vset.pattern.permute.xlu0 0
        %5459 = vperm.xlu0 %5458, %v5445
        %v5460 = vpop.permute.xlu0 %5459
        %5463 = vset.pattern.permute.xlu0 0
        %5464 = vperm.xlu0 %5463, %v5446
        %v5465 = vpop.permute.xlu0 %5464
        %vm5467 = vcmask 261120
        %v5469 = vsel %vm5467, %v5181, 0
        %v5472 = vsel %vm5467, %v5184, 0
        %v5475 = vsel %vm5467, %v5187, 0
        %v5478 = vsel %vm5467, %v5190, 0
        %5480 = vmatprep.subr.mxu0 %v5297
        %5481 = vmatpush1.msra.mxu0 %v5296
        %5482 = vmatprep.subr.mxu0 %v5290
        %5483 = vmatpush1.msra.mxu0 %v5289
        %5484 = vmatprep.subr.mxu0 %v5283
        %5485 = vmatpush1.msra.mxu0 %v5282
        %5486 = vmatprep.subr.mxu0 %v5276
        %5487 = vmatpush1.msra.mxu0 %v5275
        %5488 = vmatprep.subr.mxu0 %v5269
        %5489 = vmatpush1.msra.mxu0 %v5268
        %5490 = vmatprep.subr.mxu0 %v5262
        %5491 = vmatpush1.msra.mxu0 %v5261
        %5492 = vmatprep.subr.mxu0 %v5255
        %5493 = vmatpush1.msra.mxu0 %v5254
        %5494 = vmatprep.subr.mxu0 %v5248
        %5495 = vmatpush1.msra.mxu0 %v5247
        %5496 = vmatprep.subr.mxu0 %v5241
        %5497 = vmatpush1.msra.mxu0 %v5240
        %5498 = vmatprep.subr.mxu0 %v5234
        %5499 = vmatpush1.msra.mxu0 %v5233
        %5500 = vmatprep.subr.mxu0 %v5227
        %5501 = vmatpush1.msra.mxu0 %v5226
        %5502 = vmatprep.subr.mxu0 %v5220
        %5503 = vmatpush1.msra.mxu0 %v5219
        %5504 = vmatprep.subr.mxu0 %v5213
        %5505 = vmatpush1.msra.mxu0 %v5212
        %5506 = vmatprep.subr.mxu0 %v5206
        %5507 = vmatpush1.msra.mxu0 %v5205
        %5508 = vmatprep.subr.mxu0 %v5199
        %5509 = vmatpush1.msra.mxu0 %v5198
        %5510 = vmatprep.subr.mxu0 %v5192
        %5511 = vmatpush1.msra.mxu0 %v5191
        %5512 = vmatprep.subr.mxu0 %v5409
        %5513 = vmatpush2.msra.mxu0 %v5408
        %5514 = vmatprep.subr.mxu0 %v5402
        %5515 = vmatpush2.msra.mxu0 %v5401
        %5516 = vmatprep.subr.mxu0 %v5395
        %5517 = vmatpush2.msra.mxu0 %v5394
        %5518 = vmatprep.subr.mxu0 %v5388
        %5519 = vmatpush2.msra.mxu0 %v5387
        %5520 = vmatprep.subr.mxu0 %v5381
        %5521 = vmatpush2.msra.mxu0 %v5380
        %5522 = vmatprep.subr.mxu0 %v5374
        %5523 = vmatpush2.msra.mxu0 %v5373
        %5524 = vmatprep.subr.mxu0 %v5367
        %5525 = vmatpush2.msra.mxu0 %v5366
        %5526 = vmatprep.subr.mxu0 %v5360
        %5527 = vmatpush2.msra.mxu0 %v5359
        %5528 = vmatprep.subr.mxu0 %v5353
        %5529 = vmatpush2.msra.mxu0 %v5352
        %5530 = vmatprep.subr.mxu0 %v5346
        %5531 = vmatpush2.msra.mxu0 %v5345
        %5532 = vmatprep.subr.mxu0 %v5339
        %5533 = vmatpush2.msra.mxu0 %v5338
        %5534 = vmatprep.subr.mxu0 %v5332
        %5535 = vmatpush2.msra.mxu0 %v5331
        %5536 = vmatprep.subr.mxu0 %v5325
        %5537 = vmatpush2.msra.mxu0 %v5324
        %5538 = vmatprep.subr.mxu0 %v5318
        %5539 = vmatpush2.msra.mxu0 %v5317
        %5540 = vmatprep.subr.mxu0 %v5311
        %5541 = vmatpush2.msra.mxu0 %v5310
        %5542 = vmatprep.subr.mxu0 %v5304
        %5543 = vmatpush2.msra.mxu0 %v5303
        %5544 = vmatprep.mubr.f32.mxu0 %v5180
        %5545 = vmatmul.mubr.f32.gmra.mxu0 %v5179
        %v5546 = vpop.f32.mrf.mxu0
        %v5547 = vadd.f32 %v5450, %v5546
        %v5548 = vpop.f32.mrf.mxu0
        %v5549 = vadd.f32 %v5450, %v5548
        %5550 = vmatprep.mubr.f32.mxu0 %v5183
        %5551 = vmatmul.mubr.f32.gmra.mxu0 %v5182
        %v5552 = vpop.f32.mrf.mxu0
        %v5553 = vadd.f32 %v5455, %v5552
        %v5554 = vpop.f32.mrf.mxu0
        %v5555 = vadd.f32 %v5455, %v5554
        %5556 = vmatprep.mubr.f32.mxu0 %v5186
        %5557 = vmatmul.mubr.f32.gmra.mxu0 %v5185
        %v5558 = vpop.f32.mrf.mxu0
        %v5559 = vadd.f32 %v5460, %v5558
        %v5560 = vpop.f32.mrf.mxu0
        %v5561 = vadd.f32 %v5460, %v5560
        %5562 = vmatprep.mubr.f32.mxu0 %v5189
        %5563 = vmatmul.mubr.f32.gmra.mxu0 %v5188
        %v5564 = vpop.f32.mrf.mxu0
        %v5565 = vadd.f32 %v5465, %v5564
        %v5566 = vpop.f32.mrf.mxu0
        %v5567 = vadd.f32 %v5465, %v5566
        %5568 = vdwg.mxu0
        %5569 = vmatprep.subr.mxu0 0.0
        %5570 = vmatpush1.msra.mxu0 0.0
        %5571 = vmatprep.subr.mxu0 0.0
        %5572 = vmatpush1.msra.mxu0 0.0
        %5573 = vmatprep.subr.mxu0 0.0
        %5574 = vmatpush1.msra.mxu0 0.0
        %5575 = vmatprep.subr.mxu0 0.0
        %5576 = vmatpush1.msra.mxu0 0.0
        %5577 = vmatprep.subr.mxu0 0.0
        %5578 = vmatpush1.msra.mxu0 0.0
        %5579 = vmatprep.subr.mxu0 0.0
        %5580 = vmatpush1.msra.mxu0 0.0
        %5581 = vmatprep.subr.mxu0 0.0
        %5582 = vmatpush1.msra.mxu0 0.0
        %5583 = vmatprep.subr.mxu0 0.0
        %5584 = vmatpush1.msra.mxu0 0.0
        %5585 = vmatprep.subr.mxu0 0.0
        %5586 = vmatpush1.msra.mxu0 0.0
        %5587 = vmatprep.subr.mxu0 0.0
        %5588 = vmatpush1.msra.mxu0 0.0
        %5589 = vmatprep.subr.mxu0 0.0
        %5590 = vmatpush1.msra.mxu0 0.0
        %5591 = vmatprep.subr.mxu0 0.0
        %5592 = vmatpush1.msra.mxu0 0.0
        %5593 = vmatprep.subr.mxu0 %v5437
        %5594 = vmatpush1.msra.mxu0 %v5436
        %5595 = vmatprep.subr.mxu0 %v5430
        %5596 = vmatpush1.msra.mxu0 %v5429
        %5597 = vmatprep.subr.mxu0 %v5423
        %5598 = vmatpush1.msra.mxu0 %v5422
        %5599 = vmatprep.subr.mxu0 %v5416
        %5600 = vmatpush1.msra.mxu0 %v5415
        %5601 = vmatprep.subr.mxu0 0.0
        %5602 = vmatpush2.msra.mxu0 0.0
        %5603 = vmatprep.subr.mxu0 0.0
        %5604 = vmatpush2.msra.mxu0 0.0
        %5605 = vmatprep.subr.mxu0 0.0
        %5606 = vmatpush2.msra.mxu0 0.0
        %5607 = vmatprep.subr.mxu0 0.0
        %5608 = vmatpush2.msra.mxu0 0.0
        %5609 = vmatprep.subr.mxu0 0.0
        %5610 = vmatpush2.msra.mxu0 0.0
        %5611 = vmatprep.subr.mxu0 0.0
        %5612 = vmatpush2.msra.mxu0 0.0
        %5613 = vmatprep.subr.mxu0 0.0
        %5614 = vmatpush2.msra.mxu0 0.0
        %5615 = vmatprep.subr.mxu0 0.0
        %5616 = vmatpush2.msra.mxu0 0.0
        %5617 = vmatprep.subr.mxu0 0.0
        %5618 = vmatpush2.msra.mxu0 0.0
        %5619 = vmatprep.subr.mxu0 0.0
        %5620 = vmatpush2.msra.mxu0 0.0
        %5621 = vmatprep.subr.mxu0 0.0
        %5622 = vmatpush2.msra.mxu0 0.0
        %5623 = vmatprep.subr.mxu0 0.0
        %5624 = vmatpush2.msra.mxu0 0.0
        %5625 = vmatprep.subr.mxu0 0.0
        %5626 = vmatpush2.msra.mxu0 0.0
        %5627 = vmatprep.subr.mxu0 0.0
        %5628 = vmatpush2.msra.mxu0 0.0
        %5629 = vmatprep.subr.mxu0 0.0
        %5630 = vmatpush2.msra.mxu0 0.0
        %5631 = vmatprep.subr.mxu0 0.0
        %5632 = vmatpush2.msra.mxu0 0.0
        %5633 = vmatprep.mubr.f32.mxu0 0.0
        %5634 = vmatmul.mubr.f32.gmra.mxu0 %v5469
        %v5635 = vpop.f32.mrf.mxu0
        %v5636 = vadd.f32 %v5547, %v5635
        %v5637 = vpop.f32.mrf.mxu0
        %v5638 = vadd.f32 %v5549, %v5637
        %5639 = vmatprep.mubr.f32.mxu0 0.0
        %5640 = vmatmul.mubr.f32.gmra.mxu0 %v5472
        %v5641 = vpop.f32.mrf.mxu0
        %v5642 = vadd.f32 %v5553, %v5641
        %v5643 = vpop.f32.mrf.mxu0
        %v5644 = vadd.f32 %v5555, %v5643
        %5645 = vmatprep.mubr.f32.mxu0 0.0
        %5646 = vmatmul.mubr.f32.gmra.mxu0 %v5475
        %v5647 = vpop.f32.mrf.mxu0
        %v5648 = vadd.f32 %v5559, %v5647
        %v5649 = vpop.f32.mrf.mxu0
        %v5650 = vadd.f32 %v5561, %v5649
        %5651 = vmatprep.mubr.f32.mxu0 0.0
        %5652 = vmatmul.mubr.f32.gmra.mxu0 %v5478
        %v5653 = vpop.f32.mrf.mxu0
        %v5654 = vadd.f32 %v5565, %v5653
        %v5655 = vpop.f32.mrf.mxu0
        %v5656 = vadd.f32 %v5567, %v5655
        %5657 = vdwg.mxu0
        %5658 = vmatprep.subr.mxu0 %v5299
        %5659 = vmatpush1.msra.mxu0 %v5298
        %5660 = vmatprep.subr.mxu0 %v5292
        %5661 = vmatpush1.msra.mxu0 %v5291
        %5662 = vmatprep.subr.mxu0 %v5285
        %5663 = vmatpush1.msra.mxu0 %v5284
        %5664 = vmatprep.subr.mxu0 %v5278
        %5665 = vmatpush1.msra.mxu0 %v5277
        %5666 = vmatprep.subr.mxu0 %v5271
        %5667 = vmatpush1.msra.mxu0 %v5270
        %5668 = vmatprep.subr.mxu0 %v5264
        %5669 = vmatpush1.msra.mxu0 %v5263
        %5670 = vmatprep.subr.mxu0 %v5257
        %5671 = vmatpush1.msra.mxu0 %v5256
        %5672 = vmatprep.subr.mxu0 %v5250
        %5673 = vmatpush1.msra.mxu0 %v5249
        %5674 = vmatprep.subr.mxu0 %v5243
        %5675 = vmatpush1.msra.mxu0 %v5242
        %5676 = vmatprep.subr.mxu0 %v5236
        %5677 = vmatpush1.msra.mxu0 %v5235
        %5678 = vmatprep.subr.mxu0 %v5229
        %5679 = vmatpush1.msra.mxu0 %v5228
        %5680 = vmatprep.subr.mxu0 %v5222
        %5681 = vmatpush1.msra.mxu0 %v5221
        %5682 = vmatprep.subr.mxu0 %v5215
        %5683 = vmatpush1.msra.mxu0 %v5214
        %5684 = vmatprep.subr.mxu0 %v5208
        %5685 = vmatpush1.msra.mxu0 %v5207
        %5686 = vmatprep.subr.mxu0 %v5201
        %5687 = vmatpush1.msra.mxu0 %v5200
        %5688 = vmatprep.subr.mxu0 %v5194
        %5689 = vmatpush1.msra.mxu0 %v5193
        %5690 = vmatprep.subr.mxu0 %v5411
        %5691 = vmatpush2.msra.mxu0 %v5410
        %5692 = vmatprep.subr.mxu0 %v5404
        %5693 = vmatpush2.msra.mxu0 %v5403
        %5694 = vmatprep.subr.mxu0 %v5397
        %5695 = vmatpush2.msra.mxu0 %v5396
        %5696 = vmatprep.subr.mxu0 %v5390
        %5697 = vmatpush2.msra.mxu0 %v5389
        %5698 = vmatprep.subr.mxu0 %v5383
        %5699 = vmatpush2.msra.mxu0 %v5382
        %5700 = vmatprep.subr.mxu0 %v5376
        %5701 = vmatpush2.msra.mxu0 %v5375
        %5702 = vmatprep.subr.mxu0 %v5369
        %5703 = vmatpush2.msra.mxu0 %v5368
        %5704 = vmatprep.subr.mxu0 %v5362
        %5705 = vmatpush2.msra.mxu0 %v5361
        %5706 = vmatprep.subr.mxu0 %v5355
        %5707 = vmatpush2.msra.mxu0 %v5354
        %5708 = vmatprep.subr.mxu0 %v5348
        %5709 = vmatpush2.msra.mxu0 %v5347
        %5710 = vmatprep.subr.mxu0 %v5341
        %5711 = vmatpush2.msra.mxu0 %v5340
        %5712 = vmatprep.subr.mxu0 %v5334
        %5713 = vmatpush2.msra.mxu0 %v5333
        %5714 = vmatprep.subr.mxu0 %v5327
        %5715 = vmatpush2.msra.mxu0 %v5326
        %5716 = vmatprep.subr.mxu0 %v5320
        %5717 = vmatpush2.msra.mxu0 %v5319
        %5718 = vmatprep.subr.mxu0 %v5313
        %5719 = vmatpush2.msra.mxu0 %v5312
        %5720 = vmatprep.subr.mxu0 %v5306
        %5721 = vmatpush2.msra.mxu0 %v5305
        %5722 = vmatprep.mubr.f32.mxu0 %v5180
        %5723 = vmatmul.mubr.f32.gmra.mxu0 %v5179
        %v5724 = vpop.f32.mrf.mxu0
        %v5725 = vadd.f32 %v5450, %v5724
        %v5726 = vpop.f32.mrf.mxu0
        %v5727 = vadd.f32 %v5450, %v5726
        %5728 = vmatprep.mubr.f32.mxu0 %v5183
        %5729 = vmatmul.mubr.f32.gmra.mxu0 %v5182
        %v5730 = vpop.f32.mrf.mxu0
        %v5731 = vadd.f32 %v5455, %v5730
        %v5732 = vpop.f32.mrf.mxu0
        %v5733 = vadd.f32 %v5455, %v5732
        %5734 = vmatprep.mubr.f32.mxu0 %v5186
        %5735 = vmatmul.mubr.f32.gmra.mxu0 %v5185
        %v5736 = vpop.f32.mrf.mxu0
        %v5737 = vadd.f32 %v5460, %v5736
        %v5738 = vpop.f32.mrf.mxu0
        %v5739 = vadd.f32 %v5460, %v5738
        %5740 = vmatprep.mubr.f32.mxu0 %v5189
        %5741 = vmatmul.mubr.f32.gmra.mxu0 %v5188
        %v5742 = vpop.f32.mrf.mxu0
        %v5743 = vadd.f32 %v5465, %v5742
        %v5744 = vpop.f32.mrf.mxu0
        %v5745 = vadd.f32 %v5465, %v5744
        %5746 = vdwg.mxu0
        %5747 = vmatprep.subr.mxu0 0.0
        %5748 = vmatpush1.msra.mxu0 0.0
        %5749 = vmatprep.subr.mxu0 0.0
        %5750 = vmatpush1.msra.mxu0 0.0
        %5751 = vmatprep.subr.mxu0 0.0
        %5752 = vmatpush1.msra.mxu0 0.0
        %5753 = vmatprep.subr.mxu0 0.0
        %5754 = vmatpush1.msra.mxu0 0.0
        %5755 = vmatprep.subr.mxu0 0.0
        %5756 = vmatpush1.msra.mxu0 0.0
        %5757 = vmatprep.subr.mxu0 0.0
        %5758 = vmatpush1.msra.mxu0 0.0
        %5759 = vmatprep.subr.mxu0 0.0
        %5760 = vmatpush1.msra.mxu0 0.0
        %5761 = vmatprep.subr.mxu0 0.0
        %5762 = vmatpush1.msra.mxu0 0.0
        %5763 = vmatprep.subr.mxu0 0.0
        %5764 = vmatpush1.msra.mxu0 0.0
        %5765 = vmatprep.subr.mxu0 0.0
        %5766 = vmatpush1.msra.mxu0 0.0
        %5767 = vmatprep.subr.mxu0 0.0
        %5768 = vmatpush1.msra.mxu0 0.0
        %5769 = vmatprep.subr.mxu0 0.0
        %5770 = vmatpush1.msra.mxu0 0.0
        %5771 = vmatprep.subr.mxu0 %v5439
        %5772 = vmatpush1.msra.mxu0 %v5438
        %5773 = vmatprep.subr.mxu0 %v5432
        %5774 = vmatpush1.msra.mxu0 %v5431
        %5775 = vmatprep.subr.mxu0 %v5425
        %5776 = vmatpush1.msra.mxu0 %v5424
        %5777 = vmatprep.subr.mxu0 %v5418
        %5778 = vmatpush1.msra.mxu0 %v5417
        %5779 = vmatprep.subr.mxu0 0.0
        %5780 = vmatpush2.msra.mxu0 0.0
        %5781 = vmatprep.subr.mxu0 0.0
        %5782 = vmatpush2.msra.mxu0 0.0
        %5783 = vmatprep.subr.mxu0 0.0
        %5784 = vmatpush2.msra.mxu0 0.0
        %5785 = vmatprep.subr.mxu0 0.0
        %5786 = vmatpush2.msra.mxu0 0.0
        %5787 = vmatprep.subr.mxu0 0.0
        %5788 = vmatpush2.msra.mxu0 0.0
        %5789 = vmatprep.subr.mxu0 0.0
        %5790 = vmatpush2.msra.mxu0 0.0
        %5791 = vmatprep.subr.mxu0 0.0
        %5792 = vmatpush2.msra.mxu0 0.0
        %5793 = vmatprep.subr.mxu0 0.0
        %5794 = vmatpush2.msra.mxu0 0.0
        %5795 = vmatprep.subr.mxu0 0.0
        %5796 = vmatpush2.msra.mxu0 0.0
        %5797 = vmatprep.subr.mxu0 0.0
        %5798 = vmatpush2.msra.mxu0 0.0
        %5799 = vmatprep.subr.mxu0 0.0
        %5800 = vmatpush2.msra.mxu0 0.0
        %5801 = vmatprep.subr.mxu0 0.0
        %5802 = vmatpush2.msra.mxu0 0.0
        %5803 = vmatprep.subr.mxu0 0.0
        %5804 = vmatpush2.msra.mxu0 0.0
        %5805 = vmatprep.subr.mxu0 0.0
        %5806 = vmatpush2.msra.mxu0 0.0
        %5807 = vmatprep.subr.mxu0 0.0
        %5808 = vmatpush2.msra.mxu0 0.0
        %5809 = vmatprep.subr.mxu0 0.0
        %5810 = vmatpush2.msra.mxu0 0.0
        %5811 = vmatprep.mubr.f32.mxu0 0.0
        %5812 = vmatmul.mubr.f32.gmra.mxu0 %v5469
        %v5813 = vpop.f32.mrf.mxu0
        %v5814 = vadd.f32 %v5725, %v5813
        %v5815 = vpop.f32.mrf.mxu0
        %v5816 = vadd.f32 %v5727, %v5815
        %5817 = vmatprep.mubr.f32.mxu0 0.0
        %5818 = vmatmul.mubr.f32.gmra.mxu0 %v5472
        %v5819 = vpop.f32.mrf.mxu0
        %v5820 = vadd.f32 %v5731, %v5819
        %v5821 = vpop.f32.mrf.mxu0
        %v5822 = vadd.f32 %v5733, %v5821
        %5823 = vmatprep.mubr.f32.mxu0 0.0
        %5824 = vmatmul.mubr.f32.gmra.mxu0 %v5475
        %v5825 = vpop.f32.mrf.mxu0
        %v5826 = vadd.f32 %v5737, %v5825
        %v5827 = vpop.f32.mrf.mxu0
        %v5828 = vadd.f32 %v5739, %v5827
        %5829 = vmatprep.mubr.f32.mxu0 0.0
        %5830 = vmatmul.mubr.f32.gmra.mxu0 %v5478
        %v5831 = vpop.f32.mrf.mxu0
        %v5832 = vadd.f32 %v5743, %v5831
        %v5833 = vpop.f32.mrf.mxu0
        %v5834 = vadd.f32 %v5745, %v5833
        %5835 = vdwg.mxu0
        %5836 = vmatprep.subr.mxu0 %v5301
        %5837 = vmatpush1.msra.mxu0 %v5300
        %5838 = vmatprep.subr.mxu0 %v5294
        %5839 = vmatpush1.msra.mxu0 %v5293
        %5840 = vmatprep.subr.mxu0 %v5287
        %5841 = vmatpush1.msra.mxu0 %v5286
        %5842 = vmatprep.subr.mxu0 %v5280
        %5843 = vmatpush1.msra.mxu0 %v5279
        %5844 = vmatprep.subr.mxu0 %v5273
        %5845 = vmatpush1.msra.mxu0 %v5272
        %5846 = vmatprep.subr.mxu0 %v5266
        %5847 = vmatpush1.msra.mxu0 %v5265
        %5848 = vmatprep.subr.mxu0 %v5259
        %5849 = vmatpush1.msra.mxu0 %v5258
        %5850 = vmatprep.subr.mxu0 %v5252
        %5851 = vmatpush1.msra.mxu0 %v5251
        %5852 = vmatprep.subr.mxu0 %v5245
        %5853 = vmatpush1.msra.mxu0 %v5244
        %5854 = vmatprep.subr.mxu0 %v5238
        %5855 = vmatpush1.msra.mxu0 %v5237
        %5856 = vmatprep.subr.mxu0 %v5231
        %5857 = vmatpush1.msra.mxu0 %v5230
        %5858 = vmatprep.subr.mxu0 %v5224
        %5859 = vmatpush1.msra.mxu0 %v5223
        %5860 = vmatprep.subr.mxu0 %v5217
        %5861 = vmatpush1.msra.mxu0 %v5216
        %5862 = vmatprep.subr.mxu0 %v5210
        %5863 = vmatpush1.msra.mxu0 %v5209
        %5864 = vmatprep.subr.mxu0 %v5203
        %5865 = vmatpush1.msra.mxu0 %v5202
        %5866 = vmatprep.subr.mxu0 %v5196
        %5867 = vmatpush1.msra.mxu0 %v5195
        %5868 = vmatprep.subr.mxu0 %v5413
        %5869 = vmatpush2.msra.mxu0 %v5412
        %5870 = vmatprep.subr.mxu0 %v5406
        %5871 = vmatpush2.msra.mxu0 %v5405
        %5872 = vmatprep.subr.mxu0 %v5399
        %5873 = vmatpush2.msra.mxu0 %v5398
        %5874 = vmatprep.subr.mxu0 %v5392
        %5875 = vmatpush2.msra.mxu0 %v5391
        %5876 = vmatprep.subr.mxu0 %v5385
        %5877 = vmatpush2.msra.mxu0 %v5384
        %5878 = vmatprep.subr.mxu0 %v5378
        %5879 = vmatpush2.msra.mxu0 %v5377
        %5880 = vmatprep.subr.mxu0 %v5371
        %5881 = vmatpush2.msra.mxu0 %v5370
        %5882 = vmatprep.subr.mxu0 %v5364
        %5883 = vmatpush2.msra.mxu0 %v5363
        %5884 = vmatprep.subr.mxu0 %v5357
        %5885 = vmatpush2.msra.mxu0 %v5356
        %5886 = vmatprep.subr.mxu0 %v5350
        %5887 = vmatpush2.msra.mxu0 %v5349
        %5888 = vmatprep.subr.mxu0 %v5343
        %5889 = vmatpush2.msra.mxu0 %v5342
        %5890 = vmatprep.subr.mxu0 %v5336
        %5891 = vmatpush2.msra.mxu0 %v5335
        %5892 = vmatprep.subr.mxu0 %v5329
        %5893 = vmatpush2.msra.mxu0 %v5328
        %5894 = vmatprep.subr.mxu0 %v5322
        %5895 = vmatpush2.msra.mxu0 %v5321
        %5896 = vmatprep.subr.mxu0 %v5315
        %5897 = vmatpush2.msra.mxu0 %v5314
        %5898 = vmatprep.subr.mxu0 %v5308
        %5899 = vmatpush2.msra.mxu0 %v5307
        %5900 = vmatprep.mubr.f32.mxu0 %v5180
        %5901 = vmatmul.mubr.f32.gmra.mxu0 %v5179
        %v5902 = vpop.f32.mrf.mxu0
        %v5903 = vadd.f32 %v5450, %v5902
        %v5904 = vpop.f32.mrf.mxu0
        %v5905 = vadd.f32 %v5450, %v5904
        %5906 = vmatprep.mubr.f32.mxu0 %v5183
        %5907 = vmatmul.mubr.f32.gmra.mxu0 %v5182
        %v5908 = vpop.f32.mrf.mxu0
        %v5909 = vadd.f32 %v5455, %v5908
        %v5910 = vpop.f32.mrf.mxu0
        %v5911 = vadd.f32 %v5455, %v5910
        %5912 = vmatprep.mubr.f32.mxu0 %v5186
        %5913 = vmatmul.mubr.f32.gmra.mxu0 %v5185
        %v5914 = vpop.f32.mrf.mxu0
        %v5915 = vadd.f32 %v5460, %v5914
        %v5916 = vpop.f32.mrf.mxu0
        %v5917 = vadd.f32 %v5460, %v5916
        %5918 = vmatprep.mubr.f32.mxu0 %v5189
        %5919 = vmatmul.mubr.f32.gmra.mxu0 %v5188
        %v5920 = vpop.f32.mrf.mxu0
        %v5921 = vadd.f32 %v5465, %v5920
        %v5922 = vpop.f32.mrf.mxu0
        %v5923 = vadd.f32 %v5465, %v5922
        %5924 = vdwg.mxu0
        %5925 = vmatprep.subr.mxu0 0.0
        %5926 = vmatpush1.msra.mxu0 0.0
        %5927 = vmatprep.subr.mxu0 0.0
        %5928 = vmatpush1.msra.mxu0 0.0
        %5929 = vmatprep.subr.mxu0 0.0
        %5930 = vmatpush1.msra.mxu0 0.0
        %5931 = vmatprep.subr.mxu0 0.0
        %5932 = vmatpush1.msra.mxu0 0.0
        %5933 = vmatprep.subr.mxu0 0.0
        %5934 = vmatpush1.msra.mxu0 0.0
        %5935 = vmatprep.subr.mxu0 0.0
        %5936 = vmatpush1.msra.mxu0 0.0
        %5937 = vmatprep.subr.mxu0 0.0
        %5938 = vmatpush1.msra.mxu0 0.0
        %5939 = vmatprep.subr.mxu0 0.0
        %5940 = vmatpush1.msra.mxu0 0.0
        %5941 = vmatprep.subr.mxu0 0.0
        %5942 = vmatpush1.msra.mxu0 0.0
        %5943 = vmatprep.subr.mxu0 0.0
        %5944 = vmatpush1.msra.mxu0 0.0
        %5945 = vmatprep.subr.mxu0 0.0
        %5946 = vmatpush1.msra.mxu0 0.0
        %5947 = vmatprep.subr.mxu0 0.0
        %5948 = vmatpush1.msra.mxu0 0.0
        %5949 = vmatprep.subr.mxu0 %v5441
        %5950 = vmatpush1.msra.mxu0 %v5440
        %5951 = vmatprep.subr.mxu0 %v5434
        %5952 = vmatpush1.msra.mxu0 %v5433
        %5953 = vmatprep.subr.mxu0 %v5427
        %5954 = vmatpush1.msra.mxu0 %v5426
        %5955 = vmatprep.subr.mxu0 %v5420
        %5956 = vmatpush1.msra.mxu0 %v5419
        %5957 = vmatprep.subr.mxu0 0.0
        %5958 = vmatpush2.msra.mxu0 0.0
        %5959 = vmatprep.subr.mxu0 0.0
        %5960 = vmatpush2.msra.mxu0 0.0
        %5961 = vmatprep.subr.mxu0 0.0
        %5962 = vmatpush2.msra.mxu0 0.0
        %5963 = vmatprep.subr.mxu0 0.0
        %5964 = vmatpush2.msra.mxu0 0.0
        %5965 = vmatprep.subr.mxu0 0.0
        %5966 = vmatpush2.msra.mxu0 0.0
        %5967 = vmatprep.subr.mxu0 0.0
        %5968 = vmatpush2.msra.mxu0 0.0
        %5969 = vmatprep.subr.mxu0 0.0
        %5970 = vmatpush2.msra.mxu0 0.0
        %5971 = vmatprep.subr.mxu0 0.0
        %5972 = vmatpush2.msra.mxu0 0.0
        %5973 = vmatprep.subr.mxu0 0.0
        %5974 = vmatpush2.msra.mxu0 0.0
        %5975 = vmatprep.subr.mxu0 0.0
        %5976 = vmatpush2.msra.mxu0 0.0
        %5977 = vmatprep.subr.mxu0 0.0
        %5978 = vmatpush2.msra.mxu0 0.0
        %5979 = vmatprep.subr.mxu0 0.0
        %5980 = vmatpush2.msra.mxu0 0.0
        %5981 = vmatprep.subr.mxu0 0.0
        %5982 = vmatpush2.msra.mxu0 0.0
        %5983 = vmatprep.subr.mxu0 0.0
        %5984 = vmatpush2.msra.mxu0 0.0
        %5985 = vmatprep.subr.mxu0 0.0
        %5986 = vmatpush2.msra.mxu0 0.0
        %5987 = vmatprep.subr.mxu0 0.0
        %5988 = vmatpush2.msra.mxu0 0.0
        %5989 = vmatprep.mubr.f32.mxu0 0.0
        %5990 = vmatmul.mubr.f32.gmra.mxu0 %v5469
        %v5991 = vpop.f32.mrf.mxu0
        %v5992 = vadd.f32 %v5903, %v5991
        %v5993 = vpop.f32.mrf.mxu0
        %v5994 = vadd.f32 %v5905, %v5993
        %5995 = vmatprep.mubr.f32.mxu0 0.0
        %5996 = vmatmul.mubr.f32.gmra.mxu0 %v5472
        %v5997 = vpop.f32.mrf.mxu0
        %v5998 = vadd.f32 %v5909, %v5997
        %v5999 = vpop.f32.mrf.mxu0
        %v6000 = vadd.f32 %v5911, %v5999
        %6001 = vmatprep.mubr.f32.mxu0 0.0
        %6002 = vmatmul.mubr.f32.gmra.mxu0 %v5475
        %v6003 = vpop.f32.mrf.mxu0
        %v6004 = vadd.f32 %v5915, %v6003
        %v6005 = vpop.f32.mrf.mxu0
        %v6006 = vadd.f32 %v5917, %v6005
        %6007 = vmatprep.mubr.f32.mxu0 0.0
        %6008 = vmatmul.mubr.f32.gmra.mxu0 %v5478
        %v6009 = vpop.f32.mrf.mxu0
        %v6010 = vadd.f32 %v5921, %v6009
        %v6011 = vpop.f32.mrf.mxu0
        %v6012 = vadd.f32 %v5923, %v6011
        %6013 = vdwg.mxu0
        %6014 = vmatprep.subr.mxu0 0.0
        %6015 = vmatpush1.msra.mxu0 %v5302
        %6016 = vmatprep.subr.mxu0 0.0
        %6017 = vmatpush1.msra.mxu0 %v5295
        %6018 = vmatprep.subr.mxu0 0.0
        %6019 = vmatpush1.msra.mxu0 %v5288
        %6020 = vmatprep.subr.mxu0 0.0
        %6021 = vmatpush1.msra.mxu0 %v5281
        %6022 = vmatprep.subr.mxu0 0.0
        %6023 = vmatpush1.msra.mxu0 %v5274
        %6024 = vmatprep.subr.mxu0 0.0
        %6025 = vmatpush1.msra.mxu0 %v5267
        %6026 = vmatprep.subr.mxu0 0.0
        %6027 = vmatpush1.msra.mxu0 %v5260
        %6028 = vmatprep.subr.mxu0 0.0
        %6029 = vmatpush1.msra.mxu0 %v5253
        %6030 = vmatprep.subr.mxu0 0.0
        %6031 = vmatpush1.msra.mxu0 %v5246
        %6032 = vmatprep.subr.mxu0 0.0
        %6033 = vmatpush1.msra.mxu0 %v5239
        %6034 = vmatprep.subr.mxu0 0.0
        %6035 = vmatpush1.msra.mxu0 %v5232
        %6036 = vmatprep.subr.mxu0 0.0
        %6037 = vmatpush1.msra.mxu0 %v5225
        %6038 = vmatprep.subr.mxu0 0.0
        %6039 = vmatpush1.msra.mxu0 %v5218
        %6040 = vmatprep.subr.mxu0 0.0
        %6041 = vmatpush1.msra.mxu0 %v5211
        %6042 = vmatprep.subr.mxu0 0.0
        %6043 = vmatpush1.msra.mxu0 %v5204
        %6044 = vmatprep.subr.mxu0 0.0
        %6045 = vmatpush1.msra.mxu0 %v5197
        %6046 = vmatprep.subr.mxu0 0.0
        %6047 = vmatpush2.msra.mxu0 %v5414
        %6048 = vmatprep.subr.mxu0 0.0
        %6049 = vmatpush2.msra.mxu0 %v5407
        %6050 = vmatprep.subr.mxu0 0.0
        %6051 = vmatpush2.msra.mxu0 %v5400
        %6052 = vmatprep.subr.mxu0 0.0
        %6053 = vmatpush2.msra.mxu0 %v5393
        %6054 = vmatprep.subr.mxu0 0.0
        %6055 = vmatpush2.msra.mxu0 %v5386
        %6056 = vmatprep.subr.mxu0 0.0
        %6057 = vmatpush2.msra.mxu0 %v5379
        %6058 = vmatprep.subr.mxu0 0.0
        %6059 = vmatpush2.msra.mxu0 %v5372
        %6060 = vmatprep.subr.mxu0 0.0
        %6061 = vmatpush2.msra.mxu0 %v5365
        %6062 = vmatprep.subr.mxu0 0.0
        %6063 = vmatpush2.msra.mxu0 %v5358
        %6064 = vmatprep.subr.mxu0 0.0
        %6065 = vmatpush2.msra.mxu0 %v5351
        %6066 = vmatprep.subr.mxu0 0.0
        %6067 = vmatpush2.msra.mxu0 %v5344
        %6068 = vmatprep.subr.mxu0 0.0
        %6069 = vmatpush2.msra.mxu0 %v5337
        %6070 = vmatprep.subr.mxu0 0.0
        %6071 = vmatpush2.msra.mxu0 %v5330
        %6072 = vmatprep.subr.mxu0 0.0
        %6073 = vmatpush2.msra.mxu0 %v5323
        %6074 = vmatprep.subr.mxu0 0.0
        %6075 = vmatpush2.msra.mxu0 %v5316
        %6076 = vmatprep.subr.mxu0 0.0
        %6077 = vmatpush2.msra.mxu0 %v5309
        %6078 = vmatprep.mubr.f32.mxu0 %v5180
        %6079 = vmatmul.mubr.f32.gmra.mxu0 %v5179
        %v6080 = vpop.f32.mrf.mxu0
        %v6081 = vadd.f32 %v5450, %v6080
        %v6082 = vpop.f32.mrf.mxu0
        %6083 = vmatprep.mubr.f32.mxu0 %v5183
        %6084 = vmatmul.mubr.f32.gmra.mxu0 %v5182
        %v6085 = vpop.f32.mrf.mxu0
        %v6086 = vadd.f32 %v5455, %v6085
        %v6087 = vpop.f32.mrf.mxu0
        %6088 = vmatprep.mubr.f32.mxu0 %v5186
        %6089 = vmatmul.mubr.f32.gmra.mxu0 %v5185
        %v6090 = vpop.f32.mrf.mxu0
        %v6091 = vadd.f32 %v5460, %v6090
        %v6092 = vpop.f32.mrf.mxu0
        %6093 = vmatprep.mubr.f32.mxu0 %v5189
        %6094 = vmatmul.mubr.f32.gmra.mxu0 %v5188
        %v6095 = vpop.f32.mrf.mxu0
        %v6096 = vadd.f32 %v5465, %v6095
        %v6097 = vpop.f32.mrf.mxu0
        %6098 = vdwg.mxu0
        %6099 = vmatprep.subr.mxu0 0.0
        %6100 = vmatpush1.msra.mxu0 0.0
        %6101 = vmatprep.subr.mxu0 0.0
        %6102 = vmatpush1.msra.mxu0 0.0
        %6103 = vmatprep.subr.mxu0 0.0
        %6104 = vmatpush1.msra.mxu0 0.0
        %6105 = vmatprep.subr.mxu0 0.0
        %6106 = vmatpush1.msra.mxu0 0.0
        %6107 = vmatprep.subr.mxu0 0.0
        %6108 = vmatpush1.msra.mxu0 0.0
        %6109 = vmatprep.subr.mxu0 0.0
        %6110 = vmatpush1.msra.mxu0 0.0
        %6111 = vmatprep.subr.mxu0 0.0
        %6112 = vmatpush1.msra.mxu0 0.0
        %6113 = vmatprep.subr.mxu0 0.0
        %6114 = vmatpush1.msra.mxu0 0.0
        %6115 = vmatprep.subr.mxu0 0.0
        %6116 = vmatpush1.msra.mxu0 0.0
        %6117 = vmatprep.subr.mxu0 0.0
        %6118 = vmatpush1.msra.mxu0 0.0
        %6119 = vmatprep.subr.mxu0 0.0
        %6120 = vmatpush1.msra.mxu0 0.0
        %6121 = vmatprep.subr.mxu0 0.0
        %6122 = vmatpush1.msra.mxu0 0.0
        %6123 = vmatprep.subr.mxu0 0.0
        %6124 = vmatpush1.msra.mxu0 %v5442
        %6125 = vmatprep.subr.mxu0 0.0
        %6126 = vmatpush1.msra.mxu0 %v5435
        %6127 = vmatprep.subr.mxu0 0.0
        %6128 = vmatpush1.msra.mxu0 %v5428
        %6129 = vmatprep.subr.mxu0 0.0
        %6130 = vmatpush1.msra.mxu0 %v5421
        %6131 = vmatprep.subr.mxu0 0.0
        %6132 = vmatpush2.msra.mxu0 0.0
        %6133 = vmatprep.subr.mxu0 0.0
        %6134 = vmatpush2.msra.mxu0 0.0
        %6135 = vmatprep.subr.mxu0 0.0
        %6136 = vmatpush2.msra.mxu0 0.0
        %6137 = vmatprep.subr.mxu0 0.0
        %6138 = vmatpush2.msra.mxu0 0.0
        %6139 = vmatprep.subr.mxu0 0.0
        %6140 = vmatpush2.msra.mxu0 0.0
        %6141 = vmatprep.subr.mxu0 0.0
        %6142 = vmatpush2.msra.mxu0 0.0
        %6143 = vmatprep.subr.mxu0 0.0
        %6144 = vmatpush2.msra.mxu0 0.0
        %6145 = vmatprep.subr.mxu0 0.0
        %6146 = vmatpush2.msra.mxu0 0.0
        %6147 = vmatprep.subr.mxu0 0.0
        %6148 = vmatpush2.msra.mxu0 0.0
        %6149 = vmatprep.subr.mxu0 0.0
        %6150 = vmatpush2.msra.mxu0 0.0
        %6151 = vmatprep.subr.mxu0 0.0
        %6152 = vmatpush2.msra.mxu0 0.0
        %6153 = vmatprep.subr.mxu0 0.0
        %6154 = vmatpush2.msra.mxu0 0.0
        %6155 = vmatprep.subr.mxu0 0.0
        %6156 = vmatpush2.msra.mxu0 0.0
        %6157 = vmatprep.subr.mxu0 0.0
        %6158 = vmatpush2.msra.mxu0 0.0
        %6159 = vmatprep.subr.mxu0 0.0
        %6160 = vmatpush2.msra.mxu0 0.0
        %6161 = vmatprep.subr.mxu0 0.0
        %6162 = vmatpush2.msra.mxu0 0.0
        %6163 = vmatprep.mubr.f32.mxu0 0.0
        %6164 = vmatmul.mubr.f32.gmra.mxu0 %v5469
        %v6165 = vpop.f32.mrf.mxu0
        %v6166 = vadd.f32 %v6081, %v6165
        %v6167 = vpop.f32.mrf.mxu0
        %6168 = vmatprep.mubr.f32.mxu0 0.0
        %6169 = vmatmul.mubr.f32.gmra.mxu0 %v5472
        %v6170 = vpop.f32.mrf.mxu0
        %v6171 = vadd.f32 %v6086, %v6170
        %v6172 = vpop.f32.mrf.mxu0
        %6173 = vmatprep.mubr.f32.mxu0 0.0
        %6174 = vmatmul.mubr.f32.gmra.mxu0 %v5475
        %v6175 = vpop.f32.mrf.mxu0
        %v6176 = vadd.f32 %v6091, %v6175
        %v6177 = vpop.f32.mrf.mxu0
        %6178 = vmatprep.mubr.f32.mxu0 0.0
        %6179 = vmatmul.mubr.f32.gmra.mxu0 %v5478
        %v6180 = vpop.f32.mrf.mxu0
        %v6181 = vadd.f32 %v6096, %v6180
        %v6182 = vpop.f32.mrf.mxu0
        %6183 = vdwg.mxu0
        %6184 = vst [vmem:[%s555] sm:$0xff] %v5636
        %6185 = vst [vmem:[%s555 + $0x8] sm:$0xff] %v5638
        %6186 = vst [vmem:[%s555 + $0x10] sm:$0xff] %v5814
        %6187 = vst [vmem:[%s555 + $0x18] sm:$0xff] %v5816
        %6188 = vst [vmem:[%s555 + $0x20] sm:$0xff] %v5992
        %6189 = vst [vmem:[%s555 + $0x28] sm:$0xff] %v5994
        %6190 = vst.msk [vmem:[%s555 + $0x30] sm:$0xff] %vm4036, %v6166
        %6191 = vst [vmem:[%s555 + $0x38] sm:$0xff] %v5642
        %6192 = vst [vmem:[%s555 + $0x40] sm:$0xff] %v5644
        %6193 = vst [vmem:[%s555 + $0x48] sm:$0xff] %v5820
        %6194 = vst [vmem:[%s555 + $0x50] sm:$0xff] %v5822
        %6195 = vst [vmem:[%s555 + $0x58] sm:$0xff] %v5998
        %6196 = vst [vmem:[%s555 + $0x60] sm:$0xff] %v6000
        %6197 = vst.msk [vmem:[%s555 + $0x68] sm:$0xff] %vm4036, %v6171
        %6198 = vst [vmem:[%s555 + $0x70] sm:$0xff] %v5648
        %6199 = vst [vmem:[%s555 + $0x78] sm:$0xff] %v5650
        %6200 = vst [vmem:[%s555 + $0x80] sm:$0xff] %v5826
        %6201 = vst [vmem:[%s555 + $0x88] sm:$0xff] %v5828
        %6202 = vst [vmem:[%s555 + $0x90] sm:$0xff] %v6004
        %6203 = vst [vmem:[%s555 + $0x98] sm:$0xff] %v6006
        %6204 = vst.msk [vmem:[%s555 + $0xa0] sm:$0xff] %vm4036, %v6176
        %6205 = vst [vmem:[%s555 + $0xa8] sm:$0xff] %v5654
        %6206 = vst [vmem:[%s555 + $0xb0] sm:$0xff] %v5656
        %6207 = vst [vmem:[%s555 + $0xb8] sm:$0xff] %v5832
        %6208 = vst [vmem:[%s555 + $0xc0] sm:$0xff] %v5834
        %6209 = vst [vmem:[%s555 + $0xc8] sm:$0xff] %v6010
        %6210 = vst [vmem:[%s555 + $0xd0] sm:$0xff] %v6012
        %6211 = vst.msk [vmem:[%s555 + $0xd8] sm:$0xff] %vm4036, %v6181
        %6240 = vrot.lane.b32.xlu0 %v5636, 126
        %v6241 = vpop.permute.xlu0 %6240
        %6242 = vrot.lane.b32.xlu0 %v5638, 126
        %v6243 = vpop.permute.xlu0 %6242
        %6244 = vrot.lane.b32.xlu0 %v5814, 126
        %v6245 = vpop.permute.xlu0 %6244
        %6246 = vrot.lane.b32.xlu0 %v5816, 126
        %v6247 = vpop.permute.xlu0 %6246
        %6248 = vrot.lane.b32.xlu0 %v5992, 126
        %v6249 = vpop.permute.xlu0 %6248
        %6250 = vrot.lane.b32.xlu0 %v5994, 126
        %v6251 = vpop.permute.xlu0 %6250
        %6252 = vrot.lane.b32.xlu0 %v6166, 126
        %v6253 = vpop.permute.xlu0 %6252
        %6254 = vrot.lane.b32.xlu0 %v5642, 126
        %v6255 = vpop.permute.xlu0 %6254
        %6256 = vrot.lane.b32.xlu0 %v5644, 126
        %v6257 = vpop.permute.xlu0 %6256
        %6258 = vrot.lane.b32.xlu0 %v5820, 126
        %v6259 = vpop.permute.xlu0 %6258
        %6260 = vrot.lane.b32.xlu0 %v5822, 126
        %v6261 = vpop.permute.xlu0 %6260
        %6262 = vrot.lane.b32.xlu0 %v5998, 126
        %v6263 = vpop.permute.xlu0 %6262
        %6264 = vrot.lane.b32.xlu0 %v6000, 126
        %v6265 = vpop.permute.xlu0 %6264
        %6266 = vrot.lane.b32.xlu0 %v6171, 126
        %v6267 = vpop.permute.xlu0 %6266
        %6268 = vrot.lane.b32.xlu0 %v5648, 126
        %v6269 = vpop.permute.xlu0 %6268
        %6270 = vrot.lane.b32.xlu0 %v5650, 126
        %v6271 = vpop.permute.xlu0 %6270
        %6272 = vrot.lane.b32.xlu0 %v5826, 126
        %v6273 = vpop.permute.xlu0 %6272
        %6274 = vrot.lane.b32.xlu0 %v5828, 126
        %v6275 = vpop.permute.xlu0 %6274
        %6276 = vrot.lane.b32.xlu0 %v6004, 126
        %v6277 = vpop.permute.xlu0 %6276
        %6278 = vrot.lane.b32.xlu0 %v6006, 126
        %v6279 = vpop.permute.xlu0 %6278
        %6280 = vrot.lane.b32.xlu0 %v6176, 126
        %v6281 = vpop.permute.xlu0 %6280
        %6282 = vrot.lane.b32.xlu0 %v5654, 126
        %v6283 = vpop.permute.xlu0 %6282
        %6284 = vrot.lane.b32.xlu0 %v5656, 126
        %v6285 = vpop.permute.xlu0 %6284
        %6286 = vrot.lane.b32.xlu0 %v5832, 126
        %v6287 = vpop.permute.xlu0 %6286
        %6288 = vrot.lane.b32.xlu0 %v5834, 126
        %v6289 = vpop.permute.xlu0 %6288
        %6290 = vrot.lane.b32.xlu0 %v6010, 126
        %v6291 = vpop.permute.xlu0 %6290
        %6292 = vrot.lane.b32.xlu0 %v6012, 126
        %v6293 = vpop.permute.xlu0 %6292
        %6294 = vrot.lane.b32.xlu0 %v6181, 126
        %v6295 = vpop.permute.xlu0 %6294
        %v6296 = vsel %vm600, %v6241, %v6243
        %v6297 = vsel %vm600, %v6243, %v6245
        %v6298 = vsel %vm600, %v6245, %v6247
        %v6299 = vsel %vm600, %v6247, %v6249
        %v6300 = vsel %vm600, %v6249, %v6251
        %v6301 = vsel %vm600, %v6251, %v6253
        %v6302 = vsel %vm600, %v6255, %v6257
        %v6303 = vsel %vm600, %v6257, %v6259
        %v6304 = vsel %vm600, %v6259, %v6261
        %v6305 = vsel %vm600, %v6261, %v6263
        %v6306 = vsel %vm600, %v6263, %v6265
        %v6307 = vsel %vm600, %v6265, %v6267
        %v6308 = vsel %vm600, %v6269, %v6271
        %v6309 = vsel %vm600, %v6271, %v6273
        %v6310 = vsel %vm600, %v6273, %v6275
        %v6311 = vsel %vm600, %v6275, %v6277
        %v6312 = vsel %vm600, %v6277, %v6279
        %v6313 = vsel %vm600, %v6279, %v6281
        %v6314 = vsel %vm600, %v6283, %v6285
        %v6315 = vsel %vm600, %v6285, %v6287
        %v6316 = vsel %vm600, %v6287, %v6289
        %v6317 = vsel %vm600, %v6289, %v6291
        %v6318 = vsel %vm600, %v6291, %v6293
        %v6319 = vsel %vm600, %v6293, %v6295
        %v6348 = vmax.f32 %v5636, %v6296
        %v6349 = vmax.f32 %v5638, %v6297
        %v6350 = vmax.f32 %v5814, %v6298
        %v6351 = vmax.f32 %v5816, %v6299
        %v6352 = vmax.f32 %v5992, %v6300
        %v6353 = vmax.f32 %v5994, %v6301
        %v6354 = vmax.f32 %v6166, %v6253
        %v6355 = vmax.f32 %v5642, %v6302
        %v6356 = vmax.f32 %v5644, %v6303
        %v6357 = vmax.f32 %v5820, %v6304
        %v6358 = vmax.f32 %v5822, %v6305
        %v6359 = vmax.f32 %v5998, %v6306
        %v6360 = vmax.f32 %v6000, %v6307
        %v6361 = vmax.f32 %v6171, %v6267
        %v6362 = vmax.f32 %v5648, %v6308
        %v6363 = vmax.f32 %v5650, %v6309
        %v6364 = vmax.f32 %v5826, %v6310
        %v6365 = vmax.f32 %v5828, %v6311
        %v6366 = vmax.f32 %v6004, %v6312
        %v6367 = vmax.f32 %v6006, %v6313
        %v6368 = vmax.f32 %v6176, %v6281
        %v6369 = vmax.f32 %v5654, %v6314
        %v6370 = vmax.f32 %v5656, %v6315
        %v6371 = vmax.f32 %v5832, %v6316
        %v6372 = vmax.f32 %v5834, %v6317
        %v6373 = vmax.f32 %v6010, %v6318
        %v6374 = vmax.f32 %v6012, %v6319
        %v6375 = vmax.f32 %v6181, %v6295
        %6404 = vrot.lane.b32.xlu0 %v6348, 56
        %v6405 = vpop.permute.xlu0 %6404
        %6406 = vrot.lane.b32.xlu0 %v6349, 56
        %v6407 = vpop.permute.xlu0 %6406
        %6408 = vrot.lane.b32.xlu0 %v6350, 56
        %v6409 = vpop.permute.xlu0 %6408
        %6410 = vrot.lane.b32.xlu0 %v6351, 56
        %v6411 = vpop.permute.xlu0 %6410
        %6412 = vrot.lane.b32.xlu0 %v6352, 56
        %v6413 = vpop.permute.xlu0 %6412
        %6414 = vrot.lane.b32.xlu0 %v6353, 56
        %v6415 = vpop.permute.xlu0 %6414
        %6416 = vrot.lane.b32.xlu0 %v6354, 56
        %v6417 = vpop.permute.xlu0 %6416
        %6418 = vrot.lane.b32.xlu0 %v6355, 56
        %v6419 = vpop.permute.xlu0 %6418
        %6420 = vrot.lane.b32.xlu0 %v6356, 56
        %v6421 = vpop.permute.xlu0 %6420
        %6422 = vrot.lane.b32.xlu0 %v6357, 56
        %v6423 = vpop.permute.xlu0 %6422
        %6424 = vrot.lane.b32.xlu0 %v6358, 56
        %v6425 = vpop.permute.xlu0 %6424
        %6426 = vrot.lane.b32.xlu0 %v6359, 56
        %v6427 = vpop.permute.xlu0 %6426
        %6428 = vrot.lane.b32.xlu0 %v6360, 56
        %v6429 = vpop.permute.xlu0 %6428
        %6430 = vrot.lane.b32.xlu0 %v6361, 56
        %v6431 = vpop.permute.xlu0 %6430
        %6432 = vrot.lane.b32.xlu0 %v6362, 56
        %v6433 = vpop.permute.xlu0 %6432
        %6434 = vrot.lane.b32.xlu0 %v6363, 56
        %v6435 = vpop.permute.xlu0 %6434
        %6436 = vrot.lane.b32.xlu0 %v6364, 56
        %v6437 = vpop.permute.xlu0 %6436
        %6438 = vrot.lane.b32.xlu0 %v6365, 56
        %v6439 = vpop.permute.xlu0 %6438
        %6440 = vrot.lane.b32.xlu0 %v6366, 56
        %v6441 = vpop.permute.xlu0 %6440
        %6442 = vrot.lane.b32.xlu0 %v6367, 56
        %v6443 = vpop.permute.xlu0 %6442
        %6444 = vrot.lane.b32.xlu0 %v6368, 56
        %v6445 = vpop.permute.xlu0 %6444
        %6446 = vrot.lane.b32.xlu0 %v6369, 56
        %v6447 = vpop.permute.xlu0 %6446
        %6448 = vrot.lane.b32.xlu0 %v6370, 56
        %v6449 = vpop.permute.xlu0 %6448
        %6450 = vrot.lane.b32.xlu0 %v6371, 56
        %v6451 = vpop.permute.xlu0 %6450
        %6452 = vrot.lane.b32.xlu0 %v6372, 56
        %v6453 = vpop.permute.xlu0 %6452
        %6454 = vrot.lane.b32.xlu0 %v6373, 56
        %v6455 = vpop.permute.xlu0 %6454
        %6456 = vrot.lane.b32.xlu0 %v6374, 56
        %v6457 = vpop.permute.xlu0 %6456
        %6458 = vrot.lane.b32.xlu0 %v6375, 56
        %v6459 = vpop.permute.xlu0 %6458
        %v6460 = vsel %vm672, %v6405, %v6407
        %v6461 = vsel %vm672, %v6407, %v6409
        %v6462 = vsel %vm672, %v6409, %v6411
        %v6463 = vsel %vm672, %v6411, %v6413
        %v6464 = vsel %vm672, %v6413, %v6415
        %v6465 = vsel %vm672, %v6415, %v6417
        %v6466 = vsel %vm672, %v6419, %v6421
        %v6467 = vsel %vm672, %v6421, %v6423
        %v6468 = vsel %vm672, %v6423, %v6425
        %v6469 = vsel %vm672, %v6425, %v6427
        %v6470 = vsel %vm672, %v6427, %v6429
        %v6471 = vsel %vm672, %v6429, %v6431
        %v6472 = vsel %vm672, %v6433, %v6435
        %v6473 = vsel %vm672, %v6435, %v6437
        %v6474 = vsel %vm672, %v6437, %v6439
        %v6475 = vsel %vm672, %v6439, %v6441
        %v6476 = vsel %vm672, %v6441, %v6443
        %v6477 = vsel %vm672, %v6443, %v6445
        %v6478 = vsel %vm672, %v6447, %v6449
        %v6479 = vsel %vm672, %v6449, %v6451
        %v6480 = vsel %vm672, %v6451, %v6453
        %v6481 = vsel %vm672, %v6453, %v6455
        %v6482 = vsel %vm672, %v6455, %v6457
        %v6483 = vsel %vm672, %v6457, %v6459
        %v6508 = vmax.f32 %v6348, %v6460
        %v6509 = vmax.f32 %v6349, %v6461
        %v6510 = vmax.f32 %v6350, %v6462
        %v6511 = vmax.f32 %v6351, %v6463
        %v6512 = vmax.f32 %v6352, %v6464
        %v6513 = vmax.f32 %v6353, %v6465
        %v6514 = vmax.f32 %v6355, %v6466
        %v6515 = vmax.f32 %v6356, %v6467
        %v6516 = vmax.f32 %v6357, %v6468
        %v6517 = vmax.f32 %v6358, %v6469
        %v6518 = vmax.f32 %v6359, %v6470
        %v6519 = vmax.f32 %v6360, %v6471
        %v6520 = vmax.f32 %v6362, %v6472
        %v6521 = vmax.f32 %v6363, %v6473
        %v6522 = vmax.f32 %v6364, %v6474
        %v6523 = vmax.f32 %v6365, %v6475
        %v6524 = vmax.f32 %v6366, %v6476
        %v6525 = vmax.f32 %v6367, %v6477
        %v6526 = vmax.f32 %v6369, %v6478
        %v6527 = vmax.f32 %v6370, %v6479
        %v6528 = vmax.f32 %v6371, %v6480
        %v6529 = vmax.f32 %v6372, %v6481
        %v6530 = vmax.f32 %v6373, %v6482
        %v6531 = vmax.f32 %v6374, %v6483
        %6532 = vst [vmem:[#allocation2] sm:$0xff] %v6508
        %6533 = vst [vmem:[#allocation2 + $0x8] sm:$0xff] %v6509
        %6534 = vst [vmem:[#allocation2 + $0x10] sm:$0xff] %v6510
        %vm6535 = vcmask 498688
        %6536 = vst.msk [vmem:[#allocation2 + $0x18] sm:$0xff] %vm6535, %v6511
        %6537 = vst [vmem:[#allocation2 + $0x58] sm:$0xff] %v6514
        %6538 = vst [vmem:[#allocation2 + $0x60] sm:$0xff] %v6515
        %6539 = vst [vmem:[#allocation2 + $0x68] sm:$0xff] %v6516
        %6540 = vst.msk [vmem:[#allocation2 + $0x70] sm:$0xff] %vm6535, %v6517
        %6541 = vst [vmem:[#allocation2 + $0xb0] sm:$0xff] %v6520
        %6542 = vst [vmem:[#allocation2 + $0xb8] sm:$0xff] %v6521
        %6543 = vst [vmem:[#allocation2 + $0xc0] sm:$0xff] %v6522
        %6544 = vst.msk [vmem:[#allocation2 + $0xc8] sm:$0xff] %vm6535, %v6523
        %6545 = vst [vmem:[#allocation2 + $0x108] sm:$0xff] %v6526
        %6546 = vst [vmem:[#allocation2 + $0x110] sm:$0xff] %v6527
        %6547 = vst [vmem:[#allocation2 + $0x118] sm:$0xff] %v6528
        %6548 = vst.msk [vmem:[#allocation2 + $0x120] sm:$0xff] %vm6535, %v6529
        %6565 = vrot.lane.b32.xlu0 %v6508, 124
        %v6566 = vpop.permute.xlu0 %6565
        %6567 = vrot.lane.b32.xlu0 %v6509, 124
        %v6568 = vpop.permute.xlu0 %6567
        %6569 = vrot.lane.b32.xlu0 %v6510, 124
        %v6570 = vpop.permute.xlu0 %6569
        %6571 = vrot.lane.b32.xlu0 %v6511, 124
        %v6572 = vpop.permute.xlu0 %6571
        %6573 = vrot.lane.b32.xlu0 %v6514, 124
        %v6574 = vpop.permute.xlu0 %6573
        %6575 = vrot.lane.b32.xlu0 %v6515, 124
        %v6576 = vpop.permute.xlu0 %6575
        %6577 = vrot.lane.b32.xlu0 %v6516, 124
        %v6578 = vpop.permute.xlu0 %6577
        %6579 = vrot.lane.b32.xlu0 %v6517, 124
        %v6580 = vpop.permute.xlu0 %6579
        %6581 = vrot.lane.b32.xlu0 %v6520, 124
        %v6582 = vpop.permute.xlu0 %6581
        %6583 = vrot.lane.b32.xlu0 %v6521, 124
        %v6584 = vpop.permute.xlu0 %6583
        %6585 = vrot.lane.b32.xlu0 %v6522, 124
        %v6586 = vpop.permute.xlu0 %6585
        %6587 = vrot.lane.b32.xlu0 %v6523, 124
        %v6588 = vpop.permute.xlu0 %6587
        %6589 = vrot.lane.b32.xlu0 %v6526, 124
        %v6590 = vpop.permute.xlu0 %6589
        %6591 = vrot.lane.b32.xlu0 %v6527, 124
        %v6592 = vpop.permute.xlu0 %6591
        %6593 = vrot.lane.b32.xlu0 %v6528, 124
        %v6594 = vpop.permute.xlu0 %6593
        %6595 = vrot.lane.b32.xlu0 %v6529, 124
        %v6596 = vpop.permute.xlu0 %6595
        %v6597 = vsel %vm1204, %v6566, %v6568
        %v6598 = vsel %vm1204, %v6568, %v6570
        %v6599 = vsel %vm1204, %v6570, %v6572
        %v6600 = vsel %vm1204, %v6574, %v6576
        %v6601 = vsel %vm1204, %v6576, %v6578
        %v6602 = vsel %vm1204, %v6578, %v6580
        %v6603 = vsel %vm1204, %v6582, %v6584
        %v6604 = vsel %vm1204, %v6584, %v6586
        %v6605 = vsel %vm1204, %v6586, %v6588
        %v6606 = vsel %vm1204, %v6590, %v6592
        %v6607 = vsel %vm1204, %v6592, %v6594
        %v6608 = vsel %vm1204, %v6594, %v6596
        %6625 = vst [vmem:[#allocation2 + $0x160] sm:$0xff] %v6597
        %6626 = vst [vmem:[#allocation2 + $0x168] sm:$0xff] %v6598
        %6627 = vst [vmem:[#allocation2 + $0x170] sm:$0xff] %v6599
        %6628 = vst.msk [vmem:[#allocation2 + $0x178] sm:$0xff] %vm6535, %v6572
        %6629 = vst [vmem:[#allocation2 + $0x1b8] sm:$0xff] %v6600
        %6630 = vst [vmem:[#allocation2 + $0x1c0] sm:$0xff] %v6601
        %6631 = vst [vmem:[#allocation2 + $0x1c8] sm:$0xff] %v6602
        %6632 = vst.msk [vmem:[#allocation2 + $0x1d0] sm:$0xff] %vm6535, %v6580
        %6633 = vst [vmem:[#allocation2 + $0x210] sm:$0xff] %v6603
        %6634 = vst [vmem:[#allocation2 + $0x218] sm:$0xff] %v6604
        %6635 = vst [vmem:[#allocation2 + $0x220] sm:$0xff] %v6605
        %6636 = vst.msk [vmem:[#allocation2 + $0x228] sm:$0xff] %vm6535, %v6588
        %6637 = vst [vmem:[#allocation2 + $0x268] sm:$0xff] %v6606
        %6638 = vst [vmem:[#allocation2 + $0x270] sm:$0xff] %v6607
        %6639 = vst [vmem:[#allocation2 + $0x278] sm:$0xff] %v6608
        %6640 = vst.msk [vmem:[#allocation2 + $0x280] sm:$0xff] %vm6535, %v6596
        %6641 = vrot.lane.b32.xlu0 %v6508, 120
        %v6642 = vpop.permute.xlu0 %6641
        %6643 = vrot.lane.b32.xlu0 %v6509, 120
        %v6644 = vpop.permute.xlu0 %6643
        %6645 = vrot.lane.b32.xlu0 %v6510, 120
        %v6646 = vpop.permute.xlu0 %6645
        %6647 = vrot.lane.b32.xlu0 %v6511, 120
        %v6648 = vpop.permute.xlu0 %6647
        %6649 = vrot.lane.b32.xlu0 %v6514, 120
        %v6650 = vpop.permute.xlu0 %6649
        %6651 = vrot.lane.b32.xlu0 %v6515, 120
        %v6652 = vpop.permute.xlu0 %6651
        %6653 = vrot.lane.b32.xlu0 %v6516, 120
        %v6654 = vpop.permute.xlu0 %6653
        %6655 = vrot.lane.b32.xlu0 %v6517, 120
        %v6656 = vpop.permute.xlu0 %6655
        %6657 = vrot.lane.b32.xlu0 %v6520, 120
        %v6658 = vpop.permute.xlu0 %6657
        %6659 = vrot.lane.b32.xlu0 %v6521, 120
        %v6660 = vpop.permute.xlu0 %6659
        %6661 = vrot.lane.b32.xlu0 %v6522, 120
        %v6662 = vpop.permute.xlu0 %6661
        %6663 = vrot.lane.b32.xlu0 %v6523, 120
        %v6664 = vpop.permute.xlu0 %6663
        %6665 = vrot.lane.b32.xlu0 %v6526, 120
        %v6666 = vpop.permute.xlu0 %6665
        %6667 = vrot.lane.b32.xlu0 %v6527, 120
        %v6668 = vpop.permute.xlu0 %6667
        %6669 = vrot.lane.b32.xlu0 %v6528, 120
        %v6670 = vpop.permute.xlu0 %6669
        %6671 = vrot.lane.b32.xlu0 %v6529, 120
        %v6672 = vpop.permute.xlu0 %6671
        %vm6673 = vcmask 982016
        %v6674 = vsel %vm6673, %v6642, %v6644
        %v6675 = vsel %vm6673, %v6644, %v6646
        %v6676 = vsel %vm6673, %v6646, %v6648
        %v6677 = vsel %vm6673, %v6650, %v6652
        %v6678 = vsel %vm6673, %v6652, %v6654
        %v6679 = vsel %vm6673, %v6654, %v6656
        %v6680 = vsel %vm6673, %v6658, %v6660
        %v6681 = vsel %vm6673, %v6660, %v6662
        %v6682 = vsel %vm6673, %v6662, %v6664
        %v6683 = vsel %vm6673, %v6666, %v6668
        %v6684 = vsel %vm6673, %v6668, %v6670
        %v6685 = vsel %vm6673, %v6670, %v6672
        %6702 = vst [vmem:[#allocation2 + $0x2c0] sm:$0xff] %v6674
        %6703 = vst [vmem:[#allocation2 + $0x2c8] sm:$0xff] %v6675
        %6704 = vst [vmem:[#allocation2 + $0x2d0] sm:$0xff] %v6676
        %6705 = vst.msk [vmem:[#allocation2 + $0x2d8] sm:$0xff] %vm6535, %v6648
        %6706 = vst [vmem:[#allocation2 + $0x318] sm:$0xff] %v6677
        %6707 = vst [vmem:[#allocation2 + $0x320] sm:$0xff] %v6678
        %6708 = vst [vmem:[#allocation2 + $0x328] sm:$0xff] %v6679
        %6709 = vst.msk [vmem:[#allocation2 + $0x330] sm:$0xff] %vm6535, %v6656
        %6710 = vst [vmem:[#allocation2 + $0x370] sm:$0xff] %v6680
        %6711 = vst [vmem:[#allocation2 + $0x378] sm:$0xff] %v6681
        %6712 = vst [vmem:[#allocation2 + $0x380] sm:$0xff] %v6682
        %6713 = vst.msk [vmem:[#allocation2 + $0x388] sm:$0xff] %vm6535, %v6664
        %6714 = vst [vmem:[#allocation2 + $0x3c8] sm:$0xff] %v6683
        %6715 = vst [vmem:[#allocation2 + $0x3d0] sm:$0xff] %v6684
        %6716 = vst [vmem:[#allocation2 + $0x3d8] sm:$0xff] %v6685
        %6717 = vst.msk [vmem:[#allocation2 + $0x3e0] sm:$0xff] %vm6535, %v6672
        %6722 = vrot.lane.b32.xlu0 %v6509, 112
        %v6723 = vpop.permute.xlu0 %6722
        %6724 = vrot.lane.b32.xlu0 %v6510, 112
        %v6725 = vpop.permute.xlu0 %6724
        %6726 = vrot.lane.b32.xlu0 %v6511, 112
        %v6727 = vpop.permute.xlu0 %6726
        %6728 = vrot.lane.b32.xlu0 %v6512, 112
        %v6729 = vpop.permute.xlu0 %6728
        %6730 = vrot.lane.b32.xlu0 %v6515, 112
        %v6731 = vpop.permute.xlu0 %6730
        %6732 = vrot.lane.b32.xlu0 %v6516, 112
        %v6733 = vpop.permute.xlu0 %6732
        %6734 = vrot.lane.b32.xlu0 %v6517, 112
        %v6735 = vpop.permute.xlu0 %6734
        %6736 = vrot.lane.b32.xlu0 %v6518, 112
        %v6737 = vpop.permute.xlu0 %6736
        %6738 = vrot.lane.b32.xlu0 %v6521, 112
        %v6739 = vpop.permute.xlu0 %6738
        %6740 = vrot.lane.b32.xlu0 %v6522, 112
        %v6741 = vpop.permute.xlu0 %6740
        %6742 = vrot.lane.b32.xlu0 %v6523, 112
        %v6743 = vpop.permute.xlu0 %6742
        %6744 = vrot.lane.b32.xlu0 %v6524, 112
        %v6745 = vpop.permute.xlu0 %6744
        %6746 = vrot.lane.b32.xlu0 %v6527, 112
        %v6747 = vpop.permute.xlu0 %6746
        %6748 = vrot.lane.b32.xlu0 %v6528, 112
        %v6749 = vpop.permute.xlu0 %6748
        %6750 = vrot.lane.b32.xlu0 %v6529, 112
        %v6751 = vpop.permute.xlu0 %6750
        %6752 = vrot.lane.b32.xlu0 %v6530, 112
        %v6753 = vpop.permute.xlu0 %6752
        %v6754 = vsel %vm3249, %v6723, %v6725
        %v6755 = vsel %vm3249, %v6725, %v6727
        %v6756 = vsel %vm3249, %v6727, %v6729
        %v6757 = vsel %vm3249, %v6731, %v6733
        %v6758 = vsel %vm3249, %v6733, %v6735
        %v6759 = vsel %vm3249, %v6735, %v6737
        %v6760 = vsel %vm3249, %v6739, %v6741
        %v6761 = vsel %vm3249, %v6741, %v6743
        %v6762 = vsel %vm3249, %v6743, %v6745
        %v6763 = vsel %vm3249, %v6747, %v6749
        %v6764 = vsel %vm3249, %v6749, %v6751
        %v6765 = vsel %vm3249, %v6751, %v6753
        %6782 = vst [vmem:[#allocation2 + $0x420] sm:$0xff] %v6754
        %6783 = vst [vmem:[#allocation2 + $0x428] sm:$0xff] %v6755
        %6784 = vst [vmem:[#allocation2 + $0x430] sm:$0xff] %v6756
        %6785 = vst.msk [vmem:[#allocation2 + $0x438] sm:$0xff] %vm6535, %v6729
        %6786 = vst [vmem:[#allocation2 + $0x478] sm:$0xff] %v6757
        %6787 = vst [vmem:[#allocation2 + $0x480] sm:$0xff] %v6758
        %6788 = vst [vmem:[#allocation2 + $0x488] sm:$0xff] %v6759
        %6789 = vst.msk [vmem:[#allocation2 + $0x490] sm:$0xff] %vm6535, %v6737
        %6790 = vst [vmem:[#allocation2 + $0x4d0] sm:$0xff] %v6760
        %6791 = vst [vmem:[#allocation2 + $0x4d8] sm:$0xff] %v6761
        %6792 = vst [vmem:[#allocation2 + $0x4e0] sm:$0xff] %v6762
        %6793 = vst.msk [vmem:[#allocation2 + $0x4e8] sm:$0xff] %vm6535, %v6745
        %6794 = vst [vmem:[#allocation2 + $0x528] sm:$0xff] %v6763
        %6795 = vst [vmem:[#allocation2 + $0x530] sm:$0xff] %v6764
        %6796 = vst [vmem:[#allocation2 + $0x538] sm:$0xff] %v6765
        %6797 = vst.msk [vmem:[#allocation2 + $0x540] sm:$0xff] %vm6535, %v6753
        %6798 = vrot.lane.b32.xlu0 %v6509, 108
        %v6799 = vpop.permute.xlu0 %6798
        %6800 = vrot.lane.b32.xlu0 %v6510, 108
        %v6801 = vpop.permute.xlu0 %6800
        %6802 = vrot.lane.b32.xlu0 %v6511, 108
        %v6803 = vpop.permute.xlu0 %6802
        %6804 = vrot.lane.b32.xlu0 %v6512, 108
        %v6805 = vpop.permute.xlu0 %6804
        %6806 = vrot.lane.b32.xlu0 %v6515, 108
        %v6807 = vpop.permute.xlu0 %6806
        %6808 = vrot.lane.b32.xlu0 %v6516, 108
        %v6809 = vpop.permute.xlu0 %6808
        %6810 = vrot.lane.b32.xlu0 %v6517, 108
        %v6811 = vpop.permute.xlu0 %6810
        %6812 = vrot.lane.b32.xlu0 %v6518, 108
        %v6813 = vpop.permute.xlu0 %6812
        %6814 = vrot.lane.b32.xlu0 %v6521, 108
        %v6815 = vpop.permute.xlu0 %6814
        %6816 = vrot.lane.b32.xlu0 %v6522, 108
        %v6817 = vpop.permute.xlu0 %6816
        %6818 = vrot.lane.b32.xlu0 %v6523, 108
        %v6819 = vpop.permute.xlu0 %6818
        %6820 = vrot.lane.b32.xlu0 %v6524, 108
        %v6821 = vpop.permute.xlu0 %6820
        %6822 = vrot.lane.b32.xlu0 %v6527, 108
        %v6823 = vpop.permute.xlu0 %6822
        %6824 = vrot.lane.b32.xlu0 %v6528, 108
        %v6825 = vpop.permute.xlu0 %6824
        %6826 = vrot.lane.b32.xlu0 %v6529, 108
        %v6827 = vpop.permute.xlu0 %6826
        %6828 = vrot.lane.b32.xlu0 %v6530, 108
        %v6829 = vpop.permute.xlu0 %6828
        %v6830 = vsel %vm3407, %v6799, %v6801
        %v6831 = vsel %vm3407, %v6801, %v6803
        %v6832 = vsel %vm3407, %v6803, %v6805
        %v6833 = vsel %vm3407, %v6807, %v6809
        %v6834 = vsel %vm3407, %v6809, %v6811
        %v6835 = vsel %vm3407, %v6811, %v6813
        %v6836 = vsel %vm3407, %v6815, %v6817
        %v6837 = vsel %vm3407, %v6817, %v6819
        %v6838 = vsel %vm3407, %v6819, %v6821
        %v6839 = vsel %vm3407, %v6823, %v6825
        %v6840 = vsel %vm3407, %v6825, %v6827
        %v6841 = vsel %vm3407, %v6827, %v6829
        %6858 = vst [vmem:[#allocation2 + $0x580] sm:$0xff] %v6830
        %6859 = vst [vmem:[#allocation2 + $0x588] sm:$0xff] %v6831
        %6860 = vst [vmem:[#allocation2 + $0x590] sm:$0xff] %v6832
        %6861 = vst.msk [vmem:[#allocation2 + $0x598] sm:$0xff] %vm6535, %v6805
        %6862 = vst [vmem:[#allocation2 + $0x5d8] sm:$0xff] %v6833
        %6863 = vst [vmem:[#allocation2 + $0x5e0] sm:$0xff] %v6834
        %6864 = vst [vmem:[#allocation2 + $0x5e8] sm:$0xff] %v6835
        %6865 = vst.msk [vmem:[#allocation2 + $0x5f0] sm:$0xff] %vm6535, %v6813
        %6866 = vst [vmem:[#allocation2 + $0x630] sm:$0xff] %v6836
        %6867 = vst [vmem:[#allocation2 + $0x638] sm:$0xff] %v6837
        %6868 = vst [vmem:[#allocation2 + $0x640] sm:$0xff] %v6838
        %6869 = vst.msk [vmem:[#allocation2 + $0x648] sm:$0xff] %vm6535, %v6821
        %6870 = vst [vmem:[#allocation2 + $0x688] sm:$0xff] %v6839
        %6871 = vst [vmem:[#allocation2 + $0x690] sm:$0xff] %v6840
        %6872 = vst [vmem:[#allocation2 + $0x698] sm:$0xff] %v6841
        %6873 = vst.msk [vmem:[#allocation2 + $0x6a0] sm:$0xff] %vm6535, %v6829
        %6874 = vrot.lane.b32.xlu0 %v6509, 104
        %v6875 = vpop.permute.xlu0 %6874
        %6876 = vrot.lane.b32.xlu0 %v6510, 104
        %v6877 = vpop.permute.xlu0 %6876
        %6878 = vrot.lane.b32.xlu0 %v6511, 104
        %v6879 = vpop.permute.xlu0 %6878
        %6880 = vrot.lane.b32.xlu0 %v6512, 104
        %v6881 = vpop.permute.xlu0 %6880
        %6882 = vrot.lane.b32.xlu0 %v6515, 104
        %v6883 = vpop.permute.xlu0 %6882
        %6884 = vrot.lane.b32.xlu0 %v6516, 104
        %v6885 = vpop.permute.xlu0 %6884
        %6886 = vrot.lane.b32.xlu0 %v6517, 104
        %v6887 = vpop.permute.xlu0 %6886
        %6888 = vrot.lane.b32.xlu0 %v6518, 104
        %v6889 = vpop.permute.xlu0 %6888
        %6890 = vrot.lane.b32.xlu0 %v6521, 104
        %v6891 = vpop.permute.xlu0 %6890
        %6892 = vrot.lane.b32.xlu0 %v6522, 104
        %v6893 = vpop.permute.xlu0 %6892
        %6894 = vrot.lane.b32.xlu0 %v6523, 104
        %v6895 = vpop.permute.xlu0 %6894
        %6896 = vrot.lane.b32.xlu0 %v6524, 104
        %v6897 = vpop.permute.xlu0 %6896
        %6898 = vrot.lane.b32.xlu0 %v6527, 104
        %v6899 = vpop.permute.xlu0 %6898
        %6900 = vrot.lane.b32.xlu0 %v6528, 104
        %v6901 = vpop.permute.xlu0 %6900
        %6902 = vrot.lane.b32.xlu0 %v6529, 104
        %v6903 = vpop.permute.xlu0 %6902
        %6904 = vrot.lane.b32.xlu0 %v6530, 104
        %v6905 = vpop.permute.xlu0 %6904
        %vm6906 = vcmask 850944
        %v6907 = vsel %vm6906, %v6875, %v6877
        %v6908 = vsel %vm6906, %v6877, %v6879
        %v6909 = vsel %vm6906, %v6879, %v6881
        %v6910 = vsel %vm6906, %v6883, %v6885
        %v6911 = vsel %vm6906, %v6885, %v6887
        %v6912 = vsel %vm6906, %v6887, %v6889
        %v6913 = vsel %vm6906, %v6891, %v6893
        %v6914 = vsel %vm6906, %v6893, %v6895
        %v6915 = vsel %vm6906, %v6895, %v6897
        %v6916 = vsel %vm6906, %v6899, %v6901
        %v6917 = vsel %vm6906, %v6901, %v6903
        %v6918 = vsel %vm6906, %v6903, %v6905
        %6935 = vst [vmem:[#allocation2 + $0x6e0] sm:$0xff] %v6907
        %6936 = vst [vmem:[#allocation2 + $0x6e8] sm:$0xff] %v6908
        %6937 = vst [vmem:[#allocation2 + $0x6f0] sm:$0xff] %v6909
        %6938 = vst.msk [vmem:[#allocation2 + $0x6f8] sm:$0xff] %vm6535, %v6881
        %6939 = vst [vmem:[#allocation2 + $0x738] sm:$0xff] %v6910
        %6940 = vst [vmem:[#allocation2 + $0x740] sm:$0xff] %v6911
        %6941 = vst [vmem:[#allocation2 + $0x748] sm:$0xff] %v6912
        %6942 = vst.msk [vmem:[#allocation2 + $0x750] sm:$0xff] %vm6535, %v6889
        %6943 = vst [vmem:[#allocation2 + $0x790] sm:$0xff] %v6913
        %6944 = vst [vmem:[#allocation2 + $0x798] sm:$0xff] %v6914
        %6945 = vst [vmem:[#allocation2 + $0x7a0] sm:$0xff] %v6915
        %6946 = vst.msk [vmem:[#allocation2 + $0x7a8] sm:$0xff] %vm6535, %v6897
        %6947 = vst [vmem:[#allocation2 + $0x7e8] sm:$0xff] %v6916
        %6948 = vst [vmem:[#allocation2 + $0x7f0] sm:$0xff] %v6917
        %6949 = vst [vmem:[#allocation2 + $0x7f8] sm:$0xff] %v6918
        %6950 = vst.msk [vmem:[#allocation2 + $0x800] sm:$0xff] %vm6535, %v6905
        %6955 = vrot.lane.b32.xlu0 %v6510, 96
        %v6956 = vpop.permute.xlu0 %6955
        %6957 = vrot.lane.b32.xlu0 %v6511, 96
        %v6958 = vpop.permute.xlu0 %6957
        %6959 = vrot.lane.b32.xlu0 %v6512, 96
        %v6960 = vpop.permute.xlu0 %6959
        %6961 = vrot.lane.b32.xlu0 %v6513, 96
        %v6962 = vpop.permute.xlu0 %6961
        %6963 = vrot.lane.b32.xlu0 %v6516, 96
        %v6964 = vpop.permute.xlu0 %6963
        %6965 = vrot.lane.b32.xlu0 %v6517, 96
        %v6966 = vpop.permute.xlu0 %6965
        %6967 = vrot.lane.b32.xlu0 %v6518, 96
        %v6968 = vpop.permute.xlu0 %6967
        %6969 = vrot.lane.b32.xlu0 %v6519, 96
        %v6970 = vpop.permute.xlu0 %6969
        %6971 = vrot.lane.b32.xlu0 %v6522, 96
        %v6972 = vpop.permute.xlu0 %6971
        %6973 = vrot.lane.b32.xlu0 %v6523, 96
        %v6974 = vpop.permute.xlu0 %6973
        %6975 = vrot.lane.b32.xlu0 %v6524, 96
        %v6976 = vpop.permute.xlu0 %6975
        %6977 = vrot.lane.b32.xlu0 %v6525, 96
        %v6978 = vpop.permute.xlu0 %6977
        %6979 = vrot.lane.b32.xlu0 %v6528, 96
        %v6980 = vpop.permute.xlu0 %6979
        %6981 = vrot.lane.b32.xlu0 %v6529, 96
        %v6982 = vpop.permute.xlu0 %6981
        %6983 = vrot.lane.b32.xlu0 %v6530, 96
        %v6984 = vpop.permute.xlu0 %6983
        %6985 = vrot.lane.b32.xlu0 %v6531, 96
        %v6986 = vpop.permute.xlu0 %6985
        %vm6987 = vcmask 785408
        %v6988 = vsel %vm6987, %v6956, %v6958
        %v6989 = vsel %vm6987, %v6958, %v6960
        %v6990 = vsel %vm6987, %v6960, %v6962
        %v6991 = vsel %vm6987, %v6964, %v6966
        %v6992 = vsel %vm6987, %v6966, %v6968
        %v6993 = vsel %vm6987, %v6968, %v6970
        %v6994 = vsel %vm6987, %v6972, %v6974
        %v6995 = vsel %vm6987, %v6974, %v6976
        %v6996 = vsel %vm6987, %v6976, %v6978
        %v6997 = vsel %vm6987, %v6980, %v6982
        %v6998 = vsel %vm6987, %v6982, %v6984
        %v6999 = vsel %vm6987, %v6984, %v6986
        %7016 = vst [vmem:[#allocation2 + $0x840] sm:$0xff] %v6988
        %7017 = vst [vmem:[#allocation2 + $0x848] sm:$0xff] %v6989
        %7018 = vst [vmem:[#allocation2 + $0x850] sm:$0xff] %v6990
        %7019 = vst.msk [vmem:[#allocation2 + $0x858] sm:$0xff] %vm6535, %v6962
        %7020 = vst [vmem:[#allocation2 + $0x898] sm:$0xff] %v6991
        %7021 = vst [vmem:[#allocation2 + $0x8a0] sm:$0xff] %v6992
        %7022 = vst [vmem:[#allocation2 + $0x8a8] sm:$0xff] %v6993
        %7023 = vst.msk [vmem:[#allocation2 + $0x8b0] sm:$0xff] %vm6535, %v6970
        %7024 = vst [vmem:[#allocation2 + $0x8f0] sm:$0xff] %v6994
        %7025 = vst [vmem:[#allocation2 + $0x8f8] sm:$0xff] %v6995
        %7026 = vst [vmem:[#allocation2 + $0x900] sm:$0xff] %v6996
        %7027 = vst.msk [vmem:[#allocation2 + $0x908] sm:$0xff] %vm6535, %v6978
        %7028 = vst [vmem:[#allocation2 + $0x948] sm:$0xff] %v6997
        %7029 = vst [vmem:[#allocation2 + $0x950] sm:$0xff] %v6998
        %7030 = vst [vmem:[#allocation2 + $0x958] sm:$0xff] %v6999
        %7031 = vst.msk [vmem:[#allocation2 + $0x960] sm:$0xff] %vm6535, %v6986
        %7032 = vrot.lane.b32.xlu0 %v6510, 92
        %v7033 = vpop.permute.xlu0 %7032
        %7034 = vrot.lane.b32.xlu0 %v6511, 92
        %v7035 = vpop.permute.xlu0 %7034
        %7036 = vrot.lane.b32.xlu0 %v6512, 92
        %v7037 = vpop.permute.xlu0 %7036
        %7038 = vrot.lane.b32.xlu0 %v6513, 92
        %v7039 = vpop.permute.xlu0 %7038
        %7040 = vrot.lane.b32.xlu0 %v6516, 92
        %v7041 = vpop.permute.xlu0 %7040
        %7042 = vrot.lane.b32.xlu0 %v6517, 92
        %v7043 = vpop.permute.xlu0 %7042
        %7044 = vrot.lane.b32.xlu0 %v6518, 92
        %v7045 = vpop.permute.xlu0 %7044
        %7046 = vrot.lane.b32.xlu0 %v6519, 92
        %v7047 = vpop.permute.xlu0 %7046
        %7048 = vrot.lane.b32.xlu0 %v6522, 92
        %v7049 = vpop.permute.xlu0 %7048
        %7050 = vrot.lane.b32.xlu0 %v6523, 92
        %v7051 = vpop.permute.xlu0 %7050
        %7052 = vrot.lane.b32.xlu0 %v6524, 92
        %v7053 = vpop.permute.xlu0 %7052
        %7054 = vrot.lane.b32.xlu0 %v6525, 92
        %v7055 = vpop.permute.xlu0 %7054
        %7056 = vrot.lane.b32.xlu0 %v6528, 92
        %v7057 = vpop.permute.xlu0 %7056
        %7058 = vrot.lane.b32.xlu0 %v6529, 92
        %v7059 = vpop.permute.xlu0 %7058
        %7060 = vrot.lane.b32.xlu0 %v6530, 92
        %v7061 = vpop.permute.xlu0 %7060
        %7062 = vrot.lane.b32.xlu0 %v6531, 92
        %v7063 = vpop.permute.xlu0 %7062
        %v7064 = vsel %vm618, %v7033, %v7035
        %v7065 = vsel %vm618, %v7035, %v7037
        %v7066 = vsel %vm618, %v7037, %v7039
        %v7067 = vsel %vm618, %v7041, %v7043
        %v7068 = vsel %vm618, %v7043, %v7045
        %v7069 = vsel %vm618, %v7045, %v7047
        %v7070 = vsel %vm618, %v7049, %v7051
        %v7071 = vsel %vm618, %v7051, %v7053
        %v7072 = vsel %vm618, %v7053, %v7055
        %v7073 = vsel %vm618, %v7057, %v7059
        %v7074 = vsel %vm618, %v7059, %v7061
        %v7075 = vsel %vm618, %v7061, %v7063
        %7092 = vst [vmem:[#allocation2 + $0x9a0] sm:$0xff] %v7064
        %7093 = vst [vmem:[#allocation2 + $0x9a8] sm:$0xff] %v7065
        %7094 = vst [vmem:[#allocation2 + $0x9b0] sm:$0xff] %v7066
        %7095 = vst.msk [vmem:[#allocation2 + $0x9b8] sm:$0xff] %vm6535, %v7039
        %7096 = vst [vmem:[#allocation2 + $0x9f8] sm:$0xff] %v7067
        %7097 = vst [vmem:[#allocation2 + $0xa00] sm:$0xff] %v7068
        %7098 = vst [vmem:[#allocation2 + $0xa08] sm:$0xff] %v7069
        %7099 = vst.msk [vmem:[#allocation2 + $0xa10] sm:$0xff] %vm6535, %v7047
        %7100 = vst [vmem:[#allocation2 + $0xa50] sm:$0xff] %v7070
        %7101 = vst [vmem:[#allocation2 + $0xa58] sm:$0xff] %v7071
        %7102 = vst [vmem:[#allocation2 + $0xa60] sm:$0xff] %v7072
        %7103 = vst.msk [vmem:[#allocation2 + $0xa68] sm:$0xff] %vm6535, %v7055
        %7104 = vst [vmem:[#allocation2 + $0xaa8] sm:$0xff] %v7073
        %7105 = vst [vmem:[#allocation2 + $0xab0] sm:$0xff] %v7074
        %7106 = vst [vmem:[#allocation2 + $0xab8] sm:$0xff] %v7075
        %7107 = vst.msk [vmem:[#allocation2 + $0xac0] sm:$0xff] %vm6535, %v7063
        %7108 = vrot.lane.b32.xlu0 %v6510, 88
        %v7109 = vpop.permute.xlu0 %7108
        %7110 = vrot.lane.b32.xlu0 %v6511, 88
        %v7111 = vpop.permute.xlu0 %7110
        %7112 = vrot.lane.b32.xlu0 %v6512, 88
        %v7113 = vpop.permute.xlu0 %7112
        %7114 = vrot.lane.b32.xlu0 %v6513, 88
        %v7115 = vpop.permute.xlu0 %7114
        %7116 = vrot.lane.b32.xlu0 %v6516, 88
        %v7117 = vpop.permute.xlu0 %7116
        %7118 = vrot.lane.b32.xlu0 %v6517, 88
        %v7119 = vpop.permute.xlu0 %7118
        %7120 = vrot.lane.b32.xlu0 %v6518, 88
        %v7121 = vpop.permute.xlu0 %7120
        %7122 = vrot.lane.b32.xlu0 %v6519, 88
        %v7123 = vpop.permute.xlu0 %7122
        %7124 = vrot.lane.b32.xlu0 %v6522, 88
        %v7125 = vpop.permute.xlu0 %7124
        %7126 = vrot.lane.b32.xlu0 %v6523, 88
        %v7127 = vpop.permute.xlu0 %7126
        %7128 = vrot.lane.b32.xlu0 %v6524, 88
        %v7129 = vpop.permute.xlu0 %7128
        %7130 = vrot.lane.b32.xlu0 %v6525, 88
        %v7131 = vpop.permute.xlu0 %7130
        %7132 = vrot.lane.b32.xlu0 %v6528, 88
        %v7133 = vpop.permute.xlu0 %7132
        %7134 = vrot.lane.b32.xlu0 %v6529, 88
        %v7135 = vpop.permute.xlu0 %7134
        %7136 = vrot.lane.b32.xlu0 %v6530, 88
        %v7137 = vpop.permute.xlu0 %7136
        %7138 = vrot.lane.b32.xlu0 %v6531, 88
        %v7139 = vpop.permute.xlu0 %7138
        %vm7140 = vcmask 719872
        %v7141 = vsel %vm7140, %v7109, %v7111
        %v7142 = vsel %vm7140, %v7111, %v7113
        %v7143 = vsel %vm7140, %v7113, %v7115
        %v7144 = vsel %vm7140, %v7117, %v7119
        %v7145 = vsel %vm7140, %v7119, %v7121
        %v7146 = vsel %vm7140, %v7121, %v7123
        %v7147 = vsel %vm7140, %v7125, %v7127
        %v7148 = vsel %vm7140, %v7127, %v7129
        %v7149 = vsel %vm7140, %v7129, %v7131
        %v7150 = vsel %vm7140, %v7133, %v7135
        %v7151 = vsel %vm7140, %v7135, %v7137
        %v7152 = vsel %vm7140, %v7137, %v7139
        %7169 = vst [vmem:[#allocation2 + $0xb00] sm:$0xff] %v7141
        %7170 = vst [vmem:[#allocation2 + $0xb08] sm:$0xff] %v7142
        %7171 = vst [vmem:[#allocation2 + $0xb10] sm:$0xff] %v7143
        %7172 = vst.msk [vmem:[#allocation2 + $0xb18] sm:$0xff] %vm6535, %v7115
        %7173 = vst [vmem:[#allocation2 + $0xb58] sm:$0xff] %v7144
        %7174 = vst [vmem:[#allocation2 + $0xb60] sm:$0xff] %v7145
        %7175 = vst [vmem:[#allocation2 + $0xb68] sm:$0xff] %v7146
        %7176 = vst.msk [vmem:[#allocation2 + $0xb70] sm:$0xff] %vm6535, %v7123
        %7177 = vst [vmem:[#allocation2 + $0xbb0] sm:$0xff] %v7147
        %7178 = vst [vmem:[#allocation2 + $0xbb8] sm:$0xff] %v7148
        %7179 = vst [vmem:[#allocation2 + $0xbc0] sm:$0xff] %v7149
        %7180 = vst.msk [vmem:[#allocation2 + $0xbc8] sm:$0xff] %vm6535, %v7131
        %7181 = vst [vmem:[#allocation2 + $0xc08] sm:$0xff] %v7150
        %7182 = vst [vmem:[#allocation2 + $0xc10] sm:$0xff] %v7151
        %7183 = vst [vmem:[#allocation2 + $0xc18] sm:$0xff] %v7152
        %7184 = vst.msk [vmem:[#allocation2 + $0xc20] sm:$0xff] %vm6535, %v7139
        %v7185 = vld [vmem:[#allocation7] sm:$0xff]
        %v7186 = vld [vmem:[#allocation7 + $0x8] sm:$0xff]
        %v7187 = vld [vmem:[#allocation7 + $0x10] sm:$0xff]
        %v7188 = vld [vmem:[#allocation7 + $0x18] sm:$0xff]
        %v7189 = vld [vmem:[#allocation7 + $0x20] sm:$0xff]
        %v7190 = vld [vmem:[#allocation7 + $0x28] sm:$0xff]
        %v7191 = vld [vmem:[#allocation7 + $0x30] sm:$0xff]
        %v7192 = vld [vmem:[#allocation7 + $0x38] sm:$0xff]
        %v7193 = vld [vmem:[#allocation7 + $0x40] sm:$0xff]
        %v7194 = vld [vmem:[#allocation7 + $0x48] sm:$0xff]
        %v7195 = vld [vmem:[#allocation7 + $0x50] sm:$0xff]
        %v7196 = vld [vmem:[#allocation7 + $0x58] sm:$0xff]
        %v7197 = vld [vmem:[#allocation7 + $0x60] sm:$0xff]
        %v7198 = vld [vmem:[#allocation7 + $0x68] sm:$0xff]
        %v7199 = vld [vmem:[#allocation7 + $0x70] sm:$0xff]
        %v7200 = vld [vmem:[#allocation7 + $0x78] sm:$0xff]
        %v7201 = vld [vmem:[#allocation7 + $0x80] sm:$0xff]
        %v7202 = vld [vmem:[#allocation7 + $0x88] sm:$0xff]
        %v7203 = vld [vmem:[#allocation7 + $0x90] sm:$0xff]
        %v7204 = vld [vmem:[#allocation7 + $0x98] sm:$0xff]
        %v7205 = vld [vmem:[#allocation7 + $0xa0] sm:$0xff]
        %v7206 = vld [vmem:[#allocation7 + $0xa8] sm:$0xff]
        %v7207 = vld [vmem:[#allocation7 + $0xb0] sm:$0xff]
        %v7208 = vld [vmem:[#allocation7 + $0xb8] sm:$0xff]
        %v7209 = vld [vmem:[#allocation2] sm:$0xff]
        %v7210 = vld [vmem:[#allocation2 + $0x8] sm:$0xff]
        %v7211 = vld [vmem:[#allocation2 + $0x10] sm:$0xff]
        %v7212 = vld [vmem:[#allocation2 + $0x18] sm:$0xff]
        %v7213 = vld [vmem:[#allocation2 + $0x58] sm:$0xff]
        %v7214 = vld [vmem:[#allocation2 + $0x60] sm:$0xff]
        %v7215 = vld [vmem:[#allocation2 + $0x68] sm:$0xff]
        %v7216 = vld [vmem:[#allocation2 + $0x70] sm:$0xff]
        %v7217 = vld [vmem:[#allocation2 + $0xb0] sm:$0xff]
        %v7218 = vld [vmem:[#allocation2 + $0xb8] sm:$0xff]
        %v7219 = vld [vmem:[#allocation2 + $0xc0] sm:$0xff]
        %v7220 = vld [vmem:[#allocation2 + $0xc8] sm:$0xff]
        %v7221 = vld [vmem:[#allocation2 + $0x108] sm:$0xff]
        %v7222 = vld [vmem:[#allocation2 + $0x110] sm:$0xff]
        %v7223 = vld [vmem:[#allocation2 + $0x118] sm:$0xff]
        %v7224 = vld [vmem:[#allocation2 + $0x120] sm:$0xff]
        %v7225 = vld [vmem:[#allocation2 + $0x160] sm:$0xff]
        %v7226 = vld [vmem:[#allocation2 + $0x168] sm:$0xff]
        %v7227 = vld [vmem:[#allocation2 + $0x170] sm:$0xff]
        %v7228 = vld [vmem:[#allocation2 + $0x178] sm:$0xff]
        %v7229 = vld [vmem:[#allocation2 + $0x1b8] sm:$0xff]
        %v7230 = vld [vmem:[#allocation2 + $0x1c0] sm:$0xff]
        %v7231 = vld [vmem:[#allocation2 + $0x1c8] sm:$0xff]
        %v7232 = vld [vmem:[#allocation2 + $0x1d0] sm:$0xff]
        %v7233 = vld [vmem:[#allocation2 + $0x210] sm:$0xff]
        %v7234 = vld [vmem:[#allocation2 + $0x218] sm:$0xff]
        %v7235 = vld [vmem:[#allocation2 + $0x220] sm:$0xff]
        %v7236 = vld [vmem:[#allocation2 + $0x228] sm:$0xff]
        %v7237 = vld [vmem:[#allocation2 + $0x268] sm:$0xff]
        %v7238 = vld [vmem:[#allocation2 + $0x270] sm:$0xff]
        %v7239 = vld [vmem:[#allocation2 + $0x278] sm:$0xff]
        %v7240 = vld [vmem:[#allocation2 + $0x280] sm:$0xff]
        %v7241 = vld [vmem:[#allocation2 + $0x2c0] sm:$0xff]
        %v7242 = vld [vmem:[#allocation2 + $0x2c8] sm:$0xff]
        %v7243 = vld [vmem:[#allocation2 + $0x2d0] sm:$0xff]
        %v7244 = vld [vmem:[#allocation2 + $0x2d8] sm:$0xff]
        %v7245 = vld [vmem:[#allocation2 + $0x318] sm:$0xff]
        %v7246 = vld [vmem:[#allocation2 + $0x320] sm:$0xff]
        %v7247 = vld [vmem:[#allocation2 + $0x328] sm:$0xff]
        %v7248 = vld [vmem:[#allocation2 + $0x330] sm:$0xff]
        %v7249 = vld [vmem:[#allocation2 + $0x370] sm:$0xff]
        %v7250 = vld [vmem:[#allocation2 + $0x378] sm:$0xff]
        %v7251 = vld [vmem:[#allocation2 + $0x380] sm:$0xff]
        %v7252 = vld [vmem:[#allocation2 + $0x388] sm:$0xff]
        %v7253 = vld [vmem:[#allocation2 + $0x3c8] sm:$0xff]
        %v7254 = vld [vmem:[#allocation2 + $0x3d0] sm:$0xff]
        %v7255 = vld [vmem:[#allocation2 + $0x3d8] sm:$0xff]
        %v7256 = vld [vmem:[#allocation2 + $0x3e0] sm:$0xff]
        %v7257 = vld [vmem:[#allocation2 + $0x420] sm:$0xff]
        %v7258 = vld [vmem:[#allocation2 + $0x428] sm:$0xff]
        %v7259 = vld [vmem:[#allocation2 + $0x430] sm:$0xff]
        %v7260 = vld [vmem:[#allocation2 + $0x438] sm:$0xff]
        %v7261 = vld [vmem:[#allocation2 + $0x478] sm:$0xff]
        %v7262 = vld [vmem:[#allocation2 + $0x480] sm:$0xff]
        %v7263 = vld [vmem:[#allocation2 + $0x488] sm:$0xff]
        %v7264 = vld [vmem:[#allocation2 + $0x490] sm:$0xff]
        %v7265 = vld [vmem:[#allocation2 + $0x4d0] sm:$0xff]
        %v7266 = vld [vmem:[#allocation2 + $0x4d8] sm:$0xff]
        %v7267 = vld [vmem:[#allocation2 + $0x4e0] sm:$0xff]
        %v7268 = vld [vmem:[#allocation2 + $0x4e8] sm:$0xff]
        %v7269 = vld [vmem:[#allocation2 + $0x528] sm:$0xff]
        %v7270 = vld [vmem:[#allocation2 + $0x530] sm:$0xff]
        %v7271 = vld [vmem:[#allocation2 + $0x538] sm:$0xff]
        %v7272 = vld [vmem:[#allocation2 + $0x540] sm:$0xff]
        %v7273 = vld [vmem:[#allocation2 + $0x580] sm:$0xff]
        %v7274 = vld [vmem:[#allocation2 + $0x588] sm:$0xff]
        %v7275 = vld [vmem:[#allocation2 + $0x590] sm:$0xff]
        %v7276 = vld [vmem:[#allocation2 + $0x598] sm:$0xff]
        %v7277 = vld [vmem:[#allocation2 + $0x5d8] sm:$0xff]
        %v7278 = vld [vmem:[#allocation2 + $0x5e0] sm:$0xff]
        %v7279 = vld [vmem:[#allocation2 + $0x5e8] sm:$0xff]
        %v7280 = vld [vmem:[#allocation2 + $0x5f0] sm:$0xff]
        %v7281 = vld [vmem:[#allocation2 + $0x630] sm:$0xff]
        %v7282 = vld [vmem:[#allocation2 + $0x638] sm:$0xff]
        %v7283 = vld [vmem:[#allocation2 + $0x640] sm:$0xff]
        %v7284 = vld [vmem:[#allocation2 + $0x648] sm:$0xff]
        %v7285 = vld [vmem:[#allocation2 + $0x688] sm:$0xff]
        %v7286 = vld [vmem:[#allocation2 + $0x690] sm:$0xff]
        %v7287 = vld [vmem:[#allocation2 + $0x698] sm:$0xff]
        %v7288 = vld [vmem:[#allocation2 + $0x6a0] sm:$0xff]
        %v7289 = vld [vmem:[#allocation2 + $0x6e0] sm:$0xff]
        %v7290 = vld [vmem:[#allocation2 + $0x6e8] sm:$0xff]
        %v7291 = vld [vmem:[#allocation2 + $0x6f0] sm:$0xff]
        %v7292 = vld [vmem:[#allocation2 + $0x6f8] sm:$0xff]
        %v7293 = vld [vmem:[#allocation2 + $0x738] sm:$0xff]
        %v7294 = vld [vmem:[#allocation2 + $0x740] sm:$0xff]
        %v7295 = vld [vmem:[#allocation2 + $0x748] sm:$0xff]
        %v7296 = vld [vmem:[#allocation2 + $0x750] sm:$0xff]
        %v7297 = vld [vmem:[#allocation2 + $0x790] sm:$0xff]
        %v7298 = vld [vmem:[#allocation2 + $0x798] sm:$0xff]
        %v7299 = vld [vmem:[#allocation2 + $0x7a0] sm:$0xff]
        %v7300 = vld [vmem:[#allocation2 + $0x7a8] sm:$0xff]
        %v7301 = vld [vmem:[#allocation2 + $0x7e8] sm:$0xff]
        %v7302 = vld [vmem:[#allocation2 + $0x7f0] sm:$0xff]
        %v7303 = vld [vmem:[#allocation2 + $0x7f8] sm:$0xff]
        %v7304 = vld [vmem:[#allocation2 + $0x800] sm:$0xff]
        %v7305 = vld [vmem:[#allocation2 + $0x840] sm:$0xff]
        %v7306 = vld [vmem:[#allocation2 + $0x848] sm:$0xff]
        %v7307 = vld [vmem:[#allocation2 + $0x850] sm:$0xff]
        %v7308 = vld [vmem:[#allocation2 + $0x858] sm:$0xff]
        %v7309 = vld [vmem:[#allocation2 + $0x898] sm:$0xff]
        %v7310 = vld [vmem:[#allocation2 + $0x8a0] sm:$0xff]
        %v7311 = vld [vmem:[#allocation2 + $0x8a8] sm:$0xff]
        %v7312 = vld [vmem:[#allocation2 + $0x8b0] sm:$0xff]
        %v7313 = vld [vmem:[#allocation2 + $0x8f0] sm:$0xff]
        %v7314 = vld [vmem:[#allocation2 + $0x8f8] sm:$0xff]
        %v7315 = vld [vmem:[#allocation2 + $0x900] sm:$0xff]
        %v7316 = vld [vmem:[#allocation2 + $0x908] sm:$0xff]
        %v7317 = vld [vmem:[#allocation2 + $0x948] sm:$0xff]
        %v7318 = vld [vmem:[#allocation2 + $0x950] sm:$0xff]
        %v7319 = vld [vmem:[#allocation2 + $0x958] sm:$0xff]
        %v7320 = vld [vmem:[#allocation2 + $0x960] sm:$0xff]
        %v7321 = vld [vmem:[#allocation2 + $0x9a0] sm:$0xff]
        %v7322 = vld [vmem:[#allocation2 + $0x9a8] sm:$0xff]
        %v7323 = vld [vmem:[#allocation2 + $0x9b0] sm:$0xff]
        %v7324 = vld [vmem:[#allocation2 + $0x9b8] sm:$0xff]
        %v7325 = vld [vmem:[#allocation2 + $0x9f8] sm:$0xff]
        %v7326 = vld [vmem:[#allocation2 + $0xa00] sm:$0xff]
        %v7327 = vld [vmem:[#allocation2 + $0xa08] sm:$0xff]
        %v7328 = vld [vmem:[#allocation2 + $0xa10] sm:$0xff]
        %v7329 = vld [vmem:[#allocation2 + $0xa50] sm:$0xff]
        %v7330 = vld [vmem:[#allocation2 + $0xa58] sm:$0xff]
        %v7331 = vld [vmem:[#allocation2 + $0xa60] sm:$0xff]
        %v7332 = vld [vmem:[#allocation2 + $0xa68] sm:$0xff]
        %v7333 = vld [vmem:[#allocation2 + $0xaa8] sm:$0xff]
        %v7334 = vld [vmem:[#allocation2 + $0xab0] sm:$0xff]
        %v7335 = vld [vmem:[#allocation2 + $0xab8] sm:$0xff]
        %v7336 = vld [vmem:[#allocation2 + $0xac0] sm:$0xff]
        %v7337 = vld [vmem:[#allocation2 + $0xb00] sm:$0xff]
        %v7338 = vld [vmem:[#allocation2 + $0xb08] sm:$0xff]
        %v7339 = vld [vmem:[#allocation2 + $0xb10] sm:$0xff]
        %v7340 = vld [vmem:[#allocation2 + $0xb18] sm:$0xff]
        %v7341 = vld [vmem:[#allocation2 + $0xb58] sm:$0xff]
        %v7342 = vld [vmem:[#allocation2 + $0xb60] sm:$0xff]
        %v7343 = vld [vmem:[#allocation2 + $0xb68] sm:$0xff]
        %v7344 = vld [vmem:[#allocation2 + $0xb70] sm:$0xff]
        %v7345 = vld [vmem:[#allocation2 + $0xbb0] sm:$0xff]
        %v7346 = vld [vmem:[#allocation2 + $0xbb8] sm:$0xff]
        %v7347 = vld [vmem:[#allocation2 + $0xbc0] sm:$0xff]
        %v7348 = vld [vmem:[#allocation2 + $0xbc8] sm:$0xff]
        %v7349 = vld [vmem:[#allocation2 + $0xc08] sm:$0xff]
        %v7350 = vld [vmem:[#allocation2 + $0xc10] sm:$0xff]
        %v7351 = vld [vmem:[#allocation2 + $0xc18] sm:$0xff]
        %v7352 = vld [vmem:[#allocation2 + $0xc20] sm:$0xff]
        %v7353 = vld [vmem:[%s10] sm:$0xff]
        %v7354 = vld [vmem:[%s10 + $0x8] sm:$0xff]
        %v7355 = vld [vmem:[%s10 + $0x10] sm:$0xff]
        %v7356 = vld [vmem:[%s10 + $0x18] sm:$0xff]
        %v7357 = vld [vmem:[%s10 + $0x20] sm:$0xff]
        %v7358 = vld [vmem:[%s10 + $0x28] sm:$0xff]
        %v7359 = vld [vmem:[%s10 + $0x30] sm:$0xff]
        %v7360 = vld [vmem:[%s10 + $0x38] sm:$0xff]
        %7362 = vset.pattern.permute.xlu0 0
        %7363 = vperm.xlu0 %7362, %v7353
        %v7364 = vpop.permute.xlu0 %7363
        %7367 = vset.pattern.permute.xlu0 0
        %7368 = vperm.xlu0 %7367, %v7354
        %v7369 = vpop.permute.xlu0 %7368
        %7372 = vset.pattern.permute.xlu0 0
        %7373 = vperm.xlu0 %7372, %v7355
        %v7374 = vpop.permute.xlu0 %7373
        %7377 = vset.pattern.permute.xlu0 0
        %7378 = vperm.xlu0 %7377, %v7356
        %v7379 = vpop.permute.xlu0 %7378
        %7382 = vset.pattern.permute.xlu0 0
        %7383 = vperm.xlu0 %7382, %v7357
        %v7384 = vpop.permute.xlu0 %7383
        %7387 = vset.pattern.permute.xlu0 0
        %7388 = vperm.xlu0 %7387, %v7358
        %v7389 = vpop.permute.xlu0 %7388
        %7392 = vset.pattern.permute.xlu0 0
        %7393 = vperm.xlu0 %7392, %v7359
        %v7394 = vpop.permute.xlu0 %7393
        %7397 = vset.pattern.permute.xlu0 0
        %7398 = vperm.xlu0 %7397, %v7360
        %v7399 = vpop.permute.xlu0 %7398
        %v7402 = vsel %vm5467, %v7187, 0
        %v7405 = vsel %vm5467, %v7190, 0
        %v7408 = vsel %vm5467, %v7193, 0
        %v7411 = vsel %vm5467, %v7196, 0
        %v7414 = vsel %vm5467, %v7199, 0
        %v7417 = vsel %vm5467, %v7202, 0
        %v7420 = vsel %vm5467, %v7205, 0
        %v7423 = vsel %vm5467, %v7208, 0
        %7425 = vmatprep.subr.mxu0 %v7270
        %7426 = vmatpush1.msra.mxu0 %v7269
        %7427 = vmatprep.subr.mxu0 %v7266
        %7428 = vmatpush1.msra.mxu0 %v7265
        %7429 = vmatprep.subr.mxu0 %v7262
        %7430 = vmatpush1.msra.mxu0 %v7261
        %7431 = vmatprep.subr.mxu0 %v7258
        %7432 = vmatpush1.msra.mxu0 %v7257
        %7433 = vmatprep.subr.mxu0 %v7254
        %7434 = vmatpush1.msra.mxu0 %v7253
        %7435 = vmatprep.subr.mxu0 %v7250
        %7436 = vmatpush1.msra.mxu0 %v7249
        %7437 = vmatprep.subr.mxu0 %v7246
        %7438 = vmatpush1.msra.mxu0 %v7245
        %7439 = vmatprep.subr.mxu0 %v7242
        %7440 = vmatpush1.msra.mxu0 %v7241
        %7441 = vmatprep.subr.mxu0 %v7238
        %7442 = vmatpush1.msra.mxu0 %v7237
        %7443 = vmatprep.subr.mxu0 %v7234
        %7444 = vmatpush1.msra.mxu0 %v7233
        %7445 = vmatprep.subr.mxu0 %v7230
        %7446 = vmatpush1.msra.mxu0 %v7229
        %7447 = vmatprep.subr.mxu0 %v7226
        %7448 = vmatpush1.msra.mxu0 %v7225
        %7449 = vmatprep.subr.mxu0 %v7222
        %7450 = vmatpush1.msra.mxu0 %v7221
        %7451 = vmatprep.subr.mxu0 %v7218
        %7452 = vmatpush1.msra.mxu0 %v7217
        %7453 = vmatprep.subr.mxu0 %v7214
        %7454 = vmatpush1.msra.mxu0 %v7213
        %7455 = vmatprep.subr.mxu0 %v7210
        %7456 = vmatpush1.msra.mxu0 %v7209
        %7457 = vmatprep.subr.mxu0 %v7334
        %7458 = vmatpush2.msra.mxu0 %v7333
        %7459 = vmatprep.subr.mxu0 %v7330
        %7460 = vmatpush2.msra.mxu0 %v7329
        %7461 = vmatprep.subr.mxu0 %v7326
        %7462 = vmatpush2.msra.mxu0 %v7325
        %7463 = vmatprep.subr.mxu0 %v7322
        %7464 = vmatpush2.msra.mxu0 %v7321
        %7465 = vmatprep.subr.mxu0 %v7318
        %7466 = vmatpush2.msra.mxu0 %v7317
        %7467 = vmatprep.subr.mxu0 %v7314
        %7468 = vmatpush2.msra.mxu0 %v7313
        %7469 = vmatprep.subr.mxu0 %v7310
        %7470 = vmatpush2.msra.mxu0 %v7309
        %7471 = vmatprep.subr.mxu0 %v7306
        %7472 = vmatpush2.msra.mxu0 %v7305
        %7473 = vmatprep.subr.mxu0 %v7302
        %7474 = vmatpush2.msra.mxu0 %v7301
        %7475 = vmatprep.subr.mxu0 %v7298
        %7476 = vmatpush2.msra.mxu0 %v7297
        %7477 = vmatprep.subr.mxu0 %v7294
        %7478 = vmatpush2.msra.mxu0 %v7293
        %7479 = vmatprep.subr.mxu0 %v7290
        %7480 = vmatpush2.msra.mxu0 %v7289
        %7481 = vmatprep.subr.mxu0 %v7286
        %7482 = vmatpush2.msra.mxu0 %v7285
        %7483 = vmatprep.subr.mxu0 %v7282
        %7484 = vmatpush2.msra.mxu0 %v7281
        %7485 = vmatprep.subr.mxu0 %v7278
        %7486 = vmatpush2.msra.mxu0 %v7277
        %7487 = vmatprep.subr.mxu0 %v7274
        %7488 = vmatpush2.msra.mxu0 %v7273
        %7489 = vmatprep.mubr.f32.mxu0 %v7186
        %7490 = vmatmul.mubr.f32.gmra.mxu0 %v7185
        %v7491 = vpop.f32.mrf.mxu0
        %v7492 = vadd.f32 %v7364, %v7491
        %v7493 = vpop.f32.mrf.mxu0
        %v7494 = vadd.f32 %v7364, %v7493
        %7495 = vmatprep.mubr.f32.mxu0 %v7189
        %7496 = vmatmul.mubr.f32.gmra.mxu0 %v7188
        %v7497 = vpop.f32.mrf.mxu0
        %v7498 = vadd.f32 %v7369, %v7497
        %v7499 = vpop.f32.mrf.mxu0
        %v7500 = vadd.f32 %v7369, %v7499
        %7501 = vmatprep.mubr.f32.mxu0 %v7192
        %7502 = vmatmul.mubr.f32.gmra.mxu0 %v7191
        %v7503 = vpop.f32.mrf.mxu0
        %v7504 = vadd.f32 %v7374, %v7503
        %v7505 = vpop.f32.mrf.mxu0
        %v7506 = vadd.f32 %v7374, %v7505
        %7507 = vmatprep.mubr.f32.mxu0 %v7195
        %7508 = vmatmul.mubr.f32.gmra.mxu0 %v7194
        %v7509 = vpop.f32.mrf.mxu0
        %v7510 = vadd.f32 %v7379, %v7509
        %v7511 = vpop.f32.mrf.mxu0
        %v7512 = vadd.f32 %v7379, %v7511
        %7513 = vmatprep.mubr.f32.mxu0 %v7198
        %7514 = vmatmul.mubr.f32.gmra.mxu0 %v7197
        %v7515 = vpop.f32.mrf.mxu0
        %v7516 = vadd.f32 %v7384, %v7515
        %v7517 = vpop.f32.mrf.mxu0
        %v7518 = vadd.f32 %v7384, %v7517
        %7519 = vmatprep.mubr.f32.mxu0 %v7201
        %7520 = vmatmul.mubr.f32.gmra.mxu0 %v7200
        %v7521 = vpop.f32.mrf.mxu0
        %v7522 = vadd.f32 %v7389, %v7521
        %v7523 = vpop.f32.mrf.mxu0
        %v7524 = vadd.f32 %v7389, %v7523
        %7525 = vmatprep.mubr.f32.mxu0 %v7204
        %7526 = vmatmul.mubr.f32.gmra.mxu0 %v7203
        %v7527 = vpop.f32.mrf.mxu0
        %v7528 = vadd.f32 %v7394, %v7527
        %v7529 = vpop.f32.mrf.mxu0
        %v7530 = vadd.f32 %v7394, %v7529
        %7531 = vmatprep.mubr.f32.mxu0 %v7207
        %7532 = vmatmul.mubr.f32.gmra.mxu0 %v7206
        %v7533 = vpop.f32.mrf.mxu0
        %v7534 = vadd.f32 %v7399, %v7533
        %v7535 = vpop.f32.mrf.mxu0
        %v7536 = vadd.f32 %v7399, %v7535
        %7537 = vdwg.mxu0
        %7538 = vmatprep.subr.mxu0 0.0
        %7539 = vmatpush1.msra.mxu0 0.0
        %7540 = vmatprep.subr.mxu0 0.0
        %7541 = vmatpush1.msra.mxu0 0.0
        %7542 = vmatprep.subr.mxu0 0.0
        %7543 = vmatpush1.msra.mxu0 0.0
        %7544 = vmatprep.subr.mxu0 0.0
        %7545 = vmatpush1.msra.mxu0 0.0
        %7546 = vmatprep.subr.mxu0 0.0
        %7547 = vmatpush1.msra.mxu0 0.0
        %7548 = vmatprep.subr.mxu0 0.0
        %7549 = vmatpush1.msra.mxu0 0.0
        %7550 = vmatprep.subr.mxu0 0.0
        %7551 = vmatpush1.msra.mxu0 0.0
        %7552 = vmatprep.subr.mxu0 0.0
        %7553 = vmatpush1.msra.mxu0 0.0
        %7554 = vmatprep.subr.mxu0 0.0
        %7555 = vmatpush1.msra.mxu0 0.0
        %7556 = vmatprep.subr.mxu0 0.0
        %7557 = vmatpush1.msra.mxu0 0.0
        %7558 = vmatprep.subr.mxu0 0.0
        %7559 = vmatpush1.msra.mxu0 0.0
        %7560 = vmatprep.subr.mxu0 0.0
        %7561 = vmatpush1.msra.mxu0 0.0
        %7562 = vmatprep.subr.mxu0 %v7350
        %7563 = vmatpush1.msra.mxu0 %v7349
        %7564 = vmatprep.subr.mxu0 %v7346
        %7565 = vmatpush1.msra.mxu0 %v7345
        %7566 = vmatprep.subr.mxu0 %v7342
        %7567 = vmatpush1.msra.mxu0 %v7341
        %7568 = vmatprep.subr.mxu0 %v7338
        %7569 = vmatpush1.msra.mxu0 %v7337
        %7570 = vmatprep.subr.mxu0 0.0
        %7571 = vmatpush2.msra.mxu0 0.0
        %7572 = vmatprep.subr.mxu0 0.0
        %7573 = vmatpush2.msra.mxu0 0.0
        %7574 = vmatprep.subr.mxu0 0.0
        %7575 = vmatpush2.msra.mxu0 0.0
        %7576 = vmatprep.subr.mxu0 0.0
        %7577 = vmatpush2.msra.mxu0 0.0
        %7578 = vmatprep.subr.mxu0 0.0
        %7579 = vmatpush2.msra.mxu0 0.0
        %7580 = vmatprep.subr.mxu0 0.0
        %7581 = vmatpush2.msra.mxu0 0.0
        %7582 = vmatprep.subr.mxu0 0.0
        %7583 = vmatpush2.msra.mxu0 0.0
        %7584 = vmatprep.subr.mxu0 0.0
        %7585 = vmatpush2.msra.mxu0 0.0
        %7586 = vmatprep.subr.mxu0 0.0
        %7587 = vmatpush2.msra.mxu0 0.0
        %7588 = vmatprep.subr.mxu0 0.0
        %7589 = vmatpush2.msra.mxu0 0.0
        %7590 = vmatprep.subr.mxu0 0.0
        %7591 = vmatpush2.msra.mxu0 0.0
        %7592 = vmatprep.subr.mxu0 0.0
        %7593 = vmatpush2.msra.mxu0 0.0
        %7594 = vmatprep.subr.mxu0 0.0
        %7595 = vmatpush2.msra.mxu0 0.0
        %7596 = vmatprep.subr.mxu0 0.0
        %7597 = vmatpush2.msra.mxu0 0.0
        %7598 = vmatprep.subr.mxu0 0.0
        %7599 = vmatpush2.msra.mxu0 0.0
        %7600 = vmatprep.subr.mxu0 0.0
        %7601 = vmatpush2.msra.mxu0 0.0
        %7602 = vmatprep.mubr.f32.mxu0 0.0
        %7603 = vmatmul.mubr.f32.gmra.mxu0 %v7402
        %v7604 = vpop.f32.mrf.mxu0
        %v7605 = vadd.f32 %v7492, %v7604
        %v7606 = vpop.f32.mrf.mxu0
        %v7607 = vadd.f32 %v7494, %v7606
        %7608 = vmatprep.mubr.f32.mxu0 0.0
        %7609 = vmatmul.mubr.f32.gmra.mxu0 %v7405
        %v7610 = vpop.f32.mrf.mxu0
        %v7611 = vadd.f32 %v7498, %v7610
        %v7612 = vpop.f32.mrf.mxu0
        %v7613 = vadd.f32 %v7500, %v7612
        %7614 = vmatprep.mubr.f32.mxu0 0.0
        %7615 = vmatmul.mubr.f32.gmra.mxu0 %v7408
        %v7616 = vpop.f32.mrf.mxu0
        %v7617 = vadd.f32 %v7504, %v7616
        %v7618 = vpop.f32.mrf.mxu0
        %v7619 = vadd.f32 %v7506, %v7618
        %7620 = vmatprep.mubr.f32.mxu0 0.0
        %7621 = vmatmul.mubr.f32.gmra.mxu0 %v7411
        %v7622 = vpop.f32.mrf.mxu0
        %v7623 = vadd.f32 %v7510, %v7622
        %v7624 = vpop.f32.mrf.mxu0
        %v7625 = vadd.f32 %v7512, %v7624
        %7626 = vmatprep.mubr.f32.mxu0 0.0
        %7627 = vmatmul.mubr.f32.gmra.mxu0 %v7414
        %v7628 = vpop.f32.mrf.mxu0
        %v7629 = vadd.f32 %v7516, %v7628
        %v7630 = vpop.f32.mrf.mxu0
        %v7631 = vadd.f32 %v7518, %v7630
        %7632 = vmatprep.mubr.f32.mxu0 0.0
        %7633 = vmatmul.mubr.f32.gmra.mxu0 %v7417
        %v7634 = vpop.f32.mrf.mxu0
        %v7635 = vadd.f32 %v7522, %v7634
        %v7636 = vpop.f32.mrf.mxu0
        %v7637 = vadd.f32 %v7524, %v7636
        %7638 = vmatprep.mubr.f32.mxu0 0.0
        %7639 = vmatmul.mubr.f32.gmra.mxu0 %v7420
        %v7640 = vpop.f32.mrf.mxu0
        %v7641 = vadd.f32 %v7528, %v7640
        %v7642 = vpop.f32.mrf.mxu0
        %v7643 = vadd.f32 %v7530, %v7642
        %7644 = vmatprep.mubr.f32.mxu0 0.0
        %7645 = vmatmul.mubr.f32.gmra.mxu0 %v7423
        %v7646 = vpop.f32.mrf.mxu0
        %v7647 = vadd.f32 %v7534, %v7646
        %v7648 = vpop.f32.mrf.mxu0
        %v7649 = vadd.f32 %v7536, %v7648
        %7650 = vdwg.mxu0
        %7651 = vmatprep.subr.mxu0 %v7272
        %7652 = vmatpush1.msra.mxu0 %v7271
        %7653 = vmatprep.subr.mxu0 %v7268
        %7654 = vmatpush1.msra.mxu0 %v7267
        %7655 = vmatprep.subr.mxu0 %v7264
        %7656 = vmatpush1.msra.mxu0 %v7263
        %7657 = vmatprep.subr.mxu0 %v7260
        %7658 = vmatpush1.msra.mxu0 %v7259
        %7659 = vmatprep.subr.mxu0 %v7256
        %7660 = vmatpush1.msra.mxu0 %v7255
        %7661 = vmatprep.subr.mxu0 %v7252
        %7662 = vmatpush1.msra.mxu0 %v7251
        %7663 = vmatprep.subr.mxu0 %v7248
        %7664 = vmatpush1.msra.mxu0 %v7247
        %7665 = vmatprep.subr.mxu0 %v7244
        %7666 = vmatpush1.msra.mxu0 %v7243
        %7667 = vmatprep.subr.mxu0 %v7240
        %7668 = vmatpush1.msra.mxu0 %v7239
        %7669 = vmatprep.subr.mxu0 %v7236
        %7670 = vmatpush1.msra.mxu0 %v7235
        %7671 = vmatprep.subr.mxu0 %v7232
        %7672 = vmatpush1.msra.mxu0 %v7231
        %7673 = vmatprep.subr.mxu0 %v7228
        %7674 = vmatpush1.msra.mxu0 %v7227
        %7675 = vmatprep.subr.mxu0 %v7224
        %7676 = vmatpush1.msra.mxu0 %v7223
        %7677 = vmatprep.subr.mxu0 %v7220
        %7678 = vmatpush1.msra.mxu0 %v7219
        %7679 = vmatprep.subr.mxu0 %v7216
        %7680 = vmatpush1.msra.mxu0 %v7215
        %7681 = vmatprep.subr.mxu0 %v7212
        %7682 = vmatpush1.msra.mxu0 %v7211
        %7683 = vmatprep.subr.mxu0 %v7336
        %7684 = vmatpush2.msra.mxu0 %v7335
        %7685 = vmatprep.subr.mxu0 %v7332
        %7686 = vmatpush2.msra.mxu0 %v7331
        %7687 = vmatprep.subr.mxu0 %v7328
        %7688 = vmatpush2.msra.mxu0 %v7327
        %7689 = vmatprep.subr.mxu0 %v7324
        %7690 = vmatpush2.msra.mxu0 %v7323
        %7691 = vmatprep.subr.mxu0 %v7320
        %7692 = vmatpush2.msra.mxu0 %v7319
        %7693 = vmatprep.subr.mxu0 %v7316
        %7694 = vmatpush2.msra.mxu0 %v7315
        %7695 = vmatprep.subr.mxu0 %v7312
        %7696 = vmatpush2.msra.mxu0 %v7311
        %7697 = vmatprep.subr.mxu0 %v7308
        %7698 = vmatpush2.msra.mxu0 %v7307
        %7699 = vmatprep.subr.mxu0 %v7304
        %7700 = vmatpush2.msra.mxu0 %v7303
        %7701 = vmatprep.subr.mxu0 %v7300
        %7702 = vmatpush2.msra.mxu0 %v7299
        %7703 = vmatprep.subr.mxu0 %v7296
        %7704 = vmatpush2.msra.mxu0 %v7295
        %7705 = vmatprep.subr.mxu0 %v7292
        %7706 = vmatpush2.msra.mxu0 %v7291
        %7707 = vmatprep.subr.mxu0 %v7288
        %7708 = vmatpush2.msra.mxu0 %v7287
        %7709 = vmatprep.subr.mxu0 %v7284
        %7710 = vmatpush2.msra.mxu0 %v7283
        %7711 = vmatprep.subr.mxu0 %v7280
        %7712 = vmatpush2.msra.mxu0 %v7279
        %7713 = vmatprep.subr.mxu0 %v7276
        %7714 = vmatpush2.msra.mxu0 %v7275
        %7715 = vmatprep.mubr.f32.mxu0 %v7186
        %7716 = vmatmul.mubr.f32.gmra.mxu0 %v7185
        %v7717 = vpop.f32.mrf.mxu0
        %v7718 = vadd.f32 %v7364, %v7717
        %v7719 = vpop.f32.mrf.mxu0
        %v7720 = vadd.f32 %v7364, %v7719
        %7721 = vmatprep.mubr.f32.mxu0 %v7189
        %7722 = vmatmul.mubr.f32.gmra.mxu0 %v7188
        %v7723 = vpop.f32.mrf.mxu0
        %v7724 = vadd.f32 %v7369, %v7723
        %v7725 = vpop.f32.mrf.mxu0
        %v7726 = vadd.f32 %v7369, %v7725
        %7727 = vmatprep.mubr.f32.mxu0 %v7192
        %7728 = vmatmul.mubr.f32.gmra.mxu0 %v7191
        %v7729 = vpop.f32.mrf.mxu0
        %v7730 = vadd.f32 %v7374, %v7729
        %v7731 = vpop.f32.mrf.mxu0
        %v7732 = vadd.f32 %v7374, %v7731
        %7733 = vmatprep.mubr.f32.mxu0 %v7195
        %7734 = vmatmul.mubr.f32.gmra.mxu0 %v7194
        %v7735 = vpop.f32.mrf.mxu0
        %v7736 = vadd.f32 %v7379, %v7735
        %v7737 = vpop.f32.mrf.mxu0
        %v7738 = vadd.f32 %v7379, %v7737
        %7739 = vmatprep.mubr.f32.mxu0 %v7198
        %7740 = vmatmul.mubr.f32.gmra.mxu0 %v7197
        %v7741 = vpop.f32.mrf.mxu0
        %v7742 = vadd.f32 %v7384, %v7741
        %v7743 = vpop.f32.mrf.mxu0
        %v7744 = vadd.f32 %v7384, %v7743
        %7745 = vmatprep.mubr.f32.mxu0 %v7201
        %7746 = vmatmul.mubr.f32.gmra.mxu0 %v7200
        %v7747 = vpop.f32.mrf.mxu0
        %v7748 = vadd.f32 %v7389, %v7747
        %v7749 = vpop.f32.mrf.mxu0
        %v7750 = vadd.f32 %v7389, %v7749
        %7751 = vmatprep.mubr.f32.mxu0 %v7204
        %7752 = vmatmul.mubr.f32.gmra.mxu0 %v7203
        %v7753 = vpop.f32.mrf.mxu0
        %v7754 = vadd.f32 %v7394, %v7753
        %v7755 = vpop.f32.mrf.mxu0
        %v7756 = vadd.f32 %v7394, %v7755
        %7757 = vmatprep.mubr.f32.mxu0 %v7207
        %7758 = vmatmul.mubr.f32.gmra.mxu0 %v7206
        %v7759 = vpop.f32.mrf.mxu0
        %v7760 = vadd.f32 %v7399, %v7759
        %v7761 = vpop.f32.mrf.mxu0
        %v7762 = vadd.f32 %v7399, %v7761
        %7763 = vdwg.mxu0
        %7764 = vmatprep.subr.mxu0 0.0
        %7765 = vmatpush1.msra.mxu0 0.0
        %7766 = vmatprep.subr.mxu0 0.0
        %7767 = vmatpush1.msra.mxu0 0.0
        %7768 = vmatprep.subr.mxu0 0.0
        %7769 = vmatpush1.msra.mxu0 0.0
        %7770 = vmatprep.subr.mxu0 0.0
        %7771 = vmatpush1.msra.mxu0 0.0
        %7772 = vmatprep.subr.mxu0 0.0
        %7773 = vmatpush1.msra.mxu0 0.0
        %7774 = vmatprep.subr.mxu0 0.0
        %7775 = vmatpush1.msra.mxu0 0.0
        %7776 = vmatprep.subr.mxu0 0.0
        %7777 = vmatpush1.msra.mxu0 0.0
        %7778 = vmatprep.subr.mxu0 0.0
        %7779 = vmatpush1.msra.mxu0 0.0
        %7780 = vmatprep.subr.mxu0 0.0
        %7781 = vmatpush1.msra.mxu0 0.0
        %7782 = vmatprep.subr.mxu0 0.0
        %7783 = vmatpush1.msra.mxu0 0.0
        %7784 = vmatprep.subr.mxu0 0.0
        %7785 = vmatpush1.msra.mxu0 0.0
        %7786 = vmatprep.subr.mxu0 0.0
        %7787 = vmatpush1.msra.mxu0 0.0
        %7788 = vmatprep.subr.mxu0 %v7352
        %7789 = vmatpush1.msra.mxu0 %v7351
        %7790 = vmatprep.subr.mxu0 %v7348
        %7791 = vmatpush1.msra.mxu0 %v7347
        %7792 = vmatprep.subr.mxu0 %v7344
        %7793 = vmatpush1.msra.mxu0 %v7343
        %7794 = vmatprep.subr.mxu0 %v7340
        %7795 = vmatpush1.msra.mxu0 %v7339
        %7796 = vmatprep.subr.mxu0 0.0
        %7797 = vmatpush2.msra.mxu0 0.0
        %7798 = vmatprep.subr.mxu0 0.0
        %7799 = vmatpush2.msra.mxu0 0.0
        %7800 = vmatprep.subr.mxu0 0.0
        %7801 = vmatpush2.msra.mxu0 0.0
        %7802 = vmatprep.subr.mxu0 0.0
        %7803 = vmatpush2.msra.mxu0 0.0
        %7804 = vmatprep.subr.mxu0 0.0
        %7805 = vmatpush2.msra.mxu0 0.0
        %7806 = vmatprep.subr.mxu0 0.0
        %7807 = vmatpush2.msra.mxu0 0.0
        %7808 = vmatprep.subr.mxu0 0.0
        %7809 = vmatpush2.msra.mxu0 0.0
        %7810 = vmatprep.subr.mxu0 0.0
        %7811 = vmatpush2.msra.mxu0 0.0
        %7812 = vmatprep.subr.mxu0 0.0
        %7813 = vmatpush2.msra.mxu0 0.0
        %7814 = vmatprep.subr.mxu0 0.0
        %7815 = vmatpush2.msra.mxu0 0.0
        %7816 = vmatprep.subr.mxu0 0.0
        %7817 = vmatpush2.msra.mxu0 0.0
        %7818 = vmatprep.subr.mxu0 0.0
        %7819 = vmatpush2.msra.mxu0 0.0
        %7820 = vmatprep.subr.mxu0 0.0
        %7821 = vmatpush2.msra.mxu0 0.0
        %7822 = vmatprep.subr.mxu0 0.0
        %7823 = vmatpush2.msra.mxu0 0.0
        %7824 = vmatprep.subr.mxu0 0.0
        %7825 = vmatpush2.msra.mxu0 0.0
        %7826 = vmatprep.subr.mxu0 0.0
        %7827 = vmatpush2.msra.mxu0 0.0
        %7828 = vmatprep.mubr.f32.mxu0 0.0
        %7829 = vmatmul.mubr.f32.gmra.mxu0 %v7402
        %v7830 = vpop.f32.mrf.mxu0
        %v7831 = vadd.f32 %v7718, %v7830
        %v7832 = vpop.f32.mrf.mxu0
        %v7833 = vadd.f32 %v7720, %v7832
        %7834 = vmatprep.mubr.f32.mxu0 0.0
        %7835 = vmatmul.mubr.f32.gmra.mxu0 %v7405
        %v7836 = vpop.f32.mrf.mxu0
        %v7837 = vadd.f32 %v7724, %v7836
        %v7838 = vpop.f32.mrf.mxu0
        %v7839 = vadd.f32 %v7726, %v7838
        %7840 = vmatprep.mubr.f32.mxu0 0.0
        %7841 = vmatmul.mubr.f32.gmra.mxu0 %v7408
        %v7842 = vpop.f32.mrf.mxu0
        %v7843 = vadd.f32 %v7730, %v7842
        %v7844 = vpop.f32.mrf.mxu0
        %v7845 = vadd.f32 %v7732, %v7844
        %7846 = vmatprep.mubr.f32.mxu0 0.0
        %7847 = vmatmul.mubr.f32.gmra.mxu0 %v7411
        %v7848 = vpop.f32.mrf.mxu0
        %v7849 = vadd.f32 %v7736, %v7848
        %v7850 = vpop.f32.mrf.mxu0
        %v7851 = vadd.f32 %v7738, %v7850
        %7852 = vmatprep.mubr.f32.mxu0 0.0
        %7853 = vmatmul.mubr.f32.gmra.mxu0 %v7414
        %v7854 = vpop.f32.mrf.mxu0
        %v7855 = vadd.f32 %v7742, %v7854
        %v7856 = vpop.f32.mrf.mxu0
        %v7857 = vadd.f32 %v7744, %v7856
        %7858 = vmatprep.mubr.f32.mxu0 0.0
        %7859 = vmatmul.mubr.f32.gmra.mxu0 %v7417
        %v7860 = vpop.f32.mrf.mxu0
        %v7861 = vadd.f32 %v7748, %v7860
        %v7862 = vpop.f32.mrf.mxu0
        %v7863 = vadd.f32 %v7750, %v7862
        %7864 = vmatprep.mubr.f32.mxu0 0.0
        %7865 = vmatmul.mubr.f32.gmra.mxu0 %v7420
        %v7866 = vpop.f32.mrf.mxu0
        %v7867 = vadd.f32 %v7754, %v7866
        %v7868 = vpop.f32.mrf.mxu0
        %v7869 = vadd.f32 %v7756, %v7868
        %7870 = vmatprep.mubr.f32.mxu0 0.0
        %7871 = vmatmul.mubr.f32.gmra.mxu0 %v7423
        %v7872 = vpop.f32.mrf.mxu0
        %v7873 = vadd.f32 %v7760, %v7872
        %v7874 = vpop.f32.mrf.mxu0
        %v7875 = vadd.f32 %v7762, %v7874
        %7876 = vdwg.mxu0
        %v7877 = vmax.f32 %v7605, 0.0
        %v7878 = vmax.f32 %v7607, 0.0
        %v7879 = vmax.f32 %v7831, 0.0
        %v7880 = vmax.f32 %v7833, 0.0
        %v7881 = vmax.f32 %v7611, 0.0
        %v7882 = vmax.f32 %v7613, 0.0
        %v7883 = vmax.f32 %v7837, 0.0
        %v7884 = vmax.f32 %v7839, 0.0
        %v7885 = vmax.f32 %v7617, 0.0
        %v7886 = vmax.f32 %v7619, 0.0
        %v7887 = vmax.f32 %v7843, 0.0
        %v7888 = vmax.f32 %v7845, 0.0
        %v7889 = vmax.f32 %v7623, 0.0
        %v7890 = vmax.f32 %v7625, 0.0
        %v7891 = vmax.f32 %v7849, 0.0
        %v7892 = vmax.f32 %v7851, 0.0
        %v7893 = vmax.f32 %v7629, 0.0
        %v7894 = vmax.f32 %v7631, 0.0
        %v7895 = vmax.f32 %v7855, 0.0
        %v7896 = vmax.f32 %v7857, 0.0
        %v7897 = vmax.f32 %v7635, 0.0
        %v7898 = vmax.f32 %v7637, 0.0
        %v7899 = vmax.f32 %v7861, 0.0
        %v7900 = vmax.f32 %v7863, 0.0
        %v7901 = vmax.f32 %v7641, 0.0
        %v7902 = vmax.f32 %v7643, 0.0
        %v7903 = vmax.f32 %v7867, 0.0
        %v7904 = vmax.f32 %v7869, 0.0
        %v7905 = vmax.f32 %v7647, 0.0
        %v7906 = vmax.f32 %v7649, 0.0
        %v7907 = vmax.f32 %v7873, 0.0
        %v7908 = vmax.f32 %v7875, 0.0
        %7909 = vst [vmem:[#allocation2] sm:$0xff] %v7877
        %vm7910 = vcmask 171008
        %7911 = vst.msk [vmem:[#allocation2 + $0x8] sm:$0xff] %vm7910, %v7878
        %7912 = vst [vmem:[#allocation2 + $0x58] sm:$0xff] %v7881
        %7913 = vst.msk [vmem:[#allocation2 + $0x60] sm:$0xff] %vm7910, %v7882
        %7914 = vst [vmem:[#allocation2 + $0xb0] sm:$0xff] %v7885
        %7915 = vst.msk [vmem:[#allocation2 + $0xb8] sm:$0xff] %vm7910, %v7886
        %7916 = vst [vmem:[#allocation2 + $0x108] sm:$0xff] %v7889
        %7917 = vst.msk [vmem:[#allocation2 + $0x110] sm:$0xff] %vm7910, %v7890
        %7918 = vst [vmem:[#allocation2 + $0x160] sm:$0xff] %v7893
        %7919 = vst.msk [vmem:[#allocation2 + $0x168] sm:$0xff] %vm7910, %v7894
        %7920 = vst [vmem:[#allocation2 + $0x1b8] sm:$0xff] %v7897
        %7921 = vst.msk [vmem:[#allocation2 + $0x1c0] sm:$0xff] %vm7910, %v7898
        %7922 = vst [vmem:[#allocation2 + $0x210] sm:$0xff] %v7901
        %7923 = vst.msk [vmem:[#allocation2 + $0x218] sm:$0xff] %vm7910, %v7902
        %7924 = vst [vmem:[#allocation2 + $0x268] sm:$0xff] %v7905
        %7925 = vst.msk [vmem:[#allocation2 + $0x270] sm:$0xff] %vm7910, %v7906
        %7942 = vrot.lane.b32.xlu0 %v7877, 124
        %v7943 = vpop.permute.xlu0 %7942
        %7944 = vrot.lane.b32.xlu0 %v7878, 124
        %v7945 = vpop.permute.xlu0 %7944
        %7946 = vrot.lane.b32.xlu0 %v7881, 124
        %v7947 = vpop.permute.xlu0 %7946
        %7948 = vrot.lane.b32.xlu0 %v7882, 124
        %v7949 = vpop.permute.xlu0 %7948
        %7950 = vrot.lane.b32.xlu0 %v7885, 124
        %v7951 = vpop.permute.xlu0 %7950
        %7952 = vrot.lane.b32.xlu0 %v7886, 124
        %v7953 = vpop.permute.xlu0 %7952
        %7954 = vrot.lane.b32.xlu0 %v7889, 124
        %v7955 = vpop.permute.xlu0 %7954
        %7956 = vrot.lane.b32.xlu0 %v7890, 124
        %v7957 = vpop.permute.xlu0 %7956
        %7958 = vrot.lane.b32.xlu0 %v7893, 124
        %v7959 = vpop.permute.xlu0 %7958
        %7960 = vrot.lane.b32.xlu0 %v7894, 124
        %v7961 = vpop.permute.xlu0 %7960
        %7962 = vrot.lane.b32.xlu0 %v7897, 124
        %v7963 = vpop.permute.xlu0 %7962
        %7964 = vrot.lane.b32.xlu0 %v7898, 124
        %v7965 = vpop.permute.xlu0 %7964
        %7966 = vrot.lane.b32.xlu0 %v7901, 124
        %v7967 = vpop.permute.xlu0 %7966
        %7968 = vrot.lane.b32.xlu0 %v7902, 124
        %v7969 = vpop.permute.xlu0 %7968
        %7970 = vrot.lane.b32.xlu0 %v7905, 124
        %v7971 = vpop.permute.xlu0 %7970
        %7972 = vrot.lane.b32.xlu0 %v7906, 124
        %v7973 = vpop.permute.xlu0 %7972
        %v7974 = vsel %vm1204, %v7943, %v7945
        %v7975 = vsel %vm1204, %v7947, %v7949
        %v7976 = vsel %vm1204, %v7951, %v7953
        %v7977 = vsel %vm1204, %v7955, %v7957
        %v7978 = vsel %vm1204, %v7959, %v7961
        %v7979 = vsel %vm1204, %v7963, %v7965
        %v7980 = vsel %vm1204, %v7967, %v7969
        %v7981 = vsel %vm1204, %v7971, %v7973
        %7998 = vst [vmem:[#allocation2 + $0x2c0] sm:$0xff] %v7974
        %7999 = vst.msk [vmem:[#allocation2 + $0x2c8] sm:$0xff] %vm7910, %v7945
        %8000 = vst [vmem:[#allocation2 + $0x318] sm:$0xff] %v7975
        %8001 = vst.msk [vmem:[#allocation2 + $0x320] sm:$0xff] %vm7910, %v7949
        %8002 = vst [vmem:[#allocation2 + $0x370] sm:$0xff] %v7976
        %8003 = vst.msk [vmem:[#allocation2 + $0x378] sm:$0xff] %vm7910, %v7953
        %8004 = vst [vmem:[#allocation2 + $0x3c8] sm:$0xff] %v7977
        %8005 = vst.msk [vmem:[#allocation2 + $0x3d0] sm:$0xff] %vm7910, %v7957
        %8006 = vst [vmem:[#allocation2 + $0x420] sm:$0xff] %v7978
        %8007 = vst.msk [vmem:[#allocation2 + $0x428] sm:$0xff] %vm7910, %v7961
        %8008 = vst [vmem:[#allocation2 + $0x478] sm:$0xff] %v7979
        %8009 = vst.msk [vmem:[#allocation2 + $0x480] sm:$0xff] %vm7910, %v7965
        %8010 = vst [vmem:[#allocation2 + $0x4d0] sm:$0xff] %v7980
        %8011 = vst.msk [vmem:[#allocation2 + $0x4d8] sm:$0xff] %vm7910, %v7969
        %8012 = vst [vmem:[#allocation2 + $0x528] sm:$0xff] %v7981
        %8013 = vst.msk [vmem:[#allocation2 + $0x530] sm:$0xff] %vm7910, %v7973
        %8014 = vrot.lane.b32.xlu0 %v7877, 120
        %v8015 = vpop.permute.xlu0 %8014
        %8016 = vrot.lane.b32.xlu0 %v7878, 120
        %v8017 = vpop.permute.xlu0 %8016
        %8018 = vrot.lane.b32.xlu0 %v7881, 120
        %v8019 = vpop.permute.xlu0 %8018
        %8020 = vrot.lane.b32.xlu0 %v7882, 120
        %v8021 = vpop.permute.xlu0 %8020
        %8022 = vrot.lane.b32.xlu0 %v7885, 120
        %v8023 = vpop.permute.xlu0 %8022
        %8024 = vrot.lane.b32.xlu0 %v7886, 120
        %v8025 = vpop.permute.xlu0 %8024
        %8026 = vrot.lane.b32.xlu0 %v7889, 120
        %v8027 = vpop.permute.xlu0 %8026
        %8028 = vrot.lane.b32.xlu0 %v7890, 120
        %v8029 = vpop.permute.xlu0 %8028
        %8030 = vrot.lane.b32.xlu0 %v7893, 120
        %v8031 = vpop.permute.xlu0 %8030
        %8032 = vrot.lane.b32.xlu0 %v7894, 120
        %v8033 = vpop.permute.xlu0 %8032
        %8034 = vrot.lane.b32.xlu0 %v7897, 120
        %v8035 = vpop.permute.xlu0 %8034
        %8036 = vrot.lane.b32.xlu0 %v7898, 120
        %v8037 = vpop.permute.xlu0 %8036
        %8038 = vrot.lane.b32.xlu0 %v7901, 120
        %v8039 = vpop.permute.xlu0 %8038
        %8040 = vrot.lane.b32.xlu0 %v7902, 120
        %v8041 = vpop.permute.xlu0 %8040
        %8042 = vrot.lane.b32.xlu0 %v7905, 120
        %v8043 = vpop.permute.xlu0 %8042
        %8044 = vrot.lane.b32.xlu0 %v7906, 120
        %v8045 = vpop.permute.xlu0 %8044
        %v8046 = vsel %vm6673, %v8015, %v8017
        %v8047 = vsel %vm6673, %v8019, %v8021
        %v8048 = vsel %vm6673, %v8023, %v8025
        %v8049 = vsel %vm6673, %v8027, %v8029
        %v8050 = vsel %vm6673, %v8031, %v8033
        %v8051 = vsel %vm6673, %v8035, %v8037
        %v8052 = vsel %vm6673, %v8039, %v8041
        %v8053 = vsel %vm6673, %v8043, %v8045
        %8070 = vst [vmem:[#allocation2 + $0x580] sm:$0xff] %v8046
        %8071 = vst.msk [vmem:[#allocation2 + $0x588] sm:$0xff] %vm7910, %v8017
        %8072 = vst [vmem:[#allocation2 + $0x5d8] sm:$0xff] %v8047
        %8073 = vst.msk [vmem:[#allocation2 + $0x5e0] sm:$0xff] %vm7910, %v8021
        %8074 = vst [vmem:[#allocation2 + $0x630] sm:$0xff] %v8048
        %8075 = vst.msk [vmem:[#allocation2 + $0x638] sm:$0xff] %vm7910, %v8025
        %8076 = vst [vmem:[#allocation2 + $0x688] sm:$0xff] %v8049
        %8077 = vst.msk [vmem:[#allocation2 + $0x690] sm:$0xff] %vm7910, %v8029
        %8078 = vst [vmem:[#allocation2 + $0x6e0] sm:$0xff] %v8050
        %8079 = vst.msk [vmem:[#allocation2 + $0x6e8] sm:$0xff] %vm7910, %v8033
        %8080 = vst [vmem:[#allocation2 + $0x738] sm:$0xff] %v8051
        %8081 = vst.msk [vmem:[#allocation2 + $0x740] sm:$0xff] %vm7910, %v8037
        %8082 = vst [vmem:[#allocation2 + $0x790] sm:$0xff] %v8052
        %8083 = vst.msk [vmem:[#allocation2 + $0x798] sm:$0xff] %vm7910, %v8041
        %8084 = vst [vmem:[#allocation2 + $0x7e8] sm:$0xff] %v8053
        %8085 = vst.msk [vmem:[#allocation2 + $0x7f0] sm:$0xff] %vm7910, %v8045
        %8094 = vrot.lane.b32.xlu0 %v7878, 112
        %v8095 = vpop.permute.xlu0 %8094
        %8096 = vrot.lane.b32.xlu0 %v7879, 112
        %v8097 = vpop.permute.xlu0 %8096
        %8098 = vrot.lane.b32.xlu0 %v7882, 112
        %v8099 = vpop.permute.xlu0 %8098
        %8100 = vrot.lane.b32.xlu0 %v7883, 112
        %v8101 = vpop.permute.xlu0 %8100
        %8102 = vrot.lane.b32.xlu0 %v7886, 112
        %v8103 = vpop.permute.xlu0 %8102
        %8104 = vrot.lane.b32.xlu0 %v7887, 112
        %v8105 = vpop.permute.xlu0 %8104
        %8106 = vrot.lane.b32.xlu0 %v7890, 112
        %v8107 = vpop.permute.xlu0 %8106
        %8108 = vrot.lane.b32.xlu0 %v7891, 112
        %v8109 = vpop.permute.xlu0 %8108
        %8110 = vrot.lane.b32.xlu0 %v7894, 112
        %v8111 = vpop.permute.xlu0 %8110
        %8112 = vrot.lane.b32.xlu0 %v7895, 112
        %v8113 = vpop.permute.xlu0 %8112
        %8114 = vrot.lane.b32.xlu0 %v7898, 112
        %v8115 = vpop.permute.xlu0 %8114
        %8116 = vrot.lane.b32.xlu0 %v7899, 112
        %v8117 = vpop.permute.xlu0 %8116
        %8118 = vrot.lane.b32.xlu0 %v7902, 112
        %v8119 = vpop.permute.xlu0 %8118
        %8120 = vrot.lane.b32.xlu0 %v7903, 112
        %v8121 = vpop.permute.xlu0 %8120
        %8122 = vrot.lane.b32.xlu0 %v7906, 112
        %v8123 = vpop.permute.xlu0 %8122
        %8124 = vrot.lane.b32.xlu0 %v7907, 112
        %v8125 = vpop.permute.xlu0 %8124
        %v8126 = vsel %vm3249, %v8095, %v8097
        %v8127 = vsel %vm3249, %v8099, %v8101
        %v8128 = vsel %vm3249, %v8103, %v8105
        %v8129 = vsel %vm3249, %v8107, %v8109
        %v8130 = vsel %vm3249, %v8111, %v8113
        %v8131 = vsel %vm3249, %v8115, %v8117
        %v8132 = vsel %vm3249, %v8119, %v8121
        %v8133 = vsel %vm3249, %v8123, %v8125
        %8150 = vst [vmem:[#allocation2 + $0x840] sm:$0xff] %v8126
        %8151 = vst.msk [vmem:[#allocation2 + $0x848] sm:$0xff] %vm7910, %v8097
        %8152 = vst [vmem:[#allocation2 + $0x898] sm:$0xff] %v8127
        %8153 = vst.msk [vmem:[#allocation2 + $0x8a0] sm:$0xff] %vm7910, %v8101
        %8154 = vst [vmem:[#allocation2 + $0x8f0] sm:$0xff] %v8128
        %8155 = vst.msk [vmem:[#allocation2 + $0x8f8] sm:$0xff] %vm7910, %v8105
        %8156 = vst [vmem:[#allocation2 + $0x948] sm:$0xff] %v8129
        %8157 = vst.msk [vmem:[#allocation2 + $0x950] sm:$0xff] %vm7910, %v8109
        %8158 = vst [vmem:[#allocation2 + $0x9a0] sm:$0xff] %v8130
        %8159 = vst.msk [vmem:[#allocation2 + $0x9a8] sm:$0xff] %vm7910, %v8113
        %8160 = vst [vmem:[#allocation2 + $0x9f8] sm:$0xff] %v8131
        %8161 = vst.msk [vmem:[#allocation2 + $0xa00] sm:$0xff] %vm7910, %v8117
        %8162 = vst [vmem:[#allocation2 + $0xa50] sm:$0xff] %v8132
        %8163 = vst.msk [vmem:[#allocation2 + $0xa58] sm:$0xff] %vm7910, %v8121
        %8164 = vst [vmem:[#allocation2 + $0xaa8] sm:$0xff] %v8133
        %8165 = vst.msk [vmem:[#allocation2 + $0xab0] sm:$0xff] %vm7910, %v8125
        %8166 = vrot.lane.b32.xlu0 %v7878, 108
        %v8167 = vpop.permute.xlu0 %8166
        %8168 = vrot.lane.b32.xlu0 %v7879, 108
        %v8169 = vpop.permute.xlu0 %8168
        %8170 = vrot.lane.b32.xlu0 %v7882, 108
        %v8171 = vpop.permute.xlu0 %8170
        %8172 = vrot.lane.b32.xlu0 %v7883, 108
        %v8173 = vpop.permute.xlu0 %8172
        %8174 = vrot.lane.b32.xlu0 %v7886, 108
        %v8175 = vpop.permute.xlu0 %8174
        %8176 = vrot.lane.b32.xlu0 %v7887, 108
        %v8177 = vpop.permute.xlu0 %8176
        %8178 = vrot.lane.b32.xlu0 %v7890, 108
        %v8179 = vpop.permute.xlu0 %8178
        %8180 = vrot.lane.b32.xlu0 %v7891, 108
        %v8181 = vpop.permute.xlu0 %8180
        %8182 = vrot.lane.b32.xlu0 %v7894, 108
        %v8183 = vpop.permute.xlu0 %8182
        %8184 = vrot.lane.b32.xlu0 %v7895, 108
        %v8185 = vpop.permute.xlu0 %8184
        %8186 = vrot.lane.b32.xlu0 %v7898, 108
        %v8187 = vpop.permute.xlu0 %8186
        %8188 = vrot.lane.b32.xlu0 %v7899, 108
        %v8189 = vpop.permute.xlu0 %8188
        %8190 = vrot.lane.b32.xlu0 %v7902, 108
        %v8191 = vpop.permute.xlu0 %8190
        %8192 = vrot.lane.b32.xlu0 %v7903, 108
        %v8193 = vpop.permute.xlu0 %8192
        %8194 = vrot.lane.b32.xlu0 %v7906, 108
        %v8195 = vpop.permute.xlu0 %8194
        %8196 = vrot.lane.b32.xlu0 %v7907, 108
        %v8197 = vpop.permute.xlu0 %8196
        %v8198 = vsel %vm3407, %v8167, %v8169
        %v8199 = vsel %vm3407, %v8171, %v8173
        %v8200 = vsel %vm3407, %v8175, %v8177
        %v8201 = vsel %vm3407, %v8179, %v8181
        %v8202 = vsel %vm3407, %v8183, %v8185
        %v8203 = vsel %vm3407, %v8187, %v8189
        %v8204 = vsel %vm3407, %v8191, %v8193
        %v8205 = vsel %vm3407, %v8195, %v8197
        %8222 = vst [vmem:[#allocation2 + $0xb00] sm:$0xff] %v8198
        %8223 = vst.msk [vmem:[#allocation2 + $0xb08] sm:$0xff] %vm7910, %v8169
        %8224 = vst [vmem:[#allocation2 + $0xb58] sm:$0xff] %v8199
        %8225 = vst.msk [vmem:[#allocation2 + $0xb60] sm:$0xff] %vm7910, %v8173
        %8226 = vst [vmem:[#allocation2 + $0xbb0] sm:$0xff] %v8200
        %8227 = vst.msk [vmem:[#allocation2 + $0xbb8] sm:$0xff] %vm7910, %v8177
        %8228 = vst [vmem:[#allocation2 + $0xc08] sm:$0xff] %v8201
        %8229 = vst.msk [vmem:[#allocation2 + $0xc10] sm:$0xff] %vm7910, %v8181
        %8230 = vst [vmem:[#allocation2 + $0xc60] sm:$0xff] %v8202
        %8231 = vst.msk [vmem:[#allocation2 + $0xc68] sm:$0xff] %vm7910, %v8185
        %8232 = vst [vmem:[#allocation2 + $0xcb8] sm:$0xff] %v8203
        %8233 = vst.msk [vmem:[#allocation2 + $0xcc0] sm:$0xff] %vm7910, %v8189
        %8234 = vst [vmem:[#allocation2 + $0xd10] sm:$0xff] %v8204
        %8235 = vst.msk [vmem:[#allocation2 + $0xd18] sm:$0xff] %vm7910, %v8193
        %8236 = vst [vmem:[#allocation2 + $0xd68] sm:$0xff] %v8205
        %8237 = vst.msk [vmem:[#allocation2 + $0xd70] sm:$0xff] %vm7910, %v8197
        %8238 = vrot.lane.b32.xlu0 %v7878, 104
        %v8239 = vpop.permute.xlu0 %8238
        %8240 = vrot.lane.b32.xlu0 %v7879, 104
        %v8241 = vpop.permute.xlu0 %8240
        %8242 = vrot.lane.b32.xlu0 %v7882, 104
        %v8243 = vpop.permute.xlu0 %8242
        %8244 = vrot.lane.b32.xlu0 %v7883, 104
        %v8245 = vpop.permute.xlu0 %8244
        %8246 = vrot.lane.b32.xlu0 %v7886, 104
        %v8247 = vpop.permute.xlu0 %8246
        %8248 = vrot.lane.b32.xlu0 %v7887, 104
        %v8249 = vpop.permute.xlu0 %8248
        %8250 = vrot.lane.b32.xlu0 %v7890, 104
        %v8251 = vpop.permute.xlu0 %8250
        %8252 = vrot.lane.b32.xlu0 %v7891, 104
        %v8253 = vpop.permute.xlu0 %8252
        %8254 = vrot.lane.b32.xlu0 %v7894, 104
        %v8255 = vpop.permute.xlu0 %8254
        %8256 = vrot.lane.b32.xlu0 %v7895, 104
        %v8257 = vpop.permute.xlu0 %8256
        %8258 = vrot.lane.b32.xlu0 %v7898, 104
        %v8259 = vpop.permute.xlu0 %8258
        %8260 = vrot.lane.b32.xlu0 %v7899, 104
        %v8261 = vpop.permute.xlu0 %8260
        %8262 = vrot.lane.b32.xlu0 %v7902, 104
        %v8263 = vpop.permute.xlu0 %8262
        %8264 = vrot.lane.b32.xlu0 %v7903, 104
        %v8265 = vpop.permute.xlu0 %8264
        %8266 = vrot.lane.b32.xlu0 %v7906, 104
        %v8267 = vpop.permute.xlu0 %8266
        %8268 = vrot.lane.b32.xlu0 %v7907, 104
        %v8269 = vpop.permute.xlu0 %8268
        %v8270 = vsel %vm6906, %v8239, %v8241
        %v8271 = vsel %vm6906, %v8243, %v8245
        %v8272 = vsel %vm6906, %v8247, %v8249
        %v8273 = vsel %vm6906, %v8251, %v8253
        %v8274 = vsel %vm6906, %v8255, %v8257
        %v8275 = vsel %vm6906, %v8259, %v8261
        %v8276 = vsel %vm6906, %v8263, %v8265
        %v8277 = vsel %vm6906, %v8267, %v8269
        %8294 = vst [vmem:[#allocation2 + $0xdc0] sm:$0xff] %v8270
        %8295 = vst.msk [vmem:[#allocation2 + $0xdc8] sm:$0xff] %vm7910, %v8241
        %8296 = vst [vmem:[#allocation2 + $0xe18] sm:$0xff] %v8271
        %8297 = vst.msk [vmem:[#allocation2 + $0xe20] sm:$0xff] %vm7910, %v8245
        %8298 = vst [vmem:[#allocation2 + $0xe70] sm:$0xff] %v8272
        %8299 = vst.msk [vmem:[#allocation2 + $0xe78] sm:$0xff] %vm7910, %v8249
        %8300 = vst [vmem:[#allocation2 + $0xec8] sm:$0xff] %v8273
        %8301 = vst.msk [vmem:[#allocation2 + $0xed0] sm:$0xff] %vm7910, %v8253
        %8302 = vst [vmem:[#allocation2 + $0xf20] sm:$0xff] %v8274
        %8303 = vst.msk [vmem:[#allocation2 + $0xf28] sm:$0xff] %vm7910, %v8257
        %8304 = vst [vmem:[#allocation2 + $0xf78] sm:$0xff] %v8275
        %8305 = vst.msk [vmem:[#allocation2 + $0xf80] sm:$0xff] %vm7910, %v8261
        %8306 = vst [vmem:[#allocation2 + $0xfd0] sm:$0xff] %v8276
        %8307 = vst.msk [vmem:[#allocation2 + $0xfd8] sm:$0xff] %vm7910, %v8265
        %8308 = vst [vmem:[#allocation2 + $0x1028] sm:$0xff] %v8277
        %8309 = vst.msk [vmem:[#allocation2 + $0x1030] sm:$0xff] %vm7910, %v8269
        %8318 = vrot.lane.b32.xlu0 %v7879, 96
        %v8319 = vpop.permute.xlu0 %8318
        %8320 = vrot.lane.b32.xlu0 %v7880, 96
        %v8321 = vpop.permute.xlu0 %8320
        %8322 = vrot.lane.b32.xlu0 %v7883, 96
        %v8323 = vpop.permute.xlu0 %8322
        %8324 = vrot.lane.b32.xlu0 %v7884, 96
        %v8325 = vpop.permute.xlu0 %8324
        %8326 = vrot.lane.b32.xlu0 %v7887, 96
        %v8327 = vpop.permute.xlu0 %8326
        %8328 = vrot.lane.b32.xlu0 %v7888, 96
        %v8329 = vpop.permute.xlu0 %8328
        %8330 = vrot.lane.b32.xlu0 %v7891, 96
        %v8331 = vpop.permute.xlu0 %8330
        %8332 = vrot.lane.b32.xlu0 %v7892, 96
        %v8333 = vpop.permute.xlu0 %8332
        %8334 = vrot.lane.b32.xlu0 %v7895, 96
        %v8335 = vpop.permute.xlu0 %8334
        %8336 = vrot.lane.b32.xlu0 %v7896, 96
        %v8337 = vpop.permute.xlu0 %8336
        %8338 = vrot.lane.b32.xlu0 %v7899, 96
        %v8339 = vpop.permute.xlu0 %8338
        %8340 = vrot.lane.b32.xlu0 %v7900, 96
        %v8341 = vpop.permute.xlu0 %8340
        %8342 = vrot.lane.b32.xlu0 %v7903, 96
        %v8343 = vpop.permute.xlu0 %8342
        %8344 = vrot.lane.b32.xlu0 %v7904, 96
        %v8345 = vpop.permute.xlu0 %8344
        %8346 = vrot.lane.b32.xlu0 %v7907, 96
        %v8347 = vpop.permute.xlu0 %8346
        %8348 = vrot.lane.b32.xlu0 %v7908, 96
        %v8349 = vpop.permute.xlu0 %8348
        %v8350 = vsel %vm6987, %v8319, %v8321
        %v8351 = vsel %vm6987, %v8323, %v8325
        %v8352 = vsel %vm6987, %v8327, %v8329
        %v8353 = vsel %vm6987, %v8331, %v8333
        %v8354 = vsel %vm6987, %v8335, %v8337
        %v8355 = vsel %vm6987, %v8339, %v8341
        %v8356 = vsel %vm6987, %v8343, %v8345
        %v8357 = vsel %vm6987, %v8347, %v8349
        %8374 = vst [vmem:[#allocation2 + $0x1080] sm:$0xff] %v8350
        %8375 = vst.msk [vmem:[#allocation2 + $0x1088] sm:$0xff] %vm7910, %v8321
        %8376 = vst [vmem:[#allocation2 + $0x10d8] sm:$0xff] %v8351
        %8377 = vst.msk [vmem:[#allocation2 + $0x10e0] sm:$0xff] %vm7910, %v8325
        %8378 = vst [vmem:[#allocation2 + $0x1130] sm:$0xff] %v8352
        %8379 = vst.msk [vmem:[#allocation2 + $0x1138] sm:$0xff] %vm7910, %v8329
        %8380 = vst [vmem:[#allocation2 + $0x1188] sm:$0xff] %v8353
        %8381 = vst.msk [vmem:[#allocation2 + $0x1190] sm:$0xff] %vm7910, %v8333
        %8382 = vst [vmem:[#allocation2 + $0x11e0] sm:$0xff] %v8354
        %8383 = vst.msk [vmem:[#allocation2 + $0x11e8] sm:$0xff] %vm7910, %v8337
        %8384 = vst [vmem:[#allocation2 + $0x1238] sm:$0xff] %v8355
        %8385 = vst.msk [vmem:[#allocation2 + $0x1240] sm:$0xff] %vm7910, %v8341
        %8386 = vst [vmem:[#allocation2 + $0x1290] sm:$0xff] %v8356
        %8387 = vst.msk [vmem:[#allocation2 + $0x1298] sm:$0xff] %vm7910, %v8345
        %8388 = vst [vmem:[#allocation2 + $0x12e8] sm:$0xff] %v8357
        %8389 = vst.msk [vmem:[#allocation2 + $0x12f0] sm:$0xff] %vm7910, %v8349
        %8390 = vrot.lane.b32.xlu0 %v7879, 92
        %v8391 = vpop.permute.xlu0 %8390
        %8392 = vrot.lane.b32.xlu0 %v7880, 92
        %v8393 = vpop.permute.xlu0 %8392
        %8394 = vrot.lane.b32.xlu0 %v7883, 92
        %v8395 = vpop.permute.xlu0 %8394
        %8396 = vrot.lane.b32.xlu0 %v7884, 92
        %v8397 = vpop.permute.xlu0 %8396
        %8398 = vrot.lane.b32.xlu0 %v7887, 92
        %v8399 = vpop.permute.xlu0 %8398
        %8400 = vrot.lane.b32.xlu0 %v7888, 92
        %v8401 = vpop.permute.xlu0 %8400
        %8402 = vrot.lane.b32.xlu0 %v7891, 92
        %v8403 = vpop.permute.xlu0 %8402
        %8404 = vrot.lane.b32.xlu0 %v7892, 92
        %v8405 = vpop.permute.xlu0 %8404
        %8406 = vrot.lane.b32.xlu0 %v7895, 92
        %v8407 = vpop.permute.xlu0 %8406
        %8408 = vrot.lane.b32.xlu0 %v7896, 92
        %v8409 = vpop.permute.xlu0 %8408
        %8410 = vrot.lane.b32.xlu0 %v7899, 92
        %v8411 = vpop.permute.xlu0 %8410
        %8412 = vrot.lane.b32.xlu0 %v7900, 92
        %v8413 = vpop.permute.xlu0 %8412
        %8414 = vrot.lane.b32.xlu0 %v7903, 92
        %v8415 = vpop.permute.xlu0 %8414
        %8416 = vrot.lane.b32.xlu0 %v7904, 92
        %v8417 = vpop.permute.xlu0 %8416
        %8418 = vrot.lane.b32.xlu0 %v7907, 92
        %v8419 = vpop.permute.xlu0 %8418
        %8420 = vrot.lane.b32.xlu0 %v7908, 92
        %v8421 = vpop.permute.xlu0 %8420
        %v8422 = vsel %vm618, %v8391, %v8393
        %v8423 = vsel %vm618, %v8395, %v8397
        %v8424 = vsel %vm618, %v8399, %v8401
        %v8425 = vsel %vm618, %v8403, %v8405
        %v8426 = vsel %vm618, %v8407, %v8409
        %v8427 = vsel %vm618, %v8411, %v8413
        %v8428 = vsel %vm618, %v8415, %v8417
        %v8429 = vsel %vm618, %v8419, %v8421
        %8446 = vst [vmem:[#allocation2 + $0x1340] sm:$0xff] %v8422
        %8447 = vst.msk [vmem:[#allocation2 + $0x1348] sm:$0xff] %vm7910, %v8393
        %8448 = vst [vmem:[#allocation2 + $0x1398] sm:$0xff] %v8423
        %8449 = vst.msk [vmem:[#allocation2 + $0x13a0] sm:$0xff] %vm7910, %v8397
        %8450 = vst [vmem:[#allocation2 + $0x13f0] sm:$0xff] %v8424
        %8451 = vst.msk [vmem:[#allocation2 + $0x13f8] sm:$0xff] %vm7910, %v8401
        %8452 = vst [vmem:[#allocation2 + $0x1448] sm:$0xff] %v8425
        %8453 = vst.msk [vmem:[#allocation2 + $0x1450] sm:$0xff] %vm7910, %v8405
        %8454 = vst [vmem:[#allocation2 + $0x14a0] sm:$0xff] %v8426
        %8455 = vst.msk [vmem:[#allocation2 + $0x14a8] sm:$0xff] %vm7910, %v8409
        %8456 = vst [vmem:[#allocation2 + $0x14f8] sm:$0xff] %v8427
        %8457 = vst.msk [vmem:[#allocation2 + $0x1500] sm:$0xff] %vm7910, %v8413
        %8458 = vst [vmem:[#allocation2 + $0x1550] sm:$0xff] %v8428
        %8459 = vst.msk [vmem:[#allocation2 + $0x1558] sm:$0xff] %vm7910, %v8417
        %8460 = vst [vmem:[#allocation2 + $0x15a8] sm:$0xff] %v8429
        %8461 = vst.msk [vmem:[#allocation2 + $0x15b0] sm:$0xff] %vm7910, %v8421
        %8462 = vrot.lane.b32.xlu0 %v7879, 88
        %v8463 = vpop.permute.xlu0 %8462
        %8464 = vrot.lane.b32.xlu0 %v7880, 88
        %v8465 = vpop.permute.xlu0 %8464
        %8466 = vrot.lane.b32.xlu0 %v7883, 88
        %v8467 = vpop.permute.xlu0 %8466
        %8468 = vrot.lane.b32.xlu0 %v7884, 88
        %v8469 = vpop.permute.xlu0 %8468
        %8470 = vrot.lane.b32.xlu0 %v7887, 88
        %v8471 = vpop.permute.xlu0 %8470
        %8472 = vrot.lane.b32.xlu0 %v7888, 88
        %v8473 = vpop.permute.xlu0 %8472
        %8474 = vrot.lane.b32.xlu0 %v7891, 88
        %v8475 = vpop.permute.xlu0 %8474
        %8476 = vrot.lane.b32.xlu0 %v7892, 88
        %v8477 = vpop.permute.xlu0 %8476
        %8478 = vrot.lane.b32.xlu0 %v7895, 88
        %v8479 = vpop.permute.xlu0 %8478
        %8480 = vrot.lane.b32.xlu0 %v7896, 88
        %v8481 = vpop.permute.xlu0 %8480
        %8482 = vrot.lane.b32.xlu0 %v7899, 88
        %v8483 = vpop.permute.xlu0 %8482
        %8484 = vrot.lane.b32.xlu0 %v7900, 88
        %v8485 = vpop.permute.xlu0 %8484
        %8486 = vrot.lane.b32.xlu0 %v7903, 88
        %v8487 = vpop.permute.xlu0 %8486
        %8488 = vrot.lane.b32.xlu0 %v7904, 88
        %v8489 = vpop.permute.xlu0 %8488
        %8490 = vrot.lane.b32.xlu0 %v7907, 88
        %v8491 = vpop.permute.xlu0 %8490
        %8492 = vrot.lane.b32.xlu0 %v7908, 88
        %v8493 = vpop.permute.xlu0 %8492
        %v8494 = vsel %vm7140, %v8463, %v8465
        %v8495 = vsel %vm7140, %v8467, %v8469
        %v8496 = vsel %vm7140, %v8471, %v8473
        %v8497 = vsel %vm7140, %v8475, %v8477
        %v8498 = vsel %vm7140, %v8479, %v8481
        %v8499 = vsel %vm7140, %v8483, %v8485
        %v8500 = vsel %vm7140, %v8487, %v8489
        %v8501 = vsel %vm7140, %v8491, %v8493
        %8518 = vst [vmem:[#allocation2 + $0x1600] sm:$0xff] %v8494
        %8519 = vst.msk [vmem:[#allocation2 + $0x1608] sm:$0xff] %vm7910, %v8465
        %8520 = vst [vmem:[#allocation2 + $0x1658] sm:$0xff] %v8495
        %8521 = vst.msk [vmem:[#allocation2 + $0x1660] sm:$0xff] %vm7910, %v8469
        %8522 = vst [vmem:[#allocation2 + $0x16b0] sm:$0xff] %v8496
        %8523 = vst.msk [vmem:[#allocation2 + $0x16b8] sm:$0xff] %vm7910, %v8473
        %8524 = vst [vmem:[#allocation2 + $0x1708] sm:$0xff] %v8497
        %8525 = vst.msk [vmem:[#allocation2 + $0x1710] sm:$0xff] %vm7910, %v8477
        %8526 = vst [vmem:[#allocation2 + $0x1760] sm:$0xff] %v8498
        %8527 = vst.msk [vmem:[#allocation2 + $0x1768] sm:$0xff] %vm7910, %v8481
        %8528 = vst [vmem:[#allocation2 + $0x17b8] sm:$0xff] %v8499
        %8529 = vst.msk [vmem:[#allocation2 + $0x17c0] sm:$0xff] %vm7910, %v8485
        %8530 = vst [vmem:[#allocation2 + $0x1810] sm:$0xff] %v8500
        %8531 = vst.msk [vmem:[#allocation2 + $0x1818] sm:$0xff] %vm7910, %v8489
        %8532 = vst [vmem:[#allocation2 + $0x1868] sm:$0xff] %v8501
        %8533 = vst.msk [vmem:[#allocation2 + $0x1870] sm:$0xff] %vm7910, %v8493
        %v8534 = vld [vmem:[%s11] sm:$0xff]
        %v8535 = vld [vmem:[%s11 + $0x8] sm:$0xff]
        %v8536 = vld [vmem:[%s11 + $0x10] sm:$0xff]
        %v8537 = vld [vmem:[%s11 + $0x18] sm:$0xff]
        %v8538 = vld [vmem:[%s11 + $0x20] sm:$0xff]
        %v8539 = vld [vmem:[%s11 + $0x28] sm:$0xff]
        %v8540 = vld [vmem:[%s11 + $0x30] sm:$0xff]
        %v8541 = vld [vmem:[%s11 + $0x38] sm:$0xff]
        %v8542 = vld [vmem:[%s11 + $0x40] sm:$0xff]
        %v8543 = vld [vmem:[%s11 + $0x48] sm:$0xff]
        %v8544 = vld [vmem:[%s11 + $0x50] sm:$0xff]
        %v8545 = vld [vmem:[%s11 + $0x58] sm:$0xff]
        %v8546 = vld [vmem:[%s11 + $0x60] sm:$0xff]
        %v8547 = vld [vmem:[%s11 + $0x68] sm:$0xff]
        %v8548 = vld [vmem:[%s11 + $0x70] sm:$0xff]
        %v8549 = vld [vmem:[%s11 + $0x78] sm:$0xff]
        %v8550 = vld [vmem:[%s11 + $0x80] sm:$0xff]
        %v8551 = vld [vmem:[%s11 + $0x88] sm:$0xff]
        %v8552 = vld [vmem:[%s11 + $0x90] sm:$0xff]
        %v8553 = vld [vmem:[%s11 + $0x98] sm:$0xff]
        %v8554 = vld [vmem:[%s11 + $0xa0] sm:$0xff]
        %v8555 = vld [vmem:[%s11 + $0xa8] sm:$0xff]
        %v8556 = vld [vmem:[%s11 + $0xb0] sm:$0xff]
        %v8557 = vld [vmem:[%s11 + $0xb8] sm:$0xff]
        %v8558 = vld [vmem:[%s11 + $0xc0] sm:$0xff]
        %v8559 = vld [vmem:[%s11 + $0xc8] sm:$0xff]
        %v8560 = vld [vmem:[%s11 + $0xd0] sm:$0xff]
        %v8561 = vld [vmem:[%s11 + $0xd8] sm:$0xff]
        %v8562 = vld [vmem:[%s11 + $0xe0] sm:$0xff]
        %v8563 = vld [vmem:[%s11 + $0xe8] sm:$0xff]
        %v8564 = vld [vmem:[%s11 + $0xf0] sm:$0xff]
        %v8565 = vld [vmem:[%s11 + $0xf8] sm:$0xff]
        %v8566 = vld [vmem:[%s11 + $0x100] sm:$0xff]
        %v8567 = vld [vmem:[%s11 + $0x108] sm:$0xff]
        %v8568 = vld [vmem:[%s11 + $0x110] sm:$0xff]
        %v8569 = vld [vmem:[%s11 + $0x118] sm:$0xff]
        %v8570 = vld [vmem:[%s11 + $0x120] sm:$0xff]
        %v8571 = vld [vmem:[%s11 + $0x128] sm:$0xff]
        %v8572 = vld [vmem:[%s11 + $0x130] sm:$0xff]
        %v8573 = vld [vmem:[%s11 + $0x138] sm:$0xff]
        %v8574 = vld [vmem:[#allocation2] sm:$0xff]
        %v8575 = vld [vmem:[#allocation2 + $0x8] sm:$0xff]
        %v8576 = vld [vmem:[#allocation2 + $0x58] sm:$0xff]
        %v8577 = vld [vmem:[#allocation2 + $0x60] sm:$0xff]
        %v8578 = vld [vmem:[#allocation2 + $0xb0] sm:$0xff]
        %v8579 = vld [vmem:[#allocation2 + $0xb8] sm:$0xff]
        %v8580 = vld [vmem:[#allocation2 + $0x108] sm:$0xff]
        %v8581 = vld [vmem:[#allocation2 + $0x110] sm:$0xff]
        %v8582 = vld [vmem:[#allocation2 + $0x160] sm:$0xff]
        %v8583 = vld [vmem:[#allocation2 + $0x168] sm:$0xff]
        %v8584 = vld [vmem:[#allocation2 + $0x1b8] sm:$0xff]
        %v8585 = vld [vmem:[#allocation2 + $0x1c0] sm:$0xff]
        %v8586 = vld [vmem:[#allocation2 + $0x210] sm:$0xff]
        %v8587 = vld [vmem:[#allocation2 + $0x218] sm:$0xff]
        %v8588 = vld [vmem:[#allocation2 + $0x268] sm:$0xff]
        %v8589 = vld [vmem:[#allocation2 + $0x270] sm:$0xff]
        %v8590 = vld [vmem:[#allocation2 + $0x2c0] sm:$0xff]
        %v8591 = vld [vmem:[#allocation2 + $0x2c8] sm:$0xff]
        %v8592 = vld [vmem:[#allocation2 + $0x318] sm:$0xff]
        %v8593 = vld [vmem:[#allocation2 + $0x320] sm:$0xff]
        %v8594 = vld [vmem:[#allocation2 + $0x370] sm:$0xff]
        %v8595 = vld [vmem:[#allocation2 + $0x378] sm:$0xff]
        %v8596 = vld [vmem:[#allocation2 + $0x3c8] sm:$0xff]
        %v8597 = vld [vmem:[#allocation2 + $0x3d0] sm:$0xff]
        %v8598 = vld [vmem:[#allocation2 + $0x420] sm:$0xff]
        %v8599 = vld [vmem:[#allocation2 + $0x428] sm:$0xff]
        %v8600 = vld [vmem:[#allocation2 + $0x478] sm:$0xff]
        %v8601 = vld [vmem:[#allocation2 + $0x480] sm:$0xff]
        %v8602 = vld [vmem:[#allocation2 + $0x4d0] sm:$0xff]
        %v8603 = vld [vmem:[#allocation2 + $0x4d8] sm:$0xff]
        %v8604 = vld [vmem:[#allocation2 + $0x528] sm:$0xff]
        %v8605 = vld [vmem:[#allocation2 + $0x530] sm:$0xff]
        %v8606 = vld [vmem:[#allocation2 + $0x580] sm:$0xff]
        %v8607 = vld [vmem:[#allocation2 + $0x588] sm:$0xff]
        %v8608 = vld [vmem:[#allocation2 + $0x5d8] sm:$0xff]
        %v8609 = vld [vmem:[#allocation2 + $0x5e0] sm:$0xff]
        %v8610 = vld [vmem:[#allocation2 + $0x630] sm:$0xff]
        %v8611 = vld [vmem:[#allocation2 + $0x638] sm:$0xff]
        %v8612 = vld [vmem:[#allocation2 + $0x688] sm:$0xff]
        %v8613 = vld [vmem:[#allocation2 + $0x690] sm:$0xff]
        %v8614 = vld [vmem:[#allocation2 + $0x6e0] sm:$0xff]
        %v8615 = vld [vmem:[#allocation2 + $0x6e8] sm:$0xff]
        %v8616 = vld [vmem:[#allocation2 + $0x738] sm:$0xff]
        %v8617 = vld [vmem:[#allocation2 + $0x740] sm:$0xff]
        %v8618 = vld [vmem:[#allocation2 + $0x790] sm:$0xff]
        %v8619 = vld [vmem:[#allocation2 + $0x798] sm:$0xff]
        %v8620 = vld [vmem:[#allocation2 + $0x7e8] sm:$0xff]
        %v8621 = vld [vmem:[#allocation2 + $0x7f0] sm:$0xff]
        %v8622 = vld [vmem:[#allocation2 + $0x840] sm:$0xff]
        %v8623 = vld [vmem:[#allocation2 + $0x848] sm:$0xff]
        %v8624 = vld [vmem:[#allocation2 + $0x898] sm:$0xff]
        %v8625 = vld [vmem:[#allocation2 + $0x8a0] sm:$0xff]
        %v8626 = vld [vmem:[#allocation2 + $0x8f0] sm:$0xff]
        %v8627 = vld [vmem:[#allocation2 + $0x8f8] sm:$0xff]
        %v8628 = vld [vmem:[#allocation2 + $0x948] sm:$0xff]
        %v8629 = vld [vmem:[#allocation2 + $0x950] sm:$0xff]
        %v8630 = vld [vmem:[#allocation2 + $0x9a0] sm:$0xff]
        %v8631 = vld [vmem:[#allocation2 + $0x9a8] sm:$0xff]
        %v8632 = vld [vmem:[#allocation2 + $0x9f8] sm:$0xff]
        %v8633 = vld [vmem:[#allocation2 + $0xa00] sm:$0xff]
        %v8634 = vld [vmem:[#allocation2 + $0xa50] sm:$0xff]
        %v8635 = vld [vmem:[#allocation2 + $0xa58] sm:$0xff]
        %v8636 = vld [vmem:[#allocation2 + $0xaa8] sm:$0xff]
        %v8637 = vld [vmem:[#allocation2 + $0xab0] sm:$0xff]
        %v8638 = vld [vmem:[#allocation2 + $0xb00] sm:$0xff]
        %v8639 = vld [vmem:[#allocation2 + $0xb08] sm:$0xff]
        %v8640 = vld [vmem:[#allocation2 + $0xb58] sm:$0xff]
        %v8641 = vld [vmem:[#allocation2 + $0xb60] sm:$0xff]
        %v8642 = vld [vmem:[#allocation2 + $0xbb0] sm:$0xff]
        %v8643 = vld [vmem:[#allocation2 + $0xbb8] sm:$0xff]
        %v8644 = vld [vmem:[#allocation2 + $0xc08] sm:$0xff]
        %v8645 = vld [vmem:[#allocation2 + $0xc10] sm:$0xff]
        %v8646 = vld [vmem:[#allocation2 + $0xc60] sm:$0xff]
        %v8647 = vld [vmem:[#allocation2 + $0xc68] sm:$0xff]
        %v8648 = vld [vmem:[#allocation2 + $0xcb8] sm:$0xff]
        %v8649 = vld [vmem:[#allocation2 + $0xcc0] sm:$0xff]
        %v8650 = vld [vmem:[#allocation2 + $0xd10] sm:$0xff]
        %v8651 = vld [vmem:[#allocation2 + $0xd18] sm:$0xff]
        %v8652 = vld [vmem:[#allocation2 + $0xd68] sm:$0xff]
        %v8653 = vld [vmem:[#allocation2 + $0xd70] sm:$0xff]
        %v8654 = vld [vmem:[#allocation2 + $0xdc0] sm:$0xff]
        %v8655 = vld [vmem:[#allocation2 + $0xdc8] sm:$0xff]
        %v8656 = vld [vmem:[#allocation2 + $0xe18] sm:$0xff]
        %v8657 = vld [vmem:[#allocation2 + $0xe20] sm:$0xff]
        %v8658 = vld [vmem:[#allocation2 + $0xe70] sm:$0xff]
        %v8659 = vld [vmem:[#allocation2 + $0xe78] sm:$0xff]
        %v8660 = vld [vmem:[#allocation2 + $0xec8] sm:$0xff]
        %v8661 = vld [vmem:[#allocation2 + $0xed0] sm:$0xff]
        %v8662 = vld [vmem:[#allocation2 + $0xf20] sm:$0xff]
        %v8663 = vld [vmem:[#allocation2 + $0xf28] sm:$0xff]
        %v8664 = vld [vmem:[#allocation2 + $0xf78] sm:$0xff]
        %v8665 = vld [vmem:[#allocation2 + $0xf80] sm:$0xff]
        %v8666 = vld [vmem:[#allocation2 + $0xfd0] sm:$0xff]
        %v8667 = vld [vmem:[#allocation2 + $0xfd8] sm:$0xff]
        %v8668 = vld [vmem:[#allocation2 + $0x1028] sm:$0xff]
        %v8669 = vld [vmem:[#allocation2 + $0x1030] sm:$0xff]
        %v8670 = vld [vmem:[#allocation2 + $0x1080] sm:$0xff]
        %v8671 = vld [vmem:[#allocation2 + $0x1088] sm:$0xff]
        %v8672 = vld [vmem:[#allocation2 + $0x10d8] sm:$0xff]
        %v8673 = vld [vmem:[#allocation2 + $0x10e0] sm:$0xff]
        %v8674 = vld [vmem:[#allocation2 + $0x1130] sm:$0xff]
        %v8675 = vld [vmem:[#allocation2 + $0x1138] sm:$0xff]
        %v8676 = vld [vmem:[#allocation2 + $0x1188] sm:$0xff]
        %v8677 = vld [vmem:[#allocation2 + $0x1190] sm:$0xff]
        %v8678 = vld [vmem:[#allocation2 + $0x11e0] sm:$0xff]
        %v8679 = vld [vmem:[#allocation2 + $0x11e8] sm:$0xff]
        %v8680 = vld [vmem:[#allocation2 + $0x1238] sm:$0xff]
        %v8681 = vld [vmem:[#allocation2 + $0x1240] sm:$0xff]
        %v8682 = vld [vmem:[#allocation2 + $0x1290] sm:$0xff]
        %v8683 = vld [vmem:[#allocation2 + $0x1298] sm:$0xff]
        %v8684 = vld [vmem:[#allocation2 + $0x12e8] sm:$0xff]
        %v8685 = vld [vmem:[#allocation2 + $0x12f0] sm:$0xff]
        %v8686 = vld [vmem:[#allocation2 + $0x1340] sm:$0xff]
        %v8687 = vld [vmem:[#allocation2 + $0x1348] sm:$0xff]
        %v8688 = vld [vmem:[#allocation2 + $0x1398] sm:$0xff]
        %v8689 = vld [vmem:[#allocation2 + $0x13a0] sm:$0xff]
        %v8690 = vld [vmem:[#allocation2 + $0x13f0] sm:$0xff]
        %v8691 = vld [vmem:[#allocation2 + $0x13f8] sm:$0xff]
        %v8692 = vld [vmem:[#allocation2 + $0x1448] sm:$0xff]
        %v8693 = vld [vmem:[#allocation2 + $0x1450] sm:$0xff]
        %v8694 = vld [vmem:[#allocation2 + $0x14a0] sm:$0xff]
        %v8695 = vld [vmem:[#allocation2 + $0x14a8] sm:$0xff]
        %v8696 = vld [vmem:[#allocation2 + $0x14f8] sm:$0xff]
        %v8697 = vld [vmem:[#allocation2 + $0x1500] sm:$0xff]
        %v8698 = vld [vmem:[#allocation2 + $0x1550] sm:$0xff]
        %v8699 = vld [vmem:[#allocation2 + $0x1558] sm:$0xff]
        %v8700 = vld [vmem:[#allocation2 + $0x15a8] sm:$0xff]
        %v8701 = vld [vmem:[#allocation2 + $0x15b0] sm:$0xff]
        %v8702 = vld [vmem:[#allocation2 + $0x1600] sm:$0xff]
        %v8703 = vld [vmem:[#allocation2 + $0x1608] sm:$0xff]
        %v8704 = vld [vmem:[#allocation2 + $0x1658] sm:$0xff]
        %v8705 = vld [vmem:[#allocation2 + $0x1660] sm:$0xff]
        %v8706 = vld [vmem:[#allocation2 + $0x16b0] sm:$0xff]
        %v8707 = vld [vmem:[#allocation2 + $0x16b8] sm:$0xff]
        %v8708 = vld [vmem:[#allocation2 + $0x1708] sm:$0xff]
        %v8709 = vld [vmem:[#allocation2 + $0x1710] sm:$0xff]
        %v8710 = vld [vmem:[#allocation2 + $0x1760] sm:$0xff]
        %v8711 = vld [vmem:[#allocation2 + $0x1768] sm:$0xff]
        %v8712 = vld [vmem:[#allocation2 + $0x17b8] sm:$0xff]
        %v8713 = vld [vmem:[#allocation2 + $0x17c0] sm:$0xff]
        %v8714 = vld [vmem:[#allocation2 + $0x1810] sm:$0xff]
        %v8715 = vld [vmem:[#allocation2 + $0x1818] sm:$0xff]
        %v8716 = vld [vmem:[#allocation2 + $0x1868] sm:$0xff]
        %v8717 = vld [vmem:[#allocation2 + $0x1870] sm:$0xff]
        %v8718 = vld [vmem:[%s12] sm:$0xff]
        %v8719 = vld [vmem:[%s12 + $0x8] sm:$0xff]
        %v8720 = vld [vmem:[%s12 + $0x10] sm:$0xff]
        %v8721 = vld [vmem:[%s12 + $0x18] sm:$0xff]
        %v8722 = vld [vmem:[%s12 + $0x20] sm:$0xff]
        %v8723 = vld [vmem:[%s12 + $0x28] sm:$0xff]
        %v8724 = vld [vmem:[%s12 + $0x30] sm:$0xff]
        %v8725 = vld [vmem:[%s12 + $0x38] sm:$0xff]
        %8727 = vset.pattern.permute.xlu0 0
        %8728 = vperm.xlu0 %8727, %v8718
        %v8729 = vpop.permute.xlu0 %8728
        %8732 = vset.pattern.permute.xlu0 0
        %8733 = vperm.xlu0 %8732, %v8719
        %v8734 = vpop.permute.xlu0 %8733
        %8737 = vset.pattern.permute.xlu0 0
        %8738 = vperm.xlu0 %8737, %v8720
        %v8739 = vpop.permute.xlu0 %8738
        %8742 = vset.pattern.permute.xlu0 0
        %8743 = vperm.xlu0 %8742, %v8721
        %v8744 = vpop.permute.xlu0 %8743
        %8747 = vset.pattern.permute.xlu0 0
        %8748 = vperm.xlu0 %8747, %v8722
        %v8749 = vpop.permute.xlu0 %8748
        %8752 = vset.pattern.permute.xlu0 0
        %8753 = vperm.xlu0 %8752, %v8723
        %v8754 = vpop.permute.xlu0 %8753
        %8757 = vset.pattern.permute.xlu0 0
        %8758 = vperm.xlu0 %8757, %v8724
        %v8759 = vpop.permute.xlu0 %8758
        %8762 = vset.pattern.permute.xlu0 0
        %8763 = vperm.xlu0 %8762, %v8725
        %v8764 = vpop.permute.xlu0 %8763
        %vm8766 = vcmask 523264
        %v8768 = vsel %vm8766, %v8538, 0
        %v8771 = vsel %vm8766, %v8543, 0
        %v8774 = vsel %vm8766, %v8548, 0
        %v8777 = vsel %vm8766, %v8553, 0
        %v8780 = vsel %vm8766, %v8558, 0
        %v8783 = vsel %vm8766, %v8563, 0
        %v8786 = vsel %vm8766, %v8568, 0
        %v8789 = vsel %vm8766, %v8573, 0
        %8791 = vmatprep.subr.mxu0 %v8605
        %8792 = vmatpush1.msra.mxu0 %v8604
        %8793 = vmatprep.subr.mxu0 %v8603
        %8794 = vmatpush1.msra.mxu0 %v8602
        %8795 = vmatprep.subr.mxu0 %v8601
        %8796 = vmatpush1.msra.mxu0 %v8600
        %8797 = vmatprep.subr.mxu0 %v8599
        %8798 = vmatpush1.msra.mxu0 %v8598
        %8799 = vmatprep.subr.mxu0 %v8597
        %8800 = vmatpush1.msra.mxu0 %v8596
        %8801 = vmatprep.subr.mxu0 %v8595
        %8802 = vmatpush1.msra.mxu0 %v8594
        %8803 = vmatprep.subr.mxu0 %v8593
        %8804 = vmatpush1.msra.mxu0 %v8592
        %8805 = vmatprep.subr.mxu0 %v8591
        %8806 = vmatpush1.msra.mxu0 %v8590
        %8807 = vmatprep.subr.mxu0 %v8589
        %8808 = vmatpush1.msra.mxu0 %v8588
        %8809 = vmatprep.subr.mxu0 %v8587
        %8810 = vmatpush1.msra.mxu0 %v8586
        %8811 = vmatprep.subr.mxu0 %v8585
        %8812 = vmatpush1.msra.mxu0 %v8584
        %8813 = vmatprep.subr.mxu0 %v8583
        %8814 = vmatpush1.msra.mxu0 %v8582
        %8815 = vmatprep.subr.mxu0 %v8581
        %8816 = vmatpush1.msra.mxu0 %v8580
        %8817 = vmatprep.subr.mxu0 %v8579
        %8818 = vmatpush1.msra.mxu0 %v8578
        %8819 = vmatprep.subr.mxu0 %v8577
        %8820 = vmatpush1.msra.mxu0 %v8576
        %8821 = vmatprep.subr.mxu0 %v8575
        %8822 = vmatpush1.msra.mxu0 %v8574
        %8823 = vmatprep.subr.mxu0 %v8637
        %8824 = vmatpush2.msra.mxu0 %v8636
        %8825 = vmatprep.subr.mxu0 %v8635
        %8826 = vmatpush2.msra.mxu0 %v8634
        %8827 = vmatprep.subr.mxu0 %v8633
        %8828 = vmatpush2.msra.mxu0 %v8632
        %8829 = vmatprep.subr.mxu0 %v8631
        %8830 = vmatpush2.msra.mxu0 %v8630
        %8831 = vmatprep.subr.mxu0 %v8629
        %8832 = vmatpush2.msra.mxu0 %v8628
        %8833 = vmatprep.subr.mxu0 %v8627
        %8834 = vmatpush2.msra.mxu0 %v8626
        %8835 = vmatprep.subr.mxu0 %v8625
        %8836 = vmatpush2.msra.mxu0 %v8624
        %8837 = vmatprep.subr.mxu0 %v8623
        %8838 = vmatpush2.msra.mxu0 %v8622
        %8839 = vmatprep.subr.mxu0 %v8621
        %8840 = vmatpush2.msra.mxu0 %v8620
        %8841 = vmatprep.subr.mxu0 %v8619
        %8842 = vmatpush2.msra.mxu0 %v8618
        %8843 = vmatprep.subr.mxu0 %v8617
        %8844 = vmatpush2.msra.mxu0 %v8616
        %8845 = vmatprep.subr.mxu0 %v8615
        %8846 = vmatpush2.msra.mxu0 %v8614
        %8847 = vmatprep.subr.mxu0 %v8613
        %8848 = vmatpush2.msra.mxu0 %v8612
        %8849 = vmatprep.subr.mxu0 %v8611
        %8850 = vmatpush2.msra.mxu0 %v8610
        %8851 = vmatprep.subr.mxu0 %v8609
        %8852 = vmatpush2.msra.mxu0 %v8608
        %8853 = vmatprep.subr.mxu0 %v8607
        %8854 = vmatpush2.msra.mxu0 %v8606
        %8855 = vmatprep.mubr.f32.mxu0 %v8535
        %8856 = vmatmul.mubr.f32.gmra.mxu0 %v8534
        %v8857 = vpop.f32.mrf.mxu0
        %v8858 = vadd.f32 %v8729, %v8857
        %v8859 = vpop.f32.mrf.mxu0
        %v8860 = vadd.f32 %v8729, %v8859
        %8861 = vmatprep.mubr.f32.mxu0 %v8540
        %8862 = vmatmul.mubr.f32.gmra.mxu0 %v8539
        %v8863 = vpop.f32.mrf.mxu0
        %v8864 = vadd.f32 %v8734, %v8863
        %v8865 = vpop.f32.mrf.mxu0
        %v8866 = vadd.f32 %v8734, %v8865
        %8867 = vmatprep.mubr.f32.mxu0 %v8545
        %8868 = vmatmul.mubr.f32.gmra.mxu0 %v8544
        %v8869 = vpop.f32.mrf.mxu0
        %v8870 = vadd.f32 %v8739, %v8869
        %v8871 = vpop.f32.mrf.mxu0
        %v8872 = vadd.f32 %v8739, %v8871
        %8873 = vmatprep.mubr.f32.mxu0 %v8550
        %8874 = vmatmul.mubr.f32.gmra.mxu0 %v8549
        %v8875 = vpop.f32.mrf.mxu0
        %v8876 = vadd.f32 %v8744, %v8875
        %v8877 = vpop.f32.mrf.mxu0
        %v8878 = vadd.f32 %v8744, %v8877
        %8879 = vmatprep.mubr.f32.mxu0 %v8555
        %8880 = vmatmul.mubr.f32.gmra.mxu0 %v8554
        %v8881 = vpop.f32.mrf.mxu0
        %v8882 = vadd.f32 %v8749, %v8881
        %v8883 = vpop.f32.mrf.mxu0
        %v8884 = vadd.f32 %v8749, %v8883
        %8885 = vmatprep.mubr.f32.mxu0 %v8560
        %8886 = vmatmul.mubr.f32.gmra.mxu0 %v8559
        %v8887 = vpop.f32.mrf.mxu0
        %v8888 = vadd.f32 %v8754, %v8887
        %v8889 = vpop.f32.mrf.mxu0
        %v8890 = vadd.f32 %v8754, %v8889
        %8891 = vmatprep.mubr.f32.mxu0 %v8565
        %8892 = vmatmul.mubr.f32.gmra.mxu0 %v8564
        %v8893 = vpop.f32.mrf.mxu0
        %v8894 = vadd.f32 %v8759, %v8893
        %v8895 = vpop.f32.mrf.mxu0
        %v8896 = vadd.f32 %v8759, %v8895
        %8897 = vmatprep.mubr.f32.mxu0 %v8570
        %8898 = vmatmul.mubr.f32.gmra.mxu0 %v8569
        %v8899 = vpop.f32.mrf.mxu0
        %v8900 = vadd.f32 %v8764, %v8899
        %v8901 = vpop.f32.mrf.mxu0
        %v8902 = vadd.f32 %v8764, %v8901
        %8903 = vdwg.mxu0
        %8904 = vmatprep.subr.mxu0 %v8669
        %8905 = vmatpush1.msra.mxu0 %v8668
        %8906 = vmatprep.subr.mxu0 %v8667
        %8907 = vmatpush1.msra.mxu0 %v8666
        %8908 = vmatprep.subr.mxu0 %v8665
        %8909 = vmatpush1.msra.mxu0 %v8664
        %8910 = vmatprep.subr.mxu0 %v8663
        %8911 = vmatpush1.msra.mxu0 %v8662
        %8912 = vmatprep.subr.mxu0 %v8661
        %8913 = vmatpush1.msra.mxu0 %v8660
        %8914 = vmatprep.subr.mxu0 %v8659
        %8915 = vmatpush1.msra.mxu0 %v8658
        %8916 = vmatprep.subr.mxu0 %v8657
        %8917 = vmatpush1.msra.mxu0 %v8656
        %8918 = vmatprep.subr.mxu0 %v8655
        %8919 = vmatpush1.msra.mxu0 %v8654
        %8920 = vmatprep.subr.mxu0 %v8653
        %8921 = vmatpush1.msra.mxu0 %v8652
        %8922 = vmatprep.subr.mxu0 %v8651
        %8923 = vmatpush1.msra.mxu0 %v8650
        %8924 = vmatprep.subr.mxu0 %v8649
        %8925 = vmatpush1.msra.mxu0 %v8648
        %8926 = vmatprep.subr.mxu0 %v8647
        %8927 = vmatpush1.msra.mxu0 %v8646
        %8928 = vmatprep.subr.mxu0 %v8645
        %8929 = vmatpush1.msra.mxu0 %v8644
        %8930 = vmatprep.subr.mxu0 %v8643
        %8931 = vmatpush1.msra.mxu0 %v8642
        %8932 = vmatprep.subr.mxu0 %v8641
        %8933 = vmatpush1.msra.mxu0 %v8640
        %8934 = vmatprep.subr.mxu0 %v8639
        %8935 = vmatpush1.msra.mxu0 %v8638
        %8936 = vmatprep.subr.mxu0 %v8701
        %8937 = vmatpush2.msra.mxu0 %v8700
        %8938 = vmatprep.subr.mxu0 %v8699
        %8939 = vmatpush2.msra.mxu0 %v8698
        %8940 = vmatprep.subr.mxu0 %v8697
        %8941 = vmatpush2.msra.mxu0 %v8696
        %8942 = vmatprep.subr.mxu0 %v8695
        %8943 = vmatpush2.msra.mxu0 %v8694
        %8944 = vmatprep.subr.mxu0 %v8693
        %8945 = vmatpush2.msra.mxu0 %v8692
        %8946 = vmatprep.subr.mxu0 %v8691
        %8947 = vmatpush2.msra.mxu0 %v8690
        %8948 = vmatprep.subr.mxu0 %v8689
        %8949 = vmatpush2.msra.mxu0 %v8688
        %8950 = vmatprep.subr.mxu0 %v8687
        %8951 = vmatpush2.msra.mxu0 %v8686
        %8952 = vmatprep.subr.mxu0 %v8685
        %8953 = vmatpush2.msra.mxu0 %v8684
        %8954 = vmatprep.subr.mxu0 %v8683
        %8955 = vmatpush2.msra.mxu0 %v8682
        %8956 = vmatprep.subr.mxu0 %v8681
        %8957 = vmatpush2.msra.mxu0 %v8680
        %8958 = vmatprep.subr.mxu0 %v8679
        %8959 = vmatpush2.msra.mxu0 %v8678
        %8960 = vmatprep.subr.mxu0 %v8677
        %8961 = vmatpush2.msra.mxu0 %v8676
        %8962 = vmatprep.subr.mxu0 %v8675
        %8963 = vmatpush2.msra.mxu0 %v8674
        %8964 = vmatprep.subr.mxu0 %v8673
        %8965 = vmatpush2.msra.mxu0 %v8672
        %8966 = vmatprep.subr.mxu0 %v8671
        %8967 = vmatpush2.msra.mxu0 %v8670
        %8968 = vmatprep.mubr.f32.mxu0 %v8537
        %8969 = vmatmul.mubr.f32.gmra.mxu0 %v8536
        %v8970 = vpop.f32.mrf.mxu0
        %v8971 = vadd.f32 %v8858, %v8970
        %v8972 = vpop.f32.mrf.mxu0
        %v8973 = vadd.f32 %v8860, %v8972
        %8974 = vmatprep.mubr.f32.mxu0 %v8542
        %8975 = vmatmul.mubr.f32.gmra.mxu0 %v8541
        %v8976 = vpop.f32.mrf.mxu0
        %v8977 = vadd.f32 %v8864, %v8976
        %v8978 = vpop.f32.mrf.mxu0
        %v8979 = vadd.f32 %v8866, %v8978
        %8980 = vmatprep.mubr.f32.mxu0 %v8547
        %8981 = vmatmul.mubr.f32.gmra.mxu0 %v8546
        %v8982 = vpop.f32.mrf.mxu0
        %v8983 = vadd.f32 %v8870, %v8982
        %v8984 = vpop.f32.mrf.mxu0
        %v8985 = vadd.f32 %v8872, %v8984
        %8986 = vmatprep.mubr.f32.mxu0 %v8552
        %8987 = vmatmul.mubr.f32.gmra.mxu0 %v8551
        %v8988 = vpop.f32.mrf.mxu0
        %v8989 = vadd.f32 %v8876, %v8988
        %v8990 = vpop.f32.mrf.mxu0
        %v8991 = vadd.f32 %v8878, %v8990
        %8992 = vmatprep.mubr.f32.mxu0 %v8557
        %8993 = vmatmul.mubr.f32.gmra.mxu0 %v8556
        %v8994 = vpop.f32.mrf.mxu0
        %v8995 = vadd.f32 %v8882, %v8994
        %v8996 = vpop.f32.mrf.mxu0
        %v8997 = vadd.f32 %v8884, %v8996
        %8998 = vmatprep.mubr.f32.mxu0 %v8562
        %8999 = vmatmul.mubr.f32.gmra.mxu0 %v8561
        %v9000 = vpop.f32.mrf.mxu0
        %v9001 = vadd.f32 %v8888, %v9000
        %v9002 = vpop.f32.mrf.mxu0
        %v9003 = vadd.f32 %v8890, %v9002
        %9004 = vmatprep.mubr.f32.mxu0 %v8567
        %9005 = vmatmul.mubr.f32.gmra.mxu0 %v8566
        %v9006 = vpop.f32.mrf.mxu0
        %v9007 = vadd.f32 %v8894, %v9006
        %v9008 = vpop.f32.mrf.mxu0
        %v9009 = vadd.f32 %v8896, %v9008
        %9010 = vmatprep.mubr.f32.mxu0 %v8572
        %9011 = vmatmul.mubr.f32.gmra.mxu0 %v8571
        %v9012 = vpop.f32.mrf.mxu0
        %v9013 = vadd.f32 %v8900, %v9012
        %v9014 = vpop.f32.mrf.mxu0
        %v9015 = vadd.f32 %v8902, %v9014
        %9016 = vdwg.mxu0
        %9017 = vmatprep.subr.mxu0 0.0
        %9018 = vmatpush1.msra.mxu0 0.0
        %9019 = vmatprep.subr.mxu0 0.0
        %9020 = vmatpush1.msra.mxu0 0.0
        %9021 = vmatprep.subr.mxu0 0.0
        %9022 = vmatpush1.msra.mxu0 0.0
        %9023 = vmatprep.subr.mxu0 0.0
        %9024 = vmatpush1.msra.mxu0 0.0
        %9025 = vmatprep.subr.mxu0 0.0
        %9026 = vmatpush1.msra.mxu0 0.0
        %9027 = vmatprep.subr.mxu0 0.0
        %9028 = vmatpush1.msra.mxu0 0.0
        %9029 = vmatprep.subr.mxu0 0.0
        %9030 = vmatpush1.msra.mxu0 0.0
        %9031 = vmatprep.subr.mxu0 0.0
        %9032 = vmatpush1.msra.mxu0 0.0
        %9033 = vmatprep.subr.mxu0 %v8717
        %9034 = vmatpush1.msra.mxu0 %v8716
        %9035 = vmatprep.subr.mxu0 %v8715
        %9036 = vmatpush1.msra.mxu0 %v8714
        %9037 = vmatprep.subr.mxu0 %v8713
        %9038 = vmatpush1.msra.mxu0 %v8712
        %9039 = vmatprep.subr.mxu0 %v8711
        %9040 = vmatpush1.msra.mxu0 %v8710
        %9041 = vmatprep.subr.mxu0 %v8709
        %9042 = vmatpush1.msra.mxu0 %v8708
        %9043 = vmatprep.subr.mxu0 %v8707
        %9044 = vmatpush1.msra.mxu0 %v8706
        %9045 = vmatprep.subr.mxu0 %v8705
        %9046 = vmatpush1.msra.mxu0 %v8704
        %9047 = vmatprep.subr.mxu0 %v8703
        %9048 = vmatpush1.msra.mxu0 %v8702
        %9049 = vmatprep.subr.mxu0 0.0
        %9050 = vmatpush2.msra.mxu0 0.0
        %9051 = vmatprep.subr.mxu0 0.0
        %9052 = vmatpush2.msra.mxu0 0.0
        %9053 = vmatprep.subr.mxu0 0.0
        %9054 = vmatpush2.msra.mxu0 0.0
        %9055 = vmatprep.subr.mxu0 0.0
        %9056 = vmatpush2.msra.mxu0 0.0
        %9057 = vmatprep.subr.mxu0 0.0
        %9058 = vmatpush2.msra.mxu0 0.0
        %9059 = vmatprep.subr.mxu0 0.0
        %9060 = vmatpush2.msra.mxu0 0.0
        %9061 = vmatprep.subr.mxu0 0.0
        %9062 = vmatpush2.msra.mxu0 0.0
        %9063 = vmatprep.subr.mxu0 0.0
        %9064 = vmatpush2.msra.mxu0 0.0
        %9065 = vmatprep.subr.mxu0 0.0
        %9066 = vmatpush2.msra.mxu0 0.0
        %9067 = vmatprep.subr.mxu0 0.0
        %9068 = vmatpush2.msra.mxu0 0.0
        %9069 = vmatprep.subr.mxu0 0.0
        %9070 = vmatpush2.msra.mxu0 0.0
        %9071 = vmatprep.subr.mxu0 0.0
        %9072 = vmatpush2.msra.mxu0 0.0
        %9073 = vmatprep.subr.mxu0 0.0
        %9074 = vmatpush2.msra.mxu0 0.0
        %9075 = vmatprep.subr.mxu0 0.0
        %9076 = vmatpush2.msra.mxu0 0.0
        %9077 = vmatprep.subr.mxu0 0.0
        %9078 = vmatpush2.msra.mxu0 0.0
        %9079 = vmatprep.subr.mxu0 0.0
        %9080 = vmatpush2.msra.mxu0 0.0
        %9081 = vmatprep.mubr.f32.mxu0 0.0
        %9082 = vmatmul.mubr.f32.gmra.mxu0 %v8768
        %v9083 = vpop.f32.mrf.mxu0
        %v9084 = vadd.f32 %v8971, %v9083
        %v9085 = vpop.f32.mrf.mxu0
        %v9086 = vadd.f32 %v8973, %v9085
        %9087 = vmatprep.mubr.f32.mxu0 0.0
        %9088 = vmatmul.mubr.f32.gmra.mxu0 %v8771
        %v9089 = vpop.f32.mrf.mxu0
        %v9090 = vadd.f32 %v8977, %v9089
        %v9091 = vpop.f32.mrf.mxu0
        %v9092 = vadd.f32 %v8979, %v9091
        %9093 = vmatprep.mubr.f32.mxu0 0.0
        %9094 = vmatmul.mubr.f32.gmra.mxu0 %v8774
        %v9095 = vpop.f32.mrf.mxu0
        %v9096 = vadd.f32 %v8983, %v9095
        %v9097 = vpop.f32.mrf.mxu0
        %v9098 = vadd.f32 %v8985, %v9097
        %9099 = vmatprep.mubr.f32.mxu0 0.0
        %9100 = vmatmul.mubr.f32.gmra.mxu0 %v8777
        %v9101 = vpop.f32.mrf.mxu0
        %v9102 = vadd.f32 %v8989, %v9101
        %v9103 = vpop.f32.mrf.mxu0
        %v9104 = vadd.f32 %v8991, %v9103
        %9105 = vmatprep.mubr.f32.mxu0 0.0
        %9106 = vmatmul.mubr.f32.gmra.mxu0 %v8780
        %v9107 = vpop.f32.mrf.mxu0
        %v9108 = vadd.f32 %v8995, %v9107
        %v9109 = vpop.f32.mrf.mxu0
        %v9110 = vadd.f32 %v8997, %v9109
        %9111 = vmatprep.mubr.f32.mxu0 0.0
        %9112 = vmatmul.mubr.f32.gmra.mxu0 %v8783
        %v9113 = vpop.f32.mrf.mxu0
        %v9114 = vadd.f32 %v9001, %v9113
        %v9115 = vpop.f32.mrf.mxu0
        %v9116 = vadd.f32 %v9003, %v9115
        %9117 = vmatprep.mubr.f32.mxu0 0.0
        %9118 = vmatmul.mubr.f32.gmra.mxu0 %v8786
        %v9119 = vpop.f32.mrf.mxu0
        %v9120 = vadd.f32 %v9007, %v9119
        %v9121 = vpop.f32.mrf.mxu0
        %v9122 = vadd.f32 %v9009, %v9121
        %9123 = vmatprep.mubr.f32.mxu0 0.0
        %9124 = vmatmul.mubr.f32.gmra.mxu0 %v8789
        %v9125 = vpop.f32.mrf.mxu0
        %v9126 = vadd.f32 %v9013, %v9125
        %v9127 = vpop.f32.mrf.mxu0
        %v9128 = vadd.f32 %v9015, %v9127
        %9129 = vdwg.mxu0
        %9130 = vst [vmem:[%s560] sm:$0xff] %v9084
        %9131 = vst.msk [vmem:[%s560 + $0x8] sm:$0xff] %vm7910, %v9086
        %9132 = vst [vmem:[%s560 + $0x10] sm:$0xff] %v9090
        %9133 = vst.msk [vmem:[%s560 + $0x18] sm:$0xff] %vm7910, %v9092
        %9134 = vst [vmem:[%s560 + $0x20] sm:$0xff] %v9096
        %9135 = vst.msk [vmem:[%s560 + $0x28] sm:$0xff] %vm7910, %v9098
        %9136 = vst [vmem:[%s560 + $0x30] sm:$0xff] %v9102
        %9137 = vst.msk [vmem:[%s560 + $0x38] sm:$0xff] %vm7910, %v9104
        %9138 = vst [vmem:[%s560 + $0x40] sm:$0xff] %v9108
        %9139 = vst.msk [vmem:[%s560 + $0x48] sm:$0xff] %vm7910, %v9110
        %9140 = vst [vmem:[%s560 + $0x50] sm:$0xff] %v9114
        %9141 = vst.msk [vmem:[%s560 + $0x58] sm:$0xff] %vm7910, %v9116
        %9142 = vst [vmem:[%s560 + $0x60] sm:$0xff] %v9120
        %9143 = vst.msk [vmem:[%s560 + $0x68] sm:$0xff] %vm7910, %v9122
        %9144 = vst [vmem:[%s560 + $0x70] sm:$0xff] %v9126
        %9145 = vst.msk [vmem:[%s560 + $0x78] sm:$0xff] %vm7910, %v9128
        %p9146 = scmp.lt.s32.totalorder %s29, 1
        %s9147 = scalar_select %p9146, %s29, 1
        %s9148 = smul.addr %s9147, 18
        %s9149 = smul.addr %s9148, 8
        %s9150 = scalar_lea.vmem %s13, %s9149
        %p9151 = scmp.lt.s32.totalorder %s29, 1
        %s9152 = scalar_select %p9151, %s29, 1
        %s9153 = smul.addr %s9152, 28
        %s9154 = smul.addr %s9153, 8
        %s9155 = scalar_lea.vmem %s14, %s9154
        %p9156 = scmp.lt.s32.totalorder %s29, 1
        %s9157 = scalar_select %p9156, %s29, 1
        %s9158 = smul.addr %s9157, 16
        %s9159 = smul.addr %s9158, 8
        %s9160 = scalar_lea.vmem %s15, %s9159
        // Predicated region
        $region85: #{encoder_forward.1} parent=71 // pred_check
          %p9161 = pneg %p325
        $region86: #{encoder_forward.1} parent=71 // pred_check_branch
          %9163 = sbr.rel (%p9161) target = $region88
        $region87: #{encoder_forward.1} parent=71 // pred_region
          _
        $region88: #{encoder_forward.1} parent=71 // pred_fallthru
          _
        // Predicated region
        $region89: #{encoder_forward.1} parent=71 // pred_check
          %p9164 = pneg %p351
        $region90: #{encoder_forward.1} parent=71 // pred_check_branch
          %9166 = sbr.rel (%p9164) target = $region92
        $region91: #{encoder_forward.1} parent=71 // pred_region
          _
        $region92: #{encoder_forward.1} parent=71 // pred_fallthru
          _
        // Predicated region
        $region93: #{encoder_forward.1} parent=71 // pred_check
          %p9167 = pneg %p377
        $region94: #{encoder_forward.1} parent=71 // pred_check_branch
          %9169 = sbr.rel (%p9167) target = $region96
        $region95: #{encoder_forward.1} parent=71 // pred_region
          _
        $region96: #{encoder_forward.1} parent=71 // pred_fallthru
          _
      $region72: #{encoder_forward.1} parent=5 // pred_fallthru
        _
      %p9170 = scmp.le.s32.totalorder 2, %s24
      // Predicated region
      $region97: #{encoder_forward.1} parent=5 // pred_check
        %p9171 = pneg %p9170
      $region98: #{encoder_forward.1} parent=5 // pred_check_branch
        %9173 = sbr.rel (%p9171) target = $region100
      $region99: #{encoder_forward.1} parent=5 // pred_region
        %s9174 = ssub.s32 %s24, 2
        // Predicated region
        $region101: #{encoder_forward.1} parent=99 // pred_check
          %p9175 = pneg %p331
        $region102: #{encoder_forward.1} parent=99 // pred_check_branch
          %9177 = sbr.rel (%p9175) target = $region104
        $region103: #{encoder_forward.1} parent=99 // pred_region
          %p9178 = scmp.lt.s32.totalorder %s30, 1
          %s9179 = scalar_select %p9178, %s30, 1
          %s9180 = smul.addr %s9179, 18
          %s9181 = smul.addr %s9180, 8
          %s9182 = scalar_lea.vmem %s13, %s9181
        $region104: #{encoder_forward.1} parent=99 // pred_fallthru
          _
        // Predicated region
        $region105: #{encoder_forward.1} parent=99 // pred_check
          %p9183 = pneg %p357
        $region106: #{encoder_forward.1} parent=99 // pred_check_branch
          %9185 = sbr.rel (%p9183) target = $region108
        $region107: #{encoder_forward.1} parent=99 // pred_region
          %p9186 = scmp.lt.s32.totalorder %s30, 1
          %s9187 = scalar_select %p9186, %s30, 1
          %s9188 = smul.addr %s9187, 28
          %s9189 = smul.addr %s9188, 8
          %s9190 = scalar_lea.vmem %s14, %s9189
        $region108: #{encoder_forward.1} parent=99 // pred_fallthru
          _
        // Predicated region
        $region109: #{encoder_forward.1} parent=99 // pred_check
          %p9191 = pneg %p383
        $region110: #{encoder_forward.1} parent=99 // pred_check_branch
          %9193 = sbr.rel (%p9191) target = $region112
        $region111: #{encoder_forward.1} parent=99 // pred_region
          %p9194 = scmp.lt.s32.totalorder %s30, 1
          %s9195 = scalar_select %p9194, %s30, 1
          %s9196 = smul.addr %s9195, 16
          %s9197 = smul.addr %s9196, 8
          %s9198 = scalar_lea.vmem %s15, %s9197
        $region112: #{encoder_forward.1} parent=99 // pred_fallthru
          _
      $region100: #{encoder_forward.1} parent=5 // pred_fallthru
        _
    $region6: #{encoder_forward.1} parent=1 // loop_footer
      %s28 = sadd.s32 1, %s24
    $region7: #{encoder_forward.1} parent=1 // loop_footer_branch
      %23 = sbr.rel target = $region3
    $region8: #{encoder_forward.1} parent=1 // loop_exit
      _
    %9199 = vsyncpa [#allocation4], 1
    %s9200 = scalar_lea.sflag [#allocation4], 1
    %9201 = vsyncpa %s9200, 1
    %9202 = vsyncpa [#allocation6], 1

</llo_original>
